<compile_context>
chip_gen: v5e
topology: v5e:2x2
jax: 0.10.0
libtpu: 0.0.40
codegen_flags: <defaults>
</compile_context>

<pallas_src>
import jax
import jax.numpy as jnp
import numpy as np
from jax.experimental import pallas as pl
from jax.experimental.pallas import tpu as pltpu


_MXU_DTYPE = jnp.bfloat16          # matmul operand dtype (accumulation stays f32)


# ---------------- activations (match PyTorch Hardswish / Hardsigmoid / ReLU) -------------
def _hardswish(x):
    return x * jnp.clip(x + 3.0, 0.0, 6.0) * (1.0 / 6.0)


def _hardsigmoid(x):
    return jnp.clip(x + 3.0, 0.0, 6.0) * (1.0 / 6.0)


def _apply_act(x, act):
    if act == "relu":
        return jnp.maximum(x, 0.0)
    if act == "hardswish":
        return _hardswish(x)
    return x


# ---------------- MobileNetV3-small (torchvision) architecture config --------------------
MBV3_SMALL = [
    # (cin, kernel, expanded, cout, use_se, activation, stride)
    (16, 3, 16, 16, True,  "relu", 2),
    (16, 3, 72, 24, False, "relu", 2),
    (24, 3, 88, 24, False, "relu", 1),
    (24, 5, 96, 40, True,  "hardswish", 2),
    (40, 5, 240, 40, True, "hardswish", 1),
    (40, 5, 240, 40, True, "hardswish", 1),
    (40, 5, 120, 48, True, "hardswish", 1),
    (48, 5, 144, 48, True, "hardswish", 1),
    (48, 5, 288, 96, True, "hardswish", 2),
    (96, 5, 576, 96, True, "hardswish", 1),
    (96, 5, 576, 96, True, "hardswish", 1),
]


def _make_divisible(v, divisor=8):
    new_v = max(divisor, int(v + divisor / 2) // divisor * divisor)
    if new_v < 0.9 * v:
        new_v += divisor
    return new_v


def _bn_params(c):
    # eval-mode BatchNorm folded to affine: gamma=1, beta=0, mean=0, var=1, eps=1e-3.
    eps = 1e-3
    scale = jnp.full((c,), 1.0 / (1.0 + eps) ** 0.5, jnp.float32)
    shift = jnp.zeros((c,), jnp.float32)
    return scale, shift


def init_params(key):
    def conv_w(k, kh, cin, cout):
        std = (2.0 / (kh * kh * cin)) ** 0.5
        return jax.random.normal(k, (kh, kh, cin, cout), jnp.float32) * std

    def dense_w(k, cin, cout):
        std = (2.0 / cin) ** 0.5
        return jax.random.normal(k, (cin, cout), jnp.float32) * std

    def dw_w(k, kh, c):
        std = (2.0 / (kh * kh)) ** 0.5
        return jax.random.normal(k, (kh, kh, c), jnp.float32) * std

    keys = iter(jax.random.split(key, 128))
    params = {"stem": {"w": conv_w(next(keys), 3, 3, 16), "bn": _bn_params(16)}}
    blocks = []
    for (cin, kk, exp, cout, use_se, act, stride) in MBV3_SMALL:
        p = {}
        if exp != cin:
            p["expand_w"] = dense_w(next(keys), cin, exp)
            p["expand_bn"] = _bn_params(exp)
        p["dw_w"] = dw_w(next(keys), kk, exp)
        p["dw_bn"] = _bn_params(exp)
        if use_se:
            sq = _make_divisible(exp // 4, 8)
            p["se_w1"] = dense_w(next(keys), exp, sq)
            p["se_b1"] = jnp.zeros((sq,), jnp.float32)
            p["se_w2"] = dense_w(next(keys), sq, exp)
            p["se_b2"] = jnp.zeros((exp,), jnp.float32)
        p["project_w"] = dense_w(next(keys), exp, cout)
        p["project_bn"] = _bn_params(cout)
        blocks.append(p)
    params["blocks"] = blocks
    params["last"] = {"w": dense_w(next(keys), 96, 576), "bn": _bn_params(576)}
    params["fc_w"] = dense_w(next(keys), 576, 1)   # nn.Linear(576, 1), bias=True
    params["fc_b"] = jnp.zeros((1,), jnp.float32)
    return params


# ---------------- depthwise helpers (static / host side) ----------------------------------
def _dw_out(h, w, kk, stride):
    pad = (kk - 1) // 2
    ho = (h + 2 * pad - kk) // stride + 1
    wo = (w + 2 * pad - kk) // stride + 1
    return ho, wo, pad


def _active_taps(h, w, kk, stride, pad):
    ho = (h + 2 * pad - kk) // stride + 1
    wo = (w + 2 * pad - kk) // stride + 1
    taps = []
    for i in range(kk):
        rows_ok = any(0 <= stride * oh + i - pad < h for oh in range(ho))
        for j in range(kk):
            cols_ok = any(0 <= stride * ow + j - pad < w for ow in range(wo))
            if rows_ok and cols_ok:
                taps.append((i, j))
    return taps


def _gather_matrix(h, w, kk, stride, pad, taps, B):
    """0/1 matrix (T*B*ho*wo, B*h*w): row (t,b,oh,ow) selects input pixel
    (b, stride*oh+i-pad, stride*ow+j-pad) when in-bounds; zero row == conv zero-padding."""
    ho = (h + 2 * pad - kk) // stride + 1
    wo = (w + 2 * pad - kk) // stride + 1
    T = len(taps)
    G = np.zeros((T * B * ho * wo, B * h * w), np.float32)
    for t, (i, j) in enumerate(taps):
        for b in range(B):
            for oh in range(ho):
                hi = stride * oh + i - pad
                if not (0 <= hi < h):
                    continue
                for ow in range(wo):
                    wi = stride * ow + j - pad
                    if not (0 <= wi < w):
                        continue
                    G[t * B * ho * wo + b * ho * wo + oh * wo + ow,
                      b * h * w + hi * w + wi] = 1.0
    return jnp.asarray(G)


# ---------------- host-side weight prep: fold BN, build gather matrices, pack slabs -------
def _build_stream(params, B, h0, w0):
    """All weights in kernel-consumption order. kind 'w' -> bf16 slab, 'f' -> f32 slab."""
    stream = []

    def add_dense(wmat, bias):
        stream.append((wmat, "w"))
        stream.append((bias.reshape(1, -1), "f"))

    # stem: Conv2d(3,16,3,s=2,p=1)+BN folded; K padded 27 -> 32 (lane-friendly patches)
    s_, t_ = params["stem"]["bn"]
    wstem = params["stem"]["w"].reshape(27, 16) * s_[None, :]
    wstem = jnp.concatenate([wstem, jnp.zeros((5, 16), jnp.float32)], axis=0)
    add_dense(wstem, t_)

    h, w = h0, w0
    for (cin, kk, exp, cout, use_se, act, stride), p in zip(MBV3_SMALL, params["blocks"]):
        if exp != cin:
            s_, t_ = p["expand_bn"]
            add_dense(p["expand_w"] * s_[None, :], t_)
        s_, t_ = p["dw_bn"]
        dw_all = p["dw_w"].reshape(kk * kk, exp) * s_[None, :]
        ho, wo, pad = _dw_out(h, w, kk, stride)
        if h == 1 and w == 1:
            c = pad * kk + pad                                   # only the center tap hits
            stream.append((dw_all[c:c + 1, :], "f"))
        else:
            taps = _active_taps(h, w, kk, stride, pad)
            stream.append((_gather_matrix(h, w, kk, stride, pad, taps, B), "w"))
            stream.append((jnp.concatenate(
                [dw_all[i * kk + j:i * kk + j + 1, :] for (i, j) in taps], axis=0), "f"))
        stream.append((t_.reshape(1, exp), "f"))
        if use_se:
            add_dense(p["se_w1"], p["se_b1"])
            add_dense(p["se_w2"], p["se_b2"])
        s_, t_ = p["project_bn"]
        add_dense(p["project_w"] * s_[None, :], t_)
        h, w = ho, wo

    s_, t_ = params["last"]["bn"]
    add_dense(params["last"]["w"] * s_[None, :], t_)
    add_dense(params["fc_w"], params["fc_b"])
    return stream


def _lane_bucket(n):
    if n <= 128:
        return 128
    if n <= 256:
        return 256
    return 576


def _pack_stream(stream):
    """Consolidate ~92 weights into a few (dtype, lane-width) slabs with tile-aligned rows."""
    order, chunks, cursor = [], {}, {}
    meta = []                                         # (slab_key, row_off, K, N)
    for arr, kind in stream:
        K, N = arr.shape
        key = (kind, _lane_bucket(N))
        if key not in chunks:
            order.append(key)
            chunks[key], cursor[key] = [], 0
        align = 16 if kind == "w" else 8              # bf16 tile = (16,128), f32 = (8,128)
        Kp = -(-K // align) * align
        chunks[key].append(jnp.pad(arr.astype(jnp.float32),
                                   ((0, Kp - K), (0, key[1] - N))))
        meta.append((key, cursor[key], K, N))
        cursor[key] += Kp
    slabs, key_idx = [], {}
    for i, key in enumerate(order):
        key_idx[key] = i
        slab = jnp.concatenate(chunks[key], axis=0)
        slabs.append(slab.astype(_MXU_DTYPE) if key[0] == "w" else slab)
    meta = [(key_idx[k], off, K, N) for (k, off, K, N) in meta]
    return slabs, meta


# ---------------- the single fused Pallas kernel ------------------------------------------
def _make_kernel(meta, B, h0, w0, n_slabs, out_rows):
    """One grid step == B images; all activations stay in VMEM / vregs."""

    def kernel(patches_ref, *rest):
        slab_refs = rest[:n_slabs]
        out_ref = rest[n_slabs]
        it = iter(meta)

        def next_w():
            sid, off, K, N = next(it)
            return slab_refs[sid][off:off + K, 0:N]

        def dense(x, act):
            wmat = next_w()                            # bf16 weight (BN folded)
            bias = next_w()                            # f32 bias row
            y = jnp.dot(x.astype(_MXU_DTYPE), wmat,
                        preferred_element_type=jnp.float32) + bias
            return _apply_act(y, act)

        def seg_mean(x, hw):                           # per-image mean over hw rows
            if hw == 1:
                return x
            return jnp.concatenate(
                [jnp.mean(x[b * hw:(b + 1) * hw, :], axis=0, keepdims=True)
                 for b in range(B)], axis=0)

        # stem conv as matmul on pre-built im2col patches -> (B*h0*w0, 16)
        x = dense(patches_ref[0], "hardswish")
        h, w = h0, w0

        for (cin, kk, exp, cout, use_se, act, stride) in MBV3_SMALL:
            inp = x
            y = dense(x, act) if exp != cin else x                     # expand 1x1

            # ---- depthwise conv (+ folded BN + act): one gather matmul + per-tap FMAs ----
            ho, wo, pad = _dw_out(h, w, kk, stride)
            if h == 1 and w == 1:
                tap = next_w()                         # (1, exp) center tap, f32
                dwb = next_w()
                y = _apply_act(y * tap + dwb, act)
            else:
                G = next_w()                           # (T*B*ho*wo, B*h*w) 0/1 bf16
                tap_w = next_w()                       # (T, exp) f32
                dwb = next_w()                         # (1, exp) f32
                T = tap_w.shape[0]
                M = B * ho * wo
                P = jnp.dot(G, y.astype(_MXU_DTYPE),
                            preferred_element_type=jnp.float32)        # all taps/pixels/images
                acc = P[0:M, :] * tap_w[0:1, :]
                for t in range(1, T):
                    acc = acc + P[t * M:(t + 1) * M, :] * tap_w[t:t + 1, :]
                y = _apply_act(acc + dwb, act)
            h, w = ho, wo
            hw = h * w

            # ---- squeeze-excitation: per-image pool -> fc+ReLU -> fc+Hardsigmoid -> scale
            if use_se:
                w1 = next_w(); b1 = next_w()
                w2 = next_w(); b2 = next_w()
                pooled = seg_mean(y, hw)                                # (B, exp)
                z = jnp.maximum(jnp.dot(pooled.astype(_MXU_DTYPE), w1,
                                        preferred_element_type=jnp.float32) + b1, 0.0)
                sc = _hardsigmoid(jnp.dot(z.astype(_MXU_DTYPE), w2,
                                          preferred_element_type=jnp.float32) + b2)
                if hw == 1:
                    y = y * sc
                else:
                    y = y * jnp.concatenate(
                        [jnp.broadcast_to(sc[b:b + 1, :], (hw, exp)) for b in range(B)],
                        axis=0)

            # ---- project 1x1 (+ folded BN), residual when stride==1 and cin==cout --------
            y = dense(y, "none")
            if stride == 1 and cin == cout:
                y = y + inp
            x = y

        # final Conv2d(96,576,1)+BN+Hardswish, gl_pool('off'), Linear(576,1), Sigmoid
        x = dense(x, "hardswish")                                       # (B*h*w, 576)
        feat = seg_mean(x, h * w)                                       # (B, 576)
        d = jax.nn.sigmoid(dense(feat, "none"))                         # (B, 1)

        blk = jnp.broadcast_to(d, (B, 128))                             # lane-dense store
        if out_rows > B:
            blk = jnp.concatenate(
                [blk, jnp.zeros((out_rows - B, 128), jnp.float32)], axis=0)
        out_ref[...] = blk[None]

    return kernel


# ---------------- forward pass -------------------------------------------------------------
def discriminator_forward(params, x_nchw, imgs_per_step=None):
    x = jnp.transpose(x_nchw.astype(jnp.float32), (0, 2, 3, 1))   # NCHW -> NHWC
    n, hi, wi, _ = x.shape

    # stem im2col (k=3, s=2, p=1) on the raw input; K padded 27 -> 32.
    # TODO(synk): at real 128-256 px inputs this wrapper-side im2col inflates HBM ~9x;
    # fold it into the kernel (per-tap slices of the raw NHWC input) at that scale.
    xp = jnp.pad(x, ((0, 0), (1, 1), (1, 1), (0, 0)))
    h0 = (hi + 2 - 3) // 2 + 1
    w0 = (wi + 2 - 3) // 2 + 1
    sp = [xp[:, i:i + 2 * h0:2, j:j + 2 * w0:2, :] for i in range(3) for j in range(3)]
    patches = jnp.concatenate(sp, axis=-1).reshape(n, h0 * w0, 27)
    patches = jnp.pad(patches, ((0, 0), (0, 0), (0, 5)))           # K: 27 -> 32

    # batch folding: B images per grid step (B x larger matmul M); keep >= 2 grid steps
    # when possible so both v7x TensorCores are used (v5e/v6e: 1 TC, serial grid anyway).
    if imgs_per_step is None:
        imgs_per_step = min(8, max(1, n // 2)) if n >= 2 else 1
    B = int(imgs_per_step)
    n_steps = -(-n // B)
    n_pad = n_steps * B
    if n_pad != n:
        patches = jnp.pad(patches, ((0, n_pad - n), (0, 0), (0, 0)))
    patches = patches.reshape(n_steps, B * h0 * w0, 32)

    slabs, meta = _pack_stream(_build_stream(params, B, h0, w0))
    out_rows = ((B + 7) // 8) * 8

    # rough advisory cost estimate
    macs = h0 * w0 * 32 * 16
    h, w = h0, w0
    for (cin, kk, exp, cout, use_se, act, stride) in MBV3_SMALL:
        ho, wo, _ = _dw_out(h, w, kk, stride)
        if exp != cin:
            macs += h * w * cin * exp
        macs += ho * wo * kk * kk * exp
        if use_se:
            macs += 2 * exp * _make_divisible(exp // 4, 8)
        macs += ho * wo * exp * cout
        h, w = ho, wo
    macs += h * w * 96 * 576 + 576
    bytes_accessed = int(patches.size * 4
                         + sum(int(s.size) * s.dtype.itemsize for s in slabs)
                         + n_steps * out_rows * 128 * 4)
    cost = pl.CostEstimate(flops=int(2 * n_pad * macs), transcendentals=int(16 * n_pad),
                           bytes_accessed=bytes_accessed)

    in_specs = [pl.BlockSpec((1, B * h0 * w0, 32), lambda s: (s, 0, 0))]
    in_specs += [pl.BlockSpec(sl.shape, lambda s: (0, 0)) for sl in slabs]
    out_specs = pl.BlockSpec((1, out_rows, 128), lambda s: (s, 0, 0))

    out = pl.pallas_call(
        _make_kernel(meta, B, h0, w0, len(slabs), out_rows),
        grid=(n_steps,),                                  # batch-parallel across TCs on v7x
        in_specs=in_specs,
        out_specs=out_specs,
        out_shape=jax.ShapeDtypeStruct((n_steps, out_rows, 128), jnp.float32),
        compiler_params=pltpu.CompilerParams(
            dimension_semantics=("parallel",),
            vmem_limit_bytes=32 * 1024 * 1024),           # explicit budget (v7x: 64 MiB/TC)
        cost_estimate=cost,
    )(patches, *slabs)
    return out[:, :B, 0].reshape(n_pad, 1)[:n]            # (N, 1)


if __name__ == "__main__":
    key = jax.random.PRNGKey(0)
    pkey, xkey = jax.random.split(key)
    params = init_params(pkey)
    x = jax.random.normal(xkey, (8, 3, 16, 16), jnp.float32)   # NCHW, like the PyTorch module
    fwd = jax.jit(discriminator_forward)
    out = jax.block_until_ready(fwd(params, x))
    assert out.shape == (8, 1)
    assert bool(jnp.all(jnp.isfinite(out)))
    assert bool(jnp.all((out >= 0.0) & (out <= 1.0)))
    print("KERNEL_OK")
</pallas_src>

<mosaic_0001>
module attributes {stable_mosaic.version = 11 : i64} {
  func.func @kernel(%arg0: i32, %arg1: memref<1x256x32xf32, #tpu.memory_space<vmem>>, %arg2: memref<4752x128xbf16, #tpu.memory_space<vmem>>, %arg3: memref<320x128xf32, #tpu.memory_space<vmem>>, %arg4: memref<2048x256xbf16, #tpu.memory_space<vmem>>, %arg5: memref<112x256xf32, #tpu.memory_space<vmem>>, %arg6: memref<704x576xbf16, #tpu.memory_space<vmem>>, %arg7: memref<104x576xf32, #tpu.memory_space<vmem>>, %arg8: memref<1x8x128xf32, #tpu.memory_space<vmem>>) attributes {dimension_semantics = [#tpu.dimension_semantics<parallel>], iteration_bounds = array<i64: 2>, scalar_prefetch = 0 : i64, scratch_operands = 0 : i64, tpu.core_type = #tpu.core_type<tc>, window_params = [{transform_indices = @transform_0, window_bounds = array<i64: 1, 256, 32>}, {pipeline_mode = #tpu.pipeline_mode<synchronous>, transform_indices = @transform_1, window_bounds = array<i64: 4752, 128>}, {pipeline_mode = #tpu.pipeline_mode<synchronous>, transform_indices = @transform_2, window_bounds = array<i64: 320, 128>}, {pipeline_mode = #tpu.pipeline_mode<synchronous>, transform_indices = @transform_3, window_bounds = array<i64: 2048, 256>}, {pipeline_mode = #tpu.pipeline_mode<synchronous>, transform_indices = @transform_4, window_bounds = array<i64: 112, 256>}, {pipeline_mode = #tpu.pipeline_mode<synchronous>, transform_indices = @transform_5, window_bounds = array<i64: 704, 576>}, {pipeline_mode = #tpu.pipeline_mode<synchronous>, transform_indices = @transform_6, window_bounds = array<i64: 104, 576>}, {transform_indices = @transform_7, window_bounds = array<i64: 1, 8, 128>}]} {
    %c0 = arith.constant 0 : index
    %c0_0 = arith.constant 0 : index
    %c0_1 = arith.constant 0 : index
    %0 = vector.load %arg1[%c0, %c0_0, %c0_1] : memref<1x256x32xf32, #tpu.memory_space<vmem>>, vector<1x256x32xf32>
    %1 = vector.shape_cast %0 : vector<1x256x32xf32> to vector<256x32xf32>
    %c0_2 = arith.constant 0 : index
    %c0_3 = arith.constant 0 : index
    %2 = vector.load %arg2[%c0_2, %c0_3] : memref<4752x128xbf16, #tpu.memory_space<vmem>>, vector<32x16xbf16>
    %c0_4 = arith.constant 0 : index
    %c0_5 = arith.constant 0 : index
    %3 = vector.load %arg3[%c0_4, %c0_5] : memref<320x128xf32, #tpu.memory_space<vmem>>, vector<1x16xf32>
    %4 = arith.truncf %1 : vector<256x32xf32> to vector<256x32xbf16>
    %cst = arith.constant dense<0.000000e+00> : vector<256x16xf32>
    %5 = tpu.matmul %4, %2, %cst {dimension_numbers = #tpu.dot_dimension_numbers<[1], [0], [0], [1], [0, 0, 1, 1], [], []>} : vector<256x32xbf16>, vector<32x16xbf16>, vector<256x16xf32> -> vector<256x16xf32>
    %6 = vector.broadcast %3 : vector<1x16xf32> to vector<256x16xf32>
    %7 = arith.addf %5, %6 : vector<256x16xf32>
    %cst_6 = arith.constant 3.000000e+00 : f32
    %8 = vector.broadcast %cst_6 : f32 to vector<256x16xf32>
    %9 = arith.addf %7, %8 : vector<256x16xf32>
    %cst_7 = arith.constant 0.000000e+00 : f32
    %cst_8 = arith.constant 6.000000e+00 : f32
    %10 = vector.broadcast %cst_7 : f32 to vector<256x16xf32>
    %11 = arith.maximumf %10, %9 : vector<256x16xf32>
    %12 = vector.broadcast %cst_8 : f32 to vector<256x16xf32>
    %13 = arith.minimumf %12, %11 : vector<256x16xf32>
    %14 = arith.mulf %7, %13 : vector<256x16xf32>
    %cst_9 = arith.constant 0.166666672 : f32
    %15 = vector.broadcast %cst_9 : f32 to vector<256x16xf32>
    %16 = arith.mulf %14, %15 : vector<256x16xf32>
    %c0_10 = arith.constant 0 : index
    %c0_11 = arith.constant 0 : index
    %17 = vector.load %arg4[%c0_10, %c0_11] : memref<2048x256xbf16, #tpu.memory_space<vmem>>, vector<576x256xbf16>
    %c8 = arith.constant 8 : index
    %c0_12 = arith.constant 0 : index
    %18 = vector.load %arg3[%c8, %c0_12] : memref<320x128xf32, #tpu.memory_space<vmem>>, vector<9x16xf32>
    %c24 = arith.constant 24 : index
    %c0_13 = arith.constant 0 : index
    %19 = vector.load %arg3[%c24, %c0_13] : memref<320x128xf32, #tpu.memory_space<vmem>>, vector<1x16xf32>
    %20 = arith.truncf %16 : vector<256x16xf32> to vector<256x16xbf16>
    %cst_14 = arith.constant dense<0.000000e+00> : vector<576x16xf32>
    %21 = tpu.matmul %17, %20, %cst_14 {dimension_numbers = #tpu.dot_dimension_numbers<[1], [0], [0], [1], [0, 0, 1, 1], [], []>} : vector<576x256xbf16>, vector<256x16xbf16>, vector<576x16xf32> -> vector<576x16xf32>
    %22 = vector.extract_strided_slice %21 {offsets = [0, 0], sizes = [64, 16], strides = [1, 1]} : vector<576x16xf32> to vector<64x16xf32>
    %23 = vector.extract_strided_slice %18 {offsets = [0, 0], sizes = [1, 16], strides = [1, 1]} : vector<9x16xf32> to vector<1x16xf32>
    %24 = vector.broadcast %23 : vector<1x16xf32> to vector<64x16xf32>
    %25 = arith.mulf %22, %24 : vector<64x16xf32>
    %26 = vector.extract_strided_slice %21 {offsets = [64, 0], sizes = [64, 16], strides = [1, 1]} : vector<576x16xf32> to vector<64x16xf32>
    %27 = vector.extract_strided_slice %18 {offsets = [1, 0], sizes = [1, 16], strides = [1, 1]} : vector<9x16xf32> to vector<1x16xf32>
    %28 = vector.broadcast %27 : vector<1x16xf32> to vector<64x16xf32>
    %29 = arith.mulf %26, %28 : vector<64x16xf32>
    %30 = arith.addf %25, %29 : vector<64x16xf32>
    %31 = vector.extract_strided_slice %21 {offsets = [128, 0], sizes = [64, 16], strides = [1, 1]} : vector<576x16xf32> to vector<64x16xf32>
    %32 = vector.extract_strided_slice %18 {offsets = [2, 0], sizes = [1, 16], strides = [1, 1]} : vector<9x16xf32> to vector<1x16xf32>
    %33 = vector.broadcast %32 : vector<1x16xf32> to vector<64x16xf32>
    %34 = arith.mulf %31, %33 : vector<64x16xf32>
    %35 = arith.addf %30, %34 : vector<64x16xf32>
    %36 = vector.extract_strided_slice %21 {offsets = [192, 0], sizes = [64, 16], strides = [1, 1]} : vector<576x16xf32> to vector<64x16xf32>
    %37 = vector.extract_strided_slice %18 {offsets = [3, 0], sizes = [1, 16], strides = [1, 1]} : vector<9x16xf32> to vector<1x16xf32>
    %38 = vector.broadcast %37 : vector<1x16xf32> to vector<64x16xf32>
    %39 = arith.mulf %36, %38 : vector<64x16xf32>
    %40 = arith.addf %35, %39 : vector<64x16xf32>
    %41 = vector.extract_strided_slice %21 {offsets = [256, 0], sizes = [64, 16], strides = [1, 1]} : vector<576x16xf32> to vector<64x16xf32>
    %42 = vector.extract_strided_slice %18 {offsets = [4, 0], sizes = [1, 16], strides = [1, 1]} : vector<9x16xf32> to vector<1x16xf32>
    %43 = vector.broadcast %42 : vector<1x16xf32> to vector<64x16xf32>
    %44 = arith.mulf %41, %43 : vector<64x16xf32>
    %45 = arith.addf %40, %44 : vector<64x16xf32>
    %46 = vector.extract_strided_slice %21 {offsets = [320, 0], sizes = [64, 16], strides = [1, 1]} : vector<576x16xf32> to vector<64x16xf32>
    %47 = vector.extract_strided_slice %18 {offsets = [5, 0], sizes = [1, 16], strides = [1, 1]} : vector<9x16xf32> to vector<1x16xf32>
    %48 = vector.broadcast %47 : vector<1x16xf32> to vector<64x16xf32>
    %49 = arith.mulf %46, %48 : vector<64x16xf32>
    %50 = arith.addf %45, %49 : vector<64x16xf32>
    %51 = vector.extract_strided_slice %21 {offsets = [384, 0], sizes = [64, 16], strides = [1, 1]} : vector<576x16xf32> to vector<64x16xf32>
    %52 = vector.extract_strided_slice %18 {offsets = [6, 0], sizes = [1, 16], strides = [1, 1]} : vector<9x16xf32> to vector<1x16xf32>
    %53 = vector.broadcast %52 : vector<1x16xf32> to vector<64x16xf32>
    %54 = arith.mulf %51, %53 : vector<64x16xf32>
    %55 = arith.addf %50, %54 : vector<64x16xf32>
    %56 = vector.extract_strided_slice %21 {offsets = [448, 0], sizes = [64, 16], strides = [1, 1]} : vector<576x16xf32> to vector<64x16xf32>
    %57 = vector.extract_strided_slice %18 {offsets = [7, 0], sizes = [1, 16], strides = [1, 1]} : vector<9x16xf32> to vector<1x16xf32>
    %58 = vector.broadcast %57 : vector<1x16xf32> to vector<64x16xf32>
    %59 = arith.mulf %56, %58 : vector<64x16xf32>
    %60 = arith.addf %55, %59 : vector<64x16xf32>
    %61 = vector.extract_strided_slice %21 {offsets = [512, 0], sizes = [64, 16], strides = [1, 1]} : vector<576x16xf32> to vector<64x16xf32>
    %62 = vector.extract_strided_slice %18 {offsets = [8, 0], sizes = [1, 16], strides = [1, 1]} : vector<9x16xf32> to vector<1x16xf32>
    %63 = vector.broadcast %62 : vector<1x16xf32> to vector<64x16xf32>
    %64 = arith.mulf %61, %63 : vector<64x16xf32>
    %65 = arith.addf %60, %64 : vector<64x16xf32>
    %66 = vector.broadcast %19 : vector<1x16xf32> to vector<64x16xf32>
    %67 = arith.addf %65, %66 : vector<64x16xf32>
    %cst_15 = arith.constant 0.000000e+00 : f32
    %68 = vector.broadcast %cst_15 : f32 to vector<64x16xf32>
    %69 = arith.maximumf %67, %68 : vector<64x16xf32>
    %c32 = arith.constant 32 : index
    %c0_16 = arith.constant 0 : index
    %70 = vector.load %arg2[%c32, %c0_16] : memref<4752x128xbf16, #tpu.memory_space<vmem>>, vector<16x8xbf16>
    %c32_17 = arith.constant 32 : index
    %c0_18 = arith.constant 0 : index
    %71 = vector.load %arg3[%c32_17, %c0_18] : memref<320x128xf32, #tpu.memory_space<vmem>>, vector<1x8xf32>
    %c48 = arith.constant 48 : index
    %c0_19 = arith.constant 0 : index
    %72 = vector.load %arg2[%c48, %c0_19] : memref<4752x128xbf16, #tpu.memory_space<vmem>>, vector<8x16xbf16>
    %c40 = arith.constant 40 : index
    %c0_20 = arith.constant 0 : index
    %73 = vector.load %arg3[%c40, %c0_20] : memref<320x128xf32, #tpu.memory_space<vmem>>, vector<1x16xf32>
    %74 = vector.extract_strided_slice %69 {offsets = [0, 0], sizes = [16, 16], strides = [1, 1]} : vector<64x16xf32> to vector<16x16xf32>
    %cst_21 = arith.constant dense<0.000000e+00> : vector<16xf32>
    %75 = vector.multi_reduction <add>, %74, %cst_21 [0] : vector<16x16xf32> to vector<16xf32>
    %76 = vector.shape_cast %75 : vector<16xf32> to vector<1x16xf32>
    %cst_22 = arith.constant 1.600000e+01 : f32
    %77 = vector.broadcast %cst_22 : f32 to vector<1x16xf32>
    %78 = arith.divf %76, %77 : vector<1x16xf32>
    %79 = vector.extract_strided_slice %69 {offsets = [16, 0], sizes = [16, 16], strides = [1, 1]} : vector<64x16xf32> to vector<16x16xf32>
    %cst_23 = arith.constant dense<0.000000e+00> : vector<16xf32>
    %80 = vector.multi_reduction <add>, %79, %cst_23 [0] : vector<16x16xf32> to vector<16xf32>
    %81 = vector.shape_cast %80 : vector<16xf32> to vector<1x16xf32>
    %cst_24 = arith.constant 1.600000e+01 : f32
    %82 = vector.broadcast %cst_24 : f32 to vector<1x16xf32>
    %83 = arith.divf %81, %82 : vector<1x16xf32>
    %84 = vector.extract_strided_slice %69 {offsets = [32, 0], sizes = [16, 16], strides = [1, 1]} : vector<64x16xf32> to vector<16x16xf32>
    %cst_25 = arith.constant dense<0.000000e+00> : vector<16xf32>
    %85 = vector.multi_reduction <add>, %84, %cst_25 [0] : vector<16x16xf32> to vector<16xf32>
    %86 = vector.shape_cast %85 : vector<16xf32> to vector<1x16xf32>
    %cst_26 = arith.constant 1.600000e+01 : f32
    %87 = vector.broadcast %cst_26 : f32 to vector<1x16xf32>
    %88 = arith.divf %86, %87 : vector<1x16xf32>
    %89 = vector.extract_strided_slice %69 {offsets = [48, 0], sizes = [16, 16], strides = [1, 1]} : vector<64x16xf32> to vector<16x16xf32>
    %cst_27 = arith.constant dense<0.000000e+00> : vector<16xf32>
    %90 = vector.multi_reduction <add>, %89, %cst_27 [0] : vector<16x16xf32> to vector<16xf32>
    %91 = vector.shape_cast %90 : vector<16xf32> to vector<1x16xf32>
    %cst_28 = arith.constant 1.600000e+01 : f32
    %92 = vector.broadcast %cst_28 : f32 to vector<1x16xf32>
    %93 = arith.divf %91, %92 : vector<1x16xf32>
    %94 = tpu.concatenate %78, %83, %88, %93 in 0 : vector<1x16xf32>, vector<1x16xf32>, vector<1x16xf32>, vector<1x16xf32> -> vector<4x16xf32>
    %95 = arith.truncf %94 : vector<4x16xf32> to vector<4x16xbf16>
    %cst_29 = arith.constant dense<0.000000e+00> : vector<4x8xf32>
    %96 = tpu.matmul %95, %70, %cst_29 {dimension_numbers = #tpu.dot_dimension_numbers<[1], [0], [0], [1], [0, 0, 1, 1], [], []>} : vector<4x16xbf16>, vector<16x8xbf16>, vector<4x8xf32> -> vector<4x8xf32>
    %97 = vector.broadcast %71 : vector<1x8xf32> to vector<4x8xf32>
    %98 = arith.addf %96, %97 : vector<4x8xf32>
    %cst_30 = arith.constant 0.000000e+00 : f32
    %99 = vector.broadcast %cst_30 : f32 to vector<4x8xf32>
    %100 = arith.maximumf %98, %99 : vector<4x8xf32>
    %101 = arith.truncf %100 : vector<4x8xf32> to vector<4x8xbf16>
    %cst_31 = arith.constant dense<0.000000e+00> : vector<4x16xf32>
    %102 = tpu.matmul %101, %72, %cst_31 {dimension_numbers = #tpu.dot_dimension_numbers<[1], [0], [0], [1], [0, 0, 1, 1], [], []>} : vector<4x8xbf16>, vector<8x16xbf16>, vector<4x16xf32> -> vector<4x16xf32>
    %103 = vector.broadcast %73 : vector<1x16xf32> to vector<4x16xf32>
    %104 = arith.addf %102, %103 : vector<4x16xf32>
    %cst_32 = arith.constant 3.000000e+00 : f32
    %105 = vector.broadcast %cst_32 : f32 to vector<4x16xf32>
    %106 = arith.addf %104, %105 : vector<4x16xf32>
    %cst_33 = arith.constant 0.000000e+00 : f32
    %cst_34 = arith.constant 6.000000e+00 : f32
    %107 = vector.broadcast %cst_33 : f32 to vector<4x16xf32>
    %108 = arith.maximumf %107, %106 : vector<4x16xf32>
    %109 = vector.broadcast %cst_34 : f32 to vector<4x16xf32>
    %110 = arith.minimumf %109, %108 : vector<4x16xf32>
    %cst_35 = arith.constant 0.166666672 : f32
    %111 = vector.broadcast %cst_35 : f32 to vector<4x16xf32>
    %112 = arith.mulf %110, %111 : vector<4x16xf32>
    %113 = vector.extract_strided_slice %112 {offsets = [0, 0], sizes = [1, 16], strides = [1, 1]} : vector<4x16xf32> to vector<1x16xf32>
    %114 = vector.shape_cast %113 : vector<1x16xf32> to vector<1x16xf32>
    %115 = vector.broadcast %114 : vector<1x16xf32> to vector<16x16xf32>
    %116 = vector.extract_strided_slice %112 {offsets = [1, 0], sizes = [1, 16], strides = [1, 1]} : vector<4x16xf32> to vector<1x16xf32>
    %117 = vector.shape_cast %116 : vector<1x16xf32> to vector<1x16xf32>
    %118 = vector.broadcast %117 : vector<1x16xf32> to vector<16x16xf32>
    %119 = vector.extract_strided_slice %112 {offsets = [2, 0], sizes = [1, 16], strides = [1, 1]} : vector<4x16xf32> to vector<1x16xf32>
    %120 = vector.shape_cast %119 : vector<1x16xf32> to vector<1x16xf32>
    %121 = vector.broadcast %120 : vector<1x16xf32> to vector<16x16xf32>
    %122 = vector.extract_strided_slice %112 {offsets = [3, 0], sizes = [1, 16], strides = [1, 1]} : vector<4x16xf32> to vector<1x16xf32>
    %123 = vector.shape_cast %122 : vector<1x16xf32> to vector<1x16xf32>
    %124 = vector.broadcast %123 : vector<1x16xf32> to vector<16x16xf32>
    %125 = tpu.concatenate %115, %118, %121, %124 in 0 : vector<16x16xf32>, vector<16x16xf32>, vector<16x16xf32>, vector<16x16xf32> -> vector<64x16xf32>
    %126 = arith.mulf %69, %125 : vector<64x16xf32>
    %c64 = arith.constant 64 : index
    %c0_36 = arith.constant 0 : index
    %127 = vector.load %arg2[%c64, %c0_36] : memref<4752x128xbf16, #tpu.memory_space<vmem>>, vector<16x16xbf16>
    %c48_37 = arith.constant 48 : index
    %c0_38 = arith.constant 0 : index
    %128 = vector.load %arg3[%c48_37, %c0_38] : memref<320x128xf32, #tpu.memory_space<vmem>>, vector<1x16xf32>
    %129 = arith.truncf %126 : vector<64x16xf32> to vector<64x16xbf16>
    %cst_39 = arith.constant dense<0.000000e+00> : vector<64x16xf32>
    %130 = tpu.matmul %129, %127, %cst_39 {dimension_numbers = #tpu.dot_dimension_numbers<[1], [0], [0], [1], [0, 0, 1, 1], [], []>} : vector<64x16xbf16>, vector<16x16xbf16>, vector<64x16xf32> -> vector<64x16xf32>
    %131 = vector.broadcast %128 : vector<1x16xf32> to vector<64x16xf32>
    %132 = arith.addf %130, %131 : vector<64x16xf32>
    %c80 = arith.constant 80 : index
    %c0_40 = arith.constant 0 : index
    %133 = vector.load %arg2[%c80, %c0_40] : memref<4752x128xbf16, #tpu.memory_space<vmem>>, vector<16x72xbf16>
    %c56 = arith.constant 56 : index
    %c0_41 = arith.constant 0 : index
    %134 = vector.load %arg3[%c56, %c0_41] : memref<320x128xf32, #tpu.memory_space<vmem>>, vector<1x72xf32>
    %135 = arith.truncf %132 : vector<64x16xf32> to vector<64x16xbf16>
    %cst_42 = arith.constant dense<0.000000e+00> : vector<64x72xf32>
    %136 = tpu.matmul %135, %133, %cst_42 {dimension_numbers = #tpu.dot_dimension_numbers<[1], [0], [0], [1], [0, 0, 1, 1], [], []>} : vector<64x16xbf16>, vector<16x72xbf16>, vector<64x72xf32> -> vector<64x72xf32>
    %137 = vector.broadcast %134 : vector<1x72xf32> to vector<64x72xf32>
    %138 = arith.addf %136, %137 : vector<64x72xf32>
    %cst_43 = arith.constant 0.000000e+00 : f32
    %139 = vector.broadcast %cst_43 : f32 to vector<64x72xf32>
    %140 = arith.maximumf %138, %139 : vector<64x72xf32>
    %c96 = arith.constant 96 : index
    %c0_44 = arith.constant 0 : index
    %141 = vector.load %arg2[%c96, %c0_44] : memref<4752x128xbf16, #tpu.memory_space<vmem>>, vector<144x64xbf16>
    %c64_45 = arith.constant 64 : index
    %c0_46 = arith.constant 0 : index
    %142 = vector.load %arg3[%c64_45, %c0_46] : memref<320x128xf32, #tpu.memory_space<vmem>>, vector<9x72xf32>
    %c80_47 = arith.constant 80 : index
    %c0_48 = arith.constant 0 : index
    %143 = vector.load %arg3[%c80_47, %c0_48] : memref<320x128xf32, #tpu.memory_space<vmem>>, vector<1x72xf32>
    %144 = arith.truncf %140 : vector<64x72xf32> to vector<64x72xbf16>
    %cst_49 = arith.constant dense<0.000000e+00> : vector<144x72xf32>
    %145 = tpu.matmul %141, %144, %cst_49 {dimension_numbers = #tpu.dot_dimension_numbers<[1], [0], [0], [1], [0, 0, 1, 1], [], []>} : vector<144x64xbf16>, vector<64x72xbf16>, vector<144x72xf32> -> vector<144x72xf32>
    %146 = vector.extract_strided_slice %145 {offsets = [0, 0], sizes = [16, 72], strides = [1, 1]} : vector<144x72xf32> to vector<16x72xf32>
    %147 = vector.extract_strided_slice %142 {offsets = [0, 0], sizes = [1, 72], strides = [1, 1]} : vector<9x72xf32> to vector<1x72xf32>
    %148 = vector.broadcast %147 : vector<1x72xf32> to vector<16x72xf32>
    %149 = arith.mulf %146, %148 : vector<16x72xf32>
    %150 = vector.extract_strided_slice %145 {offsets = [16, 0], sizes = [16, 72], strides = [1, 1]} : vector<144x72xf32> to vector<16x72xf32>
    %151 = vector.extract_strided_slice %142 {offsets = [1, 0], sizes = [1, 72], strides = [1, 1]} : vector<9x72xf32> to vector<1x72xf32>
    %152 = vector.broadcast %151 : vector<1x72xf32> to vector<16x72xf32>
    %153 = arith.mulf %150, %152 : vector<16x72xf32>
    %154 = arith.addf %149, %153 : vector<16x72xf32>
    %155 = vector.extract_strided_slice %145 {offsets = [32, 0], sizes = [16, 72], strides = [1, 1]} : vector<144x72xf32> to vector<16x72xf32>
    %156 = vector.extract_strided_slice %142 {offsets = [2, 0], sizes = [1, 72], strides = [1, 1]} : vector<9x72xf32> to vector<1x72xf32>
    %157 = vector.broadcast %156 : vector<1x72xf32> to vector<16x72xf32>
    %158 = arith.mulf %155, %157 : vector<16x72xf32>
    %159 = arith.addf %154, %158 : vector<16x72xf32>
    %160 = vector.extract_strided_slice %145 {offsets = [48, 0], sizes = [16, 72], strides = [1, 1]} : vector<144x72xf32> to vector<16x72xf32>
    %161 = vector.extract_strided_slice %142 {offsets = [3, 0], sizes = [1, 72], strides = [1, 1]} : vector<9x72xf32> to vector<1x72xf32>
    %162 = vector.broadcast %161 : vector<1x72xf32> to vector<16x72xf32>
    %163 = arith.mulf %160, %162 : vector<16x72xf32>
    %164 = arith.addf %159, %163 : vector<16x72xf32>
    %165 = vector.extract_strided_slice %145 {offsets = [64, 0], sizes = [16, 72], strides = [1, 1]} : vector<144x72xf32> to vector<16x72xf32>
    %166 = vector.extract_strided_slice %142 {offsets = [4, 0], sizes = [1, 72], strides = [1, 1]} : vector<9x72xf32> to vector<1x72xf32>
    %167 = vector.broadcast %166 : vector<1x72xf32> to vector<16x72xf32>
    %168 = arith.mulf %165, %167 : vector<16x72xf32>
    %169 = arith.addf %164, %168 : vector<16x72xf32>
    %170 = vector.extract_strided_slice %145 {offsets = [80, 0], sizes = [16, 72], strides = [1, 1]} : vector<144x72xf32> to vector<16x72xf32>
    %171 = vector.extract_strided_slice %142 {offsets = [5, 0], sizes = [1, 72], strides = [1, 1]} : vector<9x72xf32> to vector<1x72xf32>
    %172 = vector.broadcast %171 : vector<1x72xf32> to vector<16x72xf32>
    %173 = arith.mulf %170, %172 : vector<16x72xf32>
    %174 = arith.addf %169, %173 : vector<16x72xf32>
    %175 = vector.extract_strided_slice %145 {offsets = [96, 0], sizes = [16, 72], strides = [1, 1]} : vector<144x72xf32> to vector<16x72xf32>
    %176 = vector.extract_strided_slice %142 {offsets = [6, 0], sizes = [1, 72], strides = [1, 1]} : vector<9x72xf32> to vector<1x72xf32>
    %177 = vector.broadcast %176 : vector<1x72xf32> to vector<16x72xf32>
    %178 = arith.mulf %175, %177 : vector<16x72xf32>
    %179 = arith.addf %174, %178 : vector<16x72xf32>
    %180 = vector.extract_strided_slice %145 {offsets = [112, 0], sizes = [16, 72], strides = [1, 1]} : vector<144x72xf32> to vector<16x72xf32>
    %181 = vector.extract_strided_slice %142 {offsets = [7, 0], sizes = [1, 72], strides = [1, 1]} : vector<9x72xf32> to vector<1x72xf32>
    %182 = vector.broadcast %181 : vector<1x72xf32> to vector<16x72xf32>
    %183 = arith.mulf %180, %182 : vector<16x72xf32>
    %184 = arith.addf %179, %183 : vector<16x72xf32>
    %185 = vector.extract_strided_slice %145 {offsets = [128, 0], sizes = [16, 72], strides = [1, 1]} : vector<144x72xf32> to vector<16x72xf32>
    %186 = vector.extract_strided_slice %142 {offsets = [8, 0], sizes = [1, 72], strides = [1, 1]} : vector<9x72xf32> to vector<1x72xf32>
    %187 = vector.broadcast %186 : vector<1x72xf32> to vector<16x72xf32>
    %188 = arith.mulf %185, %187 : vector<16x72xf32>
    %189 = arith.addf %184, %188 : vector<16x72xf32>
    %190 = vector.broadcast %143 : vector<1x72xf32> to vector<16x72xf32>
    %191 = arith.addf %189, %190 : vector<16x72xf32>
    %cst_50 = arith.constant 0.000000e+00 : f32
    %192 = vector.broadcast %cst_50 : f32 to vector<16x72xf32>
    %193 = arith.maximumf %191, %192 : vector<16x72xf32>
    %c240 = arith.constant 240 : index
    %c0_51 = arith.constant 0 : index
    %194 = vector.load %arg2[%c240, %c0_51] : memref<4752x128xbf16, #tpu.memory_space<vmem>>, vector<72x24xbf16>
    %c88 = arith.constant 88 : index
    %c0_52 = arith.constant 0 : index
    %195 = vector.load %arg3[%c88, %c0_52] : memref<320x128xf32, #tpu.memory_space<vmem>>, vector<1x24xf32>
    %196 = arith.truncf %193 : vector<16x72xf32> to vector<16x72xbf16>
    %cst_53 = arith.constant dense<0.000000e+00> : vector<16x24xf32>
    %197 = tpu.matmul %196, %194, %cst_53 {dimension_numbers = #tpu.dot_dimension_numbers<[1], [0], [0], [1], [0, 0, 1, 1], [], []>} : vector<16x72xbf16>, vector<72x24xbf16>, vector<16x24xf32> -> vector<16x24xf32>
    %198 = vector.broadcast %195 : vector<1x24xf32> to vector<16x24xf32>
    %199 = arith.addf %197, %198 : vector<16x24xf32>
    %c320 = arith.constant 320 : index
    %c0_54 = arith.constant 0 : index
    %200 = vector.load %arg2[%c320, %c0_54] : memref<4752x128xbf16, #tpu.memory_space<vmem>>, vector<24x88xbf16>
    %c96_55 = arith.constant 96 : index
    %c0_56 = arith.constant 0 : index
    %201 = vector.load %arg3[%c96_55, %c0_56] : memref<320x128xf32, #tpu.memory_space<vmem>>, vector<1x88xf32>
    %202 = arith.truncf %199 : vector<16x24xf32> to vector<16x24xbf16>
    %cst_57 = arith.constant dense<0.000000e+00> : vector<16x88xf32>
    %203 = tpu.matmul %202, %200, %cst_57 {dimension_numbers = #tpu.dot_dimension_numbers<[1], [0], [0], [1], [0, 0, 1, 1], [], []>} : vector<16x24xbf16>, vector<24x88xbf16>, vector<16x88xf32> -> vector<16x88xf32>
    %204 = vector.broadcast %201 : vector<1x88xf32> to vector<16x88xf32>
    %205 = arith.addf %203, %204 : vector<16x88xf32>
    %cst_58 = arith.constant 0.000000e+00 : f32
    %206 = vector.broadcast %cst_58 : f32 to vector<16x88xf32>
    %207 = arith.maximumf %205, %206 : vector<16x88xf32>
    %c352 = arith.constant 352 : index
    %c0_59 = arith.constant 0 : index
    %208 = vector.load %arg2[%c352, %c0_59] : memref<4752x128xbf16, #tpu.memory_space<vmem>>, vector<144x16xbf16>
    %c104 = arith.constant 104 : index
    %c0_60 = arith.constant 0 : index
    %209 = vector.load %arg3[%c104, %c0_60] : memref<320x128xf32, #tpu.memory_space<vmem>>, vector<9x88xf32>
    %c120 = arith.constant 120 : index
    %c0_61 = arith.constant 0 : index
    %210 = vector.load %arg3[%c120, %c0_61] : memref<320x128xf32, #tpu.memory_space<vmem>>, vector<1x88xf32>
    %211 = arith.truncf %207 : vector<16x88xf32> to vector<16x88xbf16>
    %cst_62 = arith.constant dense<0.000000e+00> : vector<144x88xf32>
    %212 = tpu.matmul %208, %211, %cst_62 {dimension_numbers = #tpu.dot_dimension_numbers<[1], [0], [0], [1], [0, 0, 1, 1], [], []>} : vector<144x16xbf16>, vector<16x88xbf16>, vector<144x88xf32> -> vector<144x88xf32>
    %213 = vector.extract_strided_slice %212 {offsets = [0, 0], sizes = [16, 88], strides = [1, 1]} : vector<144x88xf32> to vector<16x88xf32>
    %214 = vector.extract_strided_slice %209 {offsets = [0, 0], sizes = [1, 88], strides = [1, 1]} : vector<9x88xf32> to vector<1x88xf32>
    %215 = vector.broadcast %214 : vector<1x88xf32> to vector<16x88xf32>
    %216 = arith.mulf %213, %215 : vector<16x88xf32>
    %217 = vector.extract_strided_slice %212 {offsets = [16, 0], sizes = [16, 88], strides = [1, 1]} : vector<144x88xf32> to vector<16x88xf32>
    %218 = vector.extract_strided_slice %209 {offsets = [1, 0], sizes = [1, 88], strides = [1, 1]} : vector<9x88xf32> to vector<1x88xf32>
    %219 = vector.broadcast %218 : vector<1x88xf32> to vector<16x88xf32>
    %220 = arith.mulf %217, %219 : vector<16x88xf32>
    %221 = arith.addf %216, %220 : vector<16x88xf32>
    %222 = vector.extract_strided_slice %212 {offsets = [32, 0], sizes = [16, 88], strides = [1, 1]} : vector<144x88xf32> to vector<16x88xf32>
    %223 = vector.extract_strided_slice %209 {offsets = [2, 0], sizes = [1, 88], strides = [1, 1]} : vector<9x88xf32> to vector<1x88xf32>
    %224 = vector.broadcast %223 : vector<1x88xf32> to vector<16x88xf32>
    %225 = arith.mulf %222, %224 : vector<16x88xf32>
    %226 = arith.addf %221, %225 : vector<16x88xf32>
    %227 = vector.extract_strided_slice %212 {offsets = [48, 0], sizes = [16, 88], strides = [1, 1]} : vector<144x88xf32> to vector<16x88xf32>
    %228 = vector.extract_strided_slice %209 {offsets = [3, 0], sizes = [1, 88], strides = [1, 1]} : vector<9x88xf32> to vector<1x88xf32>
    %229 = vector.broadcast %228 : vector<1x88xf32> to vector<16x88xf32>
    %230 = arith.mulf %227, %229 : vector<16x88xf32>
    %231 = arith.addf %226, %230 : vector<16x88xf32>
    %232 = vector.extract_strided_slice %212 {offsets = [64, 0], sizes = [16, 88], strides = [1, 1]} : vector<144x88xf32> to vector<16x88xf32>
    %233 = vector.extract_strided_slice %209 {offsets = [4, 0], sizes = [1, 88], strides = [1, 1]} : vector<9x88xf32> to vector<1x88xf32>
    %234 = vector.broadcast %233 : vector<1x88xf32> to vector<16x88xf32>
    %235 = arith.mulf %232, %234 : vector<16x88xf32>
    %236 = arith.addf %231, %235 : vector<16x88xf32>
    %237 = vector.extract_strided_slice %212 {offsets = [80, 0], sizes = [16, 88], strides = [1, 1]} : vector<144x88xf32> to vector<16x88xf32>
    %238 = vector.extract_strided_slice %209 {offsets = [5, 0], sizes = [1, 88], strides = [1, 1]} : vector<9x88xf32> to vector<1x88xf32>
    %239 = vector.broadcast %238 : vector<1x88xf32> to vector<16x88xf32>
    %240 = arith.mulf %237, %239 : vector<16x88xf32>
    %241 = arith.addf %236, %240 : vector<16x88xf32>
    %242 = vector.extract_strided_slice %212 {offsets = [96, 0], sizes = [16, 88], strides = [1, 1]} : vector<144x88xf32> to vector<16x88xf32>
    %243 = vector.extract_strided_slice %209 {offsets = [6, 0], sizes = [1, 88], strides = [1, 1]} : vector<9x88xf32> to vector<1x88xf32>
    %244 = vector.broadcast %243 : vector<1x88xf32> to vector<16x88xf32>
    %245 = arith.mulf %242, %244 : vector<16x88xf32>
    %246 = arith.addf %241, %245 : vector<16x88xf32>
    %247 = vector.extract_strided_slice %212 {offsets = [112, 0], sizes = [16, 88], strides = [1, 1]} : vector<144x88xf32> to vector<16x88xf32>
    %248 = vector.extract_strided_slice %209 {offsets = [7, 0], sizes = [1, 88], strides = [1, 1]} : vector<9x88xf32> to vector<1x88xf32>
    %249 = vector.broadcast %248 : vector<1x88xf32> to vector<16x88xf32>
    %250 = arith.mulf %247, %249 : vector<16x88xf32>
    %251 = arith.addf %246, %250 : vector<16x88xf32>
    %252 = vector.extract_strided_slice %212 {offsets = [128, 0], sizes = [16, 88], strides = [1, 1]} : vector<144x88xf32> to vector<16x88xf32>
    %253 = vector.extract_strided_slice %209 {offsets = [8, 0], sizes = [1, 88], strides = [1, 1]} : vector<9x88xf32> to vector<1x88xf32>
    %254 = vector.broadcast %253 : vector<1x88xf32> to vector<16x88xf32>
    %255 = arith.mulf %252, %254 : vector<16x88xf32>
    %256 = arith.addf %251, %255 : vector<16x88xf32>
    %257 = vector.broadcast %210 : vector<1x88xf32> to vector<16x88xf32>
    %258 = arith.addf %256, %257 : vector<16x88xf32>
    %cst_63 = arith.constant 0.000000e+00 : f32
    %259 = vector.broadcast %cst_63 : f32 to vector<16x88xf32>
    %260 = arith.maximumf %258, %259 : vector<16x88xf32>
    %c496 = arith.constant 496 : index
    %c0_64 = arith.constant 0 : index
    %261 = vector.load %arg2[%c496, %c0_64] : memref<4752x128xbf16, #tpu.memory_space<vmem>>, vector<88x24xbf16>
    %c128 = arith.constant 128 : index
    %c0_65 = arith.constant 0 : index
    %262 = vector.load %arg3[%c128, %c0_65] : memref<320x128xf32, #tpu.memory_space<vmem>>, vector<1x24xf32>
    %263 = arith.truncf %260 : vector<16x88xf32> to vector<16x88xbf16>
    %cst_66 = arith.constant dense<0.000000e+00> : vector<16x24xf32>
    %264 = tpu.matmul %263, %261, %cst_66 {dimension_numbers = #tpu.dot_dimension_numbers<[1], [0], [0], [1], [0, 0, 1, 1], [], []>} : vector<16x88xbf16>, vector<88x24xbf16>, vector<16x24xf32> -> vector<16x24xf32>
    %265 = vector.broadcast %262 : vector<1x24xf32> to vector<16x24xf32>
    %266 = arith.addf %264, %265 : vector<16x24xf32>
    %267 = arith.addf %266, %199 : vector<16x24xf32>
    %c592 = arith.constant 592 : index
    %c0_67 = arith.constant 0 : index
    %268 = vector.load %arg2[%c592, %c0_67] : memref<4752x128xbf16, #tpu.memory_space<vmem>>, vector<24x96xbf16>
    %c136 = arith.constant 136 : index
    %c0_68 = arith.constant 0 : index
    %269 = vector.load %arg3[%c136, %c0_68] : memref<320x128xf32, #tpu.memory_space<vmem>>, vector<1x96xf32>
    %270 = arith.truncf %267 : vector<16x24xf32> to vector<16x24xbf16>
    %cst_69 = arith.constant dense<0.000000e+00> : vector<16x96xf32>
    %271 = tpu.matmul %270, %268, %cst_69 {dimension_numbers = #tpu.dot_dimension_numbers<[1], [0], [0], [1], [0, 0, 1, 1], [], []>} : vector<16x24xbf16>, vector<24x96xbf16>, vector<16x96xf32> -> vector<16x96xf32>
    %272 = vector.broadcast %269 : vector<1x96xf32> to vector<16x96xf32>
    %273 = arith.addf %271, %272 : vector<16x96xf32>
    %cst_70 = arith.constant 3.000000e+00 : f32
    %274 = vector.broadcast %cst_70 : f32 to vector<16x96xf32>
    %275 = arith.addf %273, %274 : vector<16x96xf32>
    %cst_71 = arith.constant 0.000000e+00 : f32
    %cst_72 = arith.constant 6.000000e+00 : f32
    %276 = vector.broadcast %cst_71 : f32 to vector<16x96xf32>
    %277 = arith.maximumf %276, %275 : vector<16x96xf32>
    %278 = vector.broadcast %cst_72 : f32 to vector<16x96xf32>
    %279 = arith.minimumf %278, %277 : vector<16x96xf32>
    %280 = arith.mulf %273, %279 : vector<16x96xf32>
    %cst_73 = arith.constant 0.166666672 : f32
    %281 = vector.broadcast %cst_73 : f32 to vector<16x96xf32>
    %282 = arith.mulf %280, %281 : vector<16x96xf32>
    %c624 = arith.constant 624 : index
    %c0_74 = arith.constant 0 : index
    %283 = vector.load %arg2[%c624, %c0_74] : memref<4752x128xbf16, #tpu.memory_space<vmem>>, vector<16x16xbf16>
    %c144 = arith.constant 144 : index
    %c0_75 = arith.constant 0 : index
    %284 = vector.load %arg3[%c144, %c0_75] : memref<320x128xf32, #tpu.memory_space<vmem>>, vector<4x96xf32>
    %c152 = arith.constant 152 : index
    %c0_76 = arith.constant 0 : index
    %285 = vector.load %arg3[%c152, %c0_76] : memref<320x128xf32, #tpu.memory_space<vmem>>, vector<1x96xf32>
    %286 = arith.truncf %282 : vector<16x96xf32> to vector<16x96xbf16>
    %cst_77 = arith.constant dense<0.000000e+00> : vector<16x96xf32>
    %287 = tpu.matmul %283, %286, %cst_77 {dimension_numbers = #tpu.dot_dimension_numbers<[1], [0], [0], [1], [0, 0, 1, 1], [], []>} : vector<16x16xbf16>, vector<16x96xbf16>, vector<16x96xf32> -> vector<16x96xf32>
    %288 = vector.extract_strided_slice %287 {offsets = [0, 0], sizes = [4, 96], strides = [1, 1]} : vector<16x96xf32> to vector<4x96xf32>
    %289 = vector.extract_strided_slice %284 {offsets = [0, 0], sizes = [1, 96], strides = [1, 1]} : vector<4x96xf32> to vector<1x96xf32>
    %290 = vector.broadcast %289 : vector<1x96xf32> to vector<4x96xf32>
    %291 = arith.mulf %288, %290 : vector<4x96xf32>
    %292 = vector.extract_strided_slice %287 {offsets = [4, 0], sizes = [4, 96], strides = [1, 1]} : vector<16x96xf32> to vector<4x96xf32>
    %293 = vector.extract_strided_slice %284 {offsets = [1, 0], sizes = [1, 96], strides = [1, 1]} : vector<4x96xf32> to vector<1x96xf32>
    %294 = vector.broadcast %293 : vector<1x96xf32> to vector<4x96xf32>
    %295 = arith.mulf %292, %294 : vector<4x96xf32>
    %296 = arith.addf %291, %295 : vector<4x96xf32>
    %297 = vector.extract_strided_slice %287 {offsets = [8, 0], sizes = [4, 96], strides = [1, 1]} : vector<16x96xf32> to vector<4x96xf32>
    %298 = vector.extract_strided_slice %284 {offsets = [2, 0], sizes = [1, 96], strides = [1, 1]} : vector<4x96xf32> to vector<1x96xf32>
    %299 = vector.broadcast %298 : vector<1x96xf32> to vector<4x96xf32>
    %300 = arith.mulf %297, %299 : vector<4x96xf32>
    %301 = arith.addf %296, %300 : vector<4x96xf32>
    %302 = vector.extract_strided_slice %287 {offsets = [12, 0], sizes = [4, 96], strides = [1, 1]} : vector<16x96xf32> to vector<4x96xf32>
    %303 = vector.extract_strided_slice %284 {offsets = [3, 0], sizes = [1, 96], strides = [1, 1]} : vector<4x96xf32> to vector<1x96xf32>
    %304 = vector.broadcast %303 : vector<1x96xf32> to vector<4x96xf32>
    %305 = arith.mulf %302, %304 : vector<4x96xf32>
    %306 = arith.addf %301, %305 : vector<4x96xf32>
    %307 = vector.broadcast %285 : vector<1x96xf32> to vector<4x96xf32>
    %308 = arith.addf %306, %307 : vector<4x96xf32>
    %cst_78 = arith.constant 3.000000e+00 : f32
    %309 = vector.broadcast %cst_78 : f32 to vector<4x96xf32>
    %310 = arith.addf %308, %309 : vector<4x96xf32>
    %cst_79 = arith.constant 0.000000e+00 : f32
    %cst_80 = arith.constant 6.000000e+00 : f32
    %311 = vector.broadcast %cst_79 : f32 to vector<4x96xf32>
    %312 = arith.maximumf %311, %310 : vector<4x96xf32>
    %313 = vector.broadcast %cst_80 : f32 to vector<4x96xf32>
    %314 = arith.minimumf %313, %312 : vector<4x96xf32>
    %315 = arith.mulf %308, %314 : vector<4x96xf32>
    %cst_81 = arith.constant 0.166666672 : f32
    %316 = vector.broadcast %cst_81 : f32 to vector<4x96xf32>
    %317 = arith.mulf %315, %316 : vector<4x96xf32>
    %c640 = arith.constant 640 : index
    %c0_82 = arith.constant 0 : index
    %318 = vector.load %arg2[%c640, %c0_82] : memref<4752x128xbf16, #tpu.memory_space<vmem>>, vector<96x24xbf16>
    %c160 = arith.constant 160 : index
    %c0_83 = arith.constant 0 : index
    %319 = vector.load %arg3[%c160, %c0_83] : memref<320x128xf32, #tpu.memory_space<vmem>>, vector<1x24xf32>
    %c736 = arith.constant 736 : index
    %c0_84 = arith.constant 0 : index
    %320 = vector.load %arg2[%c736, %c0_84] : memref<4752x128xbf16, #tpu.memory_space<vmem>>, vector<24x96xbf16>
    %c168 = arith.constant 168 : index
    %c0_85 = arith.constant 0 : index
    %321 = vector.load %arg3[%c168, %c0_85] : memref<320x128xf32, #tpu.memory_space<vmem>>, vector<1x96xf32>
    %322 = arith.truncf %317 : vector<4x96xf32> to vector<4x96xbf16>
    %cst_86 = arith.constant dense<0.000000e+00> : vector<4x24xf32>
    %323 = tpu.matmul %322, %318, %cst_86 {dimension_numbers = #tpu.dot_dimension_numbers<[1], [0], [0], [1], [0, 0, 1, 1], [], []>} : vector<4x96xbf16>, vector<96x24xbf16>, vector<4x24xf32> -> vector<4x24xf32>
    %324 = vector.broadcast %319 : vector<1x24xf32> to vector<4x24xf32>
    %325 = arith.addf %323, %324 : vector<4x24xf32>
    %cst_87 = arith.constant 0.000000e+00 : f32
    %326 = vector.broadcast %cst_87 : f32 to vector<4x24xf32>
    %327 = arith.maximumf %325, %326 : vector<4x24xf32>
    %328 = arith.truncf %327 : vector<4x24xf32> to vector<4x24xbf16>
    %cst_88 = arith.constant dense<0.000000e+00> : vector<4x96xf32>
    %329 = tpu.matmul %328, %320, %cst_88 {dimension_numbers = #tpu.dot_dimension_numbers<[1], [0], [0], [1], [0, 0, 1, 1], [], []>} : vector<4x24xbf16>, vector<24x96xbf16>, vector<4x96xf32> -> vector<4x96xf32>
    %330 = vector.broadcast %321 : vector<1x96xf32> to vector<4x96xf32>
    %331 = arith.addf %329, %330 : vector<4x96xf32>
    %cst_89 = arith.constant 3.000000e+00 : f32
    %332 = vector.broadcast %cst_89 : f32 to vector<4x96xf32>
    %333 = arith.addf %331, %332 : vector<4x96xf32>
    %cst_90 = arith.constant 0.000000e+00 : f32
    %cst_91 = arith.constant 6.000000e+00 : f32
    %334 = vector.broadcast %cst_90 : f32 to vector<4x96xf32>
    %335 = arith.maximumf %334, %333 : vector<4x96xf32>
    %336 = vector.broadcast %cst_91 : f32 to vector<4x96xf32>
    %337 = arith.minimumf %336, %335 : vector<4x96xf32>
    %cst_92 = arith.constant 0.166666672 : f32
    %338 = vector.broadcast %cst_92 : f32 to vector<4x96xf32>
    %339 = arith.mulf %337, %338 : vector<4x96xf32>
    %340 = arith.mulf %317, %339 : vector<4x96xf32>
    %c768 = arith.constant 768 : index
    %c0_93 = arith.constant 0 : index
    %341 = vector.load %arg2[%c768, %c0_93] : memref<4752x128xbf16, #tpu.memory_space<vmem>>, vector<96x40xbf16>
    %c176 = arith.constant 176 : index
    %c0_94 = arith.constant 0 : index
    %342 = vector.load %arg3[%c176, %c0_94] : memref<320x128xf32, #tpu.memory_space<vmem>>, vector<1x40xf32>
    %343 = arith.truncf %340 : vector<4x96xf32> to vector<4x96xbf16>
    %cst_95 = arith.constant dense<0.000000e+00> : vector<4x40xf32>
    %344 = tpu.matmul %343, %341, %cst_95 {dimension_numbers = #tpu.dot_dimension_numbers<[1], [0], [0], [1], [0, 0, 1, 1], [], []>} : vector<4x96xbf16>, vector<96x40xbf16>, vector<4x40xf32> -> vector<4x40xf32>
    %345 = vector.broadcast %342 : vector<1x40xf32> to vector<4x40xf32>
    %346 = arith.addf %344, %345 : vector<4x40xf32>
    %c576 = arith.constant 576 : index
    %c0_96 = arith.constant 0 : index
    %347 = vector.load %arg4[%c576, %c0_96] : memref<2048x256xbf16, #tpu.memory_space<vmem>>, vector<40x240xbf16>
    %c0_97 = arith.constant 0 : index
    %c0_98 = arith.constant 0 : index
    %348 = vector.load %arg5[%c0_97, %c0_98] : memref<112x256xf32, #tpu.memory_space<vmem>>, vector<1x240xf32>
    %349 = arith.truncf %346 : vector<4x40xf32> to vector<4x40xbf16>
    %cst_99 = arith.constant dense<0.000000e+00> : vector<4x240xf32>
    %350 = tpu.matmul %349, %347, %cst_99 {dimension_numbers = #tpu.dot_dimension_numbers<[1], [0], [0], [1], [0, 0, 1, 1], [], []>} : vector<4x40xbf16>, vector<40x240xbf16>, vector<4x240xf32> -> vector<4x240xf32>
    %351 = vector.broadcast %348 : vector<1x240xf32> to vector<4x240xf32>
    %352 = arith.addf %350, %351 : vector<4x240xf32>
    %cst_100 = arith.constant 3.000000e+00 : f32
    %353 = vector.broadcast %cst_100 : f32 to vector<4x240xf32>
    %354 = arith.addf %352, %353 : vector<4x240xf32>
    %cst_101 = arith.constant 0.000000e+00 : f32
    %cst_102 = arith.constant 6.000000e+00 : f32
    %355 = vector.broadcast %cst_101 : f32 to vector<4x240xf32>
    %356 = arith.maximumf %355, %354 : vector<4x240xf32>
    %357 = vector.broadcast %cst_102 : f32 to vector<4x240xf32>
    %358 = arith.minimumf %357, %356 : vector<4x240xf32>
    %359 = arith.mulf %352, %358 : vector<4x240xf32>
    %cst_103 = arith.constant 0.166666672 : f32
    %360 = vector.broadcast %cst_103 : f32 to vector<4x240xf32>
    %361 = arith.mulf %359, %360 : vector<4x240xf32>
    %c8_104 = arith.constant 8 : index
    %c0_105 = arith.constant 0 : index
    %362 = vector.load %arg5[%c8_104, %c0_105] : memref<112x256xf32, #tpu.memory_space<vmem>>, vector<1x240xf32>
    %c16 = arith.constant 16 : index
    %c0_106 = arith.constant 0 : index
    %363 = vector.load %arg5[%c16, %c0_106] : memref<112x256xf32, #tpu.memory_space<vmem>>, vector<1x240xf32>
    %364 = vector.broadcast %362 : vector<1x240xf32> to vector<4x240xf32>
    %365 = arith.mulf %361, %364 : vector<4x240xf32>
    %366 = vector.broadcast %363 : vector<1x240xf32> to vector<4x240xf32>
    %367 = arith.addf %365, %366 : vector<4x240xf32>
    %cst_107 = arith.constant 3.000000e+00 : f32
    %368 = vector.broadcast %cst_107 : f32 to vector<4x240xf32>
    %369 = arith.addf %367, %368 : vector<4x240xf32>
    %cst_108 = arith.constant 0.000000e+00 : f32
    %cst_109 = arith.constant 6.000000e+00 : f32
    %370 = vector.broadcast %cst_108 : f32 to vector<4x240xf32>
    %371 = arith.maximumf %370, %369 : vector<4x240xf32>
    %372 = vector.broadcast %cst_109 : f32 to vector<4x240xf32>
    %373 = arith.minimumf %372, %371 : vector<4x240xf32>
    %374 = arith.mulf %367, %373 : vector<4x240xf32>
    %cst_110 = arith.constant 0.166666672 : f32
    %375 = vector.broadcast %cst_110 : f32 to vector<4x240xf32>
    %376 = arith.mulf %374, %375 : vector<4x240xf32>
    %c864 = arith.constant 864 : index
    %c0_111 = arith.constant 0 : index
    %377 = vector.load %arg2[%c864, %c0_111] : memref<4752x128xbf16, #tpu.memory_space<vmem>>, vector<240x64xbf16>
    %c184 = arith.constant 184 : index
    %c0_112 = arith.constant 0 : index
    %378 = vector.load %arg3[%c184, %c0_112] : memref<320x128xf32, #tpu.memory_space<vmem>>, vector<1x64xf32>
    %c624_113 = arith.constant 624 : index
    %c0_114 = arith.constant 0 : index
    %379 = vector.load %arg4[%c624_113, %c0_114] : memref<2048x256xbf16, #tpu.memory_space<vmem>>, vector<64x240xbf16>
    %c24_115 = arith.constant 24 : index
    %c0_116 = arith.constant 0 : index
    %380 = vector.load %arg5[%c24_115, %c0_116] : memref<112x256xf32, #tpu.memory_space<vmem>>, vector<1x240xf32>
    %381 = arith.truncf %376 : vector<4x240xf32> to vector<4x240xbf16>
    %cst_117 = arith.constant dense<0.000000e+00> : vector<4x64xf32>
    %382 = tpu.matmul %381, %377, %cst_117 {dimension_numbers = #tpu.dot_dimension_numbers<[1], [0], [0], [1], [0, 0, 1, 1], [], []>} : vector<4x240xbf16>, vector<240x64xbf16>, vector<4x64xf32> -> vector<4x64xf32>
    %383 = vector.broadcast %378 : vector<1x64xf32> to vector<4x64xf32>
    %384 = arith.addf %382, %383 : vector<4x64xf32>
    %cst_118 = arith.constant 0.000000e+00 : f32
    %385 = vector.broadcast %cst_118 : f32 to vector<4x64xf32>
    %386 = arith.maximumf %384, %385 : vector<4x64xf32>
    %387 = arith.truncf %386 : vector<4x64xf32> to vector<4x64xbf16>
    %cst_119 = arith.constant dense<0.000000e+00> : vector<4x240xf32>
    %388 = tpu.matmul %387, %379, %cst_119 {dimension_numbers = #tpu.dot_dimension_numbers<[1], [0], [0], [1], [0, 0, 1, 1], [], []>} : vector<4x64xbf16>, vector<64x240xbf16>, vector<4x240xf32> -> vector<4x240xf32>
    %389 = vector.broadcast %380 : vector<1x240xf32> to vector<4x240xf32>
    %390 = arith.addf %388, %389 : vector<4x240xf32>
    %cst_120 = arith.constant 3.000000e+00 : f32
    %391 = vector.broadcast %cst_120 : f32 to vector<4x240xf32>
    %392 = arith.addf %390, %391 : vector<4x240xf32>
    %cst_121 = arith.constant 0.000000e+00 : f32
    %cst_122 = arith.constant 6.000000e+00 : f32
    %393 = vector.broadcast %cst_121 : f32 to vector<4x240xf32>
    %394 = arith.maximumf %393, %392 : vector<4x240xf32>
    %395 = vector.broadcast %cst_122 : f32 to vector<4x240xf32>
    %396 = arith.minimumf %395, %394 : vector<4x240xf32>
    %cst_123 = arith.constant 0.166666672 : f32
    %397 = vector.broadcast %cst_123 : f32 to vector<4x240xf32>
    %398 = arith.mulf %396, %397 : vector<4x240xf32>
    %399 = arith.mulf %376, %398 : vector<4x240xf32>
    %c1104 = arith.constant 1104 : index
    %c0_124 = arith.constant 0 : index
    %400 = vector.load %arg2[%c1104, %c0_124] : memref<4752x128xbf16, #tpu.memory_space<vmem>>, vector<240x40xbf16>
    %c192 = arith.constant 192 : index
    %c0_125 = arith.constant 0 : index
    %401 = vector.load %arg3[%c192, %c0_125] : memref<320x128xf32, #tpu.memory_space<vmem>>, vector<1x40xf32>
    %402 = arith.truncf %399 : vector<4x240xf32> to vector<4x240xbf16>
    %cst_126 = arith.constant dense<0.000000e+00> : vector<4x40xf32>
    %403 = tpu.matmul %402, %400, %cst_126 {dimension_numbers = #tpu.dot_dimension_numbers<[1], [0], [0], [1], [0, 0, 1, 1], [], []>} : vector<4x240xbf16>, vector<240x40xbf16>, vector<4x40xf32> -> vector<4x40xf32>
    %404 = vector.broadcast %401 : vector<1x40xf32> to vector<4x40xf32>
    %405 = arith.addf %403, %404 : vector<4x40xf32>
    %406 = arith.addf %405, %346 : vector<4x40xf32>
    %c688 = arith.constant 688 : index
    %c0_127 = arith.constant 0 : index
    %407 = vector.load %arg4[%c688, %c0_127] : memref<2048x256xbf16, #tpu.memory_space<vmem>>, vector<40x240xbf16>
    %c32_128 = arith.constant 32 : index
    %c0_129 = arith.constant 0 : index
    %408 = vector.load %arg5[%c32_128, %c0_129] : memref<112x256xf32, #tpu.memory_space<vmem>>, vector<1x240xf32>
    %409 = arith.truncf %406 : vector<4x40xf32> to vector<4x40xbf16>
    %cst_130 = arith.constant dense<0.000000e+00> : vector<4x240xf32>
    %410 = tpu.matmul %409, %407, %cst_130 {dimension_numbers = #tpu.dot_dimension_numbers<[1], [0], [0], [1], [0, 0, 1, 1], [], []>} : vector<4x40xbf16>, vector<40x240xbf16>, vector<4x240xf32> -> vector<4x240xf32>
    %411 = vector.broadcast %408 : vector<1x240xf32> to vector<4x240xf32>
    %412 = arith.addf %410, %411 : vector<4x240xf32>
    %cst_131 = arith.constant 3.000000e+00 : f32
    %413 = vector.broadcast %cst_131 : f32 to vector<4x240xf32>
    %414 = arith.addf %412, %413 : vector<4x240xf32>
    %cst_132 = arith.constant 0.000000e+00 : f32
    %cst_133 = arith.constant 6.000000e+00 : f32
    %415 = vector.broadcast %cst_132 : f32 to vector<4x240xf32>
    %416 = arith.maximumf %415, %414 : vector<4x240xf32>
    %417 = vector.broadcast %cst_133 : f32 to vector<4x240xf32>
    %418 = arith.minimumf %417, %416 : vector<4x240xf32>
    %419 = arith.mulf %412, %418 : vector<4x240xf32>
    %cst_134 = arith.constant 0.166666672 : f32
    %420 = vector.broadcast %cst_134 : f32 to vector<4x240xf32>
    %421 = arith.mulf %419, %420 : vector<4x240xf32>
    %c40_135 = arith.constant 40 : index
    %c0_136 = arith.constant 0 : index
    %422 = vector.load %arg5[%c40_135, %c0_136] : memref<112x256xf32, #tpu.memory_space<vmem>>, vector<1x240xf32>
    %c48_137 = arith.constant 48 : index
    %c0_138 = arith.constant 0 : index
    %423 = vector.load %arg5[%c48_137, %c0_138] : memref<112x256xf32, #tpu.memory_space<vmem>>, vector<1x240xf32>
    %424 = vector.broadcast %422 : vector<1x240xf32> to vector<4x240xf32>
    %425 = arith.mulf %421, %424 : vector<4x240xf32>
    %426 = vector.broadcast %423 : vector<1x240xf32> to vector<4x240xf32>
    %427 = arith.addf %425, %426 : vector<4x240xf32>
    %cst_139 = arith.constant 3.000000e+00 : f32
    %428 = vector.broadcast %cst_139 : f32 to vector<4x240xf32>
    %429 = arith.addf %427, %428 : vector<4x240xf32>
    %cst_140 = arith.constant 0.000000e+00 : f32
    %cst_141 = arith.constant 6.000000e+00 : f32
    %430 = vector.broadcast %cst_140 : f32 to vector<4x240xf32>
    %431 = arith.maximumf %430, %429 : vector<4x240xf32>
    %432 = vector.broadcast %cst_141 : f32 to vector<4x240xf32>
    %433 = arith.minimumf %432, %431 : vector<4x240xf32>
    %434 = arith.mulf %427, %433 : vector<4x240xf32>
    %cst_142 = arith.constant 0.166666672 : f32
    %435 = vector.broadcast %cst_142 : f32 to vector<4x240xf32>
    %436 = arith.mulf %434, %435 : vector<4x240xf32>
    %c1344 = arith.constant 1344 : index
    %c0_143 = arith.constant 0 : index
    %437 = vector.load %arg2[%c1344, %c0_143] : memref<4752x128xbf16, #tpu.memory_space<vmem>>, vector<240x64xbf16>
    %c200 = arith.constant 200 : index
    %c0_144 = arith.constant 0 : index
    %438 = vector.load %arg3[%c200, %c0_144] : memref<320x128xf32, #tpu.memory_space<vmem>>, vector<1x64xf32>
    %c736_145 = arith.constant 736 : index
    %c0_146 = arith.constant 0 : index
    %439 = vector.load %arg4[%c736_145, %c0_146] : memref<2048x256xbf16, #tpu.memory_space<vmem>>, vector<64x240xbf16>
    %c56_147 = arith.constant 56 : index
    %c0_148 = arith.constant 0 : index
    %440 = vector.load %arg5[%c56_147, %c0_148] : memref<112x256xf32, #tpu.memory_space<vmem>>, vector<1x240xf32>
    %441 = arith.truncf %436 : vector<4x240xf32> to vector<4x240xbf16>
    %cst_149 = arith.constant dense<0.000000e+00> : vector<4x64xf32>
    %442 = tpu.matmul %441, %437, %cst_149 {dimension_numbers = #tpu.dot_dimension_numbers<[1], [0], [0], [1], [0, 0, 1, 1], [], []>} : vector<4x240xbf16>, vector<240x64xbf16>, vector<4x64xf32> -> vector<4x64xf32>
    %443 = vector.broadcast %438 : vector<1x64xf32> to vector<4x64xf32>
    %444 = arith.addf %442, %443 : vector<4x64xf32>
    %cst_150 = arith.constant 0.000000e+00 : f32
    %445 = vector.broadcast %cst_150 : f32 to vector<4x64xf32>
    %446 = arith.maximumf %444, %445 : vector<4x64xf32>
    %447 = arith.truncf %446 : vector<4x64xf32> to vector<4x64xbf16>
    %cst_151 = arith.constant dense<0.000000e+00> : vector<4x240xf32>
    %448 = tpu.matmul %447, %439, %cst_151 {dimension_numbers = #tpu.dot_dimension_numbers<[1], [0], [0], [1], [0, 0, 1, 1], [], []>} : vector<4x64xbf16>, vector<64x240xbf16>, vector<4x240xf32> -> vector<4x240xf32>
    %449 = vector.broadcast %440 : vector<1x240xf32> to vector<4x240xf32>
    %450 = arith.addf %448, %449 : vector<4x240xf32>
    %cst_152 = arith.constant 3.000000e+00 : f32
    %451 = vector.broadcast %cst_152 : f32 to vector<4x240xf32>
    %452 = arith.addf %450, %451 : vector<4x240xf32>
    %cst_153 = arith.constant 0.000000e+00 : f32
    %cst_154 = arith.constant 6.000000e+00 : f32
    %453 = vector.broadcast %cst_153 : f32 to vector<4x240xf32>
    %454 = arith.maximumf %453, %452 : vector<4x240xf32>
    %455 = vector.broadcast %cst_154 : f32 to vector<4x240xf32>
    %456 = arith.minimumf %455, %454 : vector<4x240xf32>
    %cst_155 = arith.constant 0.166666672 : f32
    %457 = vector.broadcast %cst_155 : f32 to vector<4x240xf32>
    %458 = arith.mulf %456, %457 : vector<4x240xf32>
    %459 = arith.mulf %436, %458 : vector<4x240xf32>
    %c1584 = arith.constant 1584 : index
    %c0_156 = arith.constant 0 : index
    %460 = vector.load %arg2[%c1584, %c0_156] : memref<4752x128xbf16, #tpu.memory_space<vmem>>, vector<240x40xbf16>
    %c208 = arith.constant 208 : index
    %c0_157 = arith.constant 0 : index
    %461 = vector.load %arg3[%c208, %c0_157] : memref<320x128xf32, #tpu.memory_space<vmem>>, vector<1x40xf32>
    %462 = arith.truncf %459 : vector<4x240xf32> to vector<4x240xbf16>
    %cst_158 = arith.constant dense<0.000000e+00> : vector<4x40xf32>
    %463 = tpu.matmul %462, %460, %cst_158 {dimension_numbers = #tpu.dot_dimension_numbers<[1], [0], [0], [1], [0, 0, 1, 1], [], []>} : vector<4x240xbf16>, vector<240x40xbf16>, vector<4x40xf32> -> vector<4x40xf32>
    %464 = vector.broadcast %461 : vector<1x40xf32> to vector<4x40xf32>
    %465 = arith.addf %463, %464 : vector<4x40xf32>
    %466 = arith.addf %465, %406 : vector<4x40xf32>
    %c1824 = arith.constant 1824 : index
    %c0_159 = arith.constant 0 : index
    %467 = vector.load %arg2[%c1824, %c0_159] : memref<4752x128xbf16, #tpu.memory_space<vmem>>, vector<40x120xbf16>
    %c216 = arith.constant 216 : index
    %c0_160 = arith.constant 0 : index
    %468 = vector.load %arg3[%c216, %c0_160] : memref<320x128xf32, #tpu.memory_space<vmem>>, vector<1x120xf32>
    %469 = arith.truncf %466 : vector<4x40xf32> to vector<4x40xbf16>
    %cst_161 = arith.constant dense<0.000000e+00> : vector<4x120xf32>
    %470 = tpu.matmul %469, %467, %cst_161 {dimension_numbers = #tpu.dot_dimension_numbers<[1], [0], [0], [1], [0, 0, 1, 1], [], []>} : vector<4x40xbf16>, vector<40x120xbf16>, vector<4x120xf32> -> vector<4x120xf32>
    %471 = vector.broadcast %468 : vector<1x120xf32> to vector<4x120xf32>
    %472 = arith.addf %470, %471 : vector<4x120xf32>
    %cst_162 = arith.constant 3.000000e+00 : f32
    %473 = vector.broadcast %cst_162 : f32 to vector<4x120xf32>
    %474 = arith.addf %472, %473 : vector<4x120xf32>
    %cst_163 = arith.constant 0.000000e+00 : f32
    %cst_164 = arith.constant 6.000000e+00 : f32
    %475 = vector.broadcast %cst_163 : f32 to vector<4x120xf32>
    %476 = arith.maximumf %475, %474 : vector<4x120xf32>
    %477 = vector.broadcast %cst_164 : f32 to vector<4x120xf32>
    %478 = arith.minimumf %477, %476 : vector<4x120xf32>
    %479 = arith.mulf %472, %478 : vector<4x120xf32>
    %cst_165 = arith.constant 0.166666672 : f32
    %480 = vector.broadcast %cst_165 : f32 to vector<4x120xf32>
    %481 = arith.mulf %479, %480 : vector<4x120xf32>
    %c224 = arith.constant 224 : index
    %c0_166 = arith.constant 0 : index
    %482 = vector.load %arg3[%c224, %c0_166] : memref<320x128xf32, #tpu.memory_space<vmem>>, vector<1x120xf32>
    %c232 = arith.constant 232 : index
    %c0_167 = arith.constant 0 : index
    %483 = vector.load %arg3[%c232, %c0_167] : memref<320x128xf32, #tpu.memory_space<vmem>>, vector<1x120xf32>
    %484 = vector.broadcast %482 : vector<1x120xf32> to vector<4x120xf32>
    %485 = arith.mulf %481, %484 : vector<4x120xf32>
    %486 = vector.broadcast %483 : vector<1x120xf32> to vector<4x120xf32>
    %487 = arith.addf %485, %486 : vector<4x120xf32>
    %cst_168 = arith.constant 3.000000e+00 : f32
    %488 = vector.broadcast %cst_168 : f32 to vector<4x120xf32>
    %489 = arith.addf %487, %488 : vector<4x120xf32>
    %cst_169 = arith.constant 0.000000e+00 : f32
    %cst_170 = arith.constant 6.000000e+00 : f32
    %490 = vector.broadcast %cst_169 : f32 to vector<4x120xf32>
    %491 = arith.maximumf %490, %489 : vector<4x120xf32>
    %492 = vector.broadcast %cst_170 : f32 to vector<4x120xf32>
    %493 = arith.minimumf %492, %491 : vector<4x120xf32>
    %494 = arith.mulf %487, %493 : vector<4x120xf32>
    %cst_171 = arith.constant 0.166666672 : f32
    %495 = vector.broadcast %cst_171 : f32 to vector<4x120xf32>
    %496 = arith.mulf %494, %495 : vector<4x120xf32>
    %c1872 = arith.constant 1872 : index
    %c0_172 = arith.constant 0 : index
    %497 = vector.load %arg2[%c1872, %c0_172] : memref<4752x128xbf16, #tpu.memory_space<vmem>>, vector<120x32xbf16>
    %c240_173 = arith.constant 240 : index
    %c0_174 = arith.constant 0 : index
    %498 = vector.load %arg3[%c240_173, %c0_174] : memref<320x128xf32, #tpu.memory_space<vmem>>, vector<1x32xf32>
    %c2000 = arith.constant 2000 : index
    %c0_175 = arith.constant 0 : index
    %499 = vector.load %arg2[%c2000, %c0_175] : memref<4752x128xbf16, #tpu.memory_space<vmem>>, vector<32x120xbf16>
    %c248 = arith.constant 248 : index
    %c0_176 = arith.constant 0 : index
    %500 = vector.load %arg3[%c248, %c0_176] : memref<320x128xf32, #tpu.memory_space<vmem>>, vector<1x120xf32>
    %501 = arith.truncf %496 : vector<4x120xf32> to vector<4x120xbf16>
    %cst_177 = arith.constant dense<0.000000e+00> : vector<4x32xf32>
    %502 = tpu.matmul %501, %497, %cst_177 {dimension_numbers = #tpu.dot_dimension_numbers<[1], [0], [0], [1], [0, 0, 1, 1], [], []>} : vector<4x120xbf16>, vector<120x32xbf16>, vector<4x32xf32> -> vector<4x32xf32>
    %503 = vector.broadcast %498 : vector<1x32xf32> to vector<4x32xf32>
    %504 = arith.addf %502, %503 : vector<4x32xf32>
    %cst_178 = arith.constant 0.000000e+00 : f32
    %505 = vector.broadcast %cst_178 : f32 to vector<4x32xf32>
    %506 = arith.maximumf %504, %505 : vector<4x32xf32>
    %507 = arith.truncf %506 : vector<4x32xf32> to vector<4x32xbf16>
    %cst_179 = arith.constant dense<0.000000e+00> : vector<4x120xf32>
    %508 = tpu.matmul %507, %499, %cst_179 {dimension_numbers = #tpu.dot_dimension_numbers<[1], [0], [0], [1], [0, 0, 1, 1], [], []>} : vector<4x32xbf16>, vector<32x120xbf16>, vector<4x120xf32> -> vector<4x120xf32>
    %509 = vector.broadcast %500 : vector<1x120xf32> to vector<4x120xf32>
    %510 = arith.addf %508, %509 : vector<4x120xf32>
    %cst_180 = arith.constant 3.000000e+00 : f32
    %511 = vector.broadcast %cst_180 : f32 to vector<4x120xf32>
    %512 = arith.addf %510, %511 : vector<4x120xf32>
    %cst_181 = arith.constant 0.000000e+00 : f32
    %cst_182 = arith.constant 6.000000e+00 : f32
    %513 = vector.broadcast %cst_181 : f32 to vector<4x120xf32>
    %514 = arith.maximumf %513, %512 : vector<4x120xf32>
    %515 = vector.broadcast %cst_182 : f32 to vector<4x120xf32>
    %516 = arith.minimumf %515, %514 : vector<4x120xf32>
    %cst_183 = arith.constant 0.166666672 : f32
    %517 = vector.broadcast %cst_183 : f32 to vector<4x120xf32>
    %518 = arith.mulf %516, %517 : vector<4x120xf32>
    %519 = arith.mulf %496, %518 : vector<4x120xf32>
    %c2032 = arith.constant 2032 : index
    %c0_184 = arith.constant 0 : index
    %520 = vector.load %arg2[%c2032, %c0_184] : memref<4752x128xbf16, #tpu.memory_space<vmem>>, vector<120x48xbf16>
    %c256 = arith.constant 256 : index
    %c0_185 = arith.constant 0 : index
    %521 = vector.load %arg3[%c256, %c0_185] : memref<320x128xf32, #tpu.memory_space<vmem>>, vector<1x48xf32>
    %522 = arith.truncf %519 : vector<4x120xf32> to vector<4x120xbf16>
    %cst_186 = arith.constant dense<0.000000e+00> : vector<4x48xf32>
    %523 = tpu.matmul %522, %520, %cst_186 {dimension_numbers = #tpu.dot_dimension_numbers<[1], [0], [0], [1], [0, 0, 1, 1], [], []>} : vector<4x120xbf16>, vector<120x48xbf16>, vector<4x48xf32> -> vector<4x48xf32>
    %524 = vector.broadcast %521 : vector<1x48xf32> to vector<4x48xf32>
    %525 = arith.addf %523, %524 : vector<4x48xf32>
    %c800 = arith.constant 800 : index
    %c0_187 = arith.constant 0 : index
    %526 = vector.load %arg4[%c800, %c0_187] : memref<2048x256xbf16, #tpu.memory_space<vmem>>, vector<48x144xbf16>
    %c64_188 = arith.constant 64 : index
    %c0_189 = arith.constant 0 : index
    %527 = vector.load %arg5[%c64_188, %c0_189] : memref<112x256xf32, #tpu.memory_space<vmem>>, vector<1x144xf32>
    %528 = arith.truncf %525 : vector<4x48xf32> to vector<4x48xbf16>
    %cst_190 = arith.constant dense<0.000000e+00> : vector<4x144xf32>
    %529 = tpu.matmul %528, %526, %cst_190 {dimension_numbers = #tpu.dot_dimension_numbers<[1], [0], [0], [1], [0, 0, 1, 1], [], []>} : vector<4x48xbf16>, vector<48x144xbf16>, vector<4x144xf32> -> vector<4x144xf32>
    %530 = vector.broadcast %527 : vector<1x144xf32> to vector<4x144xf32>
    %531 = arith.addf %529, %530 : vector<4x144xf32>
    %cst_191 = arith.constant 3.000000e+00 : f32
    %532 = vector.broadcast %cst_191 : f32 to vector<4x144xf32>
    %533 = arith.addf %531, %532 : vector<4x144xf32>
    %cst_192 = arith.constant 0.000000e+00 : f32
    %cst_193 = arith.constant 6.000000e+00 : f32
    %534 = vector.broadcast %cst_192 : f32 to vector<4x144xf32>
    %535 = arith.maximumf %534, %533 : vector<4x144xf32>
    %536 = vector.broadcast %cst_193 : f32 to vector<4x144xf32>
    %537 = arith.minimumf %536, %535 : vector<4x144xf32>
    %538 = arith.mulf %531, %537 : vector<4x144xf32>
    %cst_194 = arith.constant 0.166666672 : f32
    %539 = vector.broadcast %cst_194 : f32 to vector<4x144xf32>
    %540 = arith.mulf %538, %539 : vector<4x144xf32>
    %c72 = arith.constant 72 : index
    %c0_195 = arith.constant 0 : index
    %541 = vector.load %arg5[%c72, %c0_195] : memref<112x256xf32, #tpu.memory_space<vmem>>, vector<1x144xf32>
    %c80_196 = arith.constant 80 : index
    %c0_197 = arith.constant 0 : index
    %542 = vector.load %arg5[%c80_196, %c0_197] : memref<112x256xf32, #tpu.memory_space<vmem>>, vector<1x144xf32>
    %543 = vector.broadcast %541 : vector<1x144xf32> to vector<4x144xf32>
    %544 = arith.mulf %540, %543 : vector<4x144xf32>
    %545 = vector.broadcast %542 : vector<1x144xf32> to vector<4x144xf32>
    %546 = arith.addf %544, %545 : vector<4x144xf32>
    %cst_198 = arith.constant 3.000000e+00 : f32
    %547 = vector.broadcast %cst_198 : f32 to vector<4x144xf32>
    %548 = arith.addf %546, %547 : vector<4x144xf32>
    %cst_199 = arith.constant 0.000000e+00 : f32
    %cst_200 = arith.constant 6.000000e+00 : f32
    %549 = vector.broadcast %cst_199 : f32 to vector<4x144xf32>
    %550 = arith.maximumf %549, %548 : vector<4x144xf32>
    %551 = vector.broadcast %cst_200 : f32 to vector<4x144xf32>
    %552 = arith.minimumf %551, %550 : vector<4x144xf32>
    %553 = arith.mulf %546, %552 : vector<4x144xf32>
    %cst_201 = arith.constant 0.166666672 : f32
    %554 = vector.broadcast %cst_201 : f32 to vector<4x144xf32>
    %555 = arith.mulf %553, %554 : vector<4x144xf32>
    %c2160 = arith.constant 2160 : index
    %c0_202 = arith.constant 0 : index
    %556 = vector.load %arg2[%c2160, %c0_202] : memref<4752x128xbf16, #tpu.memory_space<vmem>>, vector<144x40xbf16>
    %c264 = arith.constant 264 : index
    %c0_203 = arith.constant 0 : index
    %557 = vector.load %arg3[%c264, %c0_203] : memref<320x128xf32, #tpu.memory_space<vmem>>, vector<1x40xf32>
    %c848 = arith.constant 848 : index
    %c0_204 = arith.constant 0 : index
    %558 = vector.load %arg4[%c848, %c0_204] : memref<2048x256xbf16, #tpu.memory_space<vmem>>, vector<40x144xbf16>
    %c88_205 = arith.constant 88 : index
    %c0_206 = arith.constant 0 : index
    %559 = vector.load %arg5[%c88_205, %c0_206] : memref<112x256xf32, #tpu.memory_space<vmem>>, vector<1x144xf32>
    %560 = arith.truncf %555 : vector<4x144xf32> to vector<4x144xbf16>
    %cst_207 = arith.constant dense<0.000000e+00> : vector<4x40xf32>
    %561 = tpu.matmul %560, %556, %cst_207 {dimension_numbers = #tpu.dot_dimension_numbers<[1], [0], [0], [1], [0, 0, 1, 1], [], []>} : vector<4x144xbf16>, vector<144x40xbf16>, vector<4x40xf32> -> vector<4x40xf32>
    %562 = vector.broadcast %557 : vector<1x40xf32> to vector<4x40xf32>
    %563 = arith.addf %561, %562 : vector<4x40xf32>
    %cst_208 = arith.constant 0.000000e+00 : f32
    %564 = vector.broadcast %cst_208 : f32 to vector<4x40xf32>
    %565 = arith.maximumf %563, %564 : vector<4x40xf32>
    %566 = arith.truncf %565 : vector<4x40xf32> to vector<4x40xbf16>
    %cst_209 = arith.constant dense<0.000000e+00> : vector<4x144xf32>
    %567 = tpu.matmul %566, %558, %cst_209 {dimension_numbers = #tpu.dot_dimension_numbers<[1], [0], [0], [1], [0, 0, 1, 1], [], []>} : vector<4x40xbf16>, vector<40x144xbf16>, vector<4x144xf32> -> vector<4x144xf32>
    %568 = vector.broadcast %559 : vector<1x144xf32> to vector<4x144xf32>
    %569 = arith.addf %567, %568 : vector<4x144xf32>
    %cst_210 = arith.constant 3.000000e+00 : f32
    %570 = vector.broadcast %cst_210 : f32 to vector<4x144xf32>
    %571 = arith.addf %569, %570 : vector<4x144xf32>
    %cst_211 = arith.constant 0.000000e+00 : f32
    %cst_212 = arith.constant 6.000000e+00 : f32
    %572 = vector.broadcast %cst_211 : f32 to vector<4x144xf32>
    %573 = arith.maximumf %572, %571 : vector<4x144xf32>
    %574 = vector.broadcast %cst_212 : f32 to vector<4x144xf32>
    %575 = arith.minimumf %574, %573 : vector<4x144xf32>
    %cst_213 = arith.constant 0.166666672 : f32
    %576 = vector.broadcast %cst_213 : f32 to vector<4x144xf32>
    %577 = arith.mulf %575, %576 : vector<4x144xf32>
    %578 = arith.mulf %555, %577 : vector<4x144xf32>
    %c2304 = arith.constant 2304 : index
    %c0_214 = arith.constant 0 : index
    %579 = vector.load %arg2[%c2304, %c0_214] : memref<4752x128xbf16, #tpu.memory_space<vmem>>, vector<144x48xbf16>
    %c272 = arith.constant 272 : index
    %c0_215 = arith.constant 0 : index
    %580 = vector.load %arg3[%c272, %c0_215] : memref<320x128xf32, #tpu.memory_space<vmem>>, vector<1x48xf32>
    %581 = arith.truncf %578 : vector<4x144xf32> to vector<4x144xbf16>
    %cst_216 = arith.constant dense<0.000000e+00> : vector<4x48xf32>
    %582 = tpu.matmul %581, %579, %cst_216 {dimension_numbers = #tpu.dot_dimension_numbers<[1], [0], [0], [1], [0, 0, 1, 1], [], []>} : vector<4x144xbf16>, vector<144x48xbf16>, vector<4x48xf32> -> vector<4x48xf32>
    %583 = vector.broadcast %580 : vector<1x48xf32> to vector<4x48xf32>
    %584 = arith.addf %582, %583 : vector<4x48xf32>
    %585 = arith.addf %584, %525 : vector<4x48xf32>
    %c0_217 = arith.constant 0 : index
    %c0_218 = arith.constant 0 : index
    %586 = vector.load %arg6[%c0_217, %c0_218] : memref<704x576xbf16, #tpu.memory_space<vmem>>, vector<48x288xbf16>
    %c0_219 = arith.constant 0 : index
    %c0_220 = arith.constant 0 : index
    %587 = vector.load %arg7[%c0_219, %c0_220] : memref<104x576xf32, #tpu.memory_space<vmem>>, vector<1x288xf32>
    %588 = arith.truncf %585 : vector<4x48xf32> to vector<4x48xbf16>
    %cst_221 = arith.constant dense<0.000000e+00> : vector<4x288xf32>
    %589 = tpu.matmul %588, %586, %cst_221 {dimension_numbers = #tpu.dot_dimension_numbers<[1], [0], [0], [1], [0, 0, 1, 1], [], []>} : vector<4x48xbf16>, vector<48x288xbf16>, vector<4x288xf32> -> vector<4x288xf32>
    %590 = vector.broadcast %587 : vector<1x288xf32> to vector<4x288xf32>
    %591 = arith.addf %589, %590 : vector<4x288xf32>
    %cst_222 = arith.constant 3.000000e+00 : f32
    %592 = vector.broadcast %cst_222 : f32 to vector<4x288xf32>
    %593 = arith.addf %591, %592 : vector<4x288xf32>
    %cst_223 = arith.constant 0.000000e+00 : f32
    %cst_224 = arith.constant 6.000000e+00 : f32
    %594 = vector.broadcast %cst_223 : f32 to vector<4x288xf32>
    %595 = arith.maximumf %594, %593 : vector<4x288xf32>
    %596 = vector.broadcast %cst_224 : f32 to vector<4x288xf32>
    %597 = arith.minimumf %596, %595 : vector<4x288xf32>
    %598 = arith.mulf %591, %597 : vector<4x288xf32>
    %cst_225 = arith.constant 0.166666672 : f32
    %599 = vector.broadcast %cst_225 : f32 to vector<4x288xf32>
    %600 = arith.mulf %598, %599 : vector<4x288xf32>
    %c8_226 = arith.constant 8 : index
    %c0_227 = arith.constant 0 : index
    %601 = vector.load %arg7[%c8_226, %c0_227] : memref<104x576xf32, #tpu.memory_space<vmem>>, vector<1x288xf32>
    %c16_228 = arith.constant 16 : index
    %c0_229 = arith.constant 0 : index
    %602 = vector.load %arg7[%c16_228, %c0_229] : memref<104x576xf32, #tpu.memory_space<vmem>>, vector<1x288xf32>
    %603 = vector.broadcast %601 : vector<1x288xf32> to vector<4x288xf32>
    %604 = arith.mulf %600, %603 : vector<4x288xf32>
    %605 = vector.broadcast %602 : vector<1x288xf32> to vector<4x288xf32>
    %606 = arith.addf %604, %605 : vector<4x288xf32>
    %cst_230 = arith.constant 3.000000e+00 : f32
    %607 = vector.broadcast %cst_230 : f32 to vector<4x288xf32>
    %608 = arith.addf %606, %607 : vector<4x288xf32>
    %cst_231 = arith.constant 0.000000e+00 : f32
    %cst_232 = arith.constant 6.000000e+00 : f32
    %609 = vector.broadcast %cst_231 : f32 to vector<4x288xf32>
    %610 = arith.maximumf %609, %608 : vector<4x288xf32>
    %611 = vector.broadcast %cst_232 : f32 to vector<4x288xf32>
    %612 = arith.minimumf %611, %610 : vector<4x288xf32>
    %613 = arith.mulf %606, %612 : vector<4x288xf32>
    %cst_233 = arith.constant 0.166666672 : f32
    %614 = vector.broadcast %cst_233 : f32 to vector<4x288xf32>
    %615 = arith.mulf %613, %614 : vector<4x288xf32>
    %c2448 = arith.constant 2448 : index
    %c0_234 = arith.constant 0 : index
    %616 = vector.load %arg2[%c2448, %c0_234] : memref<4752x128xbf16, #tpu.memory_space<vmem>>, vector<288x72xbf16>
    %c280 = arith.constant 280 : index
    %c0_235 = arith.constant 0 : index
    %617 = vector.load %arg3[%c280, %c0_235] : memref<320x128xf32, #tpu.memory_space<vmem>>, vector<1x72xf32>
    %c48_236 = arith.constant 48 : index
    %c0_237 = arith.constant 0 : index
    %618 = vector.load %arg6[%c48_236, %c0_237] : memref<704x576xbf16, #tpu.memory_space<vmem>>, vector<72x288xbf16>
    %c24_238 = arith.constant 24 : index
    %c0_239 = arith.constant 0 : index
    %619 = vector.load %arg7[%c24_238, %c0_239] : memref<104x576xf32, #tpu.memory_space<vmem>>, vector<1x288xf32>
    %620 = arith.truncf %615 : vector<4x288xf32> to vector<4x288xbf16>
    %cst_240 = arith.constant dense<0.000000e+00> : vector<4x72xf32>
    %621 = tpu.matmul %620, %616, %cst_240 {dimension_numbers = #tpu.dot_dimension_numbers<[1], [0], [0], [1], [0, 0, 1, 1], [], []>} : vector<4x288xbf16>, vector<288x72xbf16>, vector<4x72xf32> -> vector<4x72xf32>
    %622 = vector.broadcast %617 : vector<1x72xf32> to vector<4x72xf32>
    %623 = arith.addf %621, %622 : vector<4x72xf32>
    %cst_241 = arith.constant 0.000000e+00 : f32
    %624 = vector.broadcast %cst_241 : f32 to vector<4x72xf32>
    %625 = arith.maximumf %623, %624 : vector<4x72xf32>
    %626 = arith.truncf %625 : vector<4x72xf32> to vector<4x72xbf16>
    %cst_242 = arith.constant dense<0.000000e+00> : vector<4x288xf32>
    %627 = tpu.matmul %626, %618, %cst_242 {dimension_numbers = #tpu.dot_dimension_numbers<[1], [0], [0], [1], [0, 0, 1, 1], [], []>} : vector<4x72xbf16>, vector<72x288xbf16>, vector<4x288xf32> -> vector<4x288xf32>
    %628 = vector.broadcast %619 : vector<1x288xf32> to vector<4x288xf32>
    %629 = arith.addf %627, %628 : vector<4x288xf32>
    %cst_243 = arith.constant 3.000000e+00 : f32
    %630 = vector.broadcast %cst_243 : f32 to vector<4x288xf32>
    %631 = arith.addf %629, %630 : vector<4x288xf32>
    %cst_244 = arith.constant 0.000000e+00 : f32
    %cst_245 = arith.constant 6.000000e+00 : f32
    %632 = vector.broadcast %cst_244 : f32 to vector<4x288xf32>
    %633 = arith.maximumf %632, %631 : vector<4x288xf32>
    %634 = vector.broadcast %cst_245 : f32 to vector<4x288xf32>
    %635 = arith.minimumf %634, %633 : vector<4x288xf32>
    %cst_246 = arith.constant 0.166666672 : f32
    %636 = vector.broadcast %cst_246 : f32 to vector<4x288xf32>
    %637 = arith.mulf %635, %636 : vector<4x288xf32>
    %638 = arith.mulf %615, %637 : vector<4x288xf32>
    %c2736 = arith.constant 2736 : index
    %c0_247 = arith.constant 0 : index
    %639 = vector.load %arg2[%c2736, %c0_247] : memref<4752x128xbf16, #tpu.memory_space<vmem>>, vector<288x96xbf16>
    %c288 = arith.constant 288 : index
    %c0_248 = arith.constant 0 : index
    %640 = vector.load %arg3[%c288, %c0_248] : memref<320x128xf32, #tpu.memory_space<vmem>>, vector<1x96xf32>
    %641 = arith.truncf %638 : vector<4x288xf32> to vector<4x288xbf16>
    %cst_249 = arith.constant dense<0.000000e+00> : vector<4x96xf32>
    %642 = tpu.matmul %641, %639, %cst_249 {dimension_numbers = #tpu.dot_dimension_numbers<[1], [0], [0], [1], [0, 0, 1, 1], [], []>} : vector<4x288xbf16>, vector<288x96xbf16>, vector<4x96xf32> -> vector<4x96xf32>
    %643 = vector.broadcast %640 : vector<1x96xf32> to vector<4x96xf32>
    %644 = arith.addf %642, %643 : vector<4x96xf32>
    %c128_250 = arith.constant 128 : index
    %c0_251 = arith.constant 0 : index
    %645 = vector.load %arg6[%c128_250, %c0_251] : memref<704x576xbf16, #tpu.memory_space<vmem>>, vector<96x576xbf16>
    %c32_252 = arith.constant 32 : index
    %c0_253 = arith.constant 0 : index
    %646 = vector.load %arg7[%c32_252, %c0_253] : memref<104x576xf32, #tpu.memory_space<vmem>>, vector<1x576xf32>
    %647 = arith.truncf %644 : vector<4x96xf32> to vector<4x96xbf16>
    %cst_254 = arith.constant dense<0.000000e+00> : vector<4x576xf32>
    %648 = tpu.matmul %647, %645, %cst_254 {dimension_numbers = #tpu.dot_dimension_numbers<[1], [0], [0], [1], [0, 0, 1, 1], [], []>} : vector<4x96xbf16>, vector<96x576xbf16>, vector<4x576xf32> -> vector<4x576xf32>
    %649 = vector.broadcast %646 : vector<1x576xf32> to vector<4x576xf32>
    %650 = arith.addf %648, %649 : vector<4x576xf32>
    %cst_255 = arith.constant 3.000000e+00 : f32
    %651 = vector.broadcast %cst_255 : f32 to vector<4x576xf32>
    %652 = arith.addf %650, %651 : vector<4x576xf32>
    %cst_256 = arith.constant 0.000000e+00 : f32
    %cst_257 = arith.constant 6.000000e+00 : f32
    %653 = vector.broadcast %cst_256 : f32 to vector<4x576xf32>
    %654 = arith.maximumf %653, %652 : vector<4x576xf32>
    %655 = vector.broadcast %cst_257 : f32 to vector<4x576xf32>
    %656 = arith.minimumf %655, %654 : vector<4x576xf32>
    %657 = arith.mulf %650, %656 : vector<4x576xf32>
    %cst_258 = arith.constant 0.166666672 : f32
    %658 = vector.broadcast %cst_258 : f32 to vector<4x576xf32>
    %659 = arith.mulf %657, %658 : vector<4x576xf32>
    %c40_259 = arith.constant 40 : index
    %c0_260 = arith.constant 0 : index
    %660 = vector.load %arg7[%c40_259, %c0_260] : memref<104x576xf32, #tpu.memory_space<vmem>>, vector<1x576xf32>
    %c48_261 = arith.constant 48 : index
    %c0_262 = arith.constant 0 : index
    %661 = vector.load %arg7[%c48_261, %c0_262] : memref<104x576xf32, #tpu.memory_space<vmem>>, vector<1x576xf32>
    %662 = vector.broadcast %660 : vector<1x576xf32> to vector<4x576xf32>
    %663 = arith.mulf %659, %662 : vector<4x576xf32>
    %664 = vector.broadcast %661 : vector<1x576xf32> to vector<4x576xf32>
    %665 = arith.addf %663, %664 : vector<4x576xf32>
    %cst_263 = arith.constant 3.000000e+00 : f32
    %666 = vector.broadcast %cst_263 : f32 to vector<4x576xf32>
    %667 = arith.addf %665, %666 : vector<4x576xf32>
    %cst_264 = arith.constant 0.000000e+00 : f32
    %cst_265 = arith.constant 6.000000e+00 : f32
    %668 = vector.broadcast %cst_264 : f32 to vector<4x576xf32>
    %669 = arith.maximumf %668, %667 : vector<4x576xf32>
    %670 = vector.broadcast %cst_265 : f32 to vector<4x576xf32>
    %671 = arith.minimumf %670, %669 : vector<4x576xf32>
    %672 = arith.mulf %665, %671 : vector<4x576xf32>
    %cst_266 = arith.constant 0.166666672 : f32
    %673 = vector.broadcast %cst_266 : f32 to vector<4x576xf32>
    %674 = arith.mulf %672, %673 : vector<4x576xf32>
    %c896 = arith.constant 896 : index
    %c0_267 = arith.constant 0 : index
    %675 = vector.load %arg4[%c896, %c0_267] : memref<2048x256xbf16, #tpu.memory_space<vmem>>, vector<576x144xbf16>
    %c96_268 = arith.constant 96 : index
    %c0_269 = arith.constant 0 : index
    %676 = vector.load %arg5[%c96_268, %c0_269] : memref<112x256xf32, #tpu.memory_space<vmem>>, vector<1x144xf32>
    %c224_270 = arith.constant 224 : index
    %c0_271 = arith.constant 0 : index
    %677 = vector.load %arg6[%c224_270, %c0_271] : memref<704x576xbf16, #tpu.memory_space<vmem>>, vector<144x576xbf16>
    %c56_272 = arith.constant 56 : index
    %c0_273 = arith.constant 0 : index
    %678 = vector.load %arg7[%c56_272, %c0_273] : memref<104x576xf32, #tpu.memory_space<vmem>>, vector<1x576xf32>
    %679 = arith.truncf %674 : vector<4x576xf32> to vector<4x576xbf16>
    %cst_274 = arith.constant dense<0.000000e+00> : vector<4x144xf32>
    %680 = tpu.matmul %679, %675, %cst_274 {dimension_numbers = #tpu.dot_dimension_numbers<[1], [0], [0], [1], [0, 0, 1, 1], [], []>} : vector<4x576xbf16>, vector<576x144xbf16>, vector<4x144xf32> -> vector<4x144xf32>
    %681 = vector.broadcast %676 : vector<1x144xf32> to vector<4x144xf32>
    %682 = arith.addf %680, %681 : vector<4x144xf32>
    %cst_275 = arith.constant 0.000000e+00 : f32
    %683 = vector.broadcast %cst_275 : f32 to vector<4x144xf32>
    %684 = arith.maximumf %682, %683 : vector<4x144xf32>
    %685 = arith.truncf %684 : vector<4x144xf32> to vector<4x144xbf16>
    %cst_276 = arith.constant dense<0.000000e+00> : vector<4x576xf32>
    %686 = tpu.matmul %685, %677, %cst_276 {dimension_numbers = #tpu.dot_dimension_numbers<[1], [0], [0], [1], [0, 0, 1, 1], [], []>} : vector<4x144xbf16>, vector<144x576xbf16>, vector<4x576xf32> -> vector<4x576xf32>
    %687 = vector.broadcast %678 : vector<1x576xf32> to vector<4x576xf32>
    %688 = arith.addf %686, %687 : vector<4x576xf32>
    %cst_277 = arith.constant 3.000000e+00 : f32
    %689 = vector.broadcast %cst_277 : f32 to vector<4x576xf32>
    %690 = arith.addf %688, %689 : vector<4x576xf32>
    %cst_278 = arith.constant 0.000000e+00 : f32
    %cst_279 = arith.constant 6.000000e+00 : f32
    %691 = vector.broadcast %cst_278 : f32 to vector<4x576xf32>
    %692 = arith.maximumf %691, %690 : vector<4x576xf32>
    %693 = vector.broadcast %cst_279 : f32 to vector<4x576xf32>
    %694 = arith.minimumf %693, %692 : vector<4x576xf32>
    %cst_280 = arith.constant 0.166666672 : f32
    %695 = vector.broadcast %cst_280 : f32 to vector<4x576xf32>
    %696 = arith.mulf %694, %695 : vector<4x576xf32>
    %697 = arith.mulf %674, %696 : vector<4x576xf32>
    %c3024 = arith.constant 3024 : index
    %c0_281 = arith.constant 0 : index
    %698 = vector.load %arg2[%c3024, %c0_281] : memref<4752x128xbf16, #tpu.memory_space<vmem>>, vector<576x96xbf16>
    %c296 = arith.constant 296 : index
    %c0_282 = arith.constant 0 : index
    %699 = vector.load %arg3[%c296, %c0_282] : memref<320x128xf32, #tpu.memory_space<vmem>>, vector<1x96xf32>
    %700 = arith.truncf %697 : vector<4x576xf32> to vector<4x576xbf16>
    %cst_283 = arith.constant dense<0.000000e+00> : vector<4x96xf32>
    %701 = tpu.matmul %700, %698, %cst_283 {dimension_numbers = #tpu.dot_dimension_numbers<[1], [0], [0], [1], [0, 0, 1, 1], [], []>} : vector<4x576xbf16>, vector<576x96xbf16>, vector<4x96xf32> -> vector<4x96xf32>
    %702 = vector.broadcast %699 : vector<1x96xf32> to vector<4x96xf32>
    %703 = arith.addf %701, %702 : vector<4x96xf32>
    %704 = arith.addf %703, %644 : vector<4x96xf32>
    %c368 = arith.constant 368 : index
    %c0_284 = arith.constant 0 : index
    %705 = vector.load %arg6[%c368, %c0_284] : memref<704x576xbf16, #tpu.memory_space<vmem>>, vector<96x576xbf16>
    %c64_285 = arith.constant 64 : index
    %c0_286 = arith.constant 0 : index
    %706 = vector.load %arg7[%c64_285, %c0_286] : memref<104x576xf32, #tpu.memory_space<vmem>>, vector<1x576xf32>
    %707 = arith.truncf %704 : vector<4x96xf32> to vector<4x96xbf16>
    %cst_287 = arith.constant dense<0.000000e+00> : vector<4x576xf32>
    %708 = tpu.matmul %707, %705, %cst_287 {dimension_numbers = #tpu.dot_dimension_numbers<[1], [0], [0], [1], [0, 0, 1, 1], [], []>} : vector<4x96xbf16>, vector<96x576xbf16>, vector<4x576xf32> -> vector<4x576xf32>
    %709 = vector.broadcast %706 : vector<1x576xf32> to vector<4x576xf32>
    %710 = arith.addf %708, %709 : vector<4x576xf32>
    %cst_288 = arith.constant 3.000000e+00 : f32
    %711 = vector.broadcast %cst_288 : f32 to vector<4x576xf32>
    %712 = arith.addf %710, %711 : vector<4x576xf32>
    %cst_289 = arith.constant 0.000000e+00 : f32
    %cst_290 = arith.constant 6.000000e+00 : f32
    %713 = vector.broadcast %cst_289 : f32 to vector<4x576xf32>
    %714 = arith.maximumf %713, %712 : vector<4x576xf32>
    %715 = vector.broadcast %cst_290 : f32 to vector<4x576xf32>
    %716 = arith.minimumf %715, %714 : vector<4x576xf32>
    %717 = arith.mulf %710, %716 : vector<4x576xf32>
    %cst_291 = arith.constant 0.166666672 : f32
    %718 = vector.broadcast %cst_291 : f32 to vector<4x576xf32>
    %719 = arith.mulf %717, %718 : vector<4x576xf32>
    %c72_292 = arith.constant 72 : index
    %c0_293 = arith.constant 0 : index
    %720 = vector.load %arg7[%c72_292, %c0_293] : memref<104x576xf32, #tpu.memory_space<vmem>>, vector<1x576xf32>
    %c80_294 = arith.constant 80 : index
    %c0_295 = arith.constant 0 : index
    %721 = vector.load %arg7[%c80_294, %c0_295] : memref<104x576xf32, #tpu.memory_space<vmem>>, vector<1x576xf32>
    %722 = vector.broadcast %720 : vector<1x576xf32> to vector<4x576xf32>
    %723 = arith.mulf %719, %722 : vector<4x576xf32>
    %724 = vector.broadcast %721 : vector<1x576xf32> to vector<4x576xf32>
    %725 = arith.addf %723, %724 : vector<4x576xf32>
    %cst_296 = arith.constant 3.000000e+00 : f32
    %726 = vector.broadcast %cst_296 : f32 to vector<4x576xf32>
    %727 = arith.addf %725, %726 : vector<4x576xf32>
    %cst_297 = arith.constant 0.000000e+00 : f32
    %cst_298 = arith.constant 6.000000e+00 : f32
    %728 = vector.broadcast %cst_297 : f32 to vector<4x576xf32>
    %729 = arith.maximumf %728, %727 : vector<4x576xf32>
    %730 = vector.broadcast %cst_298 : f32 to vector<4x576xf32>
    %731 = arith.minimumf %730, %729 : vector<4x576xf32>
    %732 = arith.mulf %725, %731 : vector<4x576xf32>
    %cst_299 = arith.constant 0.166666672 : f32
    %733 = vector.broadcast %cst_299 : f32 to vector<4x576xf32>
    %734 = arith.mulf %732, %733 : vector<4x576xf32>
    %c1472 = arith.constant 1472 : index
    %c0_300 = arith.constant 0 : index
    %735 = vector.load %arg4[%c1472, %c0_300] : memref<2048x256xbf16, #tpu.memory_space<vmem>>, vector<576x144xbf16>
    %c104_301 = arith.constant 104 : index
    %c0_302 = arith.constant 0 : index
    %736 = vector.load %arg5[%c104_301, %c0_302] : memref<112x256xf32, #tpu.memory_space<vmem>>, vector<1x144xf32>
    %c464 = arith.constant 464 : index
    %c0_303 = arith.constant 0 : index
    %737 = vector.load %arg6[%c464, %c0_303] : memref<704x576xbf16, #tpu.memory_space<vmem>>, vector<144x576xbf16>
    %c88_304 = arith.constant 88 : index
    %c0_305 = arith.constant 0 : index
    %738 = vector.load %arg7[%c88_304, %c0_305] : memref<104x576xf32, #tpu.memory_space<vmem>>, vector<1x576xf32>
    %739 = arith.truncf %734 : vector<4x576xf32> to vector<4x576xbf16>
    %cst_306 = arith.constant dense<0.000000e+00> : vector<4x144xf32>
    %740 = tpu.matmul %739, %735, %cst_306 {dimension_numbers = #tpu.dot_dimension_numbers<[1], [0], [0], [1], [0, 0, 1, 1], [], []>} : vector<4x576xbf16>, vector<576x144xbf16>, vector<4x144xf32> -> vector<4x144xf32>
    %741 = vector.broadcast %736 : vector<1x144xf32> to vector<4x144xf32>
    %742 = arith.addf %740, %741 : vector<4x144xf32>
    %cst_307 = arith.constant 0.000000e+00 : f32
    %743 = vector.broadcast %cst_307 : f32 to vector<4x144xf32>
    %744 = arith.maximumf %742, %743 : vector<4x144xf32>
    %745 = arith.truncf %744 : vector<4x144xf32> to vector<4x144xbf16>
    %cst_308 = arith.constant dense<0.000000e+00> : vector<4x576xf32>
    %746 = tpu.matmul %745, %737, %cst_308 {dimension_numbers = #tpu.dot_dimension_numbers<[1], [0], [0], [1], [0, 0, 1, 1], [], []>} : vector<4x144xbf16>, vector<144x576xbf16>, vector<4x576xf32> -> vector<4x576xf32>
    %747 = vector.broadcast %738 : vector<1x576xf32> to vector<4x576xf32>
    %748 = arith.addf %746, %747 : vector<4x576xf32>
    %cst_309 = arith.constant 3.000000e+00 : f32
    %749 = vector.broadcast %cst_309 : f32 to vector<4x576xf32>
    %750 = arith.addf %748, %749 : vector<4x576xf32>
    %cst_310 = arith.constant 0.000000e+00 : f32
    %cst_311 = arith.constant 6.000000e+00 : f32
    %751 = vector.broadcast %cst_310 : f32 to vector<4x576xf32>
    %752 = arith.maximumf %751, %750 : vector<4x576xf32>
    %753 = vector.broadcast %cst_311 : f32 to vector<4x576xf32>
    %754 = arith.minimumf %753, %752 : vector<4x576xf32>
    %cst_312 = arith.constant 0.166666672 : f32
    %755 = vector.broadcast %cst_312 : f32 to vector<4x576xf32>
    %756 = arith.mulf %754, %755 : vector<4x576xf32>
    %757 = arith.mulf %734, %756 : vector<4x576xf32>
    %c3600 = arith.constant 3600 : index
    %c0_313 = arith.constant 0 : index
    %758 = vector.load %arg2[%c3600, %c0_313] : memref<4752x128xbf16, #tpu.memory_space<vmem>>, vector<576x96xbf16>
    %c304 = arith.constant 304 : index
    %c0_314 = arith.constant 0 : index
    %759 = vector.load %arg3[%c304, %c0_314] : memref<320x128xf32, #tpu.memory_space<vmem>>, vector<1x96xf32>
    %760 = arith.truncf %757 : vector<4x576xf32> to vector<4x576xbf16>
    %cst_315 = arith.constant dense<0.000000e+00> : vector<4x96xf32>
    %761 = tpu.matmul %760, %758, %cst_315 {dimension_numbers = #tpu.dot_dimension_numbers<[1], [0], [0], [1], [0, 0, 1, 1], [], []>} : vector<4x576xbf16>, vector<576x96xbf16>, vector<4x96xf32> -> vector<4x96xf32>
    %762 = vector.broadcast %759 : vector<1x96xf32> to vector<4x96xf32>
    %763 = arith.addf %761, %762 : vector<4x96xf32>
    %764 = arith.addf %763, %704 : vector<4x96xf32>
    %c608 = arith.constant 608 : index
    %c0_316 = arith.constant 0 : index
    %765 = vector.load %arg6[%c608, %c0_316] : memref<704x576xbf16, #tpu.memory_space<vmem>>, vector<96x576xbf16>
    %c96_317 = arith.constant 96 : index
    %c0_318 = arith.constant 0 : index
    %766 = vector.load %arg7[%c96_317, %c0_318] : memref<104x576xf32, #tpu.memory_space<vmem>>, vector<1x576xf32>
    %767 = arith.truncf %764 : vector<4x96xf32> to vector<4x96xbf16>
    %cst_319 = arith.constant dense<0.000000e+00> : vector<4x576xf32>
    %768 = tpu.matmul %767, %765, %cst_319 {dimension_numbers = #tpu.dot_dimension_numbers<[1], [0], [0], [1], [0, 0, 1, 1], [], []>} : vector<4x96xbf16>, vector<96x576xbf16>, vector<4x576xf32> -> vector<4x576xf32>
    %769 = vector.broadcast %766 : vector<1x576xf32> to vector<4x576xf32>
    %770 = arith.addf %768, %769 : vector<4x576xf32>
    %cst_320 = arith.constant 3.000000e+00 : f32
    %771 = vector.broadcast %cst_320 : f32 to vector<4x576xf32>
    %772 = arith.addf %770, %771 : vector<4x576xf32>
    %cst_321 = arith.constant 0.000000e+00 : f32
    %cst_322 = arith.constant 6.000000e+00 : f32
    %773 = vector.broadcast %cst_321 : f32 to vector<4x576xf32>
    %774 = arith.maximumf %773, %772 : vector<4x576xf32>
    %775 = vector.broadcast %cst_322 : f32 to vector<4x576xf32>
    %776 = arith.minimumf %775, %774 : vector<4x576xf32>
    %777 = arith.mulf %770, %776 : vector<4x576xf32>
    %cst_323 = arith.constant 0.166666672 : f32
    %778 = vector.broadcast %cst_323 : f32 to vector<4x576xf32>
    %779 = arith.mulf %777, %778 : vector<4x576xf32>
    %c4176 = arith.constant 4176 : index
    %c0_324 = arith.constant 0 : index
    %780 = vector.load %arg2[%c4176, %c0_324] : memref<4752x128xbf16, #tpu.memory_space<vmem>>, vector<576x1xbf16>
    %c312 = arith.constant 312 : index
    %c0_325 = arith.constant 0 : index
    %781 = vector.load %arg3[%c312, %c0_325] : memref<320x128xf32, #tpu.memory_space<vmem>>, vector<1x1xf32>
    %782 = arith.truncf %779 : vector<4x576xf32> to vector<4x576xbf16>
    %cst_326 = arith.constant dense<0.000000e+00> : vector<4x1xf32>
    %783 = tpu.matmul %782, %780, %cst_326 {dimension_numbers = #tpu.dot_dimension_numbers<[1], [0], [0], [1], [0, 0, 1, 1], [], []>} : vector<4x576xbf16>, vector<576x1xbf16>, vector<4x1xf32> -> vector<4x1xf32>
    %784 = vector.broadcast %781 : vector<1x1xf32> to vector<4x1xf32>
    %785 = arith.addf %783, %784 : vector<4x1xf32>
    %786 = arith.negf %785 : vector<4x1xf32>
    %787 = math.exp %786 : vector<4x1xf32>
    %cst_327 = arith.constant 1.000000e+00 : f32
    %788 = vector.broadcast %cst_327 : f32 to vector<4x1xf32>
    %789 = arith.addf %788, %787 : vector<4x1xf32>
    %790 = arith.divf %788, %789 : vector<4x1xf32>
    %791 = vector.shape_cast %790 : vector<4x1xf32> to vector<4x1xf32>
    %792 = vector.broadcast %791 : vector<4x1xf32> to vector<4x128xf32>
    %cst_328 = arith.constant 0.000000e+00 : f32
    %793 = vector.broadcast %cst_328 : f32 to vector<4x128xf32>
    %794 = tpu.concatenate %792, %793 in 0 : vector<4x128xf32>, vector<4x128xf32> -> vector<8x128xf32>
    %795 = vector.shape_cast %794 : vector<8x128xf32> to vector<1x8x128xf32>
    %c0_329 = arith.constant 0 : index
    %c0_330 = arith.constant 0 : index
    %c0_331 = arith.constant 0 : index
    %796 = vector.load %arg8[%c0_329, %c0_330, %c0_331] : memref<1x8x128xf32, #tpu.memory_space<vmem>>, vector<1x8x128xf32>
    tpu.vector_store %arg8[%c0_329, %c0_330, %c0_331], %795 {strides = array<i32>} : memref<1x8x128xf32, #tpu.memory_space<vmem>>, vector<1x8x128xf32>,
    return
  }
  func.func @transform_0(%arg0: i32) -> (i32, i32, i32) {
    %c0_i32 = arith.constant 0 : i32
    %c0_i32_0 = arith.constant 0 : i32
    %c0_i32_1 = arith.constant 0 : i32
    return %arg0, %c0_i32, %c0_i32_0 : i32, i32, i32
  }
  func.func @transform_1(%arg0: i32) -> (i32, i32) {
    %c0_i32 = arith.constant 0 : i32
    %c0_i32_0 = arith.constant 0 : i32
    %c0_i32_1 = arith.constant 0 : i32
    return %c0_i32, %c0_i32_0 : i32, i32
  }
  func.func @transform_2(%arg0: i32) -> (i32, i32) {
    %c0_i32 = arith.constant 0 : i32
    %c0_i32_0 = arith.constant 0 : i32
    %c0_i32_1 = arith.constant 0 : i32
    return %c0_i32, %c0_i32_0 : i32, i32
  }
  func.func @transform_3(%arg0: i32) -> (i32, i32) {
    %c0_i32 = arith.constant 0 : i32
    %c0_i32_0 = arith.constant 0 : i32
    %c0_i32_1 = arith.constant 0 : i32
    return %c0_i32, %c0_i32_0 : i32, i32
  }
  func.func @transform_4(%arg0: i32) -> (i32, i32) {
    %c0_i32 = arith.constant 0 : i32
    %c0_i32_0 = arith.constant 0 : i32
    %c0_i32_1 = arith.constant 0 : i32
    return %c0_i32, %c0_i32_0 : i32, i32
  }
  func.func @transform_5(%arg0: i32) -> (i32, i32) {
    %c0_i32 = arith.constant 0 : i32
    %c0_i32_0 = arith.constant 0 : i32
    %c0_i32_1 = arith.constant 0 : i32
    return %c0_i32, %c0_i32_0 : i32, i32
  }
  func.func @transform_6(%arg0: i32) -> (i32, i32) {
    %c0_i32 = arith.constant 0 : i32
    %c0_i32_0 = arith.constant 0 : i32
    %c0_i32_1 = arith.constant 0 : i32
    return %c0_i32, %c0_i32_0 : i32, i32
  }
  func.func @transform_7(%arg0: i32) -> (i32, i32, i32) {
    %c0_i32 = arith.constant 0 : i32
    %c0_i32_0 = arith.constant 0 : i32
    %c0_i32_1 = arith.constant 0 : i32
    return %arg0, %c0_i32, %c0_i32_0 : i32, i32, i32
  }
}

</mosaic_0001>

<llo_original>
// kernel: squeeze.1
$region0: #{squeeze.1}
  %s0 = inlined_call_operand.vmem [shape: f32[2,4], index: 0, kind: input, shape index: {}]
  %s1 = inlined_call_operand.hbm [shape: f32[8,1], index: 1, kind: output, shape index: {}]
  $region1: #{squeeze.1} parent=0
    #allocation0 [shape = 'u8[512]{0}', space=vmem, size = 0x400, scoped, tag = 'operand span for operand 1']
    #allocation1 [shape = 's32[1]{0}', space=sflag, size = 0x4, scoped, tag = 'scoped memory for squeeze.1']
    #allocation2 [shape = 'u8[4096]{0}', space=vmem, size = 0x1000, scoped, tag = 'scoped mem for output reshape']
    #allocation3 [shape = 'u8[4096]{0}', space=vmem, size = 0x1000, scoped, tag = 'scoped mem for input reshape']
    %2 = vsyncpa [#allocation1], 0
    %s4 = ssub.s32 4, 1
    %v5 = vld [vmem:[%s0] sm:%s4]
    %6 = vst [vmem:[#allocation3] sm:%s4] %v5
    %v7 = vld [vmem:[#allocation3] sm:$0x1]
    %vm8 = vcmask 31744
    %9 = vst.msk [vmem:[#allocation2] sm:$0x1] %vm8, %v7
    %s10 = scalar_lea.vmem [#allocation3], 1
    %v11 = vld [vmem:[%s10] sm:$0x1]
    %12 = vrot.lane.b32.xlu0 %v11, 4
    %v13 = vpop.permute.xlu0 %12
    %vm14 = vcmask 64544
    %15 = vst.msk [vmem:[#allocation2] sm:$0x1] %vm14, %v13
    %s17 = ssub.s32 2, 1
    %v18 = vld [vmem:[#allocation2] sm:%s17]
    %s20 = ssub.s32 2, 1
    %21 = vst [vmem:[#allocation0] sm:%s20] %v18
    %23 = vsyncadd [#allocation1], 0
    %s25 = sshll.u32 [#allocation0], 4
    %s26 = int_to_ptr.vmem [resolvable:$true] %s25
    %s27 = sshll.u32 %s1, 4
    %s28 = int_to_ptr.hbm [resolvable:$true] %s27
    %30 = dma.vmem_to_hbm [thread:$0]  %s26, 16, %s28, [#allocation1]
    %32 = dma.done [#allocation1], 16
    %33 = vsyncpa [#allocation1], 1

// kernel: discriminator_forward.1
$region0: #{discriminator_forward.1}
  #allocation0 [shape = 'u32[]', space=smem, size = 0x4, offset = 0x4, fixed_abs, tag = 'smem constant byte address 0x4 - core index']
  #allocation1 [shape = 'u32[72,128]{1,0:T(1,128)}', space=vmem, size = 0x9000, scoped, tag = 'internal scratch']
  %s0 = inlined_call_operand.vmem [shape: f32[2,256,32], index: 0, kind: input, shape index: {}]
  %s1 = inlined_call_operand.vmem [shape: bf16[4752,128], index: 1, kind: input, shape index: {}]
  %s2 = inlined_call_operand.vmem [shape: f32[320,128], index: 2, kind: input, shape index: {}]
  %s3 = inlined_call_operand.vmem [shape: bf16[2048,256], index: 3, kind: input, shape index: {}]
  %s4 = inlined_call_operand.vmem [shape: f32[112,256], index: 4, kind: input, shape index: {}]
  %s5 = inlined_call_operand.vmem [shape: bf16[704,576], index: 5, kind: input, shape index: {}]
  %s6 = inlined_call_operand.vmem [shape: f32[104,576], index: 6, kind: input, shape index: {}]
  %s7 = inlined_call_operand.vmem [shape: f32[2,8,128], index: 7, kind: output, shape index: {}]
  %s8 = sld [smem:[#allocation0]]
  $region61: #{discriminator_forward.1} parent=0
    _
  %s10 = ssub.s32 1, %s8
  %s11 = scalar_select 0, %s10, %s8
  loop: start=0, step=1, limit=4
  $region2: #{discriminator_forward.1} parent=0 // loop_pre_header
    _
  $region3: #{discriminator_forward.1} parent=0 // loop_header
    %s13 = sphi 0, %s17
    %p14 = scmp.ge.s32.totalorder %s13, 4
    %s23 = sphi 0, %s25
    %s26 = sphi 0, %s23
    %s27 = sphi 0, %s26
    %s43 = sphi 0, %s27
    %s47 = sphi 0, %s47
    %s49 = sphi 0, %s47
    %s50 = sphi 0, %s49
    %s64 = sphi 0, %s50
    %s68 = sphi 0, %s68
    %s70 = sphi 0, %s68
    %s71 = sphi 0, %s70
    %s85 = sphi 0, %s71
    %s89 = sphi 0, %s89
    %s91 = sphi 0, %s89
    %s92 = sphi 0, %s91
    %s106 = sphi 0, %s92
    %s110 = sphi 0, %s110
    %s112 = sphi 0, %s110
    %s113 = sphi 0, %s112
    %s127 = sphi 0, %s113
    %s131 = sphi 0, %s131
    %s133 = sphi 0, %s131
    %s134 = sphi 0, %s133
    %s148 = sphi 0, %s134
    %s152 = sphi 0, %s152
    %s154 = sphi 0, %s152
    %s155 = sphi 0, %s154
    %s169 = sphi 0, %s155
    %s175 = sphi 0, %s177
    %s178 = sphi 0, %s175
    %s179 = sphi 0, %s178
    %s195 = sphi 0, %s179
  $region4: #{discriminator_forward.1} parent=0 // loop_header_branch
    %16 = sbr.rel (%p14) target = $region8
  $region5: #{discriminator_forward.1} parent=0 // loop_body
    %s18 = ssub.s32 %s13, 1
    %s19 = ssub.s32 %s13, 2
    %s20 = sadd.s32 %s13, 1
    %s21 = ssub.s32 %s13, %s20
    %p22 = scmp.eq.s32.totalorder %s21, 0
    %s24 = sadd.s32 %s23, 1
    %s25 = scalar_select %p22, %s23, %s24
    %p28 = pneg %p22
    %p29 = scmp.eq.s32.totalorder %s13, 1
    %p30 = por %p28, %p29
    %p31 = scmp.ne.s32.totalorder %s23, %s26
    %p32 = scmp.eq.s32.totalorder %s13, 0
    %p33 = por %p31, %p32
    %p34 = scmp.ne.s32.totalorder %s23, %s26
    %p35 = scmp.eq.s32.totalorder %s18, 1
    %p36 = por %p34, %p35
    %p37 = scmp.ne.s32.totalorder %s26, %s27
    %p38 = scmp.eq.s32.totalorder %s18, 0
    %p39 = por %p37, %p38
    %p40 = scmp.ne.s32.totalorder %s26, %s27
    %p41 = scmp.eq.s32.totalorder %s19, 1
    %p42 = por %p40, %p41
    %p44 = scmp.ne.s32.totalorder %s27, %s43
    %p45 = scmp.eq.s32.totalorder %s19, 0
    %p46 = por %p44, %p45
    %s48 = sadd.s32 %s47, 1
    %p51 = scmp.eq.s32.totalorder %s13, 1
    %p52 = scmp.ne.s32.totalorder %s47, %s49
    %p53 = scmp.eq.s32.totalorder %s13, 0
    %p54 = por %p52, %p53
    %p55 = scmp.ne.s32.totalorder %s47, %s49
    %p56 = scmp.eq.s32.totalorder %s18, 1
    %p57 = por %p55, %p56
    %p58 = scmp.ne.s32.totalorder %s49, %s50
    %p59 = scmp.eq.s32.totalorder %s18, 0
    %p60 = por %p58, %p59
    %p61 = scmp.ne.s32.totalorder %s49, %s50
    %p62 = scmp.eq.s32.totalorder %s19, 1
    %p63 = por %p61, %p62
    %p65 = scmp.ne.s32.totalorder %s50, %s64
    %p66 = scmp.eq.s32.totalorder %s19, 0
    %p67 = por %p65, %p66
    %s69 = sadd.s32 %s68, 1
    %p72 = scmp.eq.s32.totalorder %s13, 1
    %p73 = scmp.ne.s32.totalorder %s68, %s70
    %p74 = scmp.eq.s32.totalorder %s13, 0
    %p75 = por %p73, %p74
    %p76 = scmp.ne.s32.totalorder %s68, %s70
    %p77 = scmp.eq.s32.totalorder %s18, 1
    %p78 = por %p76, %p77
    %p79 = scmp.ne.s32.totalorder %s70, %s71
    %p80 = scmp.eq.s32.totalorder %s18, 0
    %p81 = por %p79, %p80
    %p82 = scmp.ne.s32.totalorder %s70, %s71
    %p83 = scmp.eq.s32.totalorder %s19, 1
    %p84 = por %p82, %p83
    %p86 = scmp.ne.s32.totalorder %s71, %s85
    %p87 = scmp.eq.s32.totalorder %s19, 0
    %p88 = por %p86, %p87
    %s90 = sadd.s32 %s89, 1
    %p93 = scmp.eq.s32.totalorder %s13, 1
    %p94 = scmp.ne.s32.totalorder %s89, %s91
    %p95 = scmp.eq.s32.totalorder %s13, 0
    %p96 = por %p94, %p95
    %p97 = scmp.ne.s32.totalorder %s89, %s91
    %p98 = scmp.eq.s32.totalorder %s18, 1
    %p99 = por %p97, %p98
    %p100 = scmp.ne.s32.totalorder %s91, %s92
    %p101 = scmp.eq.s32.totalorder %s18, 0
    %p102 = por %p100, %p101
    %p103 = scmp.ne.s32.totalorder %s91, %s92
    %p104 = scmp.eq.s32.totalorder %s19, 1
    %p105 = por %p103, %p104
    %p107 = scmp.ne.s32.totalorder %s92, %s106
    %p108 = scmp.eq.s32.totalorder %s19, 0
    %p109 = por %p107, %p108
    %s111 = sadd.s32 %s110, 1
    %p114 = scmp.eq.s32.totalorder %s13, 1
    %p115 = scmp.ne.s32.totalorder %s110, %s112
    %p116 = scmp.eq.s32.totalorder %s13, 0
    %p117 = por %p115, %p116
    %p118 = scmp.ne.s32.totalorder %s110, %s112
    %p119 = scmp.eq.s32.totalorder %s18, 1
    %p120 = por %p118, %p119
    %p121 = scmp.ne.s32.totalorder %s112, %s113
    %p122 = scmp.eq.s32.totalorder %s18, 0
    %p123 = por %p121, %p122
    %p124 = scmp.ne.s32.totalorder %s112, %s113
    %p125 = scmp.eq.s32.totalorder %s19, 1
    %p126 = por %p124, %p125
    %p128 = scmp.ne.s32.totalorder %s113, %s127
    %p129 = scmp.eq.s32.totalorder %s19, 0
    %p130 = por %p128, %p129
    %s132 = sadd.s32 %s131, 1
    %p135 = scmp.eq.s32.totalorder %s13, 1
    %p136 = scmp.ne.s32.totalorder %s131, %s133
    %p137 = scmp.eq.s32.totalorder %s13, 0
    %p138 = por %p136, %p137
    %p139 = scmp.ne.s32.totalorder %s131, %s133
    %p140 = scmp.eq.s32.totalorder %s18, 1
    %p141 = por %p139, %p140
    %p142 = scmp.ne.s32.totalorder %s133, %s134
    %p143 = scmp.eq.s32.totalorder %s18, 0
    %p144 = por %p142, %p143
    %p145 = scmp.ne.s32.totalorder %s133, %s134
    %p146 = scmp.eq.s32.totalorder %s19, 1
    %p147 = por %p145, %p146
    %p149 = scmp.ne.s32.totalorder %s134, %s148
    %p150 = scmp.eq.s32.totalorder %s19, 0
    %p151 = por %p149, %p150
    %s153 = sadd.s32 %s152, 1
    %p156 = scmp.eq.s32.totalorder %s13, 1
    %p157 = scmp.ne.s32.totalorder %s152, %s154
    %p158 = scmp.eq.s32.totalorder %s13, 0
    %p159 = por %p157, %p158
    %p160 = scmp.ne.s32.totalorder %s152, %s154
    %p161 = scmp.eq.s32.totalorder %s18, 1
    %p162 = por %p160, %p161
    %p163 = scmp.ne.s32.totalorder %s154, %s155
    %p164 = scmp.eq.s32.totalorder %s18, 0
    %p165 = por %p163, %p164
    %p166 = scmp.ne.s32.totalorder %s154, %s155
    %p167 = scmp.eq.s32.totalorder %s19, 1
    %p168 = por %p166, %p167
    %p170 = scmp.ne.s32.totalorder %s155, %s169
    %p171 = scmp.eq.s32.totalorder %s19, 0
    %p172 = por %p170, %p171
    %s173 = ssub.s32 %s13, %s20
    %p174 = scmp.eq.s32.totalorder %s173, 0
    %s176 = sadd.s32 %s175, 1
    %s177 = scalar_select %p174, %s175, %s176
    %p180 = pneg %p174
    %p181 = scmp.eq.s32.totalorder %s13, 1
    %p182 = por %p180, %p181
    %p183 = scmp.ne.s32.totalorder %s175, %s178
    %p184 = scmp.eq.s32.totalorder %s13, 0
    %p185 = por %p183, %p184
    %p186 = scmp.ne.s32.totalorder %s175, %s178
    %p187 = scmp.eq.s32.totalorder %s18, 1
    %p188 = por %p186, %p187
    %p189 = scmp.ne.s32.totalorder %s178, %s179
    %p190 = scmp.eq.s32.totalorder %s18, 0
    %p191 = por %p189, %p190
    %p192 = scmp.ne.s32.totalorder %s178, %s179
    %p193 = scmp.eq.s32.totalorder %s19, 1
    %p194 = por %p192, %p193
    %p196 = scmp.ne.s32.totalorder %s179, %s195
    %p197 = scmp.eq.s32.totalorder %s19, 0
    %p198 = por %p196, %p197
    %p199 = scmp.le.s32.totalorder 1, %s13
    %p200 = scmp.lt.s32.totalorder %s13, 3
    %p201 = pnand %p199, %p200
    %p202 = pneg %p201
    // Predicated region
    $region9: #{discriminator_forward.1} parent=5 // pred_check
      _
    $region10: #{discriminator_forward.1} parent=5 // pred_check_branch
      %204 = sbr.rel (%p201) target = $region12
    $region11: #{discriminator_forward.1} parent=5 // pred_region
      %s205 = ssub.s32 %s13, 1
      // Predicated region
      $region13: #{discriminator_forward.1} parent=11 // pred_check
        %p206 = pneg %p60
      $region14: #{discriminator_forward.1} parent=11 // pred_check_branch
        %208 = sbr.rel (%p206) target = $region16
      $region15: #{discriminator_forward.1} parent=11 // pred_region
        _
      $region16: #{discriminator_forward.1} parent=11 // pred_fallthru
        _
      // Predicated region
      $region17: #{discriminator_forward.1} parent=11 // pred_check
        %p209 = pneg %p81
      $region18: #{discriminator_forward.1} parent=11 // pred_check_branch
        %211 = sbr.rel (%p209) target = $region20
      $region19: #{discriminator_forward.1} parent=11 // pred_region
        _
      $region20: #{discriminator_forward.1} parent=11 // pred_fallthru
        _
      // Predicated region
      $region21: #{discriminator_forward.1} parent=11 // pred_check
        %p212 = pneg %p102
      $region22: #{discriminator_forward.1} parent=11 // pred_check_branch
        %214 = sbr.rel (%p212) target = $region24
      $region23: #{discriminator_forward.1} parent=11 // pred_region
        _
      $region24: #{discriminator_forward.1} parent=11 // pred_fallthru
        _
      // Predicated region
      $region25: #{discriminator_forward.1} parent=11 // pred_check
        %p215 = pneg %p123
      $region26: #{discriminator_forward.1} parent=11 // pred_check_branch
        %217 = sbr.rel (%p215) target = $region28
      $region27: #{discriminator_forward.1} parent=11 // pred_region
        _
      $region28: #{discriminator_forward.1} parent=11 // pred_fallthru
        _
      // Predicated region
      $region29: #{discriminator_forward.1} parent=11 // pred_check
        %p218 = pneg %p144
      $region30: #{discriminator_forward.1} parent=11 // pred_check_branch
        %220 = sbr.rel (%p218) target = $region32
      $region31: #{discriminator_forward.1} parent=11 // pred_region
        _
      $region32: #{discriminator_forward.1} parent=11 // pred_fallthru
        _
      // Predicated region
      $region33: #{discriminator_forward.1} parent=11 // pred_check
        %p221 = pneg %p165
      $region34: #{discriminator_forward.1} parent=11 // pred_check_branch
        %223 = sbr.rel (%p221) target = $region36
      $region35: #{discriminator_forward.1} parent=11 // pred_region
        _
      $region36: #{discriminator_forward.1} parent=11 // pred_fallthru
        _
    $region12: #{discriminator_forward.1} parent=5 // pred_fallthru
      _
    %p224 = scmp.lt.s32.totalorder %s13, 2
    // Predicated region
    $region37: #{discriminator_forward.1} parent=5 // pred_check
      %p225 = pneg %p224
    $region38: #{discriminator_forward.1} parent=5 // pred_check_branch
      %227 = sbr.rel (%p225) target = $region40
    $region39: #{discriminator_forward.1} parent=5 // pred_region
      // Predicated region
      $region41: #{discriminator_forward.1} parent=39 // pred_check
        %p228 = pneg %p33
      $region42: #{discriminator_forward.1} parent=39 // pred_check_branch
        %230 = sbr.rel (%p228) target = $region44
      $region43: #{discriminator_forward.1} parent=39 // pred_region
        %p231 = scmp.lt.s32.totalorder %s13, 1
        %s232 = scalar_select %p231, %s13, 1
        %s233 = smul.addr %s232, 32
        %s234 = smul.addr %s233, 8
        %s235 = scalar_lea.vmem %s0, %s234
      $region44: #{discriminator_forward.1} parent=39 // pred_fallthru
        _
    $region40: #{discriminator_forward.1} parent=5 // pred_fallthru
      _
    %p236 = scmp.le.s32.totalorder 1, %s13
    %p237 = scmp.lt.s32.totalorder %s13, 3
    %p238 = pnand %p236, %p237
    %p239 = pneg %p238
    // Predicated region
    $region45: #{discriminator_forward.1} parent=5 // pred_check
      _
    $region46: #{discriminator_forward.1} parent=5 // pred_check_branch
      %241 = sbr.rel (%p238) target = $region48
    $region47: #{discriminator_forward.1} parent=5 // pred_region
      %s242 = ssub.s32 %s13, 1
      %p243 = scmp.lt.s32.totalorder %s18, 1
      %s244 = scalar_select %p243, %s18, 1
      %s245 = smul.addr %s244, 32
      %s246 = smul.addr %s245, 8
      %s247 = scalar_lea.vmem %s0, %s246
      %p248 = pneg %p39
      %p249 = pneg %p36
      %p250 = pneg %p60
      %p251 = pneg %p57
      %p252 = pneg %p81
      %p253 = pneg %p78
      %p254 = pneg %p102
      %p255 = pneg %p99
      %p256 = pneg %p123
      %p257 = pneg %p120
      %p258 = pneg %p144
      %p259 = pneg %p141
      %p260 = pneg %p165
      %p261 = pneg %p162
      %p262 = pneg %p191
      %p263 = pneg %p188
      %p264 = scmp.lt.s32.totalorder %s18, 1
      %s265 = scalar_select %p264, %s18, 1
      %s266 = smul.addr %s265, 8
      %s267 = scalar_lea.vmem %s7, %s266
      %p268 = scmp.lt.s32.totalorder %s18, 1
      %s269 = scalar_select %p268, %s18, 1
      %s270 = smul.addr %s269, 32
      %s271 = smul.addr %s270, 8
      %s272 = scalar_lea.vmem %s0, %s271
      %p273 = scmp.lt.s32.totalorder %s18, 1
      %s274 = scalar_select %p273, %s18, 1
      %s275 = smul.addr %s274, 8
      %s276 = scalar_lea.vmem %s7, %s275
      %v278 = vld [vmem:[%s272] sm:$0xff]
      %v279 = vld [vmem:[%s272 + $0x8] sm:$0xff]
      %v280 = vld [vmem:[%s272 + $0x10] sm:$0xff]
      %v281 = vld [vmem:[%s272 + $0x18] sm:$0xff]
      %v282 = vld [vmem:[%s272 + $0x20] sm:$0xff]
      %v283 = vld [vmem:[%s272 + $0x28] sm:$0xff]
      %v284 = vld [vmem:[%s272 + $0x30] sm:$0xff]
      %v285 = vld [vmem:[%s272 + $0x38] sm:$0xff]
      %v286 = vld [vmem:[%s272 + $0x40] sm:$0xff]
      %v287 = vld [vmem:[%s272 + $0x48] sm:$0xff]
      %v288 = vld [vmem:[%s272 + $0x50] sm:$0xff]
      %v289 = vld [vmem:[%s272 + $0x58] sm:$0xff]
      %v290 = vld [vmem:[%s272 + $0x60] sm:$0xff]
      %v291 = vld [vmem:[%s272 + $0x68] sm:$0xff]
      %v292 = vld [vmem:[%s272 + $0x70] sm:$0xff]
      %v293 = vld [vmem:[%s272 + $0x78] sm:$0xff]
      %v294 = vld [vmem:[%s272 + $0x80] sm:$0xff]
      %v295 = vld [vmem:[%s272 + $0x88] sm:$0xff]
      %v296 = vld [vmem:[%s272 + $0x90] sm:$0xff]
      %v297 = vld [vmem:[%s272 + $0x98] sm:$0xff]
      %v298 = vld [vmem:[%s272 + $0xa0] sm:$0xff]
      %v299 = vld [vmem:[%s272 + $0xa8] sm:$0xff]
      %v300 = vld [vmem:[%s272 + $0xb0] sm:$0xff]
      %v301 = vld [vmem:[%s272 + $0xb8] sm:$0xff]
      %v302 = vld [vmem:[%s272 + $0xc0] sm:$0xff]
      %v303 = vld [vmem:[%s272 + $0xc8] sm:$0xff]
      %v304 = vld [vmem:[%s272 + $0xd0] sm:$0xff]
      %v305 = vld [vmem:[%s272 + $0xd8] sm:$0xff]
      %v306 = vld [vmem:[%s272 + $0xe0] sm:$0xff]
      %v307 = vld [vmem:[%s272 + $0xe8] sm:$0xff]
      %v308 = vld [vmem:[%s272 + $0xf0] sm:$0xff]
      %v309 = vld [vmem:[%s272 + $0xf8] sm:$0xff]
      %v310 = vld [vmem:[%s1] sm:$0xf]
      %v311 = vld [vmem:[%s1 + $0x4] sm:$0xf]
      %v312 = vld [vmem:[%s1 + $0x8] sm:$0xf]
      %v313 = vld [vmem:[%s1 + $0xc] sm:$0xf]
      %v314 = vld [vmem:[%s2] sm:$0x1]
      %v315 = vpack.c.bf16 %v279, %v278
      %v316 = vpack.c.bf16 %v281, %v280
      %v317 = vpack.c.bf16 %v283, %v282
      %v318 = vpack.c.bf16 %v285, %v284
      %v319 = vpack.c.bf16 %v287, %v286
      %v320 = vpack.c.bf16 %v289, %v288
      %v321 = vpack.c.bf16 %v291, %v290
      %v322 = vpack.c.bf16 %v293, %v292
      %v323 = vpack.c.bf16 %v295, %v294
      %v324 = vpack.c.bf16 %v297, %v296
      %v325 = vpack.c.bf16 %v299, %v298
      %v326 = vpack.c.bf16 %v301, %v300
      %v327 = vpack.c.bf16 %v303, %v302
      %v328 = vpack.c.bf16 %v305, %v304
      %v329 = vpack.c.bf16 %v307, %v306
      %v330 = vpack.c.bf16 %v309, %v308
      %v331 = vperm.slane %v314, 0
      %v336 = vunpack.c.l.b16 %v310
      %v337 = vunpack.c.l.b16 %v311
      %v338 = vunpack.c.l.b16 %v312
      %v339 = vunpack.c.l.b16 %v313
      %v340 = vpack.c.b16 %v337, %v336
      %v341 = vpack.c.b16 %v339, %v338
      %vm344 = vcmask 261120
      %v346 = vsel %vm344, %v315, 0
      %v349 = vsel %vm344, %v316, 0
      %v352 = vsel %vm344, %v317, 0
      %v355 = vsel %vm344, %v318, 0
      %v358 = vsel %vm344, %v319, 0
      %v361 = vsel %vm344, %v320, 0
      %v364 = vsel %vm344, %v321, 0
      %v367 = vsel %vm344, %v322, 0
      %v370 = vsel %vm344, %v323, 0
      %v373 = vsel %vm344, %v324, 0
      %v376 = vsel %vm344, %v325, 0
      %v379 = vsel %vm344, %v326, 0
      %v382 = vsel %vm344, %v327, 0
      %v385 = vsel %vm344, %v328, 0
      %v388 = vsel %vm344, %v329, 0
      %v391 = vsel %vm344, %v330, 0
      %393 = vmatpush.bf16.msra.mxu0 0
      %394 = vmatpush.bf16.msra.mxu0 0
      %395 = vmatpush.bf16.msra.mxu0 0
      %396 = vmatpush.bf16.msra.mxu0 0
      %397 = vmatpush.bf16.msra.mxu0 0
      %398 = vmatpush.bf16.msra.mxu0 0
      %399 = vmatpush.bf16.msra.mxu0 %v341
      %400 = vmatpush.bf16.msra.mxu0 %v340
      %401 = vmatmul.bf16.gmra.mxu0 %v346
      %v402 = vpop.f32.mrf.mxu0
      %v403 = vadd.f32 %v331, %v402
      %v404 = vpop.f32.mrf.mxu0
      %v405 = vadd.f32 %v331, %v404
      %406 = vmatmul.bf16.gmra.mxu0 %v349
      %v407 = vpop.f32.mrf.mxu0
      %v408 = vadd.f32 %v331, %v407
      %v409 = vpop.f32.mrf.mxu0
      %v410 = vadd.f32 %v331, %v409
      %411 = vmatmul.bf16.gmra.mxu0 %v352
      %v412 = vpop.f32.mrf.mxu0
      %v413 = vadd.f32 %v331, %v412
      %v414 = vpop.f32.mrf.mxu0
      %v415 = vadd.f32 %v331, %v414
      %416 = vmatmul.bf16.gmra.mxu0 %v355
      %v417 = vpop.f32.mrf.mxu0
      %v418 = vadd.f32 %v331, %v417
      %v419 = vpop.f32.mrf.mxu0
      %v420 = vadd.f32 %v331, %v419
      %421 = vmatmul.bf16.gmra.mxu0 %v358
      %v422 = vpop.f32.mrf.mxu0
      %v423 = vadd.f32 %v331, %v422
      %v424 = vpop.f32.mrf.mxu0
      %v425 = vadd.f32 %v331, %v424
      %426 = vmatmul.bf16.gmra.mxu0 %v361
      %v427 = vpop.f32.mrf.mxu0
      %v428 = vadd.f32 %v331, %v427
      %v429 = vpop.f32.mrf.mxu0
      %v430 = vadd.f32 %v331, %v429
      %431 = vmatmul.bf16.gmra.mxu0 %v364
      %v432 = vpop.f32.mrf.mxu0
      %v433 = vadd.f32 %v331, %v432
      %v434 = vpop.f32.mrf.mxu0
      %v435 = vadd.f32 %v331, %v434
      %436 = vmatmul.bf16.gmra.mxu0 %v367
      %v437 = vpop.f32.mrf.mxu0
      %v438 = vadd.f32 %v331, %v437
      %v439 = vpop.f32.mrf.mxu0
      %v440 = vadd.f32 %v331, %v439
      %441 = vmatmul.bf16.gmra.mxu0 %v370
      %v442 = vpop.f32.mrf.mxu0
      %v443 = vadd.f32 %v331, %v442
      %v444 = vpop.f32.mrf.mxu0
      %v445 = vadd.f32 %v331, %v444
      %446 = vmatmul.bf16.gmra.mxu0 %v373
      %v447 = vpop.f32.mrf.mxu0
      %v448 = vadd.f32 %v331, %v447
      %v449 = vpop.f32.mrf.mxu0
      %v450 = vadd.f32 %v331, %v449
      %451 = vmatmul.bf16.gmra.mxu0 %v376
      %v452 = vpop.f32.mrf.mxu0
      %v453 = vadd.f32 %v331, %v452
      %v454 = vpop.f32.mrf.mxu0
      %v455 = vadd.f32 %v331, %v454
      %456 = vmatmul.bf16.gmra.mxu0 %v379
      %v457 = vpop.f32.mrf.mxu0
      %v458 = vadd.f32 %v331, %v457
      %v459 = vpop.f32.mrf.mxu0
      %v460 = vadd.f32 %v331, %v459
      %461 = vmatmul.bf16.gmra.mxu0 %v382
      %v462 = vpop.f32.mrf.mxu0
      %v463 = vadd.f32 %v331, %v462
      %v464 = vpop.f32.mrf.mxu0
      %v465 = vadd.f32 %v331, %v464
      %466 = vmatmul.bf16.gmra.mxu0 %v385
      %v467 = vpop.f32.mrf.mxu0
      %v468 = vadd.f32 %v331, %v467
      %v469 = vpop.f32.mrf.mxu0
      %v470 = vadd.f32 %v331, %v469
      %471 = vmatmul.bf16.gmra.mxu0 %v388
      %v472 = vpop.f32.mrf.mxu0
      %v473 = vadd.f32 %v331, %v472
      %v474 = vpop.f32.mrf.mxu0
      %v475 = vadd.f32 %v331, %v474
      %476 = vmatmul.bf16.gmra.mxu0 %v391
      %v477 = vpop.f32.mrf.mxu0
      %v478 = vadd.f32 %v331, %v477
      %v479 = vpop.f32.mrf.mxu0
      %v480 = vadd.f32 %v331, %v479
      %481 = vdwg.mxu0
      %v482 = vadd.f32 %v403, 3.0
      %v483 = vadd.f32 %v405, 3.0
      %v484 = vadd.f32 %v408, 3.0
      %v485 = vadd.f32 %v410, 3.0
      %v486 = vadd.f32 %v413, 3.0
      %v487 = vadd.f32 %v415, 3.0
      %v488 = vadd.f32 %v418, 3.0
      %v489 = vadd.f32 %v420, 3.0
      %v490 = vadd.f32 %v423, 3.0
      %v491 = vadd.f32 %v425, 3.0
      %v492 = vadd.f32 %v428, 3.0
      %v493 = vadd.f32 %v430, 3.0
      %v494 = vadd.f32 %v433, 3.0
      %v495 = vadd.f32 %v435, 3.0
      %v496 = vadd.f32 %v438, 3.0
      %v497 = vadd.f32 %v440, 3.0
      %v498 = vadd.f32 %v443, 3.0
      %v499 = vadd.f32 %v445, 3.0
      %v500 = vadd.f32 %v448, 3.0
      %v501 = vadd.f32 %v450, 3.0
      %v502 = vadd.f32 %v453, 3.0
      %v503 = vadd.f32 %v455, 3.0
      %v504 = vadd.f32 %v458, 3.0
      %v505 = vadd.f32 %v460, 3.0
      %v506 = vadd.f32 %v463, 3.0
      %v507 = vadd.f32 %v465, 3.0
      %v508 = vadd.f32 %v468, 3.0
      %v509 = vadd.f32 %v470, 3.0
      %v510 = vadd.f32 %v473, 3.0
      %v511 = vadd.f32 %v475, 3.0
      %v512 = vadd.f32 %v478, 3.0
      %v513 = vadd.f32 %v480, 3.0
      %v514 = vmax.f32 %v482, 0.0
      %v515 = vmax.f32 %v483, 0.0
      %v516 = vmax.f32 %v484, 0.0
      %v517 = vmax.f32 %v485, 0.0
      %v518 = vmax.f32 %v486, 0.0
      %v519 = vmax.f32 %v487, 0.0
      %v520 = vmax.f32 %v488, 0.0
      %v521 = vmax.f32 %v489, 0.0
      %v522 = vmax.f32 %v490, 0.0
      %v523 = vmax.f32 %v491, 0.0
      %v524 = vmax.f32 %v492, 0.0
      %v525 = vmax.f32 %v493, 0.0
      %v526 = vmax.f32 %v494, 0.0
      %v527 = vmax.f32 %v495, 0.0
      %v528 = vmax.f32 %v496, 0.0
      %v529 = vmax.f32 %v497, 0.0
      %v530 = vmax.f32 %v498, 0.0
      %v531 = vmax.f32 %v499, 0.0
      %v532 = vmax.f32 %v500, 0.0
      %v533 = vmax.f32 %v501, 0.0
      %v534 = vmax.f32 %v502, 0.0
      %v535 = vmax.f32 %v503, 0.0
      %v536 = vmax.f32 %v504, 0.0
      %v537 = vmax.f32 %v505, 0.0
      %v538 = vmax.f32 %v506, 0.0
      %v539 = vmax.f32 %v507, 0.0
      %v540 = vmax.f32 %v508, 0.0
      %v541 = vmax.f32 %v509, 0.0
      %v542 = vmax.f32 %v510, 0.0
      %v543 = vmax.f32 %v511, 0.0
      %v544 = vmax.f32 %v512, 0.0
      %v545 = vmax.f32 %v513, 0.0
      %v546 = vmin.f32 %v514, 6.0
      %v547 = vmin.f32 %v515, 6.0
      %v548 = vmin.f32 %v516, 6.0
      %v549 = vmin.f32 %v517, 6.0
      %v550 = vmin.f32 %v518, 6.0
      %v551 = vmin.f32 %v519, 6.0
      %v552 = vmin.f32 %v520, 6.0
      %v553 = vmin.f32 %v521, 6.0
      %v554 = vmin.f32 %v522, 6.0
      %v555 = vmin.f32 %v523, 6.0
      %v556 = vmin.f32 %v524, 6.0
      %v557 = vmin.f32 %v525, 6.0
      %v558 = vmin.f32 %v526, 6.0
      %v559 = vmin.f32 %v527, 6.0
      %v560 = vmin.f32 %v528, 6.0
      %v561 = vmin.f32 %v529, 6.0
      %v562 = vmin.f32 %v530, 6.0
      %v563 = vmin.f32 %v531, 6.0
      %v564 = vmin.f32 %v532, 6.0
      %v565 = vmin.f32 %v533, 6.0
      %v566 = vmin.f32 %v534, 6.0
      %v567 = vmin.f32 %v535, 6.0
      %v568 = vmin.f32 %v536, 6.0
      %v569 = vmin.f32 %v537, 6.0
      %v570 = vmin.f32 %v538, 6.0
      %v571 = vmin.f32 %v539, 6.0
      %v572 = vmin.f32 %v540, 6.0
      %v573 = vmin.f32 %v541, 6.0
      %v574 = vmin.f32 %v542, 6.0
      %v575 = vmin.f32 %v543, 6.0
      %v576 = vmin.f32 %v544, 6.0
      %v577 = vmin.f32 %v545, 6.0
      %v578 = vmul.f32 %v403, %v546
      %v579 = vmul.f32 %v405, %v547
      %v580 = vmul.f32 %v408, %v548
      %v581 = vmul.f32 %v410, %v549
      %v582 = vmul.f32 %v413, %v550
      %v583 = vmul.f32 %v415, %v551
      %v584 = vmul.f32 %v418, %v552
      %v585 = vmul.f32 %v420, %v553
      %v586 = vmul.f32 %v423, %v554
      %v587 = vmul.f32 %v425, %v555
      %v588 = vmul.f32 %v428, %v556
      %v589 = vmul.f32 %v430, %v557
      %v590 = vmul.f32 %v433, %v558
      %v591 = vmul.f32 %v435, %v559
      %v592 = vmul.f32 %v438, %v560
      %v593 = vmul.f32 %v440, %v561
      %v594 = vmul.f32 %v443, %v562
      %v595 = vmul.f32 %v445, %v563
      %v596 = vmul.f32 %v448, %v564
      %v597 = vmul.f32 %v450, %v565
      %v598 = vmul.f32 %v453, %v566
      %v599 = vmul.f32 %v455, %v567
      %v600 = vmul.f32 %v458, %v568
      %v601 = vmul.f32 %v460, %v569
      %v602 = vmul.f32 %v463, %v570
      %v603 = vmul.f32 %v465, %v571
      %v604 = vmul.f32 %v468, %v572
      %v605 = vmul.f32 %v470, %v573
      %v606 = vmul.f32 %v473, %v574
      %v607 = vmul.f32 %v475, %v575
      %v608 = vmul.f32 %v478, %v576
      %v609 = vmul.f32 %v480, %v577
      %v610 = vmul.f32 %v578, 0.16666667
      %v611 = vmul.f32 %v579, 0.16666667
      %v612 = vmul.f32 %v580, 0.16666667
      %v613 = vmul.f32 %v581, 0.16666667
      %v614 = vmul.f32 %v582, 0.16666667
      %v615 = vmul.f32 %v583, 0.16666667
      %v616 = vmul.f32 %v584, 0.16666667
      %v617 = vmul.f32 %v585, 0.16666667
      %v618 = vmul.f32 %v586, 0.16666667
      %v619 = vmul.f32 %v587, 0.16666667
      %v620 = vmul.f32 %v588, 0.16666667
      %v621 = vmul.f32 %v589, 0.16666667
      %v622 = vmul.f32 %v590, 0.16666667
      %v623 = vmul.f32 %v591, 0.16666667
      %v624 = vmul.f32 %v592, 0.16666667
      %v625 = vmul.f32 %v593, 0.16666667
      %v626 = vmul.f32 %v594, 0.16666667
      %v627 = vmul.f32 %v595, 0.16666667
      %v628 = vmul.f32 %v596, 0.16666667
      %v629 = vmul.f32 %v597, 0.16666667
      %v630 = vmul.f32 %v598, 0.16666667
      %v631 = vmul.f32 %v599, 0.16666667
      %v632 = vmul.f32 %v600, 0.16666667
      %v633 = vmul.f32 %v601, 0.16666667
      %v634 = vmul.f32 %v602, 0.16666667
      %v635 = vmul.f32 %v603, 0.16666667
      %v636 = vmul.f32 %v604, 0.16666667
      %v637 = vmul.f32 %v605, 0.16666667
      %v638 = vmul.f32 %v606, 0.16666667
      %v639 = vmul.f32 %v607, 0.16666667
      %v640 = vmul.f32 %v608, 0.16666667
      %v641 = vmul.f32 %v609, 0.16666667
      %v642 = vld [vmem:[%s3] sm:$0xff]
      %v643 = vld [vmem:[%s3 + $0x8] sm:$0xff]
      %v644 = vld [vmem:[%s3 + $0x10] sm:$0xff]
      %v645 = vld [vmem:[%s3 + $0x18] sm:$0xff]
      %v646 = vld [vmem:[%s3 + $0x20] sm:$0xff]
      %v647 = vld [vmem:[%s3 + $0x28] sm:$0xff]
      %v648 = vld [vmem:[%s3 + $0x30] sm:$0xff]
      %v649 = vld [vmem:[%s3 + $0x38] sm:$0xff]
      %v650 = vld [vmem:[%s3 + $0x40] sm:$0xff]
      %v651 = vld [vmem:[%s3 + $0x48] sm:$0xff]
      %v652 = vld [vmem:[%s3 + $0x50] sm:$0xff]
      %v653 = vld [vmem:[%s3 + $0x58] sm:$0xff]
      %v654 = vld [vmem:[%s3 + $0x60] sm:$0xff]
      %v655 = vld [vmem:[%s3 + $0x68] sm:$0xff]
      %v656 = vld [vmem:[%s3 + $0x70] sm:$0xff]
      %v657 = vld [vmem:[%s3 + $0x78] sm:$0xff]
      %v658 = vld [vmem:[%s3 + $0x80] sm:$0xff]
      %v659 = vld [vmem:[%s3 + $0x88] sm:$0xff]
      %v660 = vld [vmem:[%s3 + $0x90] sm:$0xff]
      %v661 = vld [vmem:[%s3 + $0x98] sm:$0xff]
      %v662 = vld [vmem:[%s3 + $0xa0] sm:$0xff]
      %v663 = vld [vmem:[%s3 + $0xa8] sm:$0xff]
      %v664 = vld [vmem:[%s3 + $0xb0] sm:$0xff]
      %v665 = vld [vmem:[%s3 + $0xb8] sm:$0xff]
      %v666 = vld [vmem:[%s3 + $0xc0] sm:$0xff]
      %v667 = vld [vmem:[%s3 + $0xc8] sm:$0xff]
      %v668 = vld [vmem:[%s3 + $0xd0] sm:$0xff]
      %v669 = vld [vmem:[%s3 + $0xd8] sm:$0xff]
      %v670 = vld [vmem:[%s3 + $0xe0] sm:$0xff]
      %v671 = vld [vmem:[%s3 + $0xe8] sm:$0xff]
      %v672 = vld [vmem:[%s3 + $0xf0] sm:$0xff]
      %v673 = vld [vmem:[%s3 + $0xf8] sm:$0xff]
      %v674 = vld [vmem:[%s3 + $0x100] sm:$0xff]
      %v675 = vld [vmem:[%s3 + $0x108] sm:$0xff]
      %v676 = vld [vmem:[%s3 + $0x110] sm:$0xff]
      %v677 = vld [vmem:[%s3 + $0x118] sm:$0xff]
      %v678 = vld [vmem:[%s3 + $0x120] sm:$0xff]
      %v679 = vld [vmem:[%s3 + $0x128] sm:$0xff]
      %v680 = vld [vmem:[%s3 + $0x130] sm:$0xff]
      %v681 = vld [vmem:[%s3 + $0x138] sm:$0xff]
      %v682 = vld [vmem:[%s3 + $0x140] sm:$0xff]
      %v683 = vld [vmem:[%s3 + $0x148] sm:$0xff]
      %v684 = vld [vmem:[%s3 + $0x150] sm:$0xff]
      %v685 = vld [vmem:[%s3 + $0x158] sm:$0xff]
      %v686 = vld [vmem:[%s3 + $0x160] sm:$0xff]
      %v687 = vld [vmem:[%s3 + $0x168] sm:$0xff]
      %v688 = vld [vmem:[%s3 + $0x170] sm:$0xff]
      %v689 = vld [vmem:[%s3 + $0x178] sm:$0xff]
      %v690 = vld [vmem:[%s3 + $0x180] sm:$0xff]
      %v691 = vld [vmem:[%s3 + $0x188] sm:$0xff]
      %v692 = vld [vmem:[%s3 + $0x190] sm:$0xff]
      %v693 = vld [vmem:[%s3 + $0x198] sm:$0xff]
      %v694 = vld [vmem:[%s3 + $0x1a0] sm:$0xff]
      %v695 = vld [vmem:[%s3 + $0x1a8] sm:$0xff]
      %v696 = vld [vmem:[%s3 + $0x1b0] sm:$0xff]
      %v697 = vld [vmem:[%s3 + $0x1b8] sm:$0xff]
      %v698 = vld [vmem:[%s3 + $0x1c0] sm:$0xff]
      %v699 = vld [vmem:[%s3 + $0x1c8] sm:$0xff]
      %v700 = vld [vmem:[%s3 + $0x1d0] sm:$0xff]
      %v701 = vld [vmem:[%s3 + $0x1d8] sm:$0xff]
      %v702 = vld [vmem:[%s3 + $0x1e0] sm:$0xff]
      %v703 = vld [vmem:[%s3 + $0x1e8] sm:$0xff]
      %v704 = vld [vmem:[%s3 + $0x1f0] sm:$0xff]
      %v705 = vld [vmem:[%s3 + $0x1f8] sm:$0xff]
      %v706 = vld [vmem:[%s3 + $0x200] sm:$0xff]
      %v707 = vld [vmem:[%s3 + $0x208] sm:$0xff]
      %v708 = vld [vmem:[%s3 + $0x210] sm:$0xff]
      %v709 = vld [vmem:[%s3 + $0x218] sm:$0xff]
      %v710 = vld [vmem:[%s3 + $0x220] sm:$0xff]
      %v711 = vld [vmem:[%s3 + $0x228] sm:$0xff]
      %v712 = vld [vmem:[%s3 + $0x230] sm:$0xff]
      %v713 = vld [vmem:[%s3 + $0x238] sm:$0xff]
      %v714 = vld [vmem:[%s2 + $0x8] sm:$0xff]
      %v715 = vld [vmem:[%s2 + $0x10] sm:$0x1]
      %v716 = vld [vmem:[%s2 + $0x18] sm:$0x1]
      %v717 = vpack.c.bf16 %v611, %v610
      %v718 = vpack.c.bf16 %v613, %v612
      %v719 = vpack.c.bf16 %v615, %v614
      %v720 = vpack.c.bf16 %v617, %v616
      %v721 = vpack.c.bf16 %v619, %v618
      %v722 = vpack.c.bf16 %v621, %v620
      %v723 = vpack.c.bf16 %v623, %v622
      %v724 = vpack.c.bf16 %v625, %v624
      %v725 = vpack.c.bf16 %v627, %v626
      %v726 = vpack.c.bf16 %v629, %v628
      %v727 = vpack.c.bf16 %v631, %v630
      %v728 = vpack.c.bf16 %v633, %v632
      %v729 = vpack.c.bf16 %v635, %v634
      %v730 = vpack.c.bf16 %v637, %v636
      %v731 = vpack.c.bf16 %v639, %v638
      %v732 = vpack.c.bf16 %v641, %v640
      %v805 = vunpack.c.l.b16 %v642
      %v806 = vunpack.c.h.b16 %v642
      %v807 = vunpack.c.l.b16 %v643
      %v808 = vunpack.c.h.b16 %v643
      %v809 = vunpack.c.l.b16 %v644
      %v810 = vunpack.c.h.b16 %v644
      %v811 = vunpack.c.l.b16 %v645
      %v812 = vunpack.c.h.b16 %v645
      %v813 = vunpack.c.l.b16 %v646
      %v814 = vunpack.c.h.b16 %v646
      %v815 = vunpack.c.l.b16 %v647
      %v816 = vunpack.c.h.b16 %v647
      %v817 = vunpack.c.l.b16 %v648
      %v818 = vunpack.c.h.b16 %v648
      %v819 = vunpack.c.l.b16 %v649
      %v820 = vunpack.c.h.b16 %v649
      %v821 = vunpack.c.l.b16 %v650
      %v822 = vunpack.c.h.b16 %v650
      %v823 = vunpack.c.l.b16 %v651
      %v824 = vunpack.c.h.b16 %v651
      %v825 = vunpack.c.l.b16 %v652
      %v826 = vunpack.c.h.b16 %v652
      %v827 = vunpack.c.l.b16 %v653
      %v828 = vunpack.c.h.b16 %v653
      %v829 = vunpack.c.l.b16 %v654
      %v830 = vunpack.c.h.b16 %v654
      %v831 = vunpack.c.l.b16 %v655
      %v832 = vunpack.c.h.b16 %v655
      %v833 = vunpack.c.l.b16 %v656
      %v834 = vunpack.c.h.b16 %v656
      %v835 = vunpack.c.l.b16 %v657
      %v836 = vunpack.c.h.b16 %v657
      %v837 = vunpack.c.l.b16 %v658
      %v838 = vunpack.c.h.b16 %v658
      %v839 = vunpack.c.l.b16 %v659
      %v840 = vunpack.c.h.b16 %v659
      %v841 = vunpack.c.l.b16 %v660
      %v842 = vunpack.c.h.b16 %v660
      %v843 = vunpack.c.l.b16 %v661
      %v844 = vunpack.c.h.b16 %v661
      %v845 = vunpack.c.l.b16 %v662
      %v846 = vunpack.c.h.b16 %v662
      %v847 = vunpack.c.l.b16 %v663
      %v848 = vunpack.c.h.b16 %v663
      %v849 = vunpack.c.l.b16 %v664
      %v850 = vunpack.c.h.b16 %v664
      %v851 = vunpack.c.l.b16 %v665
      %v852 = vunpack.c.h.b16 %v665
      %v853 = vunpack.c.l.b16 %v666
      %v854 = vunpack.c.h.b16 %v666
      %v855 = vunpack.c.l.b16 %v667
      %v856 = vunpack.c.h.b16 %v667
      %v857 = vunpack.c.l.b16 %v668
      %v858 = vunpack.c.h.b16 %v668
      %v859 = vunpack.c.l.b16 %v669
      %v860 = vunpack.c.h.b16 %v669
      %v861 = vunpack.c.l.b16 %v670
      %v862 = vunpack.c.h.b16 %v670
      %v863 = vunpack.c.l.b16 %v671
      %v864 = vunpack.c.h.b16 %v671
      %v865 = vunpack.c.l.b16 %v672
      %v866 = vunpack.c.h.b16 %v672
      %v867 = vunpack.c.l.b16 %v673
      %v868 = vunpack.c.h.b16 %v673
      %v869 = vunpack.c.l.b16 %v674
      %v870 = vunpack.c.h.b16 %v674
      %v871 = vunpack.c.l.b16 %v675
      %v872 = vunpack.c.h.b16 %v675
      %v873 = vunpack.c.l.b16 %v676
      %v874 = vunpack.c.h.b16 %v676
      %v875 = vunpack.c.l.b16 %v677
      %v876 = vunpack.c.h.b16 %v677
      %v877 = vunpack.c.l.b16 %v678
      %v878 = vunpack.c.h.b16 %v678
      %v879 = vunpack.c.l.b16 %v679
      %v880 = vunpack.c.h.b16 %v679
      %v881 = vunpack.c.l.b16 %v680
      %v882 = vunpack.c.h.b16 %v680
      %v883 = vunpack.c.l.b16 %v681
      %v884 = vunpack.c.h.b16 %v681
      %v885 = vunpack.c.l.b16 %v682
      %v886 = vunpack.c.h.b16 %v682
      %v887 = vunpack.c.l.b16 %v683
      %v888 = vunpack.c.h.b16 %v683
      %v889 = vunpack.c.l.b16 %v684
      %v890 = vunpack.c.h.b16 %v684
      %v891 = vunpack.c.l.b16 %v685
      %v892 = vunpack.c.h.b16 %v685
      %v893 = vunpack.c.l.b16 %v686
      %v894 = vunpack.c.h.b16 %v686
      %v895 = vunpack.c.l.b16 %v687
      %v896 = vunpack.c.h.b16 %v687
      %v897 = vunpack.c.l.b16 %v688
      %v898 = vunpack.c.h.b16 %v688
      %v899 = vunpack.c.l.b16 %v689
      %v900 = vunpack.c.h.b16 %v689
      %v901 = vunpack.c.l.b16 %v690
      %v902 = vunpack.c.h.b16 %v690
      %v903 = vunpack.c.l.b16 %v691
      %v904 = vunpack.c.h.b16 %v691
      %v905 = vunpack.c.l.b16 %v692
      %v906 = vunpack.c.h.b16 %v692
      %v907 = vunpack.c.l.b16 %v693
      %v908 = vunpack.c.h.b16 %v693
      %v909 = vunpack.c.l.b16 %v694
      %v910 = vunpack.c.h.b16 %v694
      %v911 = vunpack.c.l.b16 %v695
      %v912 = vunpack.c.h.b16 %v695
      %v913 = vunpack.c.l.b16 %v696
      %v914 = vunpack.c.h.b16 %v696
      %v915 = vunpack.c.l.b16 %v697
      %v916 = vunpack.c.h.b16 %v697
      %v917 = vunpack.c.l.b16 %v698
      %v918 = vunpack.c.h.b16 %v698
      %v919 = vunpack.c.l.b16 %v699
      %v920 = vunpack.c.h.b16 %v699
      %v921 = vunpack.c.l.b16 %v700
      %v922 = vunpack.c.h.b16 %v700
      %v923 = vunpack.c.l.b16 %v701
      %v924 = vunpack.c.h.b16 %v701
      %v925 = vunpack.c.l.b16 %v702
      %v926 = vunpack.c.h.b16 %v702
      %v927 = vunpack.c.l.b16 %v703
      %v928 = vunpack.c.h.b16 %v703
      %v929 = vunpack.c.l.b16 %v704
      %v930 = vunpack.c.h.b16 %v704
      %v931 = vunpack.c.l.b16 %v705
      %v932 = vunpack.c.h.b16 %v705
      %v933 = vunpack.c.l.b16 %v706
      %v934 = vunpack.c.h.b16 %v706
      %v935 = vunpack.c.l.b16 %v707
      %v936 = vunpack.c.h.b16 %v707
      %v937 = vunpack.c.l.b16 %v708
      %v938 = vunpack.c.h.b16 %v708
      %v939 = vunpack.c.l.b16 %v709
      %v940 = vunpack.c.h.b16 %v709
      %v941 = vunpack.c.l.b16 %v710
      %v942 = vunpack.c.h.b16 %v710
      %v943 = vunpack.c.l.b16 %v711
      %v944 = vunpack.c.h.b16 %v711
      %v945 = vunpack.c.l.b16 %v712
      %v946 = vunpack.c.h.b16 %v712
      %v947 = vunpack.c.l.b16 %v713
      %v948 = vunpack.c.h.b16 %v713
      %v949 = vpack.c.b16 %v807, %v805
      %v950 = vpack.c.b16 %v808, %v806
      %v951 = vpack.c.b16 %v811, %v809
      %v952 = vpack.c.b16 %v812, %v810
      %v953 = vpack.c.b16 %v815, %v813
      %v954 = vpack.c.b16 %v816, %v814
      %v955 = vpack.c.b16 %v819, %v817
      %v956 = vpack.c.b16 %v820, %v818
      %v957 = vpack.c.b16 %v823, %v821
      %v958 = vpack.c.b16 %v824, %v822
      %v959 = vpack.c.b16 %v827, %v825
      %v960 = vpack.c.b16 %v828, %v826
      %v961 = vpack.c.b16 %v831, %v829
      %v962 = vpack.c.b16 %v832, %v830
      %v963 = vpack.c.b16 %v835, %v833
      %v964 = vpack.c.b16 %v836, %v834
      %v965 = vpack.c.b16 %v839, %v837
      %v966 = vpack.c.b16 %v840, %v838
      %v967 = vpack.c.b16 %v843, %v841
      %v968 = vpack.c.b16 %v844, %v842
      %v969 = vpack.c.b16 %v847, %v845
      %v970 = vpack.c.b16 %v848, %v846
      %v971 = vpack.c.b16 %v851, %v849
      %v972 = vpack.c.b16 %v852, %v850
      %v973 = vpack.c.b16 %v855, %v853
      %v974 = vpack.c.b16 %v856, %v854
      %v975 = vpack.c.b16 %v859, %v857
      %v976 = vpack.c.b16 %v860, %v858
      %v977 = vpack.c.b16 %v863, %v861
      %v978 = vpack.c.b16 %v864, %v862
      %v979 = vpack.c.b16 %v867, %v865
      %v980 = vpack.c.b16 %v868, %v866
      %v981 = vpack.c.b16 %v871, %v869
      %v982 = vpack.c.b16 %v872, %v870
      %v983 = vpack.c.b16 %v875, %v873
      %v984 = vpack.c.b16 %v876, %v874
      %v985 = vpack.c.b16 %v879, %v877
      %v986 = vpack.c.b16 %v880, %v878
      %v987 = vpack.c.b16 %v883, %v881
      %v988 = vpack.c.b16 %v884, %v882
      %v989 = vpack.c.b16 %v887, %v885
      %v990 = vpack.c.b16 %v888, %v886
      %v991 = vpack.c.b16 %v891, %v889
      %v992 = vpack.c.b16 %v892, %v890
      %v993 = vpack.c.b16 %v895, %v893
      %v994 = vpack.c.b16 %v896, %v894
      %v995 = vpack.c.b16 %v899, %v897
      %v996 = vpack.c.b16 %v900, %v898
      %v997 = vpack.c.b16 %v903, %v901
      %v998 = vpack.c.b16 %v904, %v902
      %v999 = vpack.c.b16 %v907, %v905
      %v1000 = vpack.c.b16 %v908, %v906
      %v1001 = vpack.c.b16 %v911, %v909
      %v1002 = vpack.c.b16 %v912, %v910
      %v1003 = vpack.c.b16 %v915, %v913
      %v1004 = vpack.c.b16 %v916, %v914
      %v1005 = vpack.c.b16 %v919, %v917
      %v1006 = vpack.c.b16 %v920, %v918
      %v1007 = vpack.c.b16 %v923, %v921
      %v1008 = vpack.c.b16 %v924, %v922
      %v1009 = vpack.c.b16 %v927, %v925
      %v1010 = vpack.c.b16 %v928, %v926
      %v1011 = vpack.c.b16 %v931, %v929
      %v1012 = vpack.c.b16 %v932, %v930
      %v1013 = vpack.c.b16 %v935, %v933
      %v1014 = vpack.c.b16 %v936, %v934
      %v1015 = vpack.c.b16 %v939, %v937
      %v1016 = vpack.c.b16 %v940, %v938
      %v1017 = vpack.c.b16 %v943, %v941
      %v1018 = vpack.c.b16 %v944, %v942
      %v1019 = vpack.c.b16 %v947, %v945
      %v1020 = vpack.c.b16 %v948, %v946
      %1093 = vmatpush.bf16.msra.mxu0 %v724
      %1094 = vmatpush.bf16.msra.mxu0 %v723
      %1095 = vmatpush.bf16.msra.mxu0 %v722
      %1096 = vmatpush.bf16.msra.mxu0 %v721
      %1097 = vmatpush.bf16.msra.mxu0 %v720
      %1098 = vmatpush.bf16.msra.mxu0 %v719
      %1099 = vmatpush.bf16.msra.mxu0 %v718
      %1100 = vmatpush.bf16.msra.mxu0 %v717
      %1101 = vmatmul.bf16.gmra.mxu0 %v949
      %v1102 = vpop.f32.mrf.mxu0
      %v1103 = vadd.f32 0.0, %v1102
      %v1104 = vpop.f32.mrf.mxu0
      %v1105 = vadd.f32 0.0, %v1104
      %1106 = vmatmul.bf16.gmra.mxu0 %v951
      %v1107 = vpop.f32.mrf.mxu0
      %v1108 = vadd.f32 0.0, %v1107
      %v1109 = vpop.f32.mrf.mxu0
      %v1110 = vadd.f32 0.0, %v1109
      %1111 = vmatmul.bf16.gmra.mxu0 %v953
      %v1112 = vpop.f32.mrf.mxu0
      %v1113 = vadd.f32 0.0, %v1112
      %v1114 = vpop.f32.mrf.mxu0
      %v1115 = vadd.f32 0.0, %v1114
      %1116 = vmatmul.bf16.gmra.mxu0 %v955
      %v1117 = vpop.f32.mrf.mxu0
      %v1118 = vadd.f32 0.0, %v1117
      %v1119 = vpop.f32.mrf.mxu0
      %v1120 = vadd.f32 0.0, %v1119
      %1121 = vmatmul.bf16.gmra.mxu0 %v957
      %v1122 = vpop.f32.mrf.mxu0
      %v1123 = vadd.f32 0.0, %v1122
      %v1124 = vpop.f32.mrf.mxu0
      %v1125 = vadd.f32 0.0, %v1124
      %1126 = vmatmul.bf16.gmra.mxu0 %v959
      %v1127 = vpop.f32.mrf.mxu0
      %v1128 = vadd.f32 0.0, %v1127
      %v1129 = vpop.f32.mrf.mxu0
      %v1130 = vadd.f32 0.0, %v1129
      %1131 = vmatmul.bf16.gmra.mxu0 %v961
      %v1132 = vpop.f32.mrf.mxu0
      %v1133 = vadd.f32 0.0, %v1132
      %v1134 = vpop.f32.mrf.mxu0
      %v1135 = vadd.f32 0.0, %v1134
      %1136 = vmatmul.bf16.gmra.mxu0 %v963
      %v1137 = vpop.f32.mrf.mxu0
      %v1138 = vadd.f32 0.0, %v1137
      %v1139 = vpop.f32.mrf.mxu0
      %v1140 = vadd.f32 0.0, %v1139
      %1141 = vmatmul.bf16.gmra.mxu0 %v965
      %v1142 = vpop.f32.mrf.mxu0
      %v1143 = vadd.f32 0.0, %v1142
      %v1144 = vpop.f32.mrf.mxu0
      %v1145 = vadd.f32 0.0, %v1144
      %1146 = vmatmul.bf16.gmra.mxu0 %v967
      %v1147 = vpop.f32.mrf.mxu0
      %v1148 = vadd.f32 0.0, %v1147
      %v1149 = vpop.f32.mrf.mxu0
      %v1150 = vadd.f32 0.0, %v1149
      %1151 = vmatmul.bf16.gmra.mxu0 %v969
      %v1152 = vpop.f32.mrf.mxu0
      %v1153 = vadd.f32 0.0, %v1152
      %v1154 = vpop.f32.mrf.mxu0
      %v1155 = vadd.f32 0.0, %v1154
      %1156 = vmatmul.bf16.gmra.mxu0 %v971
      %v1157 = vpop.f32.mrf.mxu0
      %v1158 = vadd.f32 0.0, %v1157
      %v1159 = vpop.f32.mrf.mxu0
      %v1160 = vadd.f32 0.0, %v1159
      %1161 = vmatmul.bf16.gmra.mxu0 %v973
      %v1162 = vpop.f32.mrf.mxu0
      %v1163 = vadd.f32 0.0, %v1162
      %v1164 = vpop.f32.mrf.mxu0
      %v1165 = vadd.f32 0.0, %v1164
      %1166 = vmatmul.bf16.gmra.mxu0 %v975
      %v1167 = vpop.f32.mrf.mxu0
      %v1168 = vadd.f32 0.0, %v1167
      %v1169 = vpop.f32.mrf.mxu0
      %v1170 = vadd.f32 0.0, %v1169
      %1171 = vmatmul.bf16.gmra.mxu0 %v977
      %v1172 = vpop.f32.mrf.mxu0
      %v1173 = vadd.f32 0.0, %v1172
      %v1174 = vpop.f32.mrf.mxu0
      %v1175 = vadd.f32 0.0, %v1174
      %1176 = vmatmul.bf16.gmra.mxu0 %v979
      %v1177 = vpop.f32.mrf.mxu0
      %v1178 = vadd.f32 0.0, %v1177
      %v1179 = vpop.f32.mrf.mxu0
      %v1180 = vadd.f32 0.0, %v1179
      %1181 = vmatmul.bf16.gmra.mxu0 %v981
      %v1182 = vpop.f32.mrf.mxu0
      %v1183 = vadd.f32 0.0, %v1182
      %v1184 = vpop.f32.mrf.mxu0
      %v1185 = vadd.f32 0.0, %v1184
      %1186 = vmatmul.bf16.gmra.mxu0 %v983
      %v1187 = vpop.f32.mrf.mxu0
      %v1188 = vadd.f32 0.0, %v1187
      %v1189 = vpop.f32.mrf.mxu0
      %v1190 = vadd.f32 0.0, %v1189
      %1191 = vmatmul.bf16.gmra.mxu0 %v985
      %v1192 = vpop.f32.mrf.mxu0
      %v1193 = vadd.f32 0.0, %v1192
      %v1194 = vpop.f32.mrf.mxu0
      %v1195 = vadd.f32 0.0, %v1194
      %1196 = vmatmul.bf16.gmra.mxu0 %v987
      %v1197 = vpop.f32.mrf.mxu0
      %v1198 = vadd.f32 0.0, %v1197
      %v1199 = vpop.f32.mrf.mxu0
      %v1200 = vadd.f32 0.0, %v1199
      %1201 = vmatmul.bf16.gmra.mxu0 %v989
      %v1202 = vpop.f32.mrf.mxu0
      %v1203 = vadd.f32 0.0, %v1202
      %v1204 = vpop.f32.mrf.mxu0
      %v1205 = vadd.f32 0.0, %v1204
      %1206 = vmatmul.bf16.gmra.mxu0 %v991
      %v1207 = vpop.f32.mrf.mxu0
      %v1208 = vadd.f32 0.0, %v1207
      %v1209 = vpop.f32.mrf.mxu0
      %v1210 = vadd.f32 0.0, %v1209
      %1211 = vmatmul.bf16.gmra.mxu0 %v993
      %v1212 = vpop.f32.mrf.mxu0
      %v1213 = vadd.f32 0.0, %v1212
      %v1214 = vpop.f32.mrf.mxu0
      %v1215 = vadd.f32 0.0, %v1214
      %1216 = vmatmul.bf16.gmra.mxu0 %v995
      %v1217 = vpop.f32.mrf.mxu0
      %v1218 = vadd.f32 0.0, %v1217
      %v1219 = vpop.f32.mrf.mxu0
      %v1220 = vadd.f32 0.0, %v1219
      %1221 = vmatmul.bf16.gmra.mxu0 %v997
      %v1222 = vpop.f32.mrf.mxu0
      %v1223 = vadd.f32 0.0, %v1222
      %v1224 = vpop.f32.mrf.mxu0
      %v1225 = vadd.f32 0.0, %v1224
      %1226 = vmatmul.bf16.gmra.mxu0 %v999
      %v1227 = vpop.f32.mrf.mxu0
      %v1228 = vadd.f32 0.0, %v1227
      %v1229 = vpop.f32.mrf.mxu0
      %v1230 = vadd.f32 0.0, %v1229
      %1231 = vmatmul.bf16.gmra.mxu0 %v1001
      %v1232 = vpop.f32.mrf.mxu0
      %v1233 = vadd.f32 0.0, %v1232
      %v1234 = vpop.f32.mrf.mxu0
      %v1235 = vadd.f32 0.0, %v1234
      %1236 = vmatmul.bf16.gmra.mxu0 %v1003
      %v1237 = vpop.f32.mrf.mxu0
      %v1238 = vadd.f32 0.0, %v1237
      %v1239 = vpop.f32.mrf.mxu0
      %v1240 = vadd.f32 0.0, %v1239
      %1241 = vmatmul.bf16.gmra.mxu0 %v1005
      %v1242 = vpop.f32.mrf.mxu0
      %v1243 = vadd.f32 0.0, %v1242
      %v1244 = vpop.f32.mrf.mxu0
      %v1245 = vadd.f32 0.0, %v1244
      %1246 = vmatmul.bf16.gmra.mxu0 %v1007
      %v1247 = vpop.f32.mrf.mxu0
      %v1248 = vadd.f32 0.0, %v1247
      %v1249 = vpop.f32.mrf.mxu0
      %v1250 = vadd.f32 0.0, %v1249
      %1251 = vmatmul.bf16.gmra.mxu0 %v1009
      %v1252 = vpop.f32.mrf.mxu0
      %v1253 = vadd.f32 0.0, %v1252
      %v1254 = vpop.f32.mrf.mxu0
      %v1255 = vadd.f32 0.0, %v1254
      %1256 = vmatmul.bf16.gmra.mxu0 %v1011
      %v1257 = vpop.f32.mrf.mxu0
      %v1258 = vadd.f32 0.0, %v1257
      %v1259 = vpop.f32.mrf.mxu0
      %v1260 = vadd.f32 0.0, %v1259
      %1261 = vmatmul.bf16.gmra.mxu0 %v1013
      %v1262 = vpop.f32.mrf.mxu0
      %v1263 = vadd.f32 0.0, %v1262
      %v1264 = vpop.f32.mrf.mxu0
      %v1265 = vadd.f32 0.0, %v1264
      %1266 = vmatmul.bf16.gmra.mxu0 %v1015
      %v1267 = vpop.f32.mrf.mxu0
      %v1268 = vadd.f32 0.0, %v1267
      %v1269 = vpop.f32.mrf.mxu0
      %v1270 = vadd.f32 0.0, %v1269
      %1271 = vmatmul.bf16.gmra.mxu0 %v1017
      %v1272 = vpop.f32.mrf.mxu0
      %v1273 = vadd.f32 0.0, %v1272
      %v1274 = vpop.f32.mrf.mxu0
      %v1275 = vadd.f32 0.0, %v1274
      %1276 = vmatmul.bf16.gmra.mxu0 %v1019
      %v1277 = vpop.f32.mrf.mxu0
      %v1278 = vadd.f32 0.0, %v1277
      %v1279 = vpop.f32.mrf.mxu0
      %v1280 = vadd.f32 0.0, %v1279
      %1281 = vdwg.mxu0
      %1282 = vmatpush.bf16.msra.mxu0 %v732
      %1283 = vmatpush.bf16.msra.mxu0 %v731
      %1284 = vmatpush.bf16.msra.mxu0 %v730
      %1285 = vmatpush.bf16.msra.mxu0 %v729
      %1286 = vmatpush.bf16.msra.mxu0 %v728
      %1287 = vmatpush.bf16.msra.mxu0 %v727
      %1288 = vmatpush.bf16.msra.mxu0 %v726
      %1289 = vmatpush.bf16.msra.mxu0 %v725
      %1290 = vmatmul.bf16.gmra.mxu0 %v950
      %v1291 = vpop.f32.mrf.mxu0
      %v1292 = vadd.f32 %v1103, %v1291
      %v1293 = vpop.f32.mrf.mxu0
      %v1294 = vadd.f32 %v1105, %v1293
      %1295 = vmatmul.bf16.gmra.mxu0 %v952
      %v1296 = vpop.f32.mrf.mxu0
      %v1297 = vadd.f32 %v1108, %v1296
      %v1298 = vpop.f32.mrf.mxu0
      %v1299 = vadd.f32 %v1110, %v1298
      %1300 = vmatmul.bf16.gmra.mxu0 %v954
      %v1301 = vpop.f32.mrf.mxu0
      %v1302 = vadd.f32 %v1113, %v1301
      %v1303 = vpop.f32.mrf.mxu0
      %v1304 = vadd.f32 %v1115, %v1303
      %1305 = vmatmul.bf16.gmra.mxu0 %v956
      %v1306 = vpop.f32.mrf.mxu0
      %v1307 = vadd.f32 %v1118, %v1306
      %v1308 = vpop.f32.mrf.mxu0
      %v1309 = vadd.f32 %v1120, %v1308
      %1310 = vmatmul.bf16.gmra.mxu0 %v958
      %v1311 = vpop.f32.mrf.mxu0
      %v1312 = vadd.f32 %v1123, %v1311
      %v1313 = vpop.f32.mrf.mxu0
      %v1314 = vadd.f32 %v1125, %v1313
      %1315 = vmatmul.bf16.gmra.mxu0 %v960
      %v1316 = vpop.f32.mrf.mxu0
      %v1317 = vadd.f32 %v1128, %v1316
      %v1318 = vpop.f32.mrf.mxu0
      %v1319 = vadd.f32 %v1130, %v1318
      %1320 = vmatmul.bf16.gmra.mxu0 %v962
      %v1321 = vpop.f32.mrf.mxu0
      %v1322 = vadd.f32 %v1133, %v1321
      %v1323 = vpop.f32.mrf.mxu0
      %v1324 = vadd.f32 %v1135, %v1323
      %1325 = vmatmul.bf16.gmra.mxu0 %v964
      %v1326 = vpop.f32.mrf.mxu0
      %v1327 = vadd.f32 %v1138, %v1326
      %v1328 = vpop.f32.mrf.mxu0
      %v1329 = vadd.f32 %v1140, %v1328
      %1330 = vmatmul.bf16.gmra.mxu0 %v966
      %v1331 = vpop.f32.mrf.mxu0
      %v1332 = vadd.f32 %v1143, %v1331
      %v1333 = vpop.f32.mrf.mxu0
      %v1334 = vadd.f32 %v1145, %v1333
      %1335 = vmatmul.bf16.gmra.mxu0 %v968
      %v1336 = vpop.f32.mrf.mxu0
      %v1337 = vadd.f32 %v1148, %v1336
      %v1338 = vpop.f32.mrf.mxu0
      %v1339 = vadd.f32 %v1150, %v1338
      %1340 = vmatmul.bf16.gmra.mxu0 %v970
      %v1341 = vpop.f32.mrf.mxu0
      %v1342 = vadd.f32 %v1153, %v1341
      %v1343 = vpop.f32.mrf.mxu0
      %v1344 = vadd.f32 %v1155, %v1343
      %1345 = vmatmul.bf16.gmra.mxu0 %v972
      %v1346 = vpop.f32.mrf.mxu0
      %v1347 = vadd.f32 %v1158, %v1346
      %v1348 = vpop.f32.mrf.mxu0
      %v1349 = vadd.f32 %v1160, %v1348
      %1350 = vmatmul.bf16.gmra.mxu0 %v974
      %v1351 = vpop.f32.mrf.mxu0
      %v1352 = vadd.f32 %v1163, %v1351
      %v1353 = vpop.f32.mrf.mxu0
      %v1354 = vadd.f32 %v1165, %v1353
      %1355 = vmatmul.bf16.gmra.mxu0 %v976
      %v1356 = vpop.f32.mrf.mxu0
      %v1357 = vadd.f32 %v1168, %v1356
      %v1358 = vpop.f32.mrf.mxu0
      %v1359 = vadd.f32 %v1170, %v1358
      %1360 = vmatmul.bf16.gmra.mxu0 %v978
      %v1361 = vpop.f32.mrf.mxu0
      %v1362 = vadd.f32 %v1173, %v1361
      %v1363 = vpop.f32.mrf.mxu0
      %v1364 = vadd.f32 %v1175, %v1363
      %1365 = vmatmul.bf16.gmra.mxu0 %v980
      %v1366 = vpop.f32.mrf.mxu0
      %v1367 = vadd.f32 %v1178, %v1366
      %v1368 = vpop.f32.mrf.mxu0
      %v1369 = vadd.f32 %v1180, %v1368
      %1370 = vmatmul.bf16.gmra.mxu0 %v982
      %v1371 = vpop.f32.mrf.mxu0
      %v1372 = vadd.f32 %v1183, %v1371
      %v1373 = vpop.f32.mrf.mxu0
      %v1374 = vadd.f32 %v1185, %v1373
      %1375 = vmatmul.bf16.gmra.mxu0 %v984
      %v1376 = vpop.f32.mrf.mxu0
      %v1377 = vadd.f32 %v1188, %v1376
      %v1378 = vpop.f32.mrf.mxu0
      %v1379 = vadd.f32 %v1190, %v1378
      %1380 = vmatmul.bf16.gmra.mxu0 %v986
      %v1381 = vpop.f32.mrf.mxu0
      %v1382 = vadd.f32 %v1193, %v1381
      %v1383 = vpop.f32.mrf.mxu0
      %v1384 = vadd.f32 %v1195, %v1383
      %1385 = vmatmul.bf16.gmra.mxu0 %v988
      %v1386 = vpop.f32.mrf.mxu0
      %v1387 = vadd.f32 %v1198, %v1386
      %v1388 = vpop.f32.mrf.mxu0
      %v1389 = vadd.f32 %v1200, %v1388
      %1390 = vmatmul.bf16.gmra.mxu0 %v990
      %v1391 = vpop.f32.mrf.mxu0
      %v1392 = vadd.f32 %v1203, %v1391
      %v1393 = vpop.f32.mrf.mxu0
      %v1394 = vadd.f32 %v1205, %v1393
      %1395 = vmatmul.bf16.gmra.mxu0 %v992
      %v1396 = vpop.f32.mrf.mxu0
      %v1397 = vadd.f32 %v1208, %v1396
      %v1398 = vpop.f32.mrf.mxu0
      %v1399 = vadd.f32 %v1210, %v1398
      %1400 = vmatmul.bf16.gmra.mxu0 %v994
      %v1401 = vpop.f32.mrf.mxu0
      %v1402 = vadd.f32 %v1213, %v1401
      %v1403 = vpop.f32.mrf.mxu0
      %v1404 = vadd.f32 %v1215, %v1403
      %1405 = vmatmul.bf16.gmra.mxu0 %v996
      %v1406 = vpop.f32.mrf.mxu0
      %v1407 = vadd.f32 %v1218, %v1406
      %v1408 = vpop.f32.mrf.mxu0
      %v1409 = vadd.f32 %v1220, %v1408
      %1410 = vmatmul.bf16.gmra.mxu0 %v998
      %v1411 = vpop.f32.mrf.mxu0
      %v1412 = vadd.f32 %v1223, %v1411
      %v1413 = vpop.f32.mrf.mxu0
      %v1414 = vadd.f32 %v1225, %v1413
      %1415 = vmatmul.bf16.gmra.mxu0 %v1000
      %v1416 = vpop.f32.mrf.mxu0
      %v1417 = vadd.f32 %v1228, %v1416
      %v1418 = vpop.f32.mrf.mxu0
      %v1419 = vadd.f32 %v1230, %v1418
      %1420 = vmatmul.bf16.gmra.mxu0 %v1002
      %v1421 = vpop.f32.mrf.mxu0
      %v1422 = vadd.f32 %v1233, %v1421
      %v1423 = vpop.f32.mrf.mxu0
      %v1424 = vadd.f32 %v1235, %v1423
      %1425 = vmatmul.bf16.gmra.mxu0 %v1004
      %v1426 = vpop.f32.mrf.mxu0
      %v1427 = vadd.f32 %v1238, %v1426
      %v1428 = vpop.f32.mrf.mxu0
      %v1429 = vadd.f32 %v1240, %v1428
      %1430 = vmatmul.bf16.gmra.mxu0 %v1006
      %v1431 = vpop.f32.mrf.mxu0
      %v1432 = vadd.f32 %v1243, %v1431
      %v1433 = vpop.f32.mrf.mxu0
      %v1434 = vadd.f32 %v1245, %v1433
      %1435 = vmatmul.bf16.gmra.mxu0 %v1008
      %v1436 = vpop.f32.mrf.mxu0
      %v1437 = vadd.f32 %v1248, %v1436
      %v1438 = vpop.f32.mrf.mxu0
      %v1439 = vadd.f32 %v1250, %v1438
      %1440 = vmatmul.bf16.gmra.mxu0 %v1010
      %v1441 = vpop.f32.mrf.mxu0
      %v1442 = vadd.f32 %v1253, %v1441
      %v1443 = vpop.f32.mrf.mxu0
      %v1444 = vadd.f32 %v1255, %v1443
      %1445 = vmatmul.bf16.gmra.mxu0 %v1012
      %v1446 = vpop.f32.mrf.mxu0
      %v1447 = vadd.f32 %v1258, %v1446
      %v1448 = vpop.f32.mrf.mxu0
      %v1449 = vadd.f32 %v1260, %v1448
      %1450 = vmatmul.bf16.gmra.mxu0 %v1014
      %v1451 = vpop.f32.mrf.mxu0
      %v1452 = vadd.f32 %v1263, %v1451
      %v1453 = vpop.f32.mrf.mxu0
      %v1454 = vadd.f32 %v1265, %v1453
      %1455 = vmatmul.bf16.gmra.mxu0 %v1016
      %v1456 = vpop.f32.mrf.mxu0
      %v1457 = vadd.f32 %v1268, %v1456
      %v1458 = vpop.f32.mrf.mxu0
      %v1459 = vadd.f32 %v1270, %v1458
      %1460 = vmatmul.bf16.gmra.mxu0 %v1018
      %v1461 = vpop.f32.mrf.mxu0
      %v1462 = vadd.f32 %v1273, %v1461
      %v1463 = vpop.f32.mrf.mxu0
      %v1464 = vadd.f32 %v1275, %v1463
      %1465 = vmatmul.bf16.gmra.mxu0 %v1020
      %v1466 = vpop.f32.mrf.mxu0
      %v1467 = vadd.f32 %v1278, %v1466
      %v1468 = vpop.f32.mrf.mxu0
      %v1469 = vadd.f32 %v1280, %v1468
      %1470 = vdwg.mxu0
      %v1471 = vperm.slane %v714, 0
      %v1472 = vmul.f32 %v1292, %v1471
      %v1473 = vmul.f32 %v1294, %v1471
      %v1474 = vmul.f32 %v1297, %v1471
      %v1475 = vmul.f32 %v1299, %v1471
      %v1476 = vmul.f32 %v1302, %v1471
      %v1477 = vmul.f32 %v1304, %v1471
      %v1478 = vmul.f32 %v1307, %v1471
      %v1479 = vmul.f32 %v1309, %v1471
      %v1480 = vperm.slane %v714, 1
      %v1481 = vmul.f32 %v1312, %v1480
      %v1482 = vmul.f32 %v1314, %v1480
      %v1483 = vmul.f32 %v1317, %v1480
      %v1484 = vmul.f32 %v1319, %v1480
      %v1485 = vmul.f32 %v1322, %v1480
      %v1486 = vmul.f32 %v1324, %v1480
      %v1487 = vmul.f32 %v1327, %v1480
      %v1488 = vmul.f32 %v1329, %v1480
      %v1489 = vadd.f32 %v1472, %v1481
      %v1490 = vadd.f32 %v1473, %v1482
      %v1491 = vadd.f32 %v1474, %v1483
      %v1492 = vadd.f32 %v1475, %v1484
      %v1493 = vadd.f32 %v1476, %v1485
      %v1494 = vadd.f32 %v1477, %v1486
      %v1495 = vadd.f32 %v1478, %v1487
      %v1496 = vadd.f32 %v1479, %v1488
      %v1497 = vperm.slane %v714, 2
      %v1498 = vmul.f32 %v1332, %v1497
      %v1499 = vmul.f32 %v1334, %v1497
      %v1500 = vmul.f32 %v1337, %v1497
      %v1501 = vmul.f32 %v1339, %v1497
      %v1502 = vmul.f32 %v1342, %v1497
      %v1503 = vmul.f32 %v1344, %v1497
      %v1504 = vmul.f32 %v1347, %v1497
      %v1505 = vmul.f32 %v1349, %v1497
      %v1506 = vadd.f32 %v1489, %v1498
      %v1507 = vadd.f32 %v1490, %v1499
      %v1508 = vadd.f32 %v1491, %v1500
      %v1509 = vadd.f32 %v1492, %v1501
      %v1510 = vadd.f32 %v1493, %v1502
      %v1511 = vadd.f32 %v1494, %v1503
      %v1512 = vadd.f32 %v1495, %v1504
      %v1513 = vadd.f32 %v1496, %v1505
      %v1514 = vperm.slane %v714, 3
      %v1515 = vmul.f32 %v1352, %v1514
      %v1516 = vmul.f32 %v1354, %v1514
      %v1517 = vmul.f32 %v1357, %v1514
      %v1518 = vmul.f32 %v1359, %v1514
      %v1519 = vmul.f32 %v1362, %v1514
      %v1520 = vmul.f32 %v1364, %v1514
      %v1521 = vmul.f32 %v1367, %v1514
      %v1522 = vmul.f32 %v1369, %v1514
      %v1523 = vadd.f32 %v1506, %v1515
      %v1524 = vadd.f32 %v1507, %v1516
      %v1525 = vadd.f32 %v1508, %v1517
      %v1526 = vadd.f32 %v1509, %v1518
      %v1527 = vadd.f32 %v1510, %v1519
      %v1528 = vadd.f32 %v1511, %v1520
      %v1529 = vadd.f32 %v1512, %v1521
      %v1530 = vadd.f32 %v1513, %v1522
      %v1531 = vperm.slane %v714, 4
      %v1532 = vmul.f32 %v1372, %v1531
      %v1533 = vmul.f32 %v1374, %v1531
      %v1534 = vmul.f32 %v1377, %v1531
      %v1535 = vmul.f32 %v1379, %v1531
      %v1536 = vmul.f32 %v1382, %v1531
      %v1537 = vmul.f32 %v1384, %v1531
      %v1538 = vmul.f32 %v1387, %v1531
      %v1539 = vmul.f32 %v1389, %v1531
      %v1540 = vadd.f32 %v1523, %v1532
      %v1541 = vadd.f32 %v1524, %v1533
      %v1542 = vadd.f32 %v1525, %v1534
      %v1543 = vadd.f32 %v1526, %v1535
      %v1544 = vadd.f32 %v1527, %v1536
      %v1545 = vadd.f32 %v1528, %v1537
      %v1546 = vadd.f32 %v1529, %v1538
      %v1547 = vadd.f32 %v1530, %v1539
      %v1548 = vperm.slane %v714, 5
      %v1549 = vmul.f32 %v1392, %v1548
      %v1550 = vmul.f32 %v1394, %v1548
      %v1551 = vmul.f32 %v1397, %v1548
      %v1552 = vmul.f32 %v1399, %v1548
      %v1553 = vmul.f32 %v1402, %v1548
      %v1554 = vmul.f32 %v1404, %v1548
      %v1555 = vmul.f32 %v1407, %v1548
      %v1556 = vmul.f32 %v1409, %v1548
      %v1557 = vadd.f32 %v1540, %v1549
      %v1558 = vadd.f32 %v1541, %v1550
      %v1559 = vadd.f32 %v1542, %v1551
      %v1560 = vadd.f32 %v1543, %v1552
      %v1561 = vadd.f32 %v1544, %v1553
      %v1562 = vadd.f32 %v1545, %v1554
      %v1563 = vadd.f32 %v1546, %v1555
      %v1564 = vadd.f32 %v1547, %v1556
      %v1565 = vperm.slane %v714, 6
      %v1566 = vmul.f32 %v1412, %v1565
      %v1567 = vmul.f32 %v1414, %v1565
      %v1568 = vmul.f32 %v1417, %v1565
      %v1569 = vmul.f32 %v1419, %v1565
      %v1570 = vmul.f32 %v1422, %v1565
      %v1571 = vmul.f32 %v1424, %v1565
      %v1572 = vmul.f32 %v1427, %v1565
      %v1573 = vmul.f32 %v1429, %v1565
      %v1574 = vadd.f32 %v1557, %v1566
      %v1575 = vadd.f32 %v1558, %v1567
      %v1576 = vadd.f32 %v1559, %v1568
      %v1577 = vadd.f32 %v1560, %v1569
      %v1578 = vadd.f32 %v1561, %v1570
      %v1579 = vadd.f32 %v1562, %v1571
      %v1580 = vadd.f32 %v1563, %v1572
      %v1581 = vadd.f32 %v1564, %v1573
      %v1582 = vperm.slane %v714, 7
      %v1583 = vmul.f32 %v1432, %v1582
      %v1584 = vmul.f32 %v1434, %v1582
      %v1585 = vmul.f32 %v1437, %v1582
      %v1586 = vmul.f32 %v1439, %v1582
      %v1587 = vmul.f32 %v1442, %v1582
      %v1588 = vmul.f32 %v1444, %v1582
      %v1589 = vmul.f32 %v1447, %v1582
      %v1590 = vmul.f32 %v1449, %v1582
      %v1591 = vadd.f32 %v1574, %v1583
      %v1592 = vadd.f32 %v1575, %v1584
      %v1593 = vadd.f32 %v1576, %v1585
      %v1594 = vadd.f32 %v1577, %v1586
      %v1595 = vadd.f32 %v1578, %v1587
      %v1596 = vadd.f32 %v1579, %v1588
      %v1597 = vadd.f32 %v1580, %v1589
      %v1598 = vadd.f32 %v1581, %v1590
      %v1599 = vperm.slane %v715, 0
      %v1600 = vmul.f32 %v1452, %v1599
      %v1601 = vmul.f32 %v1454, %v1599
      %v1602 = vmul.f32 %v1457, %v1599
      %v1603 = vmul.f32 %v1459, %v1599
      %v1604 = vmul.f32 %v1462, %v1599
      %v1605 = vmul.f32 %v1464, %v1599
      %v1606 = vmul.f32 %v1467, %v1599
      %v1607 = vmul.f32 %v1469, %v1599
      %v1608 = vadd.f32 %v1591, %v1600
      %v1609 = vadd.f32 %v1592, %v1601
      %v1610 = vadd.f32 %v1593, %v1602
      %v1611 = vadd.f32 %v1594, %v1603
      %v1612 = vadd.f32 %v1595, %v1604
      %v1613 = vadd.f32 %v1596, %v1605
      %v1614 = vadd.f32 %v1597, %v1606
      %v1615 = vadd.f32 %v1598, %v1607
      %v1616 = vperm.slane %v716, 0
      %v1617 = vadd.f32 %v1608, %v1616
      %v1618 = vadd.f32 %v1609, %v1616
      %v1619 = vadd.f32 %v1610, %v1616
      %v1620 = vadd.f32 %v1611, %v1616
      %v1621 = vadd.f32 %v1612, %v1616
      %v1622 = vadd.f32 %v1613, %v1616
      %v1623 = vadd.f32 %v1614, %v1616
      %v1624 = vadd.f32 %v1615, %v1616
      %v1625 = vmax.f32 %v1617, 0.0
      %v1626 = vmax.f32 %v1618, 0.0
      %v1627 = vmax.f32 %v1619, 0.0
      %v1628 = vmax.f32 %v1620, 0.0
      %v1629 = vmax.f32 %v1621, 0.0
      %v1630 = vmax.f32 %v1622, 0.0
      %v1631 = vmax.f32 %v1623, 0.0
      %v1632 = vmax.f32 %v1624, 0.0
      %v1633 = vld [vmem:[%s1 + $0x10] sm:$0xf]
      %v1634 = vld [vmem:[%s1 + $0x14] sm:$0xf]
      %v1635 = vld [vmem:[%s2 + $0x20] sm:$0x1]
      %v1636 = vld [vmem:[%s1 + $0x18] sm:$0xf]
      %v1637 = vld [vmem:[%s2 + $0x28] sm:$0x1]
      %vm1638 = vcmask 130048
      %v1639 = vsel %vm1638, %v1625, 0.0
      %v1640 = vsel %vm1638, %v1626, 0.0
      %v1641 = vadd.f32 %v1639, %v1640
      %v1642 = vrot.slane %v1641, 4
      %v1643 = vadd.f32 %v1641, %v1642
      %v1644 = vrot.slane %v1643, 2
      %v1645 = vadd.f32 %v1643, %v1644
      %v1646 = vrot.slane %v1645, 1
      %v1647 = vadd.f32 %v1645, %v1646
      %v1648 = vrcp.pop 16.0
      %v1649 = vmul.f32 16.0, %v1648
      %v1650 = vsub.f32 1.0, %v1649
      %v1651 = vmul.f32 %v1648, %v1650
      %v1652 = vadd.f32 %v1648, %v1651
      %vm1653 = vweird.f32 %v1648
      %v1654 = vsel %vm1653, %v1648, %v1652
      %v1655 = vmul.f32 %v1647, %v1654
      %v1656 = vsel %vm1638, %v1627, 0.0
      %v1657 = vsel %vm1638, %v1628, 0.0
      %v1658 = vadd.f32 %v1656, %v1657
      %v1659 = vrot.slane %v1658, 4
      %v1660 = vadd.f32 %v1658, %v1659
      %v1661 = vrot.slane %v1660, 2
      %v1662 = vadd.f32 %v1660, %v1661
      %v1663 = vrot.slane %v1662, 1
      %v1664 = vadd.f32 %v1662, %v1663
      %v1665 = vmul.f32 %v1664, %v1654
      %v1666 = vsel %vm1638, %v1629, 0.0
      %v1667 = vsel %vm1638, %v1630, 0.0
      %v1668 = vadd.f32 %v1666, %v1667
      %v1669 = vrot.slane %v1668, 4
      %v1670 = vadd.f32 %v1668, %v1669
      %v1671 = vrot.slane %v1670, 2
      %v1672 = vadd.f32 %v1670, %v1671
      %v1673 = vrot.slane %v1672, 1
      %v1674 = vadd.f32 %v1672, %v1673
      %v1675 = vmul.f32 %v1674, %v1654
      %v1676 = vsel %vm1638, %v1631, 0.0
      %v1677 = vsel %vm1638, %v1632, 0.0
      %v1678 = vadd.f32 %v1676, %v1677
      %v1679 = vrot.slane %v1678, 4
      %v1680 = vadd.f32 %v1678, %v1679
      %v1681 = vrot.slane %v1680, 2
      %v1682 = vadd.f32 %v1680, %v1681
      %v1683 = vrot.slane %v1682, 1
      %v1684 = vadd.f32 %v1682, %v1683
      %v1685 = vmul.f32 %v1684, %v1654
      %vm1686 = vcmask 1040384
      %v1687 = vsel %vm1686, %v1655, %v1665
      %vm1688 = vcmask 1041408
      %v1689 = vsel %vm1688, %v1687, %v1675
      %vm1690 = vcmask 1042432
      %v1691 = vsel %vm1690, %v1689, %v1685
      %v1692 = vpack.c.bf16 %v1691, %v1691
      %v1693 = vperm.slane %v1635, 0
      %v1696 = vunpack.c.l.b16 %v1633
      %v1697 = vunpack.c.l.b16 %v1634
      %v1698 = vpack.c.b16 %v1697, %v1696
      %v1701 = vsel %vm1638, %v1692, 0
      %1703 = vmatpush.bf16.msra.mxu0 0
      %1704 = vmatpush.bf16.msra.mxu0 0
      %1705 = vmatpush.bf16.msra.mxu0 0
      %1706 = vmatpush.bf16.msra.mxu0 0
      %1707 = vmatpush.bf16.msra.mxu0 0
      %1708 = vmatpush.bf16.msra.mxu0 0
      %1709 = vmatpush.bf16.msra.mxu0 0
      %1710 = vmatpush.bf16.msra.mxu0 %v1698
      %1711 = vmatmul.bf16.gmra.mxu0 %v1701
      %v1712 = vpop.f32.mrf.mxu0
      %v1713 = vadd.f32 %v1693, %v1712
      %v1714 = vpop.f32.mrf.mxu0
      %1715 = vdwg.mxu0
      %v1716 = vmax.f32 %v1713, 0.0
      %v1717 = vpack.c.bf16 %v1716, %v1716
      %v1718 = vperm.slane %v1637, 0
      %vm1719 = vcmask 64512
      %v1721 = vsel %vm1719, %v1717, 0
      %vm1723 = vcmask 1043456
      %v1725 = vsel %vm1723, %v1636, 0
      %1727 = vmatpush.bf16.msra.mxu0 0
      %1728 = vmatpush.bf16.msra.mxu0 0
      %1729 = vmatpush.bf16.msra.mxu0 0
      %1730 = vmatpush.bf16.msra.mxu0 0
      %1731 = vmatpush.bf16.msra.mxu0 0
      %1732 = vmatpush.bf16.msra.mxu0 0
      %1733 = vmatpush.bf16.msra.mxu0 0
      %1734 = vmatpush.bf16.msra.mxu0 %v1725
      %1735 = vmatmul.bf16.gmra.mxu0 %v1721
      %v1736 = vpop.f32.mrf.mxu0
      %v1737 = vadd.f32 %v1718, %v1736
      %v1738 = vpop.f32.mrf.mxu0
      %1739 = vdwg.mxu0
      %v1740 = vadd.f32 %v1737, 3.0
      %v1741 = vmax.f32 %v1740, 0.0
      %v1742 = vmin.f32 %v1741, 6.0
      %v1743 = vmul.f32 %v1742, 0.16666667
      %v1744 = vperm.slane %v1743, 0
      %v1745 = vperm.slane %v1743, 1
      %v1746 = vperm.slane %v1743, 2
      %v1747 = vperm.slane %v1743, 3
      %v1748 = vmul.f32 %v1625, %v1744
      %v1749 = vmul.f32 %v1626, %v1744
      %v1750 = vmul.f32 %v1627, %v1745
      %v1751 = vmul.f32 %v1628, %v1745
      %v1752 = vmul.f32 %v1629, %v1746
      %v1753 = vmul.f32 %v1630, %v1746
      %v1754 = vmul.f32 %v1631, %v1747
      %v1755 = vmul.f32 %v1632, %v1747
      %v1756 = vld [vmem:[%s1 + $0x20] sm:$0xf]
      %v1757 = vld [vmem:[%s1 + $0x24] sm:$0xf]
      %v1758 = vld [vmem:[%s2 + $0x30] sm:$0x1]
      %v1759 = vpack.c.bf16 %v1749, %v1748
      %v1760 = vpack.c.bf16 %v1751, %v1750
      %v1761 = vpack.c.bf16 %v1753, %v1752
      %v1762 = vpack.c.bf16 %v1755, %v1754
      %v1763 = vperm.slane %v1758, 0
      %v1766 = vunpack.c.l.b16 %v1756
      %v1767 = vunpack.c.l.b16 %v1757
      %v1768 = vpack.c.b16 %v1767, %v1766
      %v1771 = vsel %vm1638, %v1759, 0
      %v1774 = vsel %vm1638, %v1760, 0
      %v1777 = vsel %vm1638, %v1761, 0
      %v1780 = vsel %vm1638, %v1762, 0
      %1782 = vmatpush.bf16.msra.mxu0 0
      %1783 = vmatpush.bf16.msra.mxu0 0
      %1784 = vmatpush.bf16.msra.mxu0 0
      %1785 = vmatpush.bf16.msra.mxu0 0
      %1786 = vmatpush.bf16.msra.mxu0 0
      %1787 = vmatpush.bf16.msra.mxu0 0
      %1788 = vmatpush.bf16.msra.mxu0 0
      %1789 = vmatpush.bf16.msra.mxu0 %v1768
      %1790 = vmatmul.bf16.gmra.mxu0 %v1771
      %v1791 = vpop.f32.mrf.mxu0
      %v1792 = vadd.f32 %v1763, %v1791
      %v1793 = vpop.f32.mrf.mxu0
      %v1794 = vadd.f32 %v1763, %v1793
      %1795 = vmatmul.bf16.gmra.mxu0 %v1774
      %v1796 = vpop.f32.mrf.mxu0
      %v1797 = vadd.f32 %v1763, %v1796
      %v1798 = vpop.f32.mrf.mxu0
      %v1799 = vadd.f32 %v1763, %v1798
      %1800 = vmatmul.bf16.gmra.mxu0 %v1777
      %v1801 = vpop.f32.mrf.mxu0
      %v1802 = vadd.f32 %v1763, %v1801
      %v1803 = vpop.f32.mrf.mxu0
      %v1804 = vadd.f32 %v1763, %v1803
      %1805 = vmatmul.bf16.gmra.mxu0 %v1780
      %v1806 = vpop.f32.mrf.mxu0
      %v1807 = vadd.f32 %v1763, %v1806
      %v1808 = vpop.f32.mrf.mxu0
      %v1809 = vadd.f32 %v1763, %v1808
      %1810 = vdwg.mxu0
      %v1811 = vld [vmem:[%s1 + $0x28] sm:$0xf]
      %v1812 = vld [vmem:[%s1 + $0x2c] sm:$0xf]
      %v1813 = vld [vmem:[%s2 + $0x38] sm:$0x1]
      %v1814 = vpack.c.bf16 %v1794, %v1792
      %v1815 = vpack.c.bf16 %v1799, %v1797
      %v1816 = vpack.c.bf16 %v1804, %v1802
      %v1817 = vpack.c.bf16 %v1809, %v1807
      %v1818 = vperm.slane %v1813, 0
      %v1821 = vunpack.c.l.b16 %v1811
      %v1822 = vunpack.c.l.b16 %v1812
      %v1823 = vpack.c.b16 %v1822, %v1821
      %v1826 = vsel %vm1638, %v1814, 0
      %v1829 = vsel %vm1638, %v1815, 0
      %v1832 = vsel %vm1638, %v1816, 0
      %v1835 = vsel %vm1638, %v1817, 0
      %1837 = vmatpush.bf16.msra.mxu0 0
      %1838 = vmatpush.bf16.msra.mxu0 0
      %1839 = vmatpush.bf16.msra.mxu0 0
      %1840 = vmatpush.bf16.msra.mxu0 0
      %1841 = vmatpush.bf16.msra.mxu0 0
      %1842 = vmatpush.bf16.msra.mxu0 0
      %1843 = vmatpush.bf16.msra.mxu0 0
      %1844 = vmatpush.bf16.msra.mxu0 %v1823
      %1845 = vmatmul.bf16.gmra.mxu0 %v1826
      %v1846 = vpop.f32.mrf.mxu0
      %v1847 = vadd.f32 %v1818, %v1846
      %v1848 = vpop.f32.mrf.mxu0
      %v1849 = vadd.f32 %v1818, %v1848
      %1850 = vmatmul.bf16.gmra.mxu0 %v1829
      %v1851 = vpop.f32.mrf.mxu0
      %v1852 = vadd.f32 %v1818, %v1851
      %v1853 = vpop.f32.mrf.mxu0
      %v1854 = vadd.f32 %v1818, %v1853
      %1855 = vmatmul.bf16.gmra.mxu0 %v1832
      %v1856 = vpop.f32.mrf.mxu0
      %v1857 = vadd.f32 %v1818, %v1856
      %v1858 = vpop.f32.mrf.mxu0
      %v1859 = vadd.f32 %v1818, %v1858
      %1860 = vmatmul.bf16.gmra.mxu0 %v1835
      %v1861 = vpop.f32.mrf.mxu0
      %v1862 = vadd.f32 %v1818, %v1861
      %v1863 = vpop.f32.mrf.mxu0
      %v1864 = vadd.f32 %v1818, %v1863
      %1865 = vdwg.mxu0
      %v1866 = vmax.f32 %v1847, 0.0
      %v1867 = vmax.f32 %v1849, 0.0
      %v1868 = vmax.f32 %v1852, 0.0
      %v1869 = vmax.f32 %v1854, 0.0
      %v1870 = vmax.f32 %v1857, 0.0
      %v1871 = vmax.f32 %v1859, 0.0
      %v1872 = vmax.f32 %v1862, 0.0
      %v1873 = vmax.f32 %v1864, 0.0
      %v1874 = vld [vmem:[%s1 + $0x30] sm:$0xf]
      %v1875 = vld [vmem:[%s1 + $0x34] sm:$0xf]
      %v1876 = vld [vmem:[%s1 + $0x38] sm:$0xf]
      %v1877 = vld [vmem:[%s1 + $0x3c] sm:$0xf]
      %v1878 = vld [vmem:[%s1 + $0x40] sm:$0xf]
      %v1879 = vld [vmem:[%s1 + $0x44] sm:$0xf]
      %v1880 = vld [vmem:[%s1 + $0x48] sm:$0xf]
      %v1881 = vld [vmem:[%s1 + $0x4c] sm:$0xf]
      %v1882 = vld [vmem:[%s1 + $0x50] sm:$0xf]
      %v1883 = vld [vmem:[%s1 + $0x54] sm:$0xf]
      %v1884 = vld [vmem:[%s1 + $0x58] sm:$0xf]
      %v1885 = vld [vmem:[%s1 + $0x5c] sm:$0xf]
      %v1886 = vld [vmem:[%s1 + $0x60] sm:$0xf]
      %v1887 = vld [vmem:[%s1 + $0x64] sm:$0xf]
      %v1888 = vld [vmem:[%s1 + $0x68] sm:$0xf]
      %v1889 = vld [vmem:[%s1 + $0x6c] sm:$0xf]
      %v1890 = vld [vmem:[%s1 + $0x70] sm:$0xf]
      %v1891 = vld [vmem:[%s1 + $0x74] sm:$0xf]
      %v1892 = vld [vmem:[%s2 + $0x40] sm:$0xff]
      %v1893 = vld [vmem:[%s2 + $0x48] sm:$0x1]
      %v1894 = vld [vmem:[%s2 + $0x50] sm:$0x1]
      %v1895 = vpack.c.bf16 %v1867, %v1866
      %v1896 = vpack.c.bf16 %v1869, %v1868
      %v1897 = vpack.c.bf16 %v1871, %v1870
      %v1898 = vpack.c.bf16 %v1873, %v1872
      %v1917 = vunpack.c.l.b16 %v1874
      %v1918 = vunpack.c.l.b16 %v1875
      %v1919 = vunpack.c.l.b16 %v1876
      %v1920 = vunpack.c.l.b16 %v1877
      %v1921 = vunpack.c.l.b16 %v1878
      %v1922 = vunpack.c.l.b16 %v1879
      %v1923 = vunpack.c.l.b16 %v1880
      %v1924 = vunpack.c.l.b16 %v1881
      %v1925 = vunpack.c.l.b16 %v1882
      %v1926 = vunpack.c.l.b16 %v1883
      %v1927 = vunpack.c.l.b16 %v1884
      %v1928 = vunpack.c.l.b16 %v1885
      %v1929 = vunpack.c.l.b16 %v1886
      %v1930 = vunpack.c.l.b16 %v1887
      %v1931 = vunpack.c.l.b16 %v1888
      %v1932 = vunpack.c.l.b16 %v1889
      %v1933 = vunpack.c.l.b16 %v1890
      %v1934 = vunpack.c.l.b16 %v1891
      %v1935 = vpack.c.b16 %v1918, %v1917
      %v1936 = vpack.c.b16 %v1920, %v1919
      %v1937 = vpack.c.b16 %v1922, %v1921
      %v1938 = vpack.c.b16 %v1924, %v1923
      %v1939 = vpack.c.b16 %v1926, %v1925
      %v1940 = vpack.c.b16 %v1928, %v1927
      %v1941 = vpack.c.b16 %v1930, %v1929
      %v1942 = vpack.c.b16 %v1932, %v1931
      %v1943 = vpack.c.b16 %v1934, %v1933
      %vm1944 = vcmask 523264
      %v1946 = vsel %vm1944, %v1935, 0
      %v1949 = vsel %vm1944, %v1936, 0
      %v1952 = vsel %vm1944, %v1937, 0
      %v1955 = vsel %vm1944, %v1938, 0
      %v1958 = vsel %vm1944, %v1939, 0
      %v1961 = vsel %vm1944, %v1940, 0
      %v1964 = vsel %vm1944, %v1941, 0
      %v1967 = vsel %vm1944, %v1942, 0
      %v1970 = vsel %vm1944, %v1943, 0
      %1972 = vmatpush.bf16.msra.mxu0 0
      %1973 = vmatpush.bf16.msra.mxu0 0
      %1974 = vmatpush.bf16.msra.mxu0 0
      %1975 = vmatpush.bf16.msra.mxu0 0
      %1976 = vmatpush.bf16.msra.mxu0 %v1898
      %1977 = vmatpush.bf16.msra.mxu0 %v1897
      %1978 = vmatpush.bf16.msra.mxu0 %v1896
      %1979 = vmatpush.bf16.msra.mxu0 %v1895
      %1980 = vmatmul.bf16.gmra.mxu0 %v1946
      %v1981 = vpop.f32.mrf.mxu0
      %v1982 = vadd.f32 0.0, %v1981
      %v1983 = vpop.f32.mrf.mxu0
      %v1984 = vadd.f32 0.0, %v1983
      %1985 = vmatmul.bf16.gmra.mxu0 %v1949
      %v1986 = vpop.f32.mrf.mxu0
      %v1987 = vadd.f32 0.0, %v1986
      %v1988 = vpop.f32.mrf.mxu0
      %v1989 = vadd.f32 0.0, %v1988
      %1990 = vmatmul.bf16.gmra.mxu0 %v1952
      %v1991 = vpop.f32.mrf.mxu0
      %v1992 = vadd.f32 0.0, %v1991
      %v1993 = vpop.f32.mrf.mxu0
      %v1994 = vadd.f32 0.0, %v1993
      %1995 = vmatmul.bf16.gmra.mxu0 %v1955
      %v1996 = vpop.f32.mrf.mxu0
      %v1997 = vadd.f32 0.0, %v1996
      %v1998 = vpop.f32.mrf.mxu0
      %v1999 = vadd.f32 0.0, %v1998
      %2000 = vmatmul.bf16.gmra.mxu0 %v1958
      %v2001 = vpop.f32.mrf.mxu0
      %v2002 = vadd.f32 0.0, %v2001
      %v2003 = vpop.f32.mrf.mxu0
      %v2004 = vadd.f32 0.0, %v2003
      %2005 = vmatmul.bf16.gmra.mxu0 %v1961
      %v2006 = vpop.f32.mrf.mxu0
      %v2007 = vadd.f32 0.0, %v2006
      %v2008 = vpop.f32.mrf.mxu0
      %v2009 = vadd.f32 0.0, %v2008
      %2010 = vmatmul.bf16.gmra.mxu0 %v1964
      %v2011 = vpop.f32.mrf.mxu0
      %v2012 = vadd.f32 0.0, %v2011
      %v2013 = vpop.f32.mrf.mxu0
      %v2014 = vadd.f32 0.0, %v2013
      %2015 = vmatmul.bf16.gmra.mxu0 %v1967
      %v2016 = vpop.f32.mrf.mxu0
      %v2017 = vadd.f32 0.0, %v2016
      %v2018 = vpop.f32.mrf.mxu0
      %v2019 = vadd.f32 0.0, %v2018
      %2020 = vmatmul.bf16.gmra.mxu0 %v1970
      %v2021 = vpop.f32.mrf.mxu0
      %v2022 = vadd.f32 0.0, %v2021
      %v2023 = vpop.f32.mrf.mxu0
      %v2024 = vadd.f32 0.0, %v2023
      %2025 = vdwg.mxu0
      %v2026 = vperm.slane %v1892, 0
      %v2027 = vmul.f32 %v1982, %v2026
      %v2028 = vmul.f32 %v1984, %v2026
      %v2029 = vperm.slane %v1892, 1
      %v2030 = vmul.f32 %v1987, %v2029
      %v2031 = vmul.f32 %v1989, %v2029
      %v2032 = vadd.f32 %v2027, %v2030
      %v2033 = vadd.f32 %v2028, %v2031
      %v2034 = vperm.slane %v1892, 2
      %v2035 = vmul.f32 %v1992, %v2034
      %v2036 = vmul.f32 %v1994, %v2034
      %v2037 = vadd.f32 %v2032, %v2035
      %v2038 = vadd.f32 %v2033, %v2036
      %v2039 = vperm.slane %v1892, 3
      %v2040 = vmul.f32 %v1997, %v2039
      %v2041 = vmul.f32 %v1999, %v2039
      %v2042 = vadd.f32 %v2037, %v2040
      %v2043 = vadd.f32 %v2038, %v2041
      %v2044 = vperm.slane %v1892, 4
      %v2045 = vmul.f32 %v2002, %v2044
      %v2046 = vmul.f32 %v2004, %v2044
      %v2047 = vadd.f32 %v2042, %v2045
      %v2048 = vadd.f32 %v2043, %v2046
      %v2049 = vperm.slane %v1892, 5
      %v2050 = vmul.f32 %v2007, %v2049
      %v2051 = vmul.f32 %v2009, %v2049
      %v2052 = vadd.f32 %v2047, %v2050
      %v2053 = vadd.f32 %v2048, %v2051
      %v2054 = vperm.slane %v1892, 6
      %v2055 = vmul.f32 %v2012, %v2054
      %v2056 = vmul.f32 %v2014, %v2054
      %v2057 = vadd.f32 %v2052, %v2055
      %v2058 = vadd.f32 %v2053, %v2056
      %v2059 = vperm.slane %v1892, 7
      %v2060 = vmul.f32 %v2017, %v2059
      %v2061 = vmul.f32 %v2019, %v2059
      %v2062 = vadd.f32 %v2057, %v2060
      %v2063 = vadd.f32 %v2058, %v2061
      %v2064 = vperm.slane %v1893, 0
      %v2065 = vmul.f32 %v2022, %v2064
      %v2066 = vmul.f32 %v2024, %v2064
      %v2067 = vadd.f32 %v2062, %v2065
      %v2068 = vadd.f32 %v2063, %v2066
      %v2069 = vperm.slane %v1894, 0
      %v2070 = vadd.f32 %v2067, %v2069
      %v2071 = vadd.f32 %v2068, %v2069
      %v2072 = vmax.f32 %v2070, 0.0
      %v2073 = vmax.f32 %v2071, 0.0
      %v2074 = vld [vmem:[%s1 + $0x78] sm:$0xf]
      %v2075 = vld [vmem:[%s1 + $0x7c] sm:$0xf]
      %v2076 = vld [vmem:[%s1 + $0x80] sm:$0xf]
      %v2077 = vld [vmem:[%s1 + $0x84] sm:$0xf]
      %v2078 = vld [vmem:[%s1 + $0x88] sm:$0xf]
      %v2079 = vld [vmem:[%s1 + $0x8c] sm:$0xf]
      %v2080 = vld [vmem:[%s1 + $0x90] sm:$0xf]
      %v2081 = vld [vmem:[%s1 + $0x94] sm:$0xf]
      %v2082 = vld [vmem:[%s1 + $0x98] sm:$0xf]
      %v2083 = vld [vmem:[%s2 + $0x58] sm:$0x1]
      %v2084 = vpack.c.bf16 %v2073, %v2072
      %v2085 = vperm.slane %v2083, 0
      %v2095 = vunpack.c.l.b16 %v2074
      %v2096 = vunpack.c.l.b16 %v2075
      %v2097 = vunpack.c.l.b16 %v2076
      %v2098 = vunpack.c.l.b16 %v2077
      %v2099 = vunpack.c.l.b16 %v2078
      %v2100 = vunpack.c.l.b16 %v2079
      %v2101 = vunpack.c.l.b16 %v2080
      %v2102 = vunpack.c.l.b16 %v2081
      %v2103 = vunpack.c.l.b16 %v2082
      %v2104 = vpack.c.b16 %v2096, %v2095
      %v2105 = vpack.c.b16 %v2098, %v2097
      %v2106 = vpack.c.b16 %v2100, %v2099
      %v2107 = vpack.c.b16 %v2102, %v2101
      %v2108 = vpack.c.b16 %v2103, %v2103
      %vm2113 = vcmask 588800
      %v2115 = vsel %vm2113, %v2084, 0
      %v2118 = vsel %vm1723, %v2108, 0
      %2120 = vmatpush.bf16.msra.mxu0 0
      %2121 = vmatpush.bf16.msra.mxu0 0
      %2122 = vmatpush.bf16.msra.mxu0 0
      %2123 = vmatpush.bf16.msra.mxu0 %v2118
      %2124 = vmatpush.bf16.msra.mxu0 %v2107
      %2125 = vmatpush.bf16.msra.mxu0 %v2106
      %2126 = vmatpush.bf16.msra.mxu0 %v2105
      %2127 = vmatpush.bf16.msra.mxu0 %v2104
      %2128 = vmatmul.bf16.gmra.mxu0 %v2115
      %v2129 = vpop.f32.mrf.mxu0
      %v2130 = vadd.f32 %v2085, %v2129
      %v2131 = vpop.f32.mrf.mxu0
      %v2132 = vadd.f32 %v2085, %v2131
      %2133 = vdwg.mxu0
      %v2134 = vld [vmem:[%s1 + $0xa0] sm:$0xf]
      %v2135 = vld [vmem:[%s1 + $0xa4] sm:$0xf]
      %v2136 = vld [vmem:[%s1 + $0xa8] sm:$0xf]
      %v2137 = vld [vmem:[%s2 + $0x60] sm:$0x1]
      %v2138 = vpack.c.bf16 %v2132, %v2130
      %v2139 = vperm.slane %v2137, 0
      %v2143 = vunpack.c.l.b16 %v2134
      %v2144 = vunpack.c.l.b16 %v2135
      %v2145 = vunpack.c.l.b16 %v2136
      %v2146 = vpack.c.b16 %v2144, %v2143
      %v2147 = vpack.c.b16 %v2145, %v2145
      %vm2149 = vcmask 195584
      %v2151 = vsel %vm2149, %v2138, 0
      %v2154 = vsel %vm1723, %v2147, 0
      %2156 = vmatpush.bf16.msra.mxu0 0
      %2157 = vmatpush.bf16.msra.mxu0 0
      %2158 = vmatpush.bf16.msra.mxu0 0
      %2159 = vmatpush.bf16.msra.mxu0 0
      %2160 = vmatpush.bf16.msra.mxu0 0
      %2161 = vmatpush.bf16.msra.mxu0 0
      %2162 = vmatpush.bf16.msra.mxu0 %v2154
      %2163 = vmatpush.bf16.msra.mxu0 %v2146
      %2164 = vmatmul.bf16.gmra.mxu0 %v2151
      %v2165 = vpop.f32.mrf.mxu0
      %v2166 = vadd.f32 %v2139, %v2165
      %v2167 = vpop.f32.mrf.mxu0
      %v2168 = vadd.f32 %v2139, %v2167
      %2169 = vdwg.mxu0
      %v2170 = vmax.f32 %v2166, 0.0
      %v2171 = vmax.f32 %v2168, 0.0
      %v2172 = vld [vmem:[%s1 + $0xb0] sm:$0xf]
      %v2173 = vld [vmem:[%s1 + $0xb4] sm:$0xf]
      %v2174 = vld [vmem:[%s1 + $0xb8] sm:$0xf]
      %v2175 = vld [vmem:[%s1 + $0xbc] sm:$0xf]
      %v2176 = vld [vmem:[%s1 + $0xc0] sm:$0xf]
      %v2177 = vld [vmem:[%s1 + $0xc4] sm:$0xf]
      %v2178 = vld [vmem:[%s1 + $0xc8] sm:$0xf]
      %v2179 = vld [vmem:[%s1 + $0xcc] sm:$0xf]
      %v2180 = vld [vmem:[%s1 + $0xd0] sm:$0xf]
      %v2181 = vld [vmem:[%s1 + $0xd4] sm:$0xf]
      %v2182 = vld [vmem:[%s1 + $0xd8] sm:$0xf]
      %v2183 = vld [vmem:[%s1 + $0xdc] sm:$0xf]
      %v2184 = vld [vmem:[%s1 + $0xe0] sm:$0xf]
      %v2185 = vld [vmem:[%s1 + $0xe4] sm:$0xf]
      %v2186 = vld [vmem:[%s1 + $0xe8] sm:$0xf]
      %v2187 = vld [vmem:[%s1 + $0xec] sm:$0xf]
      %v2188 = vld [vmem:[%s1 + $0xf0] sm:$0xf]
      %v2189 = vld [vmem:[%s1 + $0xf4] sm:$0xf]
      %v2190 = vld [vmem:[%s2 + $0x68] sm:$0xff]
      %v2191 = vld [vmem:[%s2 + $0x70] sm:$0x1]
      %v2192 = vld [vmem:[%s2 + $0x78] sm:$0x1]
      %v2193 = vpack.c.bf16 %v2171, %v2170
      %v2212 = vunpack.c.l.b16 %v2172
      %v2213 = vunpack.c.l.b16 %v2173
      %v2214 = vunpack.c.l.b16 %v2174
      %v2215 = vunpack.c.l.b16 %v2175
      %v2216 = vunpack.c.l.b16 %v2176
      %v2217 = vunpack.c.l.b16 %v2177
      %v2218 = vunpack.c.l.b16 %v2178
      %v2219 = vunpack.c.l.b16 %v2179
      %v2220 = vunpack.c.l.b16 %v2180
      %v2221 = vunpack.c.l.b16 %v2181
      %v2222 = vunpack.c.l.b16 %v2182
      %v2223 = vunpack.c.l.b16 %v2183
      %v2224 = vunpack.c.l.b16 %v2184
      %v2225 = vunpack.c.l.b16 %v2185
      %v2226 = vunpack.c.l.b16 %v2186
      %v2227 = vunpack.c.l.b16 %v2187
      %v2228 = vunpack.c.l.b16 %v2188
      %v2229 = vunpack.c.l.b16 %v2189
      %v2230 = vpack.c.b16 %v2213, %v2212
      %v2231 = vpack.c.b16 %v2215, %v2214
      %v2232 = vpack.c.b16 %v2217, %v2216
      %v2233 = vpack.c.b16 %v2219, %v2218
      %v2234 = vpack.c.b16 %v2221, %v2220
      %v2235 = vpack.c.b16 %v2223, %v2222
      %v2236 = vpack.c.b16 %v2225, %v2224
      %v2237 = vpack.c.b16 %v2227, %v2226
      %v2238 = vpack.c.b16 %v2229, %v2228
      %v2240 = vsel %vm1638, %v2230, 0
      %v2243 = vsel %vm1638, %v2231, 0
      %v2246 = vsel %vm1638, %v2232, 0
      %v2249 = vsel %vm1638, %v2233, 0
      %v2252 = vsel %vm1638, %v2234, 0
      %v2255 = vsel %vm1638, %v2235, 0
      %v2258 = vsel %vm1638, %v2236, 0
      %v2261 = vsel %vm1638, %v2237, 0
      %v2264 = vsel %vm1638, %v2238, 0
      %2266 = vmatpush.bf16.msra.mxu0 0
      %2267 = vmatpush.bf16.msra.mxu0 0
      %2268 = vmatpush.bf16.msra.mxu0 0
      %2269 = vmatpush.bf16.msra.mxu0 0
      %2270 = vmatpush.bf16.msra.mxu0 0
      %2271 = vmatpush.bf16.msra.mxu0 0
      %2272 = vmatpush.bf16.msra.mxu0 0
      %2273 = vmatpush.bf16.msra.mxu0 %v2193
      %2274 = vmatmul.bf16.gmra.mxu0 %v2240
      %v2275 = vpop.f32.mrf.mxu0
      %v2276 = vadd.f32 0.0, %v2275
      %v2277 = vpop.f32.mrf.mxu0
      %v2278 = vadd.f32 0.0, %v2277
      %2279 = vmatmul.bf16.gmra.mxu0 %v2243
      %v2280 = vpop.f32.mrf.mxu0
      %v2281 = vadd.f32 0.0, %v2280
      %v2282 = vpop.f32.mrf.mxu0
      %v2283 = vadd.f32 0.0, %v2282
      %2284 = vmatmul.bf16.gmra.mxu0 %v2246
      %v2285 = vpop.f32.mrf.mxu0
      %v2286 = vadd.f32 0.0, %v2285
      %v2287 = vpop.f32.mrf.mxu0
      %v2288 = vadd.f32 0.0, %v2287
      %2289 = vmatmul.bf16.gmra.mxu0 %v2249
      %v2290 = vpop.f32.mrf.mxu0
      %v2291 = vadd.f32 0.0, %v2290
      %v2292 = vpop.f32.mrf.mxu0
      %v2293 = vadd.f32 0.0, %v2292
      %2294 = vmatmul.bf16.gmra.mxu0 %v2252
      %v2295 = vpop.f32.mrf.mxu0
      %v2296 = vadd.f32 0.0, %v2295
      %v2297 = vpop.f32.mrf.mxu0
      %v2298 = vadd.f32 0.0, %v2297
      %2299 = vmatmul.bf16.gmra.mxu0 %v2255
      %v2300 = vpop.f32.mrf.mxu0
      %v2301 = vadd.f32 0.0, %v2300
      %v2302 = vpop.f32.mrf.mxu0
      %v2303 = vadd.f32 0.0, %v2302
      %2304 = vmatmul.bf16.gmra.mxu0 %v2258
      %v2305 = vpop.f32.mrf.mxu0
      %v2306 = vadd.f32 0.0, %v2305
      %v2307 = vpop.f32.mrf.mxu0
      %v2308 = vadd.f32 0.0, %v2307
      %2309 = vmatmul.bf16.gmra.mxu0 %v2261
      %v2310 = vpop.f32.mrf.mxu0
      %v2311 = vadd.f32 0.0, %v2310
      %v2312 = vpop.f32.mrf.mxu0
      %v2313 = vadd.f32 0.0, %v2312
      %2314 = vmatmul.bf16.gmra.mxu0 %v2264
      %v2315 = vpop.f32.mrf.mxu0
      %v2316 = vadd.f32 0.0, %v2315
      %v2317 = vpop.f32.mrf.mxu0
      %v2318 = vadd.f32 0.0, %v2317
      %2319 = vdwg.mxu0
      %v2320 = vperm.slane %v2190, 0
      %v2321 = vmul.f32 %v2276, %v2320
      %v2322 = vmul.f32 %v2278, %v2320
      %v2323 = vperm.slane %v2190, 1
      %v2324 = vmul.f32 %v2281, %v2323
      %v2325 = vmul.f32 %v2283, %v2323
      %v2326 = vadd.f32 %v2321, %v2324
      %v2327 = vadd.f32 %v2322, %v2325
      %v2328 = vperm.slane %v2190, 2
      %v2329 = vmul.f32 %v2286, %v2328
      %v2330 = vmul.f32 %v2288, %v2328
      %v2331 = vadd.f32 %v2326, %v2329
      %v2332 = vadd.f32 %v2327, %v2330
      %v2333 = vperm.slane %v2190, 3
      %v2334 = vmul.f32 %v2291, %v2333
      %v2335 = vmul.f32 %v2293, %v2333
      %v2336 = vadd.f32 %v2331, %v2334
      %v2337 = vadd.f32 %v2332, %v2335
      %v2338 = vperm.slane %v2190, 4
      %v2339 = vmul.f32 %v2296, %v2338
      %v2340 = vmul.f32 %v2298, %v2338
      %v2341 = vadd.f32 %v2336, %v2339
      %v2342 = vadd.f32 %v2337, %v2340
      %v2343 = vperm.slane %v2190, 5
      %v2344 = vmul.f32 %v2301, %v2343
      %v2345 = vmul.f32 %v2303, %v2343
      %v2346 = vadd.f32 %v2341, %v2344
      %v2347 = vadd.f32 %v2342, %v2345
      %v2348 = vperm.slane %v2190, 6
      %v2349 = vmul.f32 %v2306, %v2348
      %v2350 = vmul.f32 %v2308, %v2348
      %v2351 = vadd.f32 %v2346, %v2349
      %v2352 = vadd.f32 %v2347, %v2350
      %v2353 = vperm.slane %v2190, 7
      %v2354 = vmul.f32 %v2311, %v2353
      %v2355 = vmul.f32 %v2313, %v2353
      %v2356 = vadd.f32 %v2351, %v2354
      %v2357 = vadd.f32 %v2352, %v2355
      %v2358 = vperm.slane %v2191, 0
      %v2359 = vmul.f32 %v2316, %v2358
      %v2360 = vmul.f32 %v2318, %v2358
      %v2361 = vadd.f32 %v2356, %v2359
      %v2362 = vadd.f32 %v2357, %v2360
      %v2363 = vperm.slane %v2192, 0
      %v2364 = vadd.f32 %v2361, %v2363
      %v2365 = vadd.f32 %v2362, %v2363
      %v2366 = vmax.f32 %v2364, 0.0
      %v2367 = vmax.f32 %v2365, 0.0
      %v2368 = vld [vmem:[%s1 + $0xf8] sm:$0xf]
      %v2369 = vld [vmem:[%s1 + $0xfc] sm:$0xf]
      %v2370 = vld [vmem:[%s1 + $0x100] sm:$0xf]
      %v2371 = vld [vmem:[%s1 + $0x104] sm:$0xf]
      %v2372 = vld [vmem:[%s1 + $0x108] sm:$0xf]
      %v2373 = vld [vmem:[%s1 + $0x10c] sm:$0xf]
      %v2374 = vld [vmem:[%s1 + $0x110] sm:$0xf]
      %v2375 = vld [vmem:[%s1 + $0x114] sm:$0xf]
      %v2376 = vld [vmem:[%s1 + $0x118] sm:$0xf]
      %v2377 = vld [vmem:[%s1 + $0x11c] sm:$0xf]
      %v2378 = vld [vmem:[%s1 + $0x120] sm:$0xf]
      %v2379 = vld [vmem:[%s2 + $0x80] sm:$0x1]
      %v2380 = vpack.c.bf16 %v2367, %v2366
      %v2381 = vperm.slane %v2379, 0
      %v2393 = vunpack.c.l.b16 %v2368
      %v2394 = vunpack.c.l.b16 %v2369
      %v2395 = vunpack.c.l.b16 %v2370
      %v2396 = vunpack.c.l.b16 %v2371
      %v2397 = vunpack.c.l.b16 %v2372
      %v2398 = vunpack.c.l.b16 %v2373
      %v2399 = vunpack.c.l.b16 %v2374
      %v2400 = vunpack.c.l.b16 %v2375
      %v2401 = vunpack.c.l.b16 %v2376
      %v2402 = vunpack.c.l.b16 %v2377
      %v2403 = vunpack.c.l.b16 %v2378
      %v2404 = vpack.c.b16 %v2394, %v2393
      %v2405 = vpack.c.b16 %v2396, %v2395
      %v2406 = vpack.c.b16 %v2398, %v2397
      %v2407 = vpack.c.b16 %v2400, %v2399
      %v2408 = vpack.c.b16 %v2402, %v2401
      %v2409 = vpack.c.b16 %v2403, %v2403
      %vm2415 = vcmask 719872
      %v2417 = vsel %vm2415, %v2380, 0
      %v2420 = vsel %vm1723, %v2409, 0
      %2422 = vmatpush.bf16.msra.mxu0 0
      %2423 = vmatpush.bf16.msra.mxu0 0
      %2424 = vmatpush.bf16.msra.mxu0 %v2420
      %2425 = vmatpush.bf16.msra.mxu0 %v2408
      %2426 = vmatpush.bf16.msra.mxu0 %v2407
      %2427 = vmatpush.bf16.msra.mxu0 %v2406
      %2428 = vmatpush.bf16.msra.mxu0 %v2405
      %2429 = vmatpush.bf16.msra.mxu0 %v2404
      %2430 = vmatmul.bf16.gmra.mxu0 %v2417
      %v2431 = vpop.f32.mrf.mxu0
      %v2432 = vadd.f32 %v2381, %v2431
      %v2433 = vpop.f32.mrf.mxu0
      %v2434 = vadd.f32 %v2381, %v2433
      %2435 = vdwg.mxu0
      %v2436 = vadd.f32 %v2432, %v2130
      %v2437 = vadd.f32 %v2434, %v2132
      %v2438 = vld [vmem:[%s1 + $0x128] sm:$0xf]
      %v2439 = vld [vmem:[%s1 + $0x12c] sm:$0xf]
      %v2440 = vld [vmem:[%s1 + $0x130] sm:$0xf]
      %v2441 = vld [vmem:[%s2 + $0x88] sm:$0x1]
      %v2442 = vpack.c.bf16 %v2437, %v2436
      %v2443 = vperm.slane %v2441, 0
      %v2447 = vunpack.c.l.b16 %v2438
      %v2448 = vunpack.c.l.b16 %v2439
      %v2449 = vunpack.c.l.b16 %v2440
      %v2450 = vpack.c.b16 %v2448, %v2447
      %v2451 = vpack.c.b16 %v2449, %v2449
      %v2454 = vsel %vm2149, %v2442, 0
      %v2457 = vsel %vm1723, %v2451, 0
      %2459 = vmatpush.bf16.msra.mxu0 0
      %2460 = vmatpush.bf16.msra.mxu0 0
      %2461 = vmatpush.bf16.msra.mxu0 0
      %2462 = vmatpush.bf16.msra.mxu0 0
      %2463 = vmatpush.bf16.msra.mxu0 0
      %2464 = vmatpush.bf16.msra.mxu0 0
      %2465 = vmatpush.bf16.msra.mxu0 %v2457
      %2466 = vmatpush.bf16.msra.mxu0 %v2450
      %2467 = vmatmul.bf16.gmra.mxu0 %v2454
      %v2468 = vpop.f32.mrf.mxu0
      %v2469 = vadd.f32 %v2443, %v2468
      %v2470 = vpop.f32.mrf.mxu0
      %v2471 = vadd.f32 %v2443, %v2470
      %2472 = vdwg.mxu0
      %v2473 = vadd.f32 %v2469, 3.0
      %v2474 = vadd.f32 %v2471, 3.0
      %v2475 = vmax.f32 %v2473, 0.0
      %v2476 = vmax.f32 %v2474, 0.0
      %v2477 = vmin.f32 %v2475, 6.0
      %v2478 = vmin.f32 %v2476, 6.0
      %v2479 = vmul.f32 %v2469, %v2477
      %v2480 = vmul.f32 %v2471, %v2478
      %v2481 = vmul.f32 %v2479, 0.16666667
      %v2482 = vmul.f32 %v2480, 0.16666667
      %v2483 = vld [vmem:[%s1 + $0x138] sm:$0xf]
      %v2484 = vld [vmem:[%s1 + $0x13c] sm:$0xf]
      %v2485 = vld [vmem:[%s2 + $0x90] sm:$0xf]
      %v2486 = vld [vmem:[%s2 + $0x98] sm:$0x1]
      %v2487 = vpack.c.bf16 %v2482, %v2481
      %v2490 = vunpack.c.l.b16 %v2483
      %v2491 = vunpack.c.l.b16 %v2484
      %v2492 = vpack.c.b16 %v2491, %v2490
      %v2494 = vsel %vm1638, %v2492, 0
      %2496 = vmatpush.bf16.msra.mxu0 0
      %2497 = vmatpush.bf16.msra.mxu0 0
      %2498 = vmatpush.bf16.msra.mxu0 0
      %2499 = vmatpush.bf16.msra.mxu0 0
      %2500 = vmatpush.bf16.msra.mxu0 0
      %2501 = vmatpush.bf16.msra.mxu0 0
      %2502 = vmatpush.bf16.msra.mxu0 0
      %2503 = vmatpush.bf16.msra.mxu0 %v2487
      %2504 = vmatmul.bf16.gmra.mxu0 %v2494
      %v2505 = vpop.f32.mrf.mxu0
      %v2506 = vadd.f32 0.0, %v2505
      %v2507 = vpop.f32.mrf.mxu0
      %v2508 = vadd.f32 0.0, %v2507
      %2509 = vdwg.mxu0
      %v2510 = vperm.slane %v2485, 0
      %v2511 = vmul.f32 %v2506, %v2510
      %v2512 = vperm.slane %v2485, 1
      %v2513 = vmul.f32 %v2506, %v2512
      %v2515 = vrot.slane %v2513, 4
      %v2517 = vadd.f32 %v2511, %v2515
      %v2518 = vperm.slane %v2485, 2
      %v2519 = vmul.f32 %v2508, %v2518
      %v2520 = vadd.f32 %v2517, %v2519
      %v2521 = vperm.slane %v2485, 3
      %v2522 = vmul.f32 %v2508, %v2521
      %v2524 = vrot.slane %v2522, 4
      %v2526 = vadd.f32 %v2520, %v2524
      %v2527 = vperm.slane %v2486, 0
      %v2528 = vadd.f32 %v2526, %v2527
      %v2529 = vadd.f32 %v2528, 3.0
      %v2530 = vmax.f32 %v2529, 0.0
      %v2531 = vmin.f32 %v2530, 6.0
      %v2532 = vmul.f32 %v2528, %v2531
      %v2533 = vmul.f32 %v2532, 0.16666667
      %v2534 = vld [vmem:[%s1 + $0x140] sm:$0xf]
      %v2535 = vld [vmem:[%s1 + $0x144] sm:$0xf]
      %v2536 = vld [vmem:[%s1 + $0x148] sm:$0xf]
      %v2537 = vld [vmem:[%s1 + $0x14c] sm:$0xf]
      %v2538 = vld [vmem:[%s1 + $0x150] sm:$0xf]
      %v2539 = vld [vmem:[%s1 + $0x154] sm:$0xf]
      %v2540 = vld [vmem:[%s1 + $0x158] sm:$0xf]
      %v2541 = vld [vmem:[%s1 + $0x15c] sm:$0xf]
      %v2542 = vld [vmem:[%s1 + $0x160] sm:$0xf]
      %v2543 = vld [vmem:[%s1 + $0x164] sm:$0xf]
      %v2544 = vld [vmem:[%s1 + $0x168] sm:$0xf]
      %v2545 = vld [vmem:[%s1 + $0x16c] sm:$0xf]
      %v2546 = vld [vmem:[%s2 + $0xa0] sm:$0x1]
      %v2547 = vld [vmem:[%s1 + $0x170] sm:$0xf]
      %v2548 = vld [vmem:[%s1 + $0x174] sm:$0xf]
      %v2549 = vld [vmem:[%s1 + $0x178] sm:$0xf]
      %v2550 = vld [vmem:[%s2 + $0xa8] sm:$0x1]
      %v2551 = vpack.c.bf16 %v2533, %v2533
      %v2552 = vperm.slane %v2546, 0
      %v2565 = vunpack.c.l.b16 %v2534
      %v2566 = vunpack.c.l.b16 %v2535
      %v2567 = vunpack.c.l.b16 %v2536
      %v2568 = vunpack.c.l.b16 %v2537
      %v2569 = vunpack.c.l.b16 %v2538
      %v2570 = vunpack.c.l.b16 %v2539
      %v2571 = vunpack.c.l.b16 %v2540
      %v2572 = vunpack.c.l.b16 %v2541
      %v2573 = vunpack.c.l.b16 %v2542
      %v2574 = vunpack.c.l.b16 %v2543
      %v2575 = vunpack.c.l.b16 %v2544
      %v2576 = vunpack.c.l.b16 %v2545
      %v2577 = vpack.c.b16 %v2566, %v2565
      %v2578 = vpack.c.b16 %v2568, %v2567
      %v2579 = vpack.c.b16 %v2570, %v2569
      %v2580 = vpack.c.b16 %v2572, %v2571
      %v2581 = vpack.c.b16 %v2574, %v2573
      %v2582 = vpack.c.b16 %v2576, %v2575
      %vm2589 = vcmask 785408
      %v2591 = vsel %vm2589, %v2551, 0
      %2593 = vmatpush.bf16.msra.mxu0 0
      %2594 = vmatpush.bf16.msra.mxu0 0
      %2595 = vmatpush.bf16.msra.mxu0 %v2582
      %2596 = vmatpush.bf16.msra.mxu0 %v2581
      %2597 = vmatpush.bf16.msra.mxu0 %v2580
      %2598 = vmatpush.bf16.msra.mxu0 %v2579
      %2599 = vmatpush.bf16.msra.mxu0 %v2578
      %2600 = vmatpush.bf16.msra.mxu0 %v2577
      %2601 = vmatmul.bf16.gmra.mxu0 %v2591
      %v2602 = vpop.f32.mrf.mxu0
      %v2603 = vadd.f32 %v2552, %v2602
      %v2604 = vpop.f32.mrf.mxu0
      %2605 = vdwg.mxu0
      %v2606 = vmax.f32 %v2603, 0.0
      %v2607 = vpack.c.bf16 %v2606, %v2606
      %v2608 = vperm.slane %v2550, 0
      %v2612 = vunpack.c.l.b16 %v2547
      %v2613 = vunpack.c.l.b16 %v2548
      %v2614 = vunpack.c.l.b16 %v2549
      %v2615 = vpack.c.b16 %v2613, %v2612
      %v2616 = vpack.c.b16 %v2614, %v2614
      %v2619 = vsel %vm2149, %v2607, 0
      %v2622 = vsel %vm1723, %v2616, 0
      %2624 = vmatpush.bf16.msra.mxu0 0
      %2625 = vmatpush.bf16.msra.mxu0 0
      %2626 = vmatpush.bf16.msra.mxu0 0
      %2627 = vmatpush.bf16.msra.mxu0 0
      %2628 = vmatpush.bf16.msra.mxu0 0
      %2629 = vmatpush.bf16.msra.mxu0 0
      %2630 = vmatpush.bf16.msra.mxu0 %v2622
      %2631 = vmatpush.bf16.msra.mxu0 %v2615
      %2632 = vmatmul.bf16.gmra.mxu0 %v2619
      %v2633 = vpop.f32.mrf.mxu0
      %v2634 = vadd.f32 %v2608, %v2633
      %v2635 = vpop.f32.mrf.mxu0
      %2636 = vdwg.mxu0
      %v2637 = vadd.f32 %v2634, 3.0
      %v2638 = vmax.f32 %v2637, 0.0
      %v2639 = vmin.f32 %v2638, 6.0
      %v2640 = vmul.f32 %v2639, 0.16666667
      %v2641 = vmul.f32 %v2533, %v2640
      %v2642 = vld [vmem:[%s1 + $0x180] sm:$0xf]
      %v2643 = vld [vmem:[%s1 + $0x184] sm:$0xf]
      %v2644 = vld [vmem:[%s1 + $0x188] sm:$0xf]
      %v2645 = vld [vmem:[%s1 + $0x18c] sm:$0xf]
      %v2646 = vld [vmem:[%s1 + $0x190] sm:$0xf]
      %v2647 = vld [vmem:[%s1 + $0x194] sm:$0xf]
      %v2648 = vld [vmem:[%s1 + $0x198] sm:$0xf]
      %v2649 = vld [vmem:[%s1 + $0x19c] sm:$0xf]
      %v2650 = vld [vmem:[%s1 + $0x1a0] sm:$0xf]
      %v2651 = vld [vmem:[%s1 + $0x1a4] sm:$0xf]
      %v2652 = vld [vmem:[%s1 + $0x1a8] sm:$0xf]
      %v2653 = vld [vmem:[%s1 + $0x1ac] sm:$0xf]
      %v2654 = vld [vmem:[%s2 + $0xb0] sm:$0x1]
      %v2655 = vpack.c.bf16 %v2641, %v2641
      %v2656 = vperm.slane %v2654, 0
      %v2669 = vunpack.c.l.b16 %v2642
      %v2670 = vunpack.c.l.b16 %v2643
      %v2671 = vunpack.c.l.b16 %v2644
      %v2672 = vunpack.c.l.b16 %v2645
      %v2673 = vunpack.c.l.b16 %v2646
      %v2674 = vunpack.c.l.b16 %v2647
      %v2675 = vunpack.c.l.b16 %v2648
      %v2676 = vunpack.c.l.b16 %v2649
      %v2677 = vunpack.c.l.b16 %v2650
      %v2678 = vunpack.c.l.b16 %v2651
      %v2679 = vunpack.c.l.b16 %v2652
      %v2680 = vunpack.c.l.b16 %v2653
      %v2681 = vpack.c.b16 %v2670, %v2669
      %v2682 = vpack.c.b16 %v2672, %v2671
      %v2683 = vpack.c.b16 %v2674, %v2673
      %v2684 = vpack.c.b16 %v2676, %v2675
      %v2685 = vpack.c.b16 %v2678, %v2677
      %v2686 = vpack.c.b16 %v2680, %v2679
      %v2694 = vsel %vm2589, %v2655, 0
      %2696 = vmatpush.bf16.msra.mxu0 0
      %2697 = vmatpush.bf16.msra.mxu0 0
      %2698 = vmatpush.bf16.msra.mxu0 %v2686
      %2699 = vmatpush.bf16.msra.mxu0 %v2685
      %2700 = vmatpush.bf16.msra.mxu0 %v2684
      %2701 = vmatpush.bf16.msra.mxu0 %v2683
      %2702 = vmatpush.bf16.msra.mxu0 %v2682
      %2703 = vmatpush.bf16.msra.mxu0 %v2681
      %2704 = vmatmul.bf16.gmra.mxu0 %v2694
      %v2705 = vpop.f32.mrf.mxu0
      %v2706 = vadd.f32 %v2656, %v2705
      %v2707 = vpop.f32.mrf.mxu0
      %2708 = vdwg.mxu0
      %v2709 = vld [vmem:[%s3 + $0x240] sm:$0xff]
      %v2710 = vld [vmem:[%s3 + $0x248] sm:$0xff]
      %v2711 = vld [vmem:[%s3 + $0x250] sm:$0xff]
      %v2712 = vld [vmem:[%s3 + $0x258] sm:$0xff]
      %v2713 = vld [vmem:[%s3 + $0x260] sm:$0xff]
      %v2714 = vld [vmem:[%s4] ss:$8 sm:$0x3]
      %v2715 = vpack.c.bf16 %v2706, %v2706
      %v2717 = vperm.slane %v2714, 0
      %v2718 = vperm.slane %v2714, 1
      %v2726 = vunpack.c.l.b16 %v2709
      %v2727 = vunpack.c.h.b16 %v2709
      %v2728 = vunpack.c.l.b16 %v2710
      %v2729 = vunpack.c.h.b16 %v2710
      %v2730 = vunpack.c.l.b16 %v2711
      %v2731 = vunpack.c.h.b16 %v2711
      %v2732 = vunpack.c.l.b16 %v2712
      %v2733 = vunpack.c.h.b16 %v2712
      %v2734 = vunpack.c.l.b16 %v2713
      %v2735 = vunpack.c.h.b16 %v2713
      %v2736 = vpack.c.b16 %v2728, %v2726
      %v2737 = vpack.c.b16 %v2729, %v2727
      %v2738 = vpack.c.b16 %v2732, %v2730
      %v2739 = vpack.c.b16 %v2733, %v2731
      %v2740 = vpack.c.b16 %v2734, %v2734
      %v2741 = vpack.c.b16 %v2735, %v2735
      %vm2746 = vcmask 326656
      %v2748 = vsel %vm2746, %v2715, 0
      %v2751 = vsel %vm1723, %v2740, 0
      %v2754 = vsel %vm1723, %v2741, 0
      %2756 = vmatpush.bf16.msra.mxu0 0
      %2757 = vmatpush.bf16.msra.mxu0 0
      %2758 = vmatpush.bf16.msra.mxu0 0
      %2759 = vmatpush.bf16.msra.mxu0 0
      %2760 = vmatpush.bf16.msra.mxu0 0
      %2761 = vmatpush.bf16.msra.mxu0 %v2751
      %2762 = vmatpush.bf16.msra.mxu0 %v2738
      %2763 = vmatpush.bf16.msra.mxu0 %v2736
      %2764 = vmatmul.bf16.gmra.mxu0 %v2748
      %v2765 = vpop.f32.mrf.mxu0
      %v2766 = vadd.f32 %v2717, %v2765
      %v2767 = vpop.f32.mrf.mxu0
      %2768 = vdwg.mxu0
      %2769 = vmatpush.bf16.msra.mxu0 0
      %2770 = vmatpush.bf16.msra.mxu0 0
      %2771 = vmatpush.bf16.msra.mxu0 0
      %2772 = vmatpush.bf16.msra.mxu0 0
      %2773 = vmatpush.bf16.msra.mxu0 0
      %2774 = vmatpush.bf16.msra.mxu0 %v2754
      %2775 = vmatpush.bf16.msra.mxu0 %v2739
      %2776 = vmatpush.bf16.msra.mxu0 %v2737
      %2777 = vmatmul.bf16.gmra.mxu0 %v2748
      %v2778 = vpop.f32.mrf.mxu0
      %v2779 = vadd.f32 %v2718, %v2778
      %v2780 = vpop.f32.mrf.mxu0
      %2781 = vdwg.mxu0
      %v2782 = vadd.f32 %v2766, 3.0
      %v2783 = vadd.f32 %v2779, 3.0
      %v2784 = vmax.f32 %v2782, 0.0
      %v2785 = vmax.f32 %v2783, 0.0
      %v2786 = vmin.f32 %v2784, 6.0
      %v2787 = vmin.f32 %v2785, 6.0
      %v2788 = vmul.f32 %v2766, %v2786
      %v2789 = vmul.f32 %v2779, %v2787
      %v2790 = vmul.f32 %v2788, 0.16666667
      %v2791 = vmul.f32 %v2789, 0.16666667
      %s2792 = scalar_lea.vmem %s4, 16
      %v2793 = vld [vmem:[%s2792] ss:$8 sm:$0x3]
      %s2794 = scalar_lea.vmem %s4, 32
      %v2795 = vld [vmem:[%s2794] ss:$8 sm:$0x3]
      %v2797 = vperm.slane %v2793, 0
      %v2798 = vperm.slane %v2793, 1
      %v2801 = vmul.f32 %v2790, %v2797
      %v2802 = vmul.f32 %v2791, %v2798
      %v2804 = vperm.slane %v2795, 0
      %v2805 = vperm.slane %v2795, 1
      %v2808 = vadd.f32 %v2801, %v2804
      %v2809 = vadd.f32 %v2802, %v2805
      %v2810 = vadd.f32 %v2808, 3.0
      %v2811 = vadd.f32 %v2809, 3.0
      %v2812 = vmax.f32 %v2810, 0.0
      %v2813 = vmax.f32 %v2811, 0.0
      %v2814 = vmin.f32 %v2812, 6.0
      %v2815 = vmin.f32 %v2813, 6.0
      %v2816 = vmul.f32 %v2808, %v2814
      %v2817 = vmul.f32 %v2809, %v2815
      %v2818 = vmul.f32 %v2816, 0.16666667
      %v2819 = vmul.f32 %v2817, 0.16666667
      %v2820 = vld [vmem:[%s1 + $0x1b0] sm:$0xf]
      %v2821 = vld [vmem:[%s1 + $0x1b4] sm:$0xf]
      %v2822 = vld [vmem:[%s1 + $0x1b8] sm:$0xf]
      %v2823 = vld [vmem:[%s1 + $0x1bc] sm:$0xf]
      %v2824 = vld [vmem:[%s1 + $0x1c0] sm:$0xf]
      %v2825 = vld [vmem:[%s1 + $0x1c4] sm:$0xf]
      %v2826 = vld [vmem:[%s1 + $0x1c8] sm:$0xf]
      %v2827 = vld [vmem:[%s1 + $0x1cc] sm:$0xf]
      %v2828 = vld [vmem:[%s1 + $0x1d0] sm:$0xf]
      %v2829 = vld [vmem:[%s1 + $0x1d4] sm:$0xf]
      %v2830 = vld [vmem:[%s1 + $0x1d8] sm:$0xf]
      %v2831 = vld [vmem:[%s1 + $0x1dc] sm:$0xf]
      %v2832 = vld [vmem:[%s1 + $0x1e0] sm:$0xf]
      %v2833 = vld [vmem:[%s1 + $0x1e4] sm:$0xf]
      %v2834 = vld [vmem:[%s1 + $0x1e8] sm:$0xf]
      %v2835 = vld [vmem:[%s1 + $0x1ec] sm:$0xf]
      %v2836 = vld [vmem:[%s1 + $0x1f0] sm:$0xf]
      %v2837 = vld [vmem:[%s1 + $0x1f4] sm:$0xf]
      %v2838 = vld [vmem:[%s1 + $0x1f8] sm:$0xf]
      %v2839 = vld [vmem:[%s1 + $0x1fc] sm:$0xf]
      %v2840 = vld [vmem:[%s1 + $0x200] sm:$0xf]
      %v2841 = vld [vmem:[%s1 + $0x204] sm:$0xf]
      %v2842 = vld [vmem:[%s1 + $0x208] sm:$0xf]
      %v2843 = vld [vmem:[%s1 + $0x20c] sm:$0xf]
      %v2844 = vld [vmem:[%s1 + $0x210] sm:$0xf]
      %v2845 = vld [vmem:[%s1 + $0x214] sm:$0xf]
      %v2846 = vld [vmem:[%s1 + $0x218] sm:$0xf]
      %v2847 = vld [vmem:[%s1 + $0x21c] sm:$0xf]
      %v2848 = vld [vmem:[%s1 + $0x220] sm:$0xf]
      %v2849 = vld [vmem:[%s1 + $0x224] sm:$0xf]
      %v2850 = vld [vmem:[%s2 + $0xb8] sm:$0x1]
      %v2851 = vld [vmem:[%s3 + $0x270] sm:$0xff]
      %v2852 = vld [vmem:[%s3 + $0x278] sm:$0xff]
      %v2853 = vld [vmem:[%s3 + $0x280] sm:$0xff]
      %v2854 = vld [vmem:[%s3 + $0x288] sm:$0xff]
      %v2855 = vld [vmem:[%s3 + $0x290] sm:$0xff]
      %v2856 = vld [vmem:[%s3 + $0x298] sm:$0xff]
      %v2857 = vld [vmem:[%s3 + $0x2a0] sm:$0xff]
      %v2858 = vld [vmem:[%s3 + $0x2a8] sm:$0xff]
      %s2859 = scalar_lea.vmem %s4, 48
      %v2860 = vld [vmem:[%s2859] ss:$8 sm:$0x3]
      %v2861 = vpack.c.bf16 %v2818, %v2818
      %v2862 = vpack.c.bf16 %v2819, %v2819
      %v2863 = vperm.slane %v2850, 0
      %v2894 = vunpack.c.l.b16 %v2820
      %v2895 = vunpack.c.l.b16 %v2821
      %v2896 = vunpack.c.l.b16 %v2822
      %v2897 = vunpack.c.l.b16 %v2823
      %v2898 = vunpack.c.l.b16 %v2824
      %v2899 = vunpack.c.l.b16 %v2825
      %v2900 = vunpack.c.l.b16 %v2826
      %v2901 = vunpack.c.l.b16 %v2827
      %v2902 = vunpack.c.l.b16 %v2828
      %v2903 = vunpack.c.l.b16 %v2829
      %v2904 = vunpack.c.l.b16 %v2830
      %v2905 = vunpack.c.l.b16 %v2831
      %v2906 = vunpack.c.l.b16 %v2832
      %v2907 = vunpack.c.l.b16 %v2833
      %v2908 = vunpack.c.l.b16 %v2834
      %v2909 = vunpack.c.l.b16 %v2835
      %v2910 = vunpack.c.l.b16 %v2836
      %v2911 = vunpack.c.l.b16 %v2837
      %v2912 = vunpack.c.l.b16 %v2838
      %v2913 = vunpack.c.l.b16 %v2839
      %v2914 = vunpack.c.l.b16 %v2840
      %v2915 = vunpack.c.l.b16 %v2841
      %v2916 = vunpack.c.l.b16 %v2842
      %v2917 = vunpack.c.l.b16 %v2843
      %v2918 = vunpack.c.l.b16 %v2844
      %v2919 = vunpack.c.l.b16 %v2845
      %v2920 = vunpack.c.l.b16 %v2846
      %v2921 = vunpack.c.l.b16 %v2847
      %v2922 = vunpack.c.l.b16 %v2848
      %v2923 = vunpack.c.l.b16 %v2849
      %v2924 = vpack.c.b16 %v2895, %v2894
      %v2925 = vpack.c.b16 %v2897, %v2896
      %v2926 = vpack.c.b16 %v2899, %v2898
      %v2927 = vpack.c.b16 %v2901, %v2900
      %v2928 = vpack.c.b16 %v2903, %v2902
      %v2929 = vpack.c.b16 %v2905, %v2904
      %v2930 = vpack.c.b16 %v2907, %v2906
      %v2931 = vpack.c.b16 %v2909, %v2908
      %v2932 = vpack.c.b16 %v2911, %v2910
      %v2933 = vpack.c.b16 %v2913, %v2912
      %v2934 = vpack.c.b16 %v2915, %v2914
      %v2935 = vpack.c.b16 %v2917, %v2916
      %v2936 = vpack.c.b16 %v2919, %v2918
      %v2937 = vpack.c.b16 %v2921, %v2920
      %v2938 = vpack.c.b16 %v2923, %v2922
      %vm2954 = vcmask 916480
      %v2956 = vsel %vm2954, %v2862, 0
      %2958 = vmatpush.bf16.msra.mxu0 %v2931
      %2959 = vmatpush.bf16.msra.mxu0 %v2930
      %2960 = vmatpush.bf16.msra.mxu0 %v2929
      %2961 = vmatpush.bf16.msra.mxu0 %v2928
      %2962 = vmatpush.bf16.msra.mxu0 %v2927
      %2963 = vmatpush.bf16.msra.mxu0 %v2926
      %2964 = vmatpush.bf16.msra.mxu0 %v2925
      %2965 = vmatpush.bf16.msra.mxu0 %v2924
      %2966 = vmatmul.bf16.gmra.mxu0 %v2861
      %v2967 = vpop.f32.mrf.mxu0
      %v2968 = vadd.f32 %v2863, %v2967
      %v2969 = vpop.f32.mrf.mxu0
      %2970 = vdwg.mxu0
      %2971 = vmatpush.bf16.msra.mxu0 0
      %2972 = vmatpush.bf16.msra.mxu0 %v2938
      %2973 = vmatpush.bf16.msra.mxu0 %v2937
      %2974 = vmatpush.bf16.msra.mxu0 %v2936
      %2975 = vmatpush.bf16.msra.mxu0 %v2935
      %2976 = vmatpush.bf16.msra.mxu0 %v2934
      %2977 = vmatpush.bf16.msra.mxu0 %v2933
      %2978 = vmatpush.bf16.msra.mxu0 %v2932
      %2979 = vmatmul.bf16.gmra.mxu0 %v2956
      %v2980 = vpop.f32.mrf.mxu0
      %v2981 = vadd.f32 %v2968, %v2980
      %v2982 = vpop.f32.mrf.mxu0
      %2983 = vdwg.mxu0
      %v2984 = vmax.f32 %v2981, 0.0
      %v2985 = vpack.c.bf16 %v2984, %v2984
      %v2987 = vperm.slane %v2860, 0
      %v2988 = vperm.slane %v2860, 1
      %v2999 = vunpack.c.l.b16 %v2851
      %v3000 = vunpack.c.h.b16 %v2851
      %v3001 = vunpack.c.l.b16 %v2852
      %v3002 = vunpack.c.h.b16 %v2852
      %v3003 = vunpack.c.l.b16 %v2853
      %v3004 = vunpack.c.h.b16 %v2853
      %v3005 = vunpack.c.l.b16 %v2854
      %v3006 = vunpack.c.h.b16 %v2854
      %v3007 = vunpack.c.l.b16 %v2855
      %v3008 = vunpack.c.h.b16 %v2855
      %v3009 = vunpack.c.l.b16 %v2856
      %v3010 = vunpack.c.h.b16 %v2856
      %v3011 = vunpack.c.l.b16 %v2857
      %v3012 = vunpack.c.h.b16 %v2857
      %v3013 = vunpack.c.l.b16 %v2858
      %v3014 = vunpack.c.h.b16 %v2858
      %v3015 = vpack.c.b16 %v3001, %v2999
      %v3016 = vpack.c.b16 %v3002, %v3000
      %v3017 = vpack.c.b16 %v3005, %v3003
      %v3018 = vpack.c.b16 %v3006, %v3004
      %v3019 = vpack.c.b16 %v3009, %v3007
      %v3020 = vpack.c.b16 %v3010, %v3008
      %v3021 = vpack.c.b16 %v3013, %v3011
      %v3022 = vpack.c.b16 %v3014, %v3012
      %v3032 = vsel %vm1944, %v2985, 0
      %3034 = vmatpush.bf16.msra.mxu0 0
      %3035 = vmatpush.bf16.msra.mxu0 0
      %3036 = vmatpush.bf16.msra.mxu0 0
      %3037 = vmatpush.bf16.msra.mxu0 0
      %3038 = vmatpush.bf16.msra.mxu0 %v3021
      %3039 = vmatpush.bf16.msra.mxu0 %v3019
      %3040 = vmatpush.bf16.msra.mxu0 %v3017
      %3041 = vmatpush.bf16.msra.mxu0 %v3015
      %3042 = vmatmul.bf16.gmra.mxu0 %v3032
      %v3043 = vpop.f32.mrf.mxu0
      %v3044 = vadd.f32 %v2987, %v3043
      %v3045 = vpop.f32.mrf.mxu0
      %3046 = vdwg.mxu0
      %3047 = vmatpush.bf16.msra.mxu0 0
      %3048 = vmatpush.bf16.msra.mxu0 0
      %3049 = vmatpush.bf16.msra.mxu0 0
      %3050 = vmatpush.bf16.msra.mxu0 0
      %3051 = vmatpush.bf16.msra.mxu0 %v3022
      %3052 = vmatpush.bf16.msra.mxu0 %v3020
      %3053 = vmatpush.bf16.msra.mxu0 %v3018
      %3054 = vmatpush.bf16.msra.mxu0 %v3016
      %3055 = vmatmul.bf16.gmra.mxu0 %v3032
      %v3056 = vpop.f32.mrf.mxu0
      %v3057 = vadd.f32 %v2988, %v3056
      %v3058 = vpop.f32.mrf.mxu0
      %3059 = vdwg.mxu0
      %v3060 = vadd.f32 %v3044, 3.0
      %v3061 = vadd.f32 %v3057, 3.0
      %v3062 = vmax.f32 %v3060, 0.0
      %v3063 = vmax.f32 %v3061, 0.0
      %v3064 = vmin.f32 %v3062, 6.0
      %v3065 = vmin.f32 %v3063, 6.0
      %v3066 = vmul.f32 %v3064, 0.16666667
      %v3067 = vmul.f32 %v3065, 0.16666667
      %v3068 = vmul.f32 %v2818, %v3066
      %v3069 = vmul.f32 %v2819, %v3067
      %v3070 = vld [vmem:[%s1 + $0x228] sm:$0xf]
      %v3071 = vld [vmem:[%s1 + $0x22c] sm:$0xf]
      %v3072 = vld [vmem:[%s1 + $0x230] sm:$0xf]
      %v3073 = vld [vmem:[%s1 + $0x234] sm:$0xf]
      %v3074 = vld [vmem:[%s1 + $0x238] sm:$0xf]
      %v3075 = vld [vmem:[%s1 + $0x23c] sm:$0xf]
      %v3076 = vld [vmem:[%s1 + $0x240] sm:$0xf]
      %v3077 = vld [vmem:[%s1 + $0x244] sm:$0xf]
      %v3078 = vld [vmem:[%s1 + $0x248] sm:$0xf]
      %v3079 = vld [vmem:[%s1 + $0x24c] sm:$0xf]
      %v3080 = vld [vmem:[%s1 + $0x250] sm:$0xf]
      %v3081 = vld [vmem:[%s1 + $0x254] sm:$0xf]
      %v3082 = vld [vmem:[%s1 + $0x258] sm:$0xf]
      %v3083 = vld [vmem:[%s1 + $0x25c] sm:$0xf]
      %v3084 = vld [vmem:[%s1 + $0x260] sm:$0xf]
      %v3085 = vld [vmem:[%s1 + $0x264] sm:$0xf]
      %v3086 = vld [vmem:[%s1 + $0x268] sm:$0xf]
      %v3087 = vld [vmem:[%s1 + $0x26c] sm:$0xf]
      %v3088 = vld [vmem:[%s1 + $0x270] sm:$0xf]
      %v3089 = vld [vmem:[%s1 + $0x274] sm:$0xf]
      %v3090 = vld [vmem:[%s1 + $0x278] sm:$0xf]
      %v3091 = vld [vmem:[%s1 + $0x27c] sm:$0xf]
      %v3092 = vld [vmem:[%s1 + $0x280] sm:$0xf]
      %v3093 = vld [vmem:[%s1 + $0x284] sm:$0xf]
      %v3094 = vld [vmem:[%s1 + $0x288] sm:$0xf]
      %v3095 = vld [vmem:[%s1 + $0x28c] sm:$0xf]
      %v3096 = vld [vmem:[%s1 + $0x290] sm:$0xf]
      %v3097 = vld [vmem:[%s1 + $0x294] sm:$0xf]
      %v3098 = vld [vmem:[%s1 + $0x298] sm:$0xf]
      %v3099 = vld [vmem:[%s1 + $0x29c] sm:$0xf]
      %v3100 = vld [vmem:[%s2 + $0xc0] sm:$0x1]
      %v3101 = vpack.c.bf16 %v3068, %v3068
      %v3102 = vpack.c.bf16 %v3069, %v3069
      %v3103 = vperm.slane %v3100, 0
      %v3134 = vunpack.c.l.b16 %v3070
      %v3135 = vunpack.c.l.b16 %v3071
      %v3136 = vunpack.c.l.b16 %v3072
      %v3137 = vunpack.c.l.b16 %v3073
      %v3138 = vunpack.c.l.b16 %v3074
      %v3139 = vunpack.c.l.b16 %v3075
      %v3140 = vunpack.c.l.b16 %v3076
      %v3141 = vunpack.c.l.b16 %v3077
      %v3142 = vunpack.c.l.b16 %v3078
      %v3143 = vunpack.c.l.b16 %v3079
      %v3144 = vunpack.c.l.b16 %v3080
      %v3145 = vunpack.c.l.b16 %v3081
      %v3146 = vunpack.c.l.b16 %v3082
      %v3147 = vunpack.c.l.b16 %v3083
      %v3148 = vunpack.c.l.b16 %v3084
      %v3149 = vunpack.c.l.b16 %v3085
      %v3150 = vunpack.c.l.b16 %v3086
      %v3151 = vunpack.c.l.b16 %v3087
      %v3152 = vunpack.c.l.b16 %v3088
      %v3153 = vunpack.c.l.b16 %v3089
      %v3154 = vunpack.c.l.b16 %v3090
      %v3155 = vunpack.c.l.b16 %v3091
      %v3156 = vunpack.c.l.b16 %v3092
      %v3157 = vunpack.c.l.b16 %v3093
      %v3158 = vunpack.c.l.b16 %v3094
      %v3159 = vunpack.c.l.b16 %v3095
      %v3160 = vunpack.c.l.b16 %v3096
      %v3161 = vunpack.c.l.b16 %v3097
      %v3162 = vunpack.c.l.b16 %v3098
      %v3163 = vunpack.c.l.b16 %v3099
      %v3164 = vpack.c.b16 %v3135, %v3134
      %v3165 = vpack.c.b16 %v3137, %v3136
      %v3166 = vpack.c.b16 %v3139, %v3138
      %v3167 = vpack.c.b16 %v3141, %v3140
      %v3168 = vpack.c.b16 %v3143, %v3142
      %v3169 = vpack.c.b16 %v3145, %v3144
      %v3170 = vpack.c.b16 %v3147, %v3146
      %v3171 = vpack.c.b16 %v3149, %v3148
      %v3172 = vpack.c.b16 %v3151, %v3150
      %v3173 = vpack.c.b16 %v3153, %v3152
      %v3174 = vpack.c.b16 %v3155, %v3154
      %v3175 = vpack.c.b16 %v3157, %v3156
      %v3176 = vpack.c.b16 %v3159, %v3158
      %v3177 = vpack.c.b16 %v3161, %v3160
      %v3178 = vpack.c.b16 %v3163, %v3162
      %v3195 = vsel %vm2954, %v3102, 0
      %3197 = vmatpush.bf16.msra.mxu0 %v3171
      %3198 = vmatpush.bf16.msra.mxu0 %v3170
      %3199 = vmatpush.bf16.msra.mxu0 %v3169
      %3200 = vmatpush.bf16.msra.mxu0 %v3168
      %3201 = vmatpush.bf16.msra.mxu0 %v3167
      %3202 = vmatpush.bf16.msra.mxu0 %v3166
      %3203 = vmatpush.bf16.msra.mxu0 %v3165
      %3204 = vmatpush.bf16.msra.mxu0 %v3164
      %3205 = vmatmul.bf16.gmra.mxu0 %v3101
      %v3206 = vpop.f32.mrf.mxu0
      %v3207 = vadd.f32 %v3103, %v3206
      %v3208 = vpop.f32.mrf.mxu0
      %3209 = vdwg.mxu0
      %3210 = vmatpush.bf16.msra.mxu0 0
      %3211 = vmatpush.bf16.msra.mxu0 %v3178
      %3212 = vmatpush.bf16.msra.mxu0 %v3177
      %3213 = vmatpush.bf16.msra.mxu0 %v3176
      %3214 = vmatpush.bf16.msra.mxu0 %v3175
      %3215 = vmatpush.bf16.msra.mxu0 %v3174
      %3216 = vmatpush.bf16.msra.mxu0 %v3173
      %3217 = vmatpush.bf16.msra.mxu0 %v3172
      %3218 = vmatmul.bf16.gmra.mxu0 %v3195
      %v3219 = vpop.f32.mrf.mxu0
      %v3220 = vadd.f32 %v3207, %v3219
      %v3221 = vpop.f32.mrf.mxu0
      %3222 = vdwg.mxu0
      %v3223 = vadd.f32 %v3220, %v2706
      %v3224 = vld [vmem:[%s3 + $0x2b0] sm:$0xff]
      %v3225 = vld [vmem:[%s3 + $0x2b8] sm:$0xff]
      %v3226 = vld [vmem:[%s3 + $0x2c0] sm:$0xff]
      %v3227 = vld [vmem:[%s3 + $0x2c8] sm:$0xff]
      %v3228 = vld [vmem:[%s3 + $0x2d0] sm:$0xff]
      %s3229 = scalar_lea.vmem %s4, 64
      %v3230 = vld [vmem:[%s3229] ss:$8 sm:$0x3]
      %v3231 = vpack.c.bf16 %v3223, %v3223
      %v3233 = vperm.slane %v3230, 0
      %v3234 = vperm.slane %v3230, 1
      %v3242 = vunpack.c.l.b16 %v3224
      %v3243 = vunpack.c.h.b16 %v3224
      %v3244 = vunpack.c.l.b16 %v3225
      %v3245 = vunpack.c.h.b16 %v3225
      %v3246 = vunpack.c.l.b16 %v3226
      %v3247 = vunpack.c.h.b16 %v3226
      %v3248 = vunpack.c.l.b16 %v3227
      %v3249 = vunpack.c.h.b16 %v3227
      %v3250 = vunpack.c.l.b16 %v3228
      %v3251 = vunpack.c.h.b16 %v3228
      %v3252 = vpack.c.b16 %v3244, %v3242
      %v3253 = vpack.c.b16 %v3245, %v3243
      %v3254 = vpack.c.b16 %v3248, %v3246
      %v3255 = vpack.c.b16 %v3249, %v3247
      %v3256 = vpack.c.b16 %v3250, %v3250
      %v3257 = vpack.c.b16 %v3251, %v3251
      %v3263 = vsel %vm2746, %v3231, 0
      %v3266 = vsel %vm1723, %v3256, 0
      %v3269 = vsel %vm1723, %v3257, 0
      %3271 = vmatpush.bf16.msra.mxu0 0
      %3272 = vmatpush.bf16.msra.mxu0 0
      %3273 = vmatpush.bf16.msra.mxu0 0
      %3274 = vmatpush.bf16.msra.mxu0 0
      %3275 = vmatpush.bf16.msra.mxu0 0
      %3276 = vmatpush.bf16.msra.mxu0 %v3266
      %3277 = vmatpush.bf16.msra.mxu0 %v3254
      %3278 = vmatpush.bf16.msra.mxu0 %v3252
      %3279 = vmatmul.bf16.gmra.mxu0 %v3263
      %v3280 = vpop.f32.mrf.mxu0
      %v3281 = vadd.f32 %v3233, %v3280
      %v3282 = vpop.f32.mrf.mxu0
      %3283 = vdwg.mxu0
      %3284 = vmatpush.bf16.msra.mxu0 0
      %3285 = vmatpush.bf16.msra.mxu0 0
      %3286 = vmatpush.bf16.msra.mxu0 0
      %3287 = vmatpush.bf16.msra.mxu0 0
      %3288 = vmatpush.bf16.msra.mxu0 0
      %3289 = vmatpush.bf16.msra.mxu0 %v3269
      %3290 = vmatpush.bf16.msra.mxu0 %v3255
      %3291 = vmatpush.bf16.msra.mxu0 %v3253
      %3292 = vmatmul.bf16.gmra.mxu0 %v3263
      %v3293 = vpop.f32.mrf.mxu0
      %v3294 = vadd.f32 %v3234, %v3293
      %v3295 = vpop.f32.mrf.mxu0
      %3296 = vdwg.mxu0
      %v3297 = vadd.f32 %v3281, 3.0
      %v3298 = vadd.f32 %v3294, 3.0
      %v3299 = vmax.f32 %v3297, 0.0
      %v3300 = vmax.f32 %v3298, 0.0
      %v3301 = vmin.f32 %v3299, 6.0
      %v3302 = vmin.f32 %v3300, 6.0
      %v3303 = vmul.f32 %v3281, %v3301
      %v3304 = vmul.f32 %v3294, %v3302
      %v3305 = vmul.f32 %v3303, 0.16666667
      %v3306 = vmul.f32 %v3304, 0.16666667
      %s3307 = scalar_lea.vmem %s4, 80
      %v3308 = vld [vmem:[%s3307] ss:$8 sm:$0x3]
      %s3309 = scalar_lea.vmem %s4, 96
      %v3310 = vld [vmem:[%s3309] ss:$8 sm:$0x3]
      %v3312 = vperm.slane %v3308, 0
      %v3313 = vperm.slane %v3308, 1
      %v3316 = vmul.f32 %v3305, %v3312
      %v3317 = vmul.f32 %v3306, %v3313
      %v3319 = vperm.slane %v3310, 0
      %v3320 = vperm.slane %v3310, 1
      %v3323 = vadd.f32 %v3316, %v3319
      %v3324 = vadd.f32 %v3317, %v3320
      %v3325 = vadd.f32 %v3323, 3.0
      %v3326 = vadd.f32 %v3324, 3.0
      %v3327 = vmax.f32 %v3325, 0.0
      %v3328 = vmax.f32 %v3326, 0.0
      %v3329 = vmin.f32 %v3327, 6.0
      %v3330 = vmin.f32 %v3328, 6.0
      %v3331 = vmul.f32 %v3323, %v3329
      %v3332 = vmul.f32 %v3324, %v3330
      %v3333 = vmul.f32 %v3331, 0.16666667
      %v3334 = vmul.f32 %v3332, 0.16666667
      %v3335 = vld [vmem:[%s1 + $0x2a0] sm:$0xf]
      %v3336 = vld [vmem:[%s1 + $0x2a4] sm:$0xf]
      %v3337 = vld [vmem:[%s1 + $0x2a8] sm:$0xf]
      %v3338 = vld [vmem:[%s1 + $0x2ac] sm:$0xf]
      %v3339 = vld [vmem:[%s1 + $0x2b0] sm:$0xf]
      %v3340 = vld [vmem:[%s1 + $0x2b4] sm:$0xf]
      %v3341 = vld [vmem:[%s1 + $0x2b8] sm:$0xf]
      %v3342 = vld [vmem:[%s1 + $0x2bc] sm:$0xf]
      %v3343 = vld [vmem:[%s1 + $0x2c0] sm:$0xf]
      %v3344 = vld [vmem:[%s1 + $0x2c4] sm:$0xf]
      %v3345 = vld [vmem:[%s1 + $0x2c8] sm:$0xf]
      %v3346 = vld [vmem:[%s1 + $0x2cc] sm:$0xf]
      %v3347 = vld [vmem:[%s1 + $0x2d0] sm:$0xf]
      %v3348 = vld [vmem:[%s1 + $0x2d4] sm:$0xf]
      %v3349 = vld [vmem:[%s1 + $0x2d8] sm:$0xf]
      %v3350 = vld [vmem:[%s1 + $0x2dc] sm:$0xf]
      %v3351 = vld [vmem:[%s1 + $0x2e0] sm:$0xf]
      %v3352 = vld [vmem:[%s1 + $0x2e4] sm:$0xf]
      %v3353 = vld [vmem:[%s1 + $0x2e8] sm:$0xf]
      %v3354 = vld [vmem:[%s1 + $0x2ec] sm:$0xf]
      %v3355 = vld [vmem:[%s1 + $0x2f0] sm:$0xf]
      %v3356 = vld [vmem:[%s1 + $0x2f4] sm:$0xf]
      %v3357 = vld [vmem:[%s1 + $0x2f8] sm:$0xf]
      %v3358 = vld [vmem:[%s1 + $0x2fc] sm:$0xf]
      %v3359 = vld [vmem:[%s1 + $0x300] sm:$0xf]
      %v3360 = vld [vmem:[%s1 + $0x304] sm:$0xf]
      %v3361 = vld [vmem:[%s1 + $0x308] sm:$0xf]
      %v3362 = vld [vmem:[%s1 + $0x30c] sm:$0xf]
      %v3363 = vld [vmem:[%s1 + $0x310] sm:$0xf]
      %v3364 = vld [vmem:[%s1 + $0x314] sm:$0xf]
      %v3365 = vld [vmem:[%s2 + $0xc8] sm:$0x1]
      %v3366 = vld [vmem:[%s3 + $0x2e0] sm:$0xff]
      %v3367 = vld [vmem:[%s3 + $0x2e8] sm:$0xff]
      %v3368 = vld [vmem:[%s3 + $0x2f0] sm:$0xff]
      %v3369 = vld [vmem:[%s3 + $0x2f8] sm:$0xff]
      %v3370 = vld [vmem:[%s3 + $0x300] sm:$0xff]
      %v3371 = vld [vmem:[%s3 + $0x308] sm:$0xff]
      %v3372 = vld [vmem:[%s3 + $0x310] sm:$0xff]
      %v3373 = vld [vmem:[%s3 + $0x318] sm:$0xff]
      %s3374 = scalar_lea.vmem %s4, 112
      %v3375 = vld [vmem:[%s3374] ss:$8 sm:$0x3]
      %v3376 = vpack.c.bf16 %v3333, %v3333
      %v3377 = vpack.c.bf16 %v3334, %v3334
      %v3378 = vperm.slane %v3365, 0
      %v3409 = vunpack.c.l.b16 %v3335
      %v3410 = vunpack.c.l.b16 %v3336
      %v3411 = vunpack.c.l.b16 %v3337
      %v3412 = vunpack.c.l.b16 %v3338
      %v3413 = vunpack.c.l.b16 %v3339
      %v3414 = vunpack.c.l.b16 %v3340
      %v3415 = vunpack.c.l.b16 %v3341
      %v3416 = vunpack.c.l.b16 %v3342
      %v3417 = vunpack.c.l.b16 %v3343
      %v3418 = vunpack.c.l.b16 %v3344
      %v3419 = vunpack.c.l.b16 %v3345
      %v3420 = vunpack.c.l.b16 %v3346
      %v3421 = vunpack.c.l.b16 %v3347
      %v3422 = vunpack.c.l.b16 %v3348
      %v3423 = vunpack.c.l.b16 %v3349
      %v3424 = vunpack.c.l.b16 %v3350
      %v3425 = vunpack.c.l.b16 %v3351
      %v3426 = vunpack.c.l.b16 %v3352
      %v3427 = vunpack.c.l.b16 %v3353
      %v3428 = vunpack.c.l.b16 %v3354
      %v3429 = vunpack.c.l.b16 %v3355
      %v3430 = vunpack.c.l.b16 %v3356
      %v3431 = vunpack.c.l.b16 %v3357
      %v3432 = vunpack.c.l.b16 %v3358
      %v3433 = vunpack.c.l.b16 %v3359
      %v3434 = vunpack.c.l.b16 %v3360
      %v3435 = vunpack.c.l.b16 %v3361
      %v3436 = vunpack.c.l.b16 %v3362
      %v3437 = vunpack.c.l.b16 %v3363
      %v3438 = vunpack.c.l.b16 %v3364
      %v3439 = vpack.c.b16 %v3410, %v3409
      %v3440 = vpack.c.b16 %v3412, %v3411
      %v3441 = vpack.c.b16 %v3414, %v3413
      %v3442 = vpack.c.b16 %v3416, %v3415
      %v3443 = vpack.c.b16 %v3418, %v3417
      %v3444 = vpack.c.b16 %v3420, %v3419
      %v3445 = vpack.c.b16 %v3422, %v3421
      %v3446 = vpack.c.b16 %v3424, %v3423
      %v3447 = vpack.c.b16 %v3426, %v3425
      %v3448 = vpack.c.b16 %v3428, %v3427
      %v3449 = vpack.c.b16 %v3430, %v3429
      %v3450 = vpack.c.b16 %v3432, %v3431
      %v3451 = vpack.c.b16 %v3434, %v3433
      %v3452 = vpack.c.b16 %v3436, %v3435
      %v3453 = vpack.c.b16 %v3438, %v3437
      %v3470 = vsel %vm2954, %v3377, 0
      %3472 = vmatpush.bf16.msra.mxu0 %v3446
      %3473 = vmatpush.bf16.msra.mxu0 %v3445
      %3474 = vmatpush.bf16.msra.mxu0 %v3444
      %3475 = vmatpush.bf16.msra.mxu0 %v3443
      %3476 = vmatpush.bf16.msra.mxu0 %v3442
      %3477 = vmatpush.bf16.msra.mxu0 %v3441
      %3478 = vmatpush.bf16.msra.mxu0 %v3440
      %3479 = vmatpush.bf16.msra.mxu0 %v3439
      %3480 = vmatmul.bf16.gmra.mxu0 %v3376
      %v3481 = vpop.f32.mrf.mxu0
      %v3482 = vadd.f32 %v3378, %v3481
      %v3483 = vpop.f32.mrf.mxu0
      %3484 = vdwg.mxu0
      %3485 = vmatpush.bf16.msra.mxu0 0
      %3486 = vmatpush.bf16.msra.mxu0 %v3453
      %3487 = vmatpush.bf16.msra.mxu0 %v3452
      %3488 = vmatpush.bf16.msra.mxu0 %v3451
      %3489 = vmatpush.bf16.msra.mxu0 %v3450
      %3490 = vmatpush.bf16.msra.mxu0 %v3449
      %3491 = vmatpush.bf16.msra.mxu0 %v3448
      %3492 = vmatpush.bf16.msra.mxu0 %v3447
      %3493 = vmatmul.bf16.gmra.mxu0 %v3470
      %v3494 = vpop.f32.mrf.mxu0
      %v3495 = vadd.f32 %v3482, %v3494
      %v3496 = vpop.f32.mrf.mxu0
      %3497 = vdwg.mxu0
      %v3498 = vmax.f32 %v3495, 0.0
      %v3499 = vpack.c.bf16 %v3498, %v3498
      %v3501 = vperm.slane %v3375, 0
      %v3502 = vperm.slane %v3375, 1
      %v3513 = vunpack.c.l.b16 %v3366
      %v3514 = vunpack.c.h.b16 %v3366
      %v3515 = vunpack.c.l.b16 %v3367
      %v3516 = vunpack.c.h.b16 %v3367
      %v3517 = vunpack.c.l.b16 %v3368
      %v3518 = vunpack.c.h.b16 %v3368
      %v3519 = vunpack.c.l.b16 %v3369
      %v3520 = vunpack.c.h.b16 %v3369
      %v3521 = vunpack.c.l.b16 %v3370
      %v3522 = vunpack.c.h.b16 %v3370
      %v3523 = vunpack.c.l.b16 %v3371
      %v3524 = vunpack.c.h.b16 %v3371
      %v3525 = vunpack.c.l.b16 %v3372
      %v3526 = vunpack.c.h.b16 %v3372
      %v3527 = vunpack.c.l.b16 %v3373
      %v3528 = vunpack.c.h.b16 %v3373
      %v3529 = vpack.c.b16 %v3515, %v3513
      %v3530 = vpack.c.b16 %v3516, %v3514
      %v3531 = vpack.c.b16 %v3519, %v3517
      %v3532 = vpack.c.b16 %v3520, %v3518
      %v3533 = vpack.c.b16 %v3523, %v3521
      %v3534 = vpack.c.b16 %v3524, %v3522
      %v3535 = vpack.c.b16 %v3527, %v3525
      %v3536 = vpack.c.b16 %v3528, %v3526
      %v3546 = vsel %vm1944, %v3499, 0
      %3548 = vmatpush.bf16.msra.mxu0 0
      %3549 = vmatpush.bf16.msra.mxu0 0
      %3550 = vmatpush.bf16.msra.mxu0 0
      %3551 = vmatpush.bf16.msra.mxu0 0
      %3552 = vmatpush.bf16.msra.mxu0 %v3535
      %3553 = vmatpush.bf16.msra.mxu0 %v3533
      %3554 = vmatpush.bf16.msra.mxu0 %v3531
      %3555 = vmatpush.bf16.msra.mxu0 %v3529
      %3556 = vmatmul.bf16.gmra.mxu0 %v3546
      %v3557 = vpop.f32.mrf.mxu0
      %v3558 = vadd.f32 %v3501, %v3557
      %v3559 = vpop.f32.mrf.mxu0
      %3560 = vdwg.mxu0
      %3561 = vmatpush.bf16.msra.mxu0 0
      %3562 = vmatpush.bf16.msra.mxu0 0
      %3563 = vmatpush.bf16.msra.mxu0 0
      %3564 = vmatpush.bf16.msra.mxu0 0
      %3565 = vmatpush.bf16.msra.mxu0 %v3536
      %3566 = vmatpush.bf16.msra.mxu0 %v3534
      %3567 = vmatpush.bf16.msra.mxu0 %v3532
      %3568 = vmatpush.bf16.msra.mxu0 %v3530
      %3569 = vmatmul.bf16.gmra.mxu0 %v3546
      %v3570 = vpop.f32.mrf.mxu0
      %v3571 = vadd.f32 %v3502, %v3570
      %v3572 = vpop.f32.mrf.mxu0
      %3573 = vdwg.mxu0
      %v3574 = vadd.f32 %v3558, 3.0
      %v3575 = vadd.f32 %v3571, 3.0
      %v3576 = vmax.f32 %v3574, 0.0
      %v3577 = vmax.f32 %v3575, 0.0
      %v3578 = vmin.f32 %v3576, 6.0
      %v3579 = vmin.f32 %v3577, 6.0
      %v3580 = vmul.f32 %v3578, 0.16666667
      %v3581 = vmul.f32 %v3579, 0.16666667
      %v3582 = vmul.f32 %v3333, %v3580
      %v3583 = vmul.f32 %v3334, %v3581
      %v3584 = vld [vmem:[%s1 + $0x318] sm:$0xf]
      %v3585 = vld [vmem:[%s1 + $0x31c] sm:$0xf]
      %v3586 = vld [vmem:[%s1 + $0x320] sm:$0xf]
      %v3587 = vld [vmem:[%s1 + $0x324] sm:$0xf]
      %v3588 = vld [vmem:[%s1 + $0x328] sm:$0xf]
      %v3589 = vld [vmem:[%s1 + $0x32c] sm:$0xf]
      %v3590 = vld [vmem:[%s1 + $0x330] sm:$0xf]
      %v3591 = vld [vmem:[%s1 + $0x334] sm:$0xf]
      %v3592 = vld [vmem:[%s1 + $0x338] sm:$0xf]
      %v3593 = vld [vmem:[%s1 + $0x33c] sm:$0xf]
      %v3594 = vld [vmem:[%s1 + $0x340] sm:$0xf]
      %v3595 = vld [vmem:[%s1 + $0x344] sm:$0xf]
      %v3596 = vld [vmem:[%s1 + $0x348] sm:$0xf]
      %v3597 = vld [vmem:[%s1 + $0x34c] sm:$0xf]
      %v3598 = vld [vmem:[%s1 + $0x350] sm:$0xf]
      %v3599 = vld [vmem:[%s1 + $0x354] sm:$0xf]
      %v3600 = vld [vmem:[%s1 + $0x358] sm:$0xf]
      %v3601 = vld [vmem:[%s1 + $0x35c] sm:$0xf]
      %v3602 = vld [vmem:[%s1 + $0x360] sm:$0xf]
      %v3603 = vld [vmem:[%s1 + $0x364] sm:$0xf]
      %v3604 = vld [vmem:[%s1 + $0x368] sm:$0xf]
      %v3605 = vld [vmem:[%s1 + $0x36c] sm:$0xf]
      %v3606 = vld [vmem:[%s1 + $0x370] sm:$0xf]
      %v3607 = vld [vmem:[%s1 + $0x374] sm:$0xf]
      %v3608 = vld [vmem:[%s1 + $0x378] sm:$0xf]
      %v3609 = vld [vmem:[%s1 + $0x37c] sm:$0xf]
      %v3610 = vld [vmem:[%s1 + $0x380] sm:$0xf]
      %v3611 = vld [vmem:[%s1 + $0x384] sm:$0xf]
      %v3612 = vld [vmem:[%s1 + $0x388] sm:$0xf]
      %v3613 = vld [vmem:[%s1 + $0x38c] sm:$0xf]
      %v3614 = vld [vmem:[%s2 + $0xd0] sm:$0x1]
      %v3615 = vpack.c.bf16 %v3582, %v3582
      %v3616 = vpack.c.bf16 %v3583, %v3583
      %v3617 = vperm.slane %v3614, 0
      %v3648 = vunpack.c.l.b16 %v3584
      %v3649 = vunpack.c.l.b16 %v3585
      %v3650 = vunpack.c.l.b16 %v3586
      %v3651 = vunpack.c.l.b16 %v3587
      %v3652 = vunpack.c.l.b16 %v3588
      %v3653 = vunpack.c.l.b16 %v3589
      %v3654 = vunpack.c.l.b16 %v3590
      %v3655 = vunpack.c.l.b16 %v3591
      %v3656 = vunpack.c.l.b16 %v3592
      %v3657 = vunpack.c.l.b16 %v3593
      %v3658 = vunpack.c.l.b16 %v3594
      %v3659 = vunpack.c.l.b16 %v3595
      %v3660 = vunpack.c.l.b16 %v3596
      %v3661 = vunpack.c.l.b16 %v3597
      %v3662 = vunpack.c.l.b16 %v3598
      %v3663 = vunpack.c.l.b16 %v3599
      %v3664 = vunpack.c.l.b16 %v3600
      %v3665 = vunpack.c.l.b16 %v3601
      %v3666 = vunpack.c.l.b16 %v3602
      %v3667 = vunpack.c.l.b16 %v3603
      %v3668 = vunpack.c.l.b16 %v3604
      %v3669 = vunpack.c.l.b16 %v3605
      %v3670 = vunpack.c.l.b16 %v3606
      %v3671 = vunpack.c.l.b16 %v3607
      %v3672 = vunpack.c.l.b16 %v3608
      %v3673 = vunpack.c.l.b16 %v3609
      %v3674 = vunpack.c.l.b16 %v3610
      %v3675 = vunpack.c.l.b16 %v3611
      %v3676 = vunpack.c.l.b16 %v3612
      %v3677 = vunpack.c.l.b16 %v3613
      %v3678 = vpack.c.b16 %v3649, %v3648
      %v3679 = vpack.c.b16 %v3651, %v3650
      %v3680 = vpack.c.b16 %v3653, %v3652
      %v3681 = vpack.c.b16 %v3655, %v3654
      %v3682 = vpack.c.b16 %v3657, %v3656
      %v3683 = vpack.c.b16 %v3659, %v3658
      %v3684 = vpack.c.b16 %v3661, %v3660
      %v3685 = vpack.c.b16 %v3663, %v3662
      %v3686 = vpack.c.b16 %v3665, %v3664
      %v3687 = vpack.c.b16 %v3667, %v3666
      %v3688 = vpack.c.b16 %v3669, %v3668
      %v3689 = vpack.c.b16 %v3671, %v3670
      %v3690 = vpack.c.b16 %v3673, %v3672
      %v3691 = vpack.c.b16 %v3675, %v3674
      %v3692 = vpack.c.b16 %v3677, %v3676
      %v3709 = vsel %vm2954, %v3616, 0
      %3711 = vmatpush.bf16.msra.mxu0 %v3685
      %3712 = vmatpush.bf16.msra.mxu0 %v3684
      %3713 = vmatpush.bf16.msra.mxu0 %v3683
      %3714 = vmatpush.bf16.msra.mxu0 %v3682
      %3715 = vmatpush.bf16.msra.mxu0 %v3681
      %3716 = vmatpush.bf16.msra.mxu0 %v3680
      %3717 = vmatpush.bf16.msra.mxu0 %v3679
      %3718 = vmatpush.bf16.msra.mxu0 %v3678
      %3719 = vmatmul.bf16.gmra.mxu0 %v3615
      %v3720 = vpop.f32.mrf.mxu0
      %v3721 = vadd.f32 %v3617, %v3720
      %v3722 = vpop.f32.mrf.mxu0
      %3723 = vdwg.mxu0
      %3724 = vmatpush.bf16.msra.mxu0 0
      %3725 = vmatpush.bf16.msra.mxu0 %v3692
      %3726 = vmatpush.bf16.msra.mxu0 %v3691
      %3727 = vmatpush.bf16.msra.mxu0 %v3690
      %3728 = vmatpush.bf16.msra.mxu0 %v3689
      %3729 = vmatpush.bf16.msra.mxu0 %v3688
      %3730 = vmatpush.bf16.msra.mxu0 %v3687
      %3731 = vmatpush.bf16.msra.mxu0 %v3686
      %3732 = vmatmul.bf16.gmra.mxu0 %v3709
      %v3733 = vpop.f32.mrf.mxu0
      %v3734 = vadd.f32 %v3721, %v3733
      %v3735 = vpop.f32.mrf.mxu0
      %3736 = vdwg.mxu0
      %v3737 = vadd.f32 %v3734, %v3223
      %v3738 = vld [vmem:[%s1 + $0x390] sm:$0xf]
      %v3739 = vld [vmem:[%s1 + $0x394] sm:$0xf]
      %v3740 = vld [vmem:[%s1 + $0x398] sm:$0xf]
      %v3741 = vld [vmem:[%s1 + $0x39c] sm:$0xf]
      %v3742 = vld [vmem:[%s1 + $0x3a0] sm:$0xf]
      %v3743 = vld [vmem:[%s2 + $0xd8] sm:$0x1]
      %v3744 = vpack.c.bf16 %v3737, %v3737
      %v3745 = vperm.slane %v3743, 0
      %v3751 = vunpack.c.l.b16 %v3738
      %v3752 = vunpack.c.l.b16 %v3739
      %v3753 = vunpack.c.l.b16 %v3740
      %v3754 = vunpack.c.l.b16 %v3741
      %v3755 = vunpack.c.l.b16 %v3742
      %v3756 = vpack.c.b16 %v3752, %v3751
      %v3757 = vpack.c.b16 %v3754, %v3753
      %v3758 = vpack.c.b16 %v3755, %v3755
      %v3762 = vsel %vm2746, %v3744, 0
      %v3765 = vsel %vm1723, %v3758, 0
      %3767 = vmatpush.bf16.msra.mxu0 0
      %3768 = vmatpush.bf16.msra.mxu0 0
      %3769 = vmatpush.bf16.msra.mxu0 0
      %3770 = vmatpush.bf16.msra.mxu0 0
      %3771 = vmatpush.bf16.msra.mxu0 0
      %3772 = vmatpush.bf16.msra.mxu0 %v3765
      %3773 = vmatpush.bf16.msra.mxu0 %v3757
      %3774 = vmatpush.bf16.msra.mxu0 %v3756
      %3775 = vmatmul.bf16.gmra.mxu0 %v3762
      %v3776 = vpop.f32.mrf.mxu0
      %v3777 = vadd.f32 %v3745, %v3776
      %v3778 = vpop.f32.mrf.mxu0
      %3779 = vdwg.mxu0
      %v3780 = vadd.f32 %v3777, 3.0
      %v3781 = vmax.f32 %v3780, 0.0
      %v3782 = vmin.f32 %v3781, 6.0
      %v3783 = vmul.f32 %v3777, %v3782
      %v3784 = vmul.f32 %v3783, 0.16666667
      %v3785 = vld [vmem:[%s2 + $0xe0] sm:$0x1]
      %v3786 = vld [vmem:[%s2 + $0xe8] sm:$0x1]
      %v3787 = vperm.slane %v3785, 0
      %v3788 = vmul.f32 %v3784, %v3787
      %v3789 = vperm.slane %v3786, 0
      %v3790 = vadd.f32 %v3788, %v3789
      %v3791 = vadd.f32 %v3790, 3.0
      %v3792 = vmax.f32 %v3791, 0.0
      %v3793 = vmin.f32 %v3792, 6.0
      %v3794 = vmul.f32 %v3790, %v3793
      %v3795 = vmul.f32 %v3794, 0.16666667
      %v3796 = vld [vmem:[%s1 + $0x3a8] sm:$0xf]
      %v3797 = vld [vmem:[%s1 + $0x3ac] sm:$0xf]
      %v3798 = vld [vmem:[%s1 + $0x3b0] sm:$0xf]
      %v3799 = vld [vmem:[%s1 + $0x3b4] sm:$0xf]
      %v3800 = vld [vmem:[%s1 + $0x3b8] sm:$0xf]
      %v3801 = vld [vmem:[%s1 + $0x3bc] sm:$0xf]
      %v3802 = vld [vmem:[%s1 + $0x3c0] sm:$0xf]
      %v3803 = vld [vmem:[%s1 + $0x3c4] sm:$0xf]
      %v3804 = vld [vmem:[%s1 + $0x3c8] sm:$0xf]
      %v3805 = vld [vmem:[%s1 + $0x3cc] sm:$0xf]
      %v3806 = vld [vmem:[%s1 + $0x3d0] sm:$0xf]
      %v3807 = vld [vmem:[%s1 + $0x3d4] sm:$0xf]
      %v3808 = vld [vmem:[%s1 + $0x3d8] sm:$0xf]
      %v3809 = vld [vmem:[%s1 + $0x3dc] sm:$0xf]
      %v3810 = vld [vmem:[%s1 + $0x3e0] sm:$0xf]
      %v3811 = vld [vmem:[%s2 + $0xf0] sm:$0x1]
      %v3812 = vld [vmem:[%s1 + $0x3e8] sm:$0xf]
      %v3813 = vld [vmem:[%s1 + $0x3ec] sm:$0xf]
      %v3814 = vld [vmem:[%s1 + $0x3f0] sm:$0xf]
      %v3815 = vld [vmem:[%s1 + $0x3f4] sm:$0xf]
      %v3816 = vld [vmem:[%s2 + $0xf8] sm:$0x1]
      %v3817 = vpack.c.bf16 %v3795, %v3795
      %v3818 = vperm.slane %v3811, 0
      %v3834 = vunpack.c.l.b16 %v3796
      %v3835 = vunpack.c.l.b16 %v3797
      %v3836 = vunpack.c.l.b16 %v3798
      %v3837 = vunpack.c.l.b16 %v3799
      %v3838 = vunpack.c.l.b16 %v3800
      %v3839 = vunpack.c.l.b16 %v3801
      %v3840 = vunpack.c.l.b16 %v3802
      %v3841 = vunpack.c.l.b16 %v3803
      %v3842 = vunpack.c.l.b16 %v3804
      %v3843 = vunpack.c.l.b16 %v3805
      %v3844 = vunpack.c.l.b16 %v3806
      %v3845 = vunpack.c.l.b16 %v3807
      %v3846 = vunpack.c.l.b16 %v3808
      %v3847 = vunpack.c.l.b16 %v3809
      %v3848 = vunpack.c.l.b16 %v3810
      %v3849 = vpack.c.b16 %v3835, %v3834
      %v3850 = vpack.c.b16 %v3837, %v3836
      %v3851 = vpack.c.b16 %v3839, %v3838
      %v3852 = vpack.c.b16 %v3841, %v3840
      %v3853 = vpack.c.b16 %v3843, %v3842
      %v3854 = vpack.c.b16 %v3845, %v3844
      %v3855 = vpack.c.b16 %v3847, %v3846
      %v3856 = vpack.c.b16 %v3848, %v3848
      %vm3864 = vcmask 982016
      %v3866 = vsel %vm3864, %v3817, 0
      %v3869 = vsel %vm1723, %v3856, 0
      %3871 = vmatpush.bf16.msra.mxu0 %v3869
      %3872 = vmatpush.bf16.msra.mxu0 %v3855
      %3873 = vmatpush.bf16.msra.mxu0 %v3854
      %3874 = vmatpush.bf16.msra.mxu0 %v3853
      %3875 = vmatpush.bf16.msra.mxu0 %v3852
      %3876 = vmatpush.bf16.msra.mxu0 %v3851
      %3877 = vmatpush.bf16.msra.mxu0 %v3850
      %3878 = vmatpush.bf16.msra.mxu0 %v3849
      %3879 = vmatmul.bf16.gmra.mxu0 %v3866
      %v3880 = vpop.f32.mrf.mxu0
      %v3881 = vadd.f32 %v3818, %v3880
      %v3882 = vpop.f32.mrf.mxu0
      %3883 = vdwg.mxu0
      %v3884 = vmax.f32 %v3881, 0.0
      %v3885 = vpack.c.bf16 %v3884, %v3884
      %v3886 = vperm.slane %v3816, 0
      %v3891 = vunpack.c.l.b16 %v3812
      %v3892 = vunpack.c.l.b16 %v3813
      %v3893 = vunpack.c.l.b16 %v3814
      %v3894 = vunpack.c.l.b16 %v3815
      %v3895 = vpack.c.b16 %v3892, %v3891
      %v3896 = vpack.c.b16 %v3894, %v3893
      %v3900 = vsel %vm344, %v3885, 0
      %3902 = vmatpush.bf16.msra.mxu0 0
      %3903 = vmatpush.bf16.msra.mxu0 0
      %3904 = vmatpush.bf16.msra.mxu0 0
      %3905 = vmatpush.bf16.msra.mxu0 0
      %3906 = vmatpush.bf16.msra.mxu0 0
      %3907 = vmatpush.bf16.msra.mxu0 0
      %3908 = vmatpush.bf16.msra.mxu0 %v3896
      %3909 = vmatpush.bf16.msra.mxu0 %v3895
      %3910 = vmatmul.bf16.gmra.mxu0 %v3900
      %v3911 = vpop.f32.mrf.mxu0
      %v3912 = vadd.f32 %v3886, %v3911
      %v3913 = vpop.f32.mrf.mxu0
      %3914 = vdwg.mxu0
      %v3915 = vadd.f32 %v3912, 3.0
      %v3916 = vmax.f32 %v3915, 0.0
      %v3917 = vmin.f32 %v3916, 6.0
      %v3918 = vmul.f32 %v3917, 0.16666667
      %v3919 = vmul.f32 %v3795, %v3918
      %v3920 = vld [vmem:[%s1 + $0x3f8] sm:$0xf]
      %v3921 = vld [vmem:[%s1 + $0x3fc] sm:$0xf]
      %v3922 = vld [vmem:[%s1 + $0x400] sm:$0xf]
      %v3923 = vld [vmem:[%s1 + $0x404] sm:$0xf]
      %v3924 = vld [vmem:[%s1 + $0x408] sm:$0xf]
      %v3925 = vld [vmem:[%s1 + $0x40c] sm:$0xf]
      %v3926 = vld [vmem:[%s1 + $0x410] sm:$0xf]
      %v3927 = vld [vmem:[%s1 + $0x414] sm:$0xf]
      %v3928 = vld [vmem:[%s1 + $0x418] sm:$0xf]
      %v3929 = vld [vmem:[%s1 + $0x41c] sm:$0xf]
      %v3930 = vld [vmem:[%s1 + $0x420] sm:$0xf]
      %v3931 = vld [vmem:[%s1 + $0x424] sm:$0xf]
      %v3932 = vld [vmem:[%s1 + $0x428] sm:$0xf]
      %v3933 = vld [vmem:[%s1 + $0x42c] sm:$0xf]
      %v3934 = vld [vmem:[%s1 + $0x430] sm:$0xf]
      %v3935 = vld [vmem:[%s2 + $0x100] sm:$0x1]
      %v3936 = vpack.c.bf16 %v3919, %v3919
      %v3937 = vperm.slane %v3935, 0
      %v3953 = vunpack.c.l.b16 %v3920
      %v3954 = vunpack.c.l.b16 %v3921
      %v3955 = vunpack.c.l.b16 %v3922
      %v3956 = vunpack.c.l.b16 %v3923
      %v3957 = vunpack.c.l.b16 %v3924
      %v3958 = vunpack.c.l.b16 %v3925
      %v3959 = vunpack.c.l.b16 %v3926
      %v3960 = vunpack.c.l.b16 %v3927
      %v3961 = vunpack.c.l.b16 %v3928
      %v3962 = vunpack.c.l.b16 %v3929
      %v3963 = vunpack.c.l.b16 %v3930
      %v3964 = vunpack.c.l.b16 %v3931
      %v3965 = vunpack.c.l.b16 %v3932
      %v3966 = vunpack.c.l.b16 %v3933
      %v3967 = vunpack.c.l.b16 %v3934
      %v3968 = vpack.c.b16 %v3954, %v3953
      %v3969 = vpack.c.b16 %v3956, %v3955
      %v3970 = vpack.c.b16 %v3958, %v3957
      %v3971 = vpack.c.b16 %v3960, %v3959
      %v3972 = vpack.c.b16 %v3962, %v3961
      %v3973 = vpack.c.b16 %v3964, %v3963
      %v3974 = vpack.c.b16 %v3966, %v3965
      %v3975 = vpack.c.b16 %v3967, %v3967
      %v3984 = vsel %vm3864, %v3936, 0
      %v3987 = vsel %vm1723, %v3975, 0
      %3989 = vmatpush.bf16.msra.mxu0 %v3987
      %3990 = vmatpush.bf16.msra.mxu0 %v3974
      %3991 = vmatpush.bf16.msra.mxu0 %v3973
      %3992 = vmatpush.bf16.msra.mxu0 %v3972
      %3993 = vmatpush.bf16.msra.mxu0 %v3971
      %3994 = vmatpush.bf16.msra.mxu0 %v3970
      %3995 = vmatpush.bf16.msra.mxu0 %v3969
      %3996 = vmatpush.bf16.msra.mxu0 %v3968
      %3997 = vmatmul.bf16.gmra.mxu0 %v3984
      %v3998 = vpop.f32.mrf.mxu0
      %v3999 = vadd.f32 %v3937, %v3998
      %v4000 = vpop.f32.mrf.mxu0
      %4001 = vdwg.mxu0
      %v4002 = vld [vmem:[%s3 + $0x320] sm:$0xff]
      %v4003 = vld [vmem:[%s3 + $0x328] sm:$0xff]
      %v4004 = vld [vmem:[%s3 + $0x330] sm:$0xff]
      %v4005 = vld [vmem:[%s3 + $0x338] sm:$0xff]
      %v4006 = vld [vmem:[%s3 + $0x340] sm:$0xff]
      %v4007 = vld [vmem:[%s3 + $0x348] sm:$0xff]
      %s4008 = scalar_lea.vmem %s4, 128
      %v4009 = vld [vmem:[%s4008] ss:$8 sm:$0x3]
      %v4010 = vpack.c.bf16 %v3999, %v3999
      %v4012 = vperm.slane %v4009, 0
      %v4013 = vperm.slane %v4009, 1
      %v4022 = vunpack.c.l.b16 %v4002
      %v4023 = vunpack.c.h.b16 %v4002
      %v4024 = vunpack.c.l.b16 %v4003
      %v4025 = vunpack.c.h.b16 %v4003
      %v4026 = vunpack.c.l.b16 %v4004
      %v4027 = vunpack.c.h.b16 %v4004
      %v4028 = vunpack.c.l.b16 %v4005
      %v4029 = vunpack.c.h.b16 %v4005
      %v4030 = vunpack.c.l.b16 %v4006
      %v4031 = vunpack.c.h.b16 %v4006
      %v4032 = vunpack.c.l.b16 %v4007
      %v4033 = vunpack.c.h.b16 %v4007
      %v4034 = vpack.c.b16 %v4024, %v4022
      %v4035 = vpack.c.b16 %v4025, %v4023
      %v4036 = vpack.c.b16 %v4028, %v4026
      %v4037 = vpack.c.b16 %v4029, %v4027
      %v4038 = vpack.c.b16 %v4032, %v4030
      %v4039 = vpack.c.b16 %v4033, %v4031
      %vm4046 = vcmask 392192
      %v4048 = vsel %vm4046, %v4010, 0
      %4050 = vmatpush.bf16.msra.mxu0 0
      %4051 = vmatpush.bf16.msra.mxu0 0
      %4052 = vmatpush.bf16.msra.mxu0 0
      %4053 = vmatpush.bf16.msra.mxu0 0
      %4054 = vmatpush.bf16.msra.mxu0 0
      %4055 = vmatpush.bf16.msra.mxu0 %v4038
      %4056 = vmatpush.bf16.msra.mxu0 %v4036
      %4057 = vmatpush.bf16.msra.mxu0 %v4034
      %4058 = vmatmul.bf16.gmra.mxu0 %v4048
      %v4059 = vpop.f32.mrf.mxu0
      %v4060 = vadd.f32 %v4012, %v4059
      %v4061 = vpop.f32.mrf.mxu0
      %4062 = vdwg.mxu0
      %4063 = vmatpush.bf16.msra.mxu0 0
      %4064 = vmatpush.bf16.msra.mxu0 0
      %4065 = vmatpush.bf16.msra.mxu0 0
      %4066 = vmatpush.bf16.msra.mxu0 0
      %4067 = vmatpush.bf16.msra.mxu0 0
      %4068 = vmatpush.bf16.msra.mxu0 %v4039
      %4069 = vmatpush.bf16.msra.mxu0 %v4037
      %4070 = vmatpush.bf16.msra.mxu0 %v4035
      %4071 = vmatmul.bf16.gmra.mxu0 %v4048
      %v4072 = vpop.f32.mrf.mxu0
      %v4073 = vadd.f32 %v4013, %v4072
      %v4074 = vpop.f32.mrf.mxu0
      %4075 = vdwg.mxu0
      %v4076 = vadd.f32 %v4060, 3.0
      %v4077 = vadd.f32 %v4073, 3.0
      %v4078 = vmax.f32 %v4076, 0.0
      %v4079 = vmax.f32 %v4077, 0.0
      %v4080 = vmin.f32 %v4078, 6.0
      %v4081 = vmin.f32 %v4079, 6.0
      %v4082 = vmul.f32 %v4060, %v4080
      %v4083 = vmul.f32 %v4073, %v4081
      %v4084 = vmul.f32 %v4082, 0.16666667
      %v4085 = vmul.f32 %v4083, 0.16666667
      %s4086 = scalar_lea.vmem %s4, 144
      %v4087 = vld [vmem:[%s4086] ss:$8 sm:$0x3]
      %s4088 = scalar_lea.vmem %s4, 160
      %v4089 = vld [vmem:[%s4088] ss:$8 sm:$0x3]
      %v4091 = vperm.slane %v4087, 0
      %v4092 = vperm.slane %v4087, 1
      %v4095 = vmul.f32 %v4084, %v4091
      %v4096 = vmul.f32 %v4085, %v4092
      %v4098 = vperm.slane %v4089, 0
      %v4099 = vperm.slane %v4089, 1
      %v4102 = vadd.f32 %v4095, %v4098
      %v4103 = vadd.f32 %v4096, %v4099
      %v4104 = vadd.f32 %v4102, 3.0
      %v4105 = vadd.f32 %v4103, 3.0
      %v4106 = vmax.f32 %v4104, 0.0
      %v4107 = vmax.f32 %v4105, 0.0
      %v4108 = vmin.f32 %v4106, 6.0
      %v4109 = vmin.f32 %v4107, 6.0
      %v4110 = vmul.f32 %v4102, %v4108
      %v4111 = vmul.f32 %v4103, %v4109
      %v4112 = vmul.f32 %v4110, 0.16666667
      %v4113 = vmul.f32 %v4111, 0.16666667
      %v4114 = vld [vmem:[%s1 + $0x438] sm:$0xf]
      %v4115 = vld [vmem:[%s1 + $0x43c] sm:$0xf]
      %v4116 = vld [vmem:[%s1 + $0x440] sm:$0xf]
      %v4117 = vld [vmem:[%s1 + $0x444] sm:$0xf]
      %v4118 = vld [vmem:[%s1 + $0x448] sm:$0xf]
      %v4119 = vld [vmem:[%s1 + $0x44c] sm:$0xf]
      %v4120 = vld [vmem:[%s1 + $0x450] sm:$0xf]
      %v4121 = vld [vmem:[%s1 + $0x454] sm:$0xf]
      %v4122 = vld [vmem:[%s1 + $0x458] sm:$0xf]
      %v4123 = vld [vmem:[%s1 + $0x45c] sm:$0xf]
      %v4124 = vld [vmem:[%s1 + $0x460] sm:$0xf]
      %v4125 = vld [vmem:[%s1 + $0x464] sm:$0xf]
      %v4126 = vld [vmem:[%s1 + $0x468] sm:$0xf]
      %v4127 = vld [vmem:[%s1 + $0x46c] sm:$0xf]
      %v4128 = vld [vmem:[%s1 + $0x470] sm:$0xf]
      %v4129 = vld [vmem:[%s1 + $0x474] sm:$0xf]
      %v4130 = vld [vmem:[%s1 + $0x478] sm:$0xf]
      %v4131 = vld [vmem:[%s1 + $0x47c] sm:$0xf]
      %v4132 = vld [vmem:[%s2 + $0x108] sm:$0x1]
      %v4133 = vld [vmem:[%s3 + $0x350] sm:$0xff]
      %v4134 = vld [vmem:[%s3 + $0x358] sm:$0xff]
      %v4135 = vld [vmem:[%s3 + $0x360] sm:$0xff]
      %v4136 = vld [vmem:[%s3 + $0x368] sm:$0xff]
      %v4137 = vld [vmem:[%s3 + $0x370] sm:$0xff]
      %s4138 = scalar_lea.vmem %s4, 176
      %v4139 = vld [vmem:[%s4138] ss:$8 sm:$0x3]
      %v4140 = vpack.c.bf16 %v4112, %v4112
      %v4141 = vpack.c.bf16 %v4113, %v4113
      %v4142 = vperm.slane %v4132, 0
      %v4161 = vunpack.c.l.b16 %v4114
      %v4162 = vunpack.c.l.b16 %v4115
      %v4163 = vunpack.c.l.b16 %v4116
      %v4164 = vunpack.c.l.b16 %v4117
      %v4165 = vunpack.c.l.b16 %v4118
      %v4166 = vunpack.c.l.b16 %v4119
      %v4167 = vunpack.c.l.b16 %v4120
      %v4168 = vunpack.c.l.b16 %v4121
      %v4169 = vunpack.c.l.b16 %v4122
      %v4170 = vunpack.c.l.b16 %v4123
      %v4171 = vunpack.c.l.b16 %v4124
      %v4172 = vunpack.c.l.b16 %v4125
      %v4173 = vunpack.c.l.b16 %v4126
      %v4174 = vunpack.c.l.b16 %v4127
      %v4175 = vunpack.c.l.b16 %v4128
      %v4176 = vunpack.c.l.b16 %v4129
      %v4177 = vunpack.c.l.b16 %v4130
      %v4178 = vunpack.c.l.b16 %v4131
      %v4179 = vpack.c.b16 %v4162, %v4161
      %v4180 = vpack.c.b16 %v4164, %v4163
      %v4181 = vpack.c.b16 %v4166, %v4165
      %v4182 = vpack.c.b16 %v4168, %v4167
      %v4183 = vpack.c.b16 %v4170, %v4169
      %v4184 = vpack.c.b16 %v4172, %v4171
      %v4185 = vpack.c.b16 %v4174, %v4173
      %v4186 = vpack.c.b16 %v4176, %v4175
      %v4187 = vpack.c.b16 %v4178, %v4177
      %v4198 = vsel %vm1638, %v4141, 0
      %4200 = vmatpush.bf16.msra.mxu0 %v4186
      %4201 = vmatpush.bf16.msra.mxu0 %v4185
      %4202 = vmatpush.bf16.msra.mxu0 %v4184
      %4203 = vmatpush.bf16.msra.mxu0 %v4183
      %4204 = vmatpush.bf16.msra.mxu0 %v4182
      %4205 = vmatpush.bf16.msra.mxu0 %v4181
      %4206 = vmatpush.bf16.msra.mxu0 %v4180
      %4207 = vmatpush.bf16.msra.mxu0 %v4179
      %4208 = vmatmul.bf16.gmra.mxu0 %v4140
      %v4209 = vpop.f32.mrf.mxu0
      %v4210 = vadd.f32 %v4142, %v4209
      %v4211 = vpop.f32.mrf.mxu0
      %4212 = vdwg.mxu0
      %4213 = vmatpush.bf16.msra.mxu0 0
      %4214 = vmatpush.bf16.msra.mxu0 0
      %4215 = vmatpush.bf16.msra.mxu0 0
      %4216 = vmatpush.bf16.msra.mxu0 0
      %4217 = vmatpush.bf16.msra.mxu0 0
      %4218 = vmatpush.bf16.msra.mxu0 0
      %4219 = vmatpush.bf16.msra.mxu0 0
      %4220 = vmatpush.bf16.msra.mxu0 %v4187
      %4221 = vmatmul.bf16.gmra.mxu0 %v4198
      %v4222 = vpop.f32.mrf.mxu0
      %v4223 = vadd.f32 %v4210, %v4222
      %v4224 = vpop.f32.mrf.mxu0
      %4225 = vdwg.mxu0
      %v4226 = vmax.f32 %v4223, 0.0
      %v4227 = vpack.c.bf16 %v4226, %v4226
      %v4229 = vperm.slane %v4139, 0
      %v4230 = vperm.slane %v4139, 1
      %v4238 = vunpack.c.l.b16 %v4133
      %v4239 = vunpack.c.h.b16 %v4133
      %v4240 = vunpack.c.l.b16 %v4134
      %v4241 = vunpack.c.h.b16 %v4134
      %v4242 = vunpack.c.l.b16 %v4135
      %v4243 = vunpack.c.h.b16 %v4135
      %v4244 = vunpack.c.l.b16 %v4136
      %v4245 = vunpack.c.h.b16 %v4136
      %v4246 = vunpack.c.l.b16 %v4137
      %v4247 = vunpack.c.h.b16 %v4137
      %v4248 = vpack.c.b16 %v4240, %v4238
      %v4249 = vpack.c.b16 %v4241, %v4239
      %v4250 = vpack.c.b16 %v4244, %v4242
      %v4251 = vpack.c.b16 %v4245, %v4243
      %v4252 = vpack.c.b16 %v4246, %v4246
      %v4253 = vpack.c.b16 %v4247, %v4247
      %v4259 = vsel %vm2746, %v4227, 0
      %v4262 = vsel %vm1723, %v4252, 0
      %v4265 = vsel %vm1723, %v4253, 0
      %4267 = vmatpush.bf16.msra.mxu0 0
      %4268 = vmatpush.bf16.msra.mxu0 0
      %4269 = vmatpush.bf16.msra.mxu0 0
      %4270 = vmatpush.bf16.msra.mxu0 0
      %4271 = vmatpush.bf16.msra.mxu0 0
      %4272 = vmatpush.bf16.msra.mxu0 %v4262
      %4273 = vmatpush.bf16.msra.mxu0 %v4250
      %4274 = vmatpush.bf16.msra.mxu0 %v4248
      %4275 = vmatmul.bf16.gmra.mxu0 %v4259
      %v4276 = vpop.f32.mrf.mxu0
      %v4277 = vadd.f32 %v4229, %v4276
      %v4278 = vpop.f32.mrf.mxu0
      %4279 = vdwg.mxu0
      %4280 = vmatpush.bf16.msra.mxu0 0
      %4281 = vmatpush.bf16.msra.mxu0 0
      %4282 = vmatpush.bf16.msra.mxu0 0
      %4283 = vmatpush.bf16.msra.mxu0 0
      %4284 = vmatpush.bf16.msra.mxu0 0
      %4285 = vmatpush.bf16.msra.mxu0 %v4265
      %4286 = vmatpush.bf16.msra.mxu0 %v4251
      %4287 = vmatpush.bf16.msra.mxu0 %v4249
      %4288 = vmatmul.bf16.gmra.mxu0 %v4259
      %v4289 = vpop.f32.mrf.mxu0
      %v4290 = vadd.f32 %v4230, %v4289
      %v4291 = vpop.f32.mrf.mxu0
      %4292 = vdwg.mxu0
      %v4293 = vadd.f32 %v4277, 3.0
      %v4294 = vadd.f32 %v4290, 3.0
      %v4295 = vmax.f32 %v4293, 0.0
      %v4296 = vmax.f32 %v4294, 0.0
      %v4297 = vmin.f32 %v4295, 6.0
      %v4298 = vmin.f32 %v4296, 6.0
      %v4299 = vmul.f32 %v4297, 0.16666667
      %v4300 = vmul.f32 %v4298, 0.16666667
      %v4301 = vmul.f32 %v4112, %v4299
      %v4302 = vmul.f32 %v4113, %v4300
      %v4303 = vld [vmem:[%s1 + $0x480] sm:$0xf]
      %v4304 = vld [vmem:[%s1 + $0x484] sm:$0xf]
      %v4305 = vld [vmem:[%s1 + $0x488] sm:$0xf]
      %v4306 = vld [vmem:[%s1 + $0x48c] sm:$0xf]
      %v4307 = vld [vmem:[%s1 + $0x490] sm:$0xf]
      %v4308 = vld [vmem:[%s1 + $0x494] sm:$0xf]
      %v4309 = vld [vmem:[%s1 + $0x498] sm:$0xf]
      %v4310 = vld [vmem:[%s1 + $0x49c] sm:$0xf]
      %v4311 = vld [vmem:[%s1 + $0x4a0] sm:$0xf]
      %v4312 = vld [vmem:[%s1 + $0x4a4] sm:$0xf]
      %v4313 = vld [vmem:[%s1 + $0x4a8] sm:$0xf]
      %v4314 = vld [vmem:[%s1 + $0x4ac] sm:$0xf]
      %v4315 = vld [vmem:[%s1 + $0x4b0] sm:$0xf]
      %v4316 = vld [vmem:[%s1 + $0x4b4] sm:$0xf]
      %v4317 = vld [vmem:[%s1 + $0x4b8] sm:$0xf]
      %v4318 = vld [vmem:[%s1 + $0x4bc] sm:$0xf]
      %v4319 = vld [vmem:[%s1 + $0x4c0] sm:$0xf]
      %v4320 = vld [vmem:[%s1 + $0x4c4] sm:$0xf]
      %v4321 = vld [vmem:[%s2 + $0x110] sm:$0x1]
      %v4322 = vpack.c.bf16 %v4301, %v4301
      %v4323 = vpack.c.bf16 %v4302, %v4302
      %v4324 = vperm.slane %v4321, 0
      %v4343 = vunpack.c.l.b16 %v4303
      %v4344 = vunpack.c.l.b16 %v4304
      %v4345 = vunpack.c.l.b16 %v4305
      %v4346 = vunpack.c.l.b16 %v4306
      %v4347 = vunpack.c.l.b16 %v4307
      %v4348 = vunpack.c.l.b16 %v4308
      %v4349 = vunpack.c.l.b16 %v4309
      %v4350 = vunpack.c.l.b16 %v4310
      %v4351 = vunpack.c.l.b16 %v4311
      %v4352 = vunpack.c.l.b16 %v4312
      %v4353 = vunpack.c.l.b16 %v4313
      %v4354 = vunpack.c.l.b16 %v4314
      %v4355 = vunpack.c.l.b16 %v4315
      %v4356 = vunpack.c.l.b16 %v4316
      %v4357 = vunpack.c.l.b16 %v4317
      %v4358 = vunpack.c.l.b16 %v4318
      %v4359 = vunpack.c.l.b16 %v4319
      %v4360 = vunpack.c.l.b16 %v4320
      %v4361 = vpack.c.b16 %v4344, %v4343
      %v4362 = vpack.c.b16 %v4346, %v4345
      %v4363 = vpack.c.b16 %v4348, %v4347
      %v4364 = vpack.c.b16 %v4350, %v4349
      %v4365 = vpack.c.b16 %v4352, %v4351
      %v4366 = vpack.c.b16 %v4354, %v4353
      %v4367 = vpack.c.b16 %v4356, %v4355
      %v4368 = vpack.c.b16 %v4358, %v4357
      %v4369 = vpack.c.b16 %v4360, %v4359
      %v4380 = vsel %vm1638, %v4323, 0
      %4382 = vmatpush.bf16.msra.mxu0 %v4368
      %4383 = vmatpush.bf16.msra.mxu0 %v4367
      %4384 = vmatpush.bf16.msra.mxu0 %v4366
      %4385 = vmatpush.bf16.msra.mxu0 %v4365
      %4386 = vmatpush.bf16.msra.mxu0 %v4364
      %4387 = vmatpush.bf16.msra.mxu0 %v4363
      %4388 = vmatpush.bf16.msra.mxu0 %v4362
      %4389 = vmatpush.bf16.msra.mxu0 %v4361
      %4390 = vmatmul.bf16.gmra.mxu0 %v4322
      %v4391 = vpop.f32.mrf.mxu0
      %v4392 = vadd.f32 %v4324, %v4391
      %v4393 = vpop.f32.mrf.mxu0
      %4394 = vdwg.mxu0
      %4395 = vmatpush.bf16.msra.mxu0 0
      %4396 = vmatpush.bf16.msra.mxu0 0
      %4397 = vmatpush.bf16.msra.mxu0 0
      %4398 = vmatpush.bf16.msra.mxu0 0
      %4399 = vmatpush.bf16.msra.mxu0 0
      %4400 = vmatpush.bf16.msra.mxu0 0
      %4401 = vmatpush.bf16.msra.mxu0 0
      %4402 = vmatpush.bf16.msra.mxu0 %v4369
      %4403 = vmatmul.bf16.gmra.mxu0 %v4380
      %v4404 = vpop.f32.mrf.mxu0
      %v4405 = vadd.f32 %v4392, %v4404
      %v4406 = vpop.f32.mrf.mxu0
      %4407 = vdwg.mxu0
      %v4408 = vadd.f32 %v4405, %v3999
      %v4409 = vld [vmem:[%s5] sm:$0xff]
      %v4410 = vld [vmem:[%s5 + $0x8] sm:$0xf]
      %v4411 = vld [vmem:[%s5 + $0x14] sm:$0xff]
      %v4412 = vld [vmem:[%s5 + $0x1c] sm:$0xf]
      %v4413 = vld [vmem:[%s5 + $0x28] sm:$0xff]
      %v4414 = vld [vmem:[%s5 + $0x30] sm:$0xf]
      %v4415 = vld [vmem:[%s5 + $0x3c] sm:$0xff]
      %v4416 = vld [vmem:[%s5 + $0x44] sm:$0xf]
      %v4417 = vld [vmem:[%s5 + $0x50] sm:$0xff]
      %v4418 = vld [vmem:[%s5 + $0x58] sm:$0xf]
      %v4419 = vld [vmem:[%s5 + $0x64] sm:$0xff]
      %v4420 = vld [vmem:[%s5 + $0x6c] sm:$0xf]
      %v4421 = vld [vmem:[%s6] ss:$8 sm:$0x7]
      %v4422 = vpack.c.bf16 %v4408, %v4408
      %v4424 = vperm.slane %v4421, 0
      %v4425 = vperm.slane %v4421, 1
      %v4426 = vperm.slane %v4421, 2
      %v4442 = vunpack.c.l.b16 %v4409
      %v4443 = vunpack.c.h.b16 %v4409
      %v4444 = vunpack.c.l.b16 %v4410
      %v4445 = vunpack.c.l.b16 %v4411
      %v4446 = vunpack.c.h.b16 %v4411
      %v4447 = vunpack.c.l.b16 %v4412
      %v4448 = vunpack.c.l.b16 %v4413
      %v4449 = vunpack.c.h.b16 %v4413
      %v4450 = vunpack.c.l.b16 %v4414
      %v4451 = vunpack.c.l.b16 %v4415
      %v4452 = vunpack.c.h.b16 %v4415
      %v4453 = vunpack.c.l.b16 %v4416
      %v4454 = vunpack.c.l.b16 %v4417
      %v4455 = vunpack.c.h.b16 %v4417
      %v4456 = vunpack.c.l.b16 %v4418
      %v4457 = vunpack.c.l.b16 %v4419
      %v4458 = vunpack.c.h.b16 %v4419
      %v4459 = vunpack.c.l.b16 %v4420
      %v4460 = vpack.c.b16 %v4445, %v4442
      %v4461 = vpack.c.b16 %v4446, %v4443
      %v4462 = vpack.c.b16 %v4447, %v4444
      %v4463 = vpack.c.b16 %v4451, %v4448
      %v4464 = vpack.c.b16 %v4452, %v4449
      %v4465 = vpack.c.b16 %v4453, %v4450
      %v4466 = vpack.c.b16 %v4457, %v4454
      %v4467 = vpack.c.b16 %v4458, %v4455
      %v4468 = vpack.c.b16 %v4459, %v4456
      %v4479 = vsel %vm4046, %v4422, 0
      %4481 = vmatpush.bf16.msra.mxu0 0
      %4482 = vmatpush.bf16.msra.mxu0 0
      %4483 = vmatpush.bf16.msra.mxu0 0
      %4484 = vmatpush.bf16.msra.mxu0 0
      %4485 = vmatpush.bf16.msra.mxu0 0
      %4486 = vmatpush.bf16.msra.mxu0 %v4466
      %4487 = vmatpush.bf16.msra.mxu0 %v4463
      %4488 = vmatpush.bf16.msra.mxu0 %v4460
      %4489 = vmatmul.bf16.gmra.mxu0 %v4479
      %v4490 = vpop.f32.mrf.mxu0
      %v4491 = vadd.f32 %v4424, %v4490
      %v4492 = vpop.f32.mrf.mxu0
      %4493 = vdwg.mxu0
      %4494 = vmatpush.bf16.msra.mxu0 0
      %4495 = vmatpush.bf16.msra.mxu0 0
      %4496 = vmatpush.bf16.msra.mxu0 0
      %4497 = vmatpush.bf16.msra.mxu0 0
      %4498 = vmatpush.bf16.msra.mxu0 0
      %4499 = vmatpush.bf16.msra.mxu0 %v4467
      %4500 = vmatpush.bf16.msra.mxu0 %v4464
      %4501 = vmatpush.bf16.msra.mxu0 %v4461
      %4502 = vmatmul.bf16.gmra.mxu0 %v4479
      %v4503 = vpop.f32.mrf.mxu0
      %v4504 = vadd.f32 %v4425, %v4503
      %v4505 = vpop.f32.mrf.mxu0
      %4506 = vdwg.mxu0
      %4507 = vmatpush.bf16.msra.mxu0 0
      %4508 = vmatpush.bf16.msra.mxu0 0
      %4509 = vmatpush.bf16.msra.mxu0 0
      %4510 = vmatpush.bf16.msra.mxu0 0
      %4511 = vmatpush.bf16.msra.mxu0 0
      %4512 = vmatpush.bf16.msra.mxu0 %v4468
      %4513 = vmatpush.bf16.msra.mxu0 %v4465
      %4514 = vmatpush.bf16.msra.mxu0 %v4462
      %4515 = vmatmul.bf16.gmra.mxu0 %v4479
      %v4516 = vpop.f32.mrf.mxu0
      %v4517 = vadd.f32 %v4426, %v4516
      %v4518 = vpop.f32.mrf.mxu0
      %4519 = vdwg.mxu0
      %v4520 = vadd.f32 %v4491, 3.0
      %v4521 = vadd.f32 %v4504, 3.0
      %v4522 = vadd.f32 %v4517, 3.0
      %v4523 = vmax.f32 %v4520, 0.0
      %v4524 = vmax.f32 %v4521, 0.0
      %v4525 = vmax.f32 %v4522, 0.0
      %v4526 = vmin.f32 %v4523, 6.0
      %v4527 = vmin.f32 %v4524, 6.0
      %v4528 = vmin.f32 %v4525, 6.0
      %v4529 = vmul.f32 %v4491, %v4526
      %v4530 = vmul.f32 %v4504, %v4527
      %v4531 = vmul.f32 %v4517, %v4528
      %v4532 = vmul.f32 %v4529, 0.16666667
      %v4533 = vmul.f32 %v4530, 0.16666667
      %v4534 = vmul.f32 %v4531, 0.16666667
      %s4535 = scalar_lea.vmem %s6, 40
      %v4536 = vld [vmem:[%s4535] ss:$8 sm:$0x7]
      %s4537 = scalar_lea.vmem %s6, 80
      %v4538 = vld [vmem:[%s4537] ss:$8 sm:$0x7]
      %v4540 = vperm.slane %v4536, 0
      %v4541 = vperm.slane %v4536, 1
      %v4542 = vperm.slane %v4536, 2
      %v4546 = vmul.f32 %v4532, %v4540
      %v4547 = vmul.f32 %v4533, %v4541
      %v4548 = vmul.f32 %v4534, %v4542
      %v4550 = vperm.slane %v4538, 0
      %v4551 = vperm.slane %v4538, 1
      %v4552 = vperm.slane %v4538, 2
      %v4556 = vadd.f32 %v4546, %v4550
      %v4557 = vadd.f32 %v4547, %v4551
      %v4558 = vadd.f32 %v4548, %v4552
      %v4559 = vadd.f32 %v4556, 3.0
      %v4560 = vadd.f32 %v4557, 3.0
      %v4561 = vadd.f32 %v4558, 3.0
      %v4562 = vmax.f32 %v4559, 0.0
      %v4563 = vmax.f32 %v4560, 0.0
      %v4564 = vmax.f32 %v4561, 0.0
      %v4565 = vmin.f32 %v4562, 6.0
      %v4566 = vmin.f32 %v4563, 6.0
      %v4567 = vmin.f32 %v4564, 6.0
      %v4568 = vmul.f32 %v4556, %v4565
      %v4569 = vmul.f32 %v4557, %v4566
      %v4570 = vmul.f32 %v4558, %v4567
      %v4571 = vmul.f32 %v4568, 0.16666667
      %v4572 = vmul.f32 %v4569, 0.16666667
      %v4573 = vmul.f32 %v4570, 0.16666667
      %v4574 = vld [vmem:[%s1 + $0x4c8] sm:$0xf]
      %v4575 = vld [vmem:[%s1 + $0x4cc] sm:$0xf]
      %v4576 = vld [vmem:[%s1 + $0x4d0] sm:$0xf]
      %v4577 = vld [vmem:[%s1 + $0x4d4] sm:$0xf]
      %v4578 = vld [vmem:[%s1 + $0x4d8] sm:$0xf]
      %v4579 = vld [vmem:[%s1 + $0x4dc] sm:$0xf]
      %v4580 = vld [vmem:[%s1 + $0x4e0] sm:$0xf]
      %v4581 = vld [vmem:[%s1 + $0x4e4] sm:$0xf]
      %v4582 = vld [vmem:[%s1 + $0x4e8] sm:$0xf]
      %v4583 = vld [vmem:[%s1 + $0x4ec] sm:$0xf]
      %v4584 = vld [vmem:[%s1 + $0x4f0] sm:$0xf]
      %v4585 = vld [vmem:[%s1 + $0x4f4] sm:$0xf]
      %v4586 = vld [vmem:[%s1 + $0x4f8] sm:$0xf]
      %v4587 = vld [vmem:[%s1 + $0x4fc] sm:$0xf]
      %v4588 = vld [vmem:[%s1 + $0x500] sm:$0xf]
      %v4589 = vld [vmem:[%s1 + $0x504] sm:$0xf]
      %v4590 = vld [vmem:[%s1 + $0x508] sm:$0xf]
      %v4591 = vld [vmem:[%s1 + $0x50c] sm:$0xf]
      %v4592 = vld [vmem:[%s1 + $0x510] sm:$0xf]
      %v4593 = vld [vmem:[%s1 + $0x514] sm:$0xf]
      %v4594 = vld [vmem:[%s1 + $0x518] sm:$0xf]
      %v4595 = vld [vmem:[%s1 + $0x51c] sm:$0xf]
      %v4596 = vld [vmem:[%s1 + $0x520] sm:$0xf]
      %v4597 = vld [vmem:[%s1 + $0x524] sm:$0xf]
      %v4598 = vld [vmem:[%s1 + $0x528] sm:$0xf]
      %v4599 = vld [vmem:[%s1 + $0x52c] sm:$0xf]
      %v4600 = vld [vmem:[%s1 + $0x530] sm:$0xf]
      %v4601 = vld [vmem:[%s1 + $0x534] sm:$0xf]
      %v4602 = vld [vmem:[%s1 + $0x538] sm:$0xf]
      %v4603 = vld [vmem:[%s1 + $0x53c] sm:$0xf]
      %v4604 = vld [vmem:[%s1 + $0x540] sm:$0xf]
      %v4605 = vld [vmem:[%s1 + $0x544] sm:$0xf]
      %v4606 = vld [vmem:[%s1 + $0x548] sm:$0xf]
      %v4607 = vld [vmem:[%s1 + $0x54c] sm:$0xf]
      %v4608 = vld [vmem:[%s1 + $0x550] sm:$0xf]
      %v4609 = vld [vmem:[%s1 + $0x554] sm:$0xf]
      %v4610 = vld [vmem:[%s2 + $0x118] sm:$0x1]
      %v4611 = vld [vmem:[%s5 + $0x78] sm:$0xff]
      %v4612 = vld [vmem:[%s5 + $0x80] sm:$0xf]
      %v4613 = vld [vmem:[%s5 + $0x8c] sm:$0xff]
      %v4614 = vld [vmem:[%s5 + $0x94] sm:$0xf]
      %v4615 = vld [vmem:[%s5 + $0xa0] sm:$0xff]
      %v4616 = vld [vmem:[%s5 + $0xa8] sm:$0xf]
      %v4617 = vld [vmem:[%s5 + $0xb4] sm:$0xff]
      %v4618 = vld [vmem:[%s5 + $0xbc] sm:$0xf]
      %v4619 = vld [vmem:[%s5 + $0xc8] sm:$0xff]
      %v4620 = vld [vmem:[%s5 + $0xd0] sm:$0xf]
      %v4621 = vld [vmem:[%s5 + $0xdc] sm:$0xff]
      %v4622 = vld [vmem:[%s5 + $0xe4] sm:$0xf]
      %v4623 = vld [vmem:[%s5 + $0xf0] sm:$0xff]
      %v4624 = vld [vmem:[%s5 + $0xf8] sm:$0xf]
      %v4625 = vld [vmem:[%s5 + $0x104] sm:$0xff]
      %v4626 = vld [vmem:[%s5 + $0x10c] sm:$0xf]
      %v4627 = vld [vmem:[%s5 + $0x118] sm:$0xff]
      %v4628 = vld [vmem:[%s5 + $0x120] sm:$0xf]
      %s4629 = scalar_lea.vmem %s6, 120
      %v4630 = vld [vmem:[%s4629] ss:$8 sm:$0x7]
      %v4631 = vpack.c.bf16 %v4571, %v4571
      %v4632 = vpack.c.bf16 %v4572, %v4572
      %v4633 = vpack.c.bf16 %v4573, %v4573
      %v4634 = vperm.slane %v4610, 0
      %v4671 = vunpack.c.l.b16 %v4574
      %v4672 = vunpack.c.l.b16 %v4575
      %v4673 = vunpack.c.l.b16 %v4576
      %v4674 = vunpack.c.l.b16 %v4577
      %v4675 = vunpack.c.l.b16 %v4578
      %v4676 = vunpack.c.l.b16 %v4579
      %v4677 = vunpack.c.l.b16 %v4580
      %v4678 = vunpack.c.l.b16 %v4581
      %v4679 = vunpack.c.l.b16 %v4582
      %v4680 = vunpack.c.l.b16 %v4583
      %v4681 = vunpack.c.l.b16 %v4584
      %v4682 = vunpack.c.l.b16 %v4585
      %v4683 = vunpack.c.l.b16 %v4586
      %v4684 = vunpack.c.l.b16 %v4587
      %v4685 = vunpack.c.l.b16 %v4588
      %v4686 = vunpack.c.l.b16 %v4589
      %v4687 = vunpack.c.l.b16 %v4590
      %v4688 = vunpack.c.l.b16 %v4591
      %v4689 = vunpack.c.l.b16 %v4592
      %v4690 = vunpack.c.l.b16 %v4593
      %v4691 = vunpack.c.l.b16 %v4594
      %v4692 = vunpack.c.l.b16 %v4595
      %v4693 = vunpack.c.l.b16 %v4596
      %v4694 = vunpack.c.l.b16 %v4597
      %v4695 = vunpack.c.l.b16 %v4598
      %v4696 = vunpack.c.l.b16 %v4599
      %v4697 = vunpack.c.l.b16 %v4600
      %v4698 = vunpack.c.l.b16 %v4601
      %v4699 = vunpack.c.l.b16 %v4602
      %v4700 = vunpack.c.l.b16 %v4603
      %v4701 = vunpack.c.l.b16 %v4604
      %v4702 = vunpack.c.l.b16 %v4605
      %v4703 = vunpack.c.l.b16 %v4606
      %v4704 = vunpack.c.l.b16 %v4607
      %v4705 = vunpack.c.l.b16 %v4608
      %v4706 = vunpack.c.l.b16 %v4609
      %v4707 = vpack.c.b16 %v4672, %v4671
      %v4708 = vpack.c.b16 %v4674, %v4673
      %v4709 = vpack.c.b16 %v4676, %v4675
      %v4710 = vpack.c.b16 %v4678, %v4677
      %v4711 = vpack.c.b16 %v4680, %v4679
      %v4712 = vpack.c.b16 %v4682, %v4681
      %v4713 = vpack.c.b16 %v4684, %v4683
      %v4714 = vpack.c.b16 %v4686, %v4685
      %v4715 = vpack.c.b16 %v4688, %v4687
      %v4716 = vpack.c.b16 %v4690, %v4689
      %v4717 = vpack.c.b16 %v4692, %v4691
      %v4718 = vpack.c.b16 %v4694, %v4693
      %v4719 = vpack.c.b16 %v4696, %v4695
      %v4720 = vpack.c.b16 %v4698, %v4697
      %v4721 = vpack.c.b16 %v4700, %v4699
      %v4722 = vpack.c.b16 %v4702, %v4701
      %v4723 = vpack.c.b16 %v4704, %v4703
      %v4724 = vpack.c.b16 %v4706, %v4705
      %v4744 = vsel %vm344, %v4633, 0
      %4746 = vmatpush.bf16.msra.mxu0 %v4714
      %4747 = vmatpush.bf16.msra.mxu0 %v4713
      %4748 = vmatpush.bf16.msra.mxu0 %v4712
      %4749 = vmatpush.bf16.msra.mxu0 %v4711
      %4750 = vmatpush.bf16.msra.mxu0 %v4710
      %4751 = vmatpush.bf16.msra.mxu0 %v4709
      %4752 = vmatpush.bf16.msra.mxu0 %v4708
      %4753 = vmatpush.bf16.msra.mxu0 %v4707
      %4754 = vmatmul.bf16.gmra.mxu0 %v4631
      %v4755 = vpop.f32.mrf.mxu0
      %v4756 = vadd.f32 %v4634, %v4755
      %v4757 = vpop.f32.mrf.mxu0
      %4758 = vdwg.mxu0
      %4759 = vmatpush.bf16.msra.mxu0 %v4722
      %4760 = vmatpush.bf16.msra.mxu0 %v4721
      %4761 = vmatpush.bf16.msra.mxu0 %v4720
      %4762 = vmatpush.bf16.msra.mxu0 %v4719
      %4763 = vmatpush.bf16.msra.mxu0 %v4718
      %4764 = vmatpush.bf16.msra.mxu0 %v4717
      %4765 = vmatpush.bf16.msra.mxu0 %v4716
      %4766 = vmatpush.bf16.msra.mxu0 %v4715
      %4767 = vmatmul.bf16.gmra.mxu0 %v4632
      %v4768 = vpop.f32.mrf.mxu0
      %v4769 = vadd.f32 %v4756, %v4768
      %v4770 = vpop.f32.mrf.mxu0
      %4771 = vdwg.mxu0
      %4772 = vmatpush.bf16.msra.mxu0 0
      %4773 = vmatpush.bf16.msra.mxu0 0
      %4774 = vmatpush.bf16.msra.mxu0 0
      %4775 = vmatpush.bf16.msra.mxu0 0
      %4776 = vmatpush.bf16.msra.mxu0 0
      %4777 = vmatpush.bf16.msra.mxu0 0
      %4778 = vmatpush.bf16.msra.mxu0 %v4724
      %4779 = vmatpush.bf16.msra.mxu0 %v4723
      %4780 = vmatmul.bf16.gmra.mxu0 %v4744
      %v4781 = vpop.f32.mrf.mxu0
      %v4782 = vadd.f32 %v4769, %v4781
      %v4783 = vpop.f32.mrf.mxu0
      %4784 = vdwg.mxu0
      %v4785 = vmax.f32 %v4782, 0.0
      %v4786 = vpack.c.bf16 %v4785, %v4785
      %v4788 = vperm.slane %v4630, 0
      %v4789 = vperm.slane %v4630, 1
      %v4790 = vperm.slane %v4630, 2
      %v4812 = vunpack.c.l.b16 %v4611
      %v4813 = vunpack.c.h.b16 %v4611
      %v4814 = vunpack.c.l.b16 %v4612
      %v4815 = vunpack.c.l.b16 %v4613
      %v4816 = vunpack.c.h.b16 %v4613
      %v4817 = vunpack.c.l.b16 %v4614
      %v4818 = vunpack.c.l.b16 %v4615
      %v4819 = vunpack.c.h.b16 %v4615
      %v4820 = vunpack.c.l.b16 %v4616
      %v4821 = vunpack.c.l.b16 %v4617
      %v4822 = vunpack.c.h.b16 %v4617
      %v4823 = vunpack.c.l.b16 %v4618
      %v4824 = vunpack.c.l.b16 %v4619
      %v4825 = vunpack.c.h.b16 %v4619
      %v4826 = vunpack.c.l.b16 %v4620
      %v4827 = vunpack.c.l.b16 %v4621
      %v4828 = vunpack.c.h.b16 %v4621
      %v4829 = vunpack.c.l.b16 %v4622
      %v4830 = vunpack.c.l.b16 %v4623
      %v4831 = vunpack.c.h.b16 %v4623
      %v4832 = vunpack.c.l.b16 %v4624
      %v4833 = vunpack.c.l.b16 %v4625
      %v4834 = vunpack.c.h.b16 %v4625
      %v4835 = vunpack.c.l.b16 %v4626
      %v4836 = vunpack.c.l.b16 %v4627
      %v4837 = vunpack.c.h.b16 %v4627
      %v4838 = vunpack.c.l.b16 %v4628
      %v4839 = vpack.c.b16 %v4815, %v4812
      %v4840 = vpack.c.b16 %v4816, %v4813
      %v4841 = vpack.c.b16 %v4817, %v4814
      %v4842 = vpack.c.b16 %v4821, %v4818
      %v4843 = vpack.c.b16 %v4822, %v4819
      %v4844 = vpack.c.b16 %v4823, %v4820
      %v4845 = vpack.c.b16 %v4827, %v4824
      %v4846 = vpack.c.b16 %v4828, %v4825
      %v4847 = vpack.c.b16 %v4829, %v4826
      %v4848 = vpack.c.b16 %v4833, %v4830
      %v4849 = vpack.c.b16 %v4834, %v4831
      %v4850 = vpack.c.b16 %v4835, %v4832
      %v4851 = vpack.c.b16 %v4836, %v4836
      %v4852 = vpack.c.b16 %v4837, %v4837
      %v4853 = vpack.c.b16 %v4838, %v4838
      %v4867 = vsel %vm2113, %v4786, 0
      %v4870 = vsel %vm1723, %v4851, 0
      %v4873 = vsel %vm1723, %v4852, 0
      %v4876 = vsel %vm1723, %v4853, 0
      %4878 = vmatpush.bf16.msra.mxu0 0
      %4879 = vmatpush.bf16.msra.mxu0 0
      %4880 = vmatpush.bf16.msra.mxu0 0
      %4881 = vmatpush.bf16.msra.mxu0 %v4870
      %4882 = vmatpush.bf16.msra.mxu0 %v4848
      %4883 = vmatpush.bf16.msra.mxu0 %v4845
      %4884 = vmatpush.bf16.msra.mxu0 %v4842
      %4885 = vmatpush.bf16.msra.mxu0 %v4839
      %4886 = vmatmul.bf16.gmra.mxu0 %v4867
      %v4887 = vpop.f32.mrf.mxu0
      %v4888 = vadd.f32 %v4788, %v4887
      %v4889 = vpop.f32.mrf.mxu0
      %4890 = vdwg.mxu0
      %4891 = vmatpush.bf16.msra.mxu0 0
      %4892 = vmatpush.bf16.msra.mxu0 0
      %4893 = vmatpush.bf16.msra.mxu0 0
      %4894 = vmatpush.bf16.msra.mxu0 %v4873
      %4895 = vmatpush.bf16.msra.mxu0 %v4849
      %4896 = vmatpush.bf16.msra.mxu0 %v4846
      %4897 = vmatpush.bf16.msra.mxu0 %v4843
      %4898 = vmatpush.bf16.msra.mxu0 %v4840
      %4899 = vmatmul.bf16.gmra.mxu0 %v4867
      %v4900 = vpop.f32.mrf.mxu0
      %v4901 = vadd.f32 %v4789, %v4900
      %v4902 = vpop.f32.mrf.mxu0
      %4903 = vdwg.mxu0
      %4904 = vmatpush.bf16.msra.mxu0 0
      %4905 = vmatpush.bf16.msra.mxu0 0
      %4906 = vmatpush.bf16.msra.mxu0 0
      %4907 = vmatpush.bf16.msra.mxu0 %v4876
      %4908 = vmatpush.bf16.msra.mxu0 %v4850
      %4909 = vmatpush.bf16.msra.mxu0 %v4847
      %4910 = vmatpush.bf16.msra.mxu0 %v4844
      %4911 = vmatpush.bf16.msra.mxu0 %v4841
      %4912 = vmatmul.bf16.gmra.mxu0 %v4867
      %v4913 = vpop.f32.mrf.mxu0
      %v4914 = vadd.f32 %v4790, %v4913
      %v4915 = vpop.f32.mrf.mxu0
      %4916 = vdwg.mxu0
      %v4917 = vadd.f32 %v4888, 3.0
      %v4918 = vadd.f32 %v4901, 3.0
      %v4919 = vadd.f32 %v4914, 3.0
      %v4920 = vmax.f32 %v4917, 0.0
      %v4921 = vmax.f32 %v4918, 0.0
      %v4922 = vmax.f32 %v4919, 0.0
      %v4923 = vmin.f32 %v4920, 6.0
      %v4924 = vmin.f32 %v4921, 6.0
      %v4925 = vmin.f32 %v4922, 6.0
      %v4926 = vmul.f32 %v4923, 0.16666667
      %v4927 = vmul.f32 %v4924, 0.16666667
      %v4928 = vmul.f32 %v4925, 0.16666667
      %v4929 = vmul.f32 %v4571, %v4926
      %v4930 = vmul.f32 %v4572, %v4927
      %v4931 = vmul.f32 %v4573, %v4928
      %v4932 = vld [vmem:[%s1 + $0x558] sm:$0xf]
      %v4933 = vld [vmem:[%s1 + $0x55c] sm:$0xf]
      %v4934 = vld [vmem:[%s1 + $0x560] sm:$0xf]
      %v4935 = vld [vmem:[%s1 + $0x564] sm:$0xf]
      %v4936 = vld [vmem:[%s1 + $0x568] sm:$0xf]
      %v4937 = vld [vmem:[%s1 + $0x56c] sm:$0xf]
      %v4938 = vld [vmem:[%s1 + $0x570] sm:$0xf]
      %v4939 = vld [vmem:[%s1 + $0x574] sm:$0xf]
      %v4940 = vld [vmem:[%s1 + $0x578] sm:$0xf]
      %v4941 = vld [vmem:[%s1 + $0x57c] sm:$0xf]
      %v4942 = vld [vmem:[%s1 + $0x580] sm:$0xf]
      %v4943 = vld [vmem:[%s1 + $0x584] sm:$0xf]
      %v4944 = vld [vmem:[%s1 + $0x588] sm:$0xf]
      %v4945 = vld [vmem:[%s1 + $0x58c] sm:$0xf]
      %v4946 = vld [vmem:[%s1 + $0x590] sm:$0xf]
      %v4947 = vld [vmem:[%s1 + $0x594] sm:$0xf]
      %v4948 = vld [vmem:[%s1 + $0x598] sm:$0xf]
      %v4949 = vld [vmem:[%s1 + $0x59c] sm:$0xf]
      %v4950 = vld [vmem:[%s1 + $0x5a0] sm:$0xf]
      %v4951 = vld [vmem:[%s1 + $0x5a4] sm:$0xf]
      %v4952 = vld [vmem:[%s1 + $0x5a8] sm:$0xf]
      %v4953 = vld [vmem:[%s1 + $0x5ac] sm:$0xf]
      %v4954 = vld [vmem:[%s1 + $0x5b0] sm:$0xf]
      %v4955 = vld [vmem:[%s1 + $0x5b4] sm:$0xf]
      %v4956 = vld [vmem:[%s1 + $0x5b8] sm:$0xf]
      %v4957 = vld [vmem:[%s1 + $0x5bc] sm:$0xf]
      %v4958 = vld [vmem:[%s1 + $0x5c0] sm:$0xf]
      %v4959 = vld [vmem:[%s1 + $0x5c4] sm:$0xf]
      %v4960 = vld [vmem:[%s1 + $0x5c8] sm:$0xf]
      %v4961 = vld [vmem:[%s1 + $0x5cc] sm:$0xf]
      %v4962 = vld [vmem:[%s1 + $0x5d0] sm:$0xf]
      %v4963 = vld [vmem:[%s1 + $0x5d4] sm:$0xf]
      %v4964 = vld [vmem:[%s1 + $0x5d8] sm:$0xf]
      %v4965 = vld [vmem:[%s1 + $0x5dc] sm:$0xf]
      %v4966 = vld [vmem:[%s1 + $0x5e0] sm:$0xf]
      %v4967 = vld [vmem:[%s1 + $0x5e4] sm:$0xf]
      %v4968 = vld [vmem:[%s2 + $0x120] sm:$0x1]
      %v4969 = vpack.c.bf16 %v4929, %v4929
      %v4970 = vpack.c.bf16 %v4930, %v4930
      %v4971 = vpack.c.bf16 %v4931, %v4931
      %v4972 = vperm.slane %v4968, 0
      %v5009 = vunpack.c.l.b16 %v4932
      %v5010 = vunpack.c.l.b16 %v4933
      %v5011 = vunpack.c.l.b16 %v4934
      %v5012 = vunpack.c.l.b16 %v4935
      %v5013 = vunpack.c.l.b16 %v4936
      %v5014 = vunpack.c.l.b16 %v4937
      %v5015 = vunpack.c.l.b16 %v4938
      %v5016 = vunpack.c.l.b16 %v4939
      %v5017 = vunpack.c.l.b16 %v4940
      %v5018 = vunpack.c.l.b16 %v4941
      %v5019 = vunpack.c.l.b16 %v4942
      %v5020 = vunpack.c.l.b16 %v4943
      %v5021 = vunpack.c.l.b16 %v4944
      %v5022 = vunpack.c.l.b16 %v4945
      %v5023 = vunpack.c.l.b16 %v4946
      %v5024 = vunpack.c.l.b16 %v4947
      %v5025 = vunpack.c.l.b16 %v4948
      %v5026 = vunpack.c.l.b16 %v4949
      %v5027 = vunpack.c.l.b16 %v4950
      %v5028 = vunpack.c.l.b16 %v4951
      %v5029 = vunpack.c.l.b16 %v4952
      %v5030 = vunpack.c.l.b16 %v4953
      %v5031 = vunpack.c.l.b16 %v4954
      %v5032 = vunpack.c.l.b16 %v4955
      %v5033 = vunpack.c.l.b16 %v4956
      %v5034 = vunpack.c.l.b16 %v4957
      %v5035 = vunpack.c.l.b16 %v4958
      %v5036 = vunpack.c.l.b16 %v4959
      %v5037 = vunpack.c.l.b16 %v4960
      %v5038 = vunpack.c.l.b16 %v4961
      %v5039 = vunpack.c.l.b16 %v4962
      %v5040 = vunpack.c.l.b16 %v4963
      %v5041 = vunpack.c.l.b16 %v4964
      %v5042 = vunpack.c.l.b16 %v4965
      %v5043 = vunpack.c.l.b16 %v4966
      %v5044 = vunpack.c.l.b16 %v4967
      %v5045 = vpack.c.b16 %v5010, %v5009
      %v5046 = vpack.c.b16 %v5012, %v5011
      %v5047 = vpack.c.b16 %v5014, %v5013
      %v5048 = vpack.c.b16 %v5016, %v5015
      %v5049 = vpack.c.b16 %v5018, %v5017
      %v5050 = vpack.c.b16 %v5020, %v5019
      %v5051 = vpack.c.b16 %v5022, %v5021
      %v5052 = vpack.c.b16 %v5024, %v5023
      %v5053 = vpack.c.b16 %v5026, %v5025
      %v5054 = vpack.c.b16 %v5028, %v5027
      %v5055 = vpack.c.b16 %v5030, %v5029
      %v5056 = vpack.c.b16 %v5032, %v5031
      %v5057 = vpack.c.b16 %v5034, %v5033
      %v5058 = vpack.c.b16 %v5036, %v5035
      %v5059 = vpack.c.b16 %v5038, %v5037
      %v5060 = vpack.c.b16 %v5040, %v5039
      %v5061 = vpack.c.b16 %v5042, %v5041
      %v5062 = vpack.c.b16 %v5044, %v5043
      %v5082 = vsel %vm344, %v4971, 0
      %5084 = vmatpush.bf16.msra.mxu0 %v5052
      %5085 = vmatpush.bf16.msra.mxu0 %v5051
      %5086 = vmatpush.bf16.msra.mxu0 %v5050
      %5087 = vmatpush.bf16.msra.mxu0 %v5049
      %5088 = vmatpush.bf16.msra.mxu0 %v5048
      %5089 = vmatpush.bf16.msra.mxu0 %v5047
      %5090 = vmatpush.bf16.msra.mxu0 %v5046
      %5091 = vmatpush.bf16.msra.mxu0 %v5045
      %5092 = vmatmul.bf16.gmra.mxu0 %v4969
      %v5093 = vpop.f32.mrf.mxu0
      %v5094 = vadd.f32 %v4972, %v5093
      %v5095 = vpop.f32.mrf.mxu0
      %5096 = vdwg.mxu0
      %5097 = vmatpush.bf16.msra.mxu0 %v5060
      %5098 = vmatpush.bf16.msra.mxu0 %v5059
      %5099 = vmatpush.bf16.msra.mxu0 %v5058
      %5100 = vmatpush.bf16.msra.mxu0 %v5057
      %5101 = vmatpush.bf16.msra.mxu0 %v5056
      %5102 = vmatpush.bf16.msra.mxu0 %v5055
      %5103 = vmatpush.bf16.msra.mxu0 %v5054
      %5104 = vmatpush.bf16.msra.mxu0 %v5053
      %5105 = vmatmul.bf16.gmra.mxu0 %v4970
      %v5106 = vpop.f32.mrf.mxu0
      %v5107 = vadd.f32 %v5094, %v5106
      %v5108 = vpop.f32.mrf.mxu0
      %5109 = vdwg.mxu0
      %5110 = vmatpush.bf16.msra.mxu0 0
      %5111 = vmatpush.bf16.msra.mxu0 0
      %5112 = vmatpush.bf16.msra.mxu0 0
      %5113 = vmatpush.bf16.msra.mxu0 0
      %5114 = vmatpush.bf16.msra.mxu0 0
      %5115 = vmatpush.bf16.msra.mxu0 0
      %5116 = vmatpush.bf16.msra.mxu0 %v5062
      %5117 = vmatpush.bf16.msra.mxu0 %v5061
      %5118 = vmatmul.bf16.gmra.mxu0 %v5082
      %v5119 = vpop.f32.mrf.mxu0
      %v5120 = vadd.f32 %v5107, %v5119
      %v5121 = vpop.f32.mrf.mxu0
      %5122 = vdwg.mxu0
      %v5123 = vld [vmem:[%s5 + $0x140] sm:$0xff]
      %v5124 = vld [vmem:[%s5 + $0x148] sm:$0xff]
      %v5125 = vld [vmem:[%s5 + $0x150] sm:$0xf]
      %v5126 = vld [vmem:[%s5 + $0x154] sm:$0xff]
      %v5127 = vld [vmem:[%s5 + $0x15c] sm:$0xff]
      %v5128 = vld [vmem:[%s5 + $0x164] sm:$0xf]
      %v5129 = vld [vmem:[%s5 + $0x168] sm:$0xff]
      %v5130 = vld [vmem:[%s5 + $0x170] sm:$0xff]
      %v5131 = vld [vmem:[%s5 + $0x178] sm:$0xf]
      %v5132 = vld [vmem:[%s5 + $0x17c] sm:$0xff]
      %v5133 = vld [vmem:[%s5 + $0x184] sm:$0xff]
      %v5134 = vld [vmem:[%s5 + $0x18c] sm:$0xf]
      %v5135 = vld [vmem:[%s5 + $0x190] sm:$0xff]
      %v5136 = vld [vmem:[%s5 + $0x198] sm:$0xff]
      %v5137 = vld [vmem:[%s5 + $0x1a0] sm:$0xf]
      %v5138 = vld [vmem:[%s5 + $0x1a4] sm:$0xff]
      %v5139 = vld [vmem:[%s5 + $0x1ac] sm:$0xff]
      %v5140 = vld [vmem:[%s5 + $0x1b4] sm:$0xf]
      %v5141 = vld [vmem:[%s5 + $0x1b8] sm:$0xff]
      %v5142 = vld [vmem:[%s5 + $0x1c0] sm:$0xff]
      %v5143 = vld [vmem:[%s5 + $0x1c8] sm:$0xf]
      %v5144 = vld [vmem:[%s5 + $0x1cc] sm:$0xff]
      %v5145 = vld [vmem:[%s5 + $0x1d4] sm:$0xff]
      %v5146 = vld [vmem:[%s5 + $0x1dc] sm:$0xf]
      %v5147 = vld [vmem:[%s5 + $0x1e0] sm:$0xff]
      %v5148 = vld [vmem:[%s5 + $0x1e8] sm:$0xff]
      %v5149 = vld [vmem:[%s5 + $0x1f0] sm:$0xf]
      %v5150 = vld [vmem:[%s5 + $0x1f4] sm:$0xff]
      %v5151 = vld [vmem:[%s5 + $0x1fc] sm:$0xff]
      %v5152 = vld [vmem:[%s5 + $0x204] sm:$0xf]
      %v5153 = vld [vmem:[%s5 + $0x208] sm:$0xff]
      %v5154 = vld [vmem:[%s5 + $0x210] sm:$0xff]
      %v5155 = vld [vmem:[%s5 + $0x218] sm:$0xf]
      %v5156 = vld [vmem:[%s5 + $0x21c] sm:$0xff]
      %v5157 = vld [vmem:[%s5 + $0x224] sm:$0xff]
      %v5158 = vld [vmem:[%s5 + $0x22c] sm:$0xf]
      %s5159 = scalar_lea.vmem %s6, 160
      %v5160 = vld [vmem:[%s5159] ss:$8 sm:$0xf]
      %v5161 = vld [vmem:[%s5159] ss:$8 sm:$0x10]
      %v5162 = vor.u32 %v5160, %v5161
      %v5163 = vpack.c.bf16 %v5120, %v5120
      %v5165 = vperm.slane %v5162, 0
      %v5166 = vperm.slane %v5162, 1
      %v5167 = vperm.slane %v5162, 2
      %v5168 = vperm.slane %v5162, 3
      %v5169 = vperm.slane %v5162, 4
      %v5211 = vunpack.c.l.b16 %v5123
      %v5212 = vunpack.c.h.b16 %v5123
      %v5213 = vunpack.c.l.b16 %v5124
      %v5214 = vunpack.c.h.b16 %v5124
      %v5215 = vunpack.c.l.b16 %v5125
      %v5216 = vunpack.c.l.b16 %v5126
      %v5217 = vunpack.c.h.b16 %v5126
      %v5218 = vunpack.c.l.b16 %v5127
      %v5219 = vunpack.c.h.b16 %v5127
      %v5220 = vunpack.c.l.b16 %v5128
      %v5221 = vunpack.c.l.b16 %v5129
      %v5222 = vunpack.c.h.b16 %v5129
      %v5223 = vunpack.c.l.b16 %v5130
      %v5224 = vunpack.c.h.b16 %v5130
      %v5225 = vunpack.c.l.b16 %v5131
      %v5226 = vunpack.c.l.b16 %v5132
      %v5227 = vunpack.c.h.b16 %v5132
      %v5228 = vunpack.c.l.b16 %v5133
      %v5229 = vunpack.c.h.b16 %v5133
      %v5230 = vunpack.c.l.b16 %v5134
      %v5231 = vunpack.c.l.b16 %v5135
      %v5232 = vunpack.c.h.b16 %v5135
      %v5233 = vunpack.c.l.b16 %v5136
      %v5234 = vunpack.c.h.b16 %v5136
      %v5235 = vunpack.c.l.b16 %v5137
      %v5236 = vunpack.c.l.b16 %v5138
      %v5237 = vunpack.c.h.b16 %v5138
      %v5238 = vunpack.c.l.b16 %v5139
      %v5239 = vunpack.c.h.b16 %v5139
      %v5240 = vunpack.c.l.b16 %v5140
      %v5241 = vunpack.c.l.b16 %v5141
      %v5242 = vunpack.c.h.b16 %v5141
      %v5243 = vunpack.c.l.b16 %v5142
      %v5244 = vunpack.c.h.b16 %v5142
      %v5245 = vunpack.c.l.b16 %v5143
      %v5246 = vunpack.c.l.b16 %v5144
      %v5247 = vunpack.c.h.b16 %v5144
      %v5248 = vunpack.c.l.b16 %v5145
      %v5249 = vunpack.c.h.b16 %v5145
      %v5250 = vunpack.c.l.b16 %v5146
      %v5251 = vunpack.c.l.b16 %v5147
      %v5252 = vunpack.c.h.b16 %v5147
      %v5253 = vunpack.c.l.b16 %v5148
      %v5254 = vunpack.c.h.b16 %v5148
      %v5255 = vunpack.c.l.b16 %v5149
      %v5256 = vunpack.c.l.b16 %v5150
      %v5257 = vunpack.c.h.b16 %v5150
      %v5258 = vunpack.c.l.b16 %v5151
      %v5259 = vunpack.c.h.b16 %v5151
      %v5260 = vunpack.c.l.b16 %v5152
      %v5261 = vunpack.c.l.b16 %v5153
      %v5262 = vunpack.c.h.b16 %v5153
      %v5263 = vunpack.c.l.b16 %v5154
      %v5264 = vunpack.c.h.b16 %v5154
      %v5265 = vunpack.c.l.b16 %v5155
      %v5266 = vunpack.c.l.b16 %v5156
      %v5267 = vunpack.c.h.b16 %v5156
      %v5268 = vunpack.c.l.b16 %v5157
      %v5269 = vunpack.c.h.b16 %v5157
      %v5270 = vunpack.c.l.b16 %v5158
      %v5271 = vpack.c.b16 %v5216, %v5211
      %v5272 = vpack.c.b16 %v5217, %v5212
      %v5273 = vpack.c.b16 %v5218, %v5213
      %v5274 = vpack.c.b16 %v5219, %v5214
      %v5275 = vpack.c.b16 %v5220, %v5215
      %v5276 = vpack.c.b16 %v5226, %v5221
      %v5277 = vpack.c.b16 %v5227, %v5222
      %v5278 = vpack.c.b16 %v5228, %v5223
      %v5279 = vpack.c.b16 %v5229, %v5224
      %v5280 = vpack.c.b16 %v5230, %v5225
      %v5281 = vpack.c.b16 %v5236, %v5231
      %v5282 = vpack.c.b16 %v5237, %v5232
      %v5283 = vpack.c.b16 %v5238, %v5233
      %v5284 = vpack.c.b16 %v5239, %v5234
      %v5285 = vpack.c.b16 %v5240, %v5235
      %v5286 = vpack.c.b16 %v5246, %v5241
      %v5287 = vpack.c.b16 %v5247, %v5242
      %v5288 = vpack.c.b16 %v5248, %v5243
      %v5289 = vpack.c.b16 %v5249, %v5244
      %v5290 = vpack.c.b16 %v5250, %v5245
      %v5291 = vpack.c.b16 %v5256, %v5251
      %v5292 = vpack.c.b16 %v5257, %v5252
      %v5293 = vpack.c.b16 %v5258, %v5253
      %v5294 = vpack.c.b16 %v5259, %v5254
      %v5295 = vpack.c.b16 %v5260, %v5255
      %v5296 = vpack.c.b16 %v5266, %v5261
      %v5297 = vpack.c.b16 %v5267, %v5262
      %v5298 = vpack.c.b16 %v5268, %v5263
      %v5299 = vpack.c.b16 %v5269, %v5264
      %v5300 = vpack.c.b16 %v5270, %v5265
      %v5332 = vsel %vm2589, %v5163, 0
      %5334 = vmatpush.bf16.msra.mxu0 0
      %5335 = vmatpush.bf16.msra.mxu0 0
      %5336 = vmatpush.bf16.msra.mxu0 %v5296
      %5337 = vmatpush.bf16.msra.mxu0 %v5291
      %5338 = vmatpush.bf16.msra.mxu0 %v5286
      %5339 = vmatpush.bf16.msra.mxu0 %v5281
      %5340 = vmatpush.bf16.msra.mxu0 %v5276
      %5341 = vmatpush.bf16.msra.mxu0 %v5271
      %5342 = vmatmul.bf16.gmra.mxu0 %v5332
      %v5343 = vpop.f32.mrf.mxu0
      %v5344 = vadd.f32 %v5165, %v5343
      %v5345 = vpop.f32.mrf.mxu0
      %5346 = vdwg.mxu0
      %5347 = vmatpush.bf16.msra.mxu0 0
      %5348 = vmatpush.bf16.msra.mxu0 0
      %5349 = vmatpush.bf16.msra.mxu0 %v5297
      %5350 = vmatpush.bf16.msra.mxu0 %v5292
      %5351 = vmatpush.bf16.msra.mxu0 %v5287
      %5352 = vmatpush.bf16.msra.mxu0 %v5282
      %5353 = vmatpush.bf16.msra.mxu0 %v5277
      %5354 = vmatpush.bf16.msra.mxu0 %v5272
      %5355 = vmatmul.bf16.gmra.mxu0 %v5332
      %v5356 = vpop.f32.mrf.mxu0
      %v5357 = vadd.f32 %v5166, %v5356
      %v5358 = vpop.f32.mrf.mxu0
      %5359 = vdwg.mxu0
      %5360 = vmatpush.bf16.msra.mxu0 0
      %5361 = vmatpush.bf16.msra.mxu0 0
      %5362 = vmatpush.bf16.msra.mxu0 %v5298
      %5363 = vmatpush.bf16.msra.mxu0 %v5293
      %5364 = vmatpush.bf16.msra.mxu0 %v5288
      %5365 = vmatpush.bf16.msra.mxu0 %v5283
      %5366 = vmatpush.bf16.msra.mxu0 %v5278
      %5367 = vmatpush.bf16.msra.mxu0 %v5273
      %5368 = vmatmul.bf16.gmra.mxu0 %v5332
      %v5369 = vpop.f32.mrf.mxu0
      %v5370 = vadd.f32 %v5167, %v5369
      %v5371 = vpop.f32.mrf.mxu0
      %5372 = vdwg.mxu0
      %5373 = vmatpush.bf16.msra.mxu0 0
      %5374 = vmatpush.bf16.msra.mxu0 0
      %5375 = vmatpush.bf16.msra.mxu0 %v5299
      %5376 = vmatpush.bf16.msra.mxu0 %v5294
      %5377 = vmatpush.bf16.msra.mxu0 %v5289
      %5378 = vmatpush.bf16.msra.mxu0 %v5284
      %5379 = vmatpush.bf16.msra.mxu0 %v5279
      %5380 = vmatpush.bf16.msra.mxu0 %v5274
      %5381 = vmatmul.bf16.gmra.mxu0 %v5332
      %v5382 = vpop.f32.mrf.mxu0
      %v5383 = vadd.f32 %v5168, %v5382
      %v5384 = vpop.f32.mrf.mxu0
      %5385 = vdwg.mxu0
      %5386 = vmatpush.bf16.msra.mxu0 0
      %5387 = vmatpush.bf16.msra.mxu0 0
      %5388 = vmatpush.bf16.msra.mxu0 %v5300
      %5389 = vmatpush.bf16.msra.mxu0 %v5295
      %5390 = vmatpush.bf16.msra.mxu0 %v5290
      %5391 = vmatpush.bf16.msra.mxu0 %v5285
      %5392 = vmatpush.bf16.msra.mxu0 %v5280
      %5393 = vmatpush.bf16.msra.mxu0 %v5275
      %5394 = vmatmul.bf16.gmra.mxu0 %v5332
      %v5395 = vpop.f32.mrf.mxu0
      %v5396 = vadd.f32 %v5169, %v5395
      %v5397 = vpop.f32.mrf.mxu0
      %5398 = vdwg.mxu0
      %v5399 = vadd.f32 %v5344, 3.0
      %v5400 = vadd.f32 %v5357, 3.0
      %v5401 = vadd.f32 %v5370, 3.0
      %v5402 = vadd.f32 %v5383, 3.0
      %v5403 = vadd.f32 %v5396, 3.0
      %v5404 = vmax.f32 %v5399, 0.0
      %v5405 = vmax.f32 %v5400, 0.0
      %v5406 = vmax.f32 %v5401, 0.0
      %v5407 = vmax.f32 %v5402, 0.0
      %v5408 = vmax.f32 %v5403, 0.0
      %v5409 = vmin.f32 %v5404, 6.0
      %v5410 = vmin.f32 %v5405, 6.0
      %v5411 = vmin.f32 %v5406, 6.0
      %v5412 = vmin.f32 %v5407, 6.0
      %v5413 = vmin.f32 %v5408, 6.0
      %v5414 = vmul.f32 %v5344, %v5409
      %v5415 = vmul.f32 %v5357, %v5410
      %v5416 = vmul.f32 %v5370, %v5411
      %v5417 = vmul.f32 %v5383, %v5412
      %v5418 = vmul.f32 %v5396, %v5413
      %v5419 = vmul.f32 %v5414, 0.16666667
      %v5420 = vmul.f32 %v5415, 0.16666667
      %v5421 = vmul.f32 %v5416, 0.16666667
      %v5422 = vmul.f32 %v5417, 0.16666667
      %v5423 = vmul.f32 %v5418, 0.16666667
      %s5424 = scalar_lea.vmem %s6, 200
      %v5425 = vld [vmem:[%s5424] ss:$8 sm:$0xf]
      %v5426 = vld [vmem:[%s5424] ss:$8 sm:$0x10]
      %v5427 = vor.u32 %v5425, %v5426
      %s5428 = scalar_lea.vmem %s6, 240
      %v5429 = vld [vmem:[%s5428] ss:$8 sm:$0xf]
      %v5430 = vld [vmem:[%s5428] ss:$8 sm:$0x10]
      %v5431 = vor.u32 %v5429, %v5430
      %v5433 = vperm.slane %v5427, 0
      %v5434 = vperm.slane %v5427, 1
      %v5435 = vperm.slane %v5427, 2
      %v5436 = vperm.slane %v5427, 3
      %v5437 = vperm.slane %v5427, 4
      %v5443 = vmul.f32 %v5419, %v5433
      %v5444 = vmul.f32 %v5420, %v5434
      %v5445 = vmul.f32 %v5421, %v5435
      %v5446 = vmul.f32 %v5422, %v5436
      %v5447 = vmul.f32 %v5423, %v5437
      %v5449 = vperm.slane %v5431, 0
      %v5450 = vperm.slane %v5431, 1
      %v5451 = vperm.slane %v5431, 2
      %v5452 = vperm.slane %v5431, 3
      %v5453 = vperm.slane %v5431, 4
      %v5459 = vadd.f32 %v5443, %v5449
      %v5460 = vadd.f32 %v5444, %v5450
      %v5461 = vadd.f32 %v5445, %v5451
      %v5462 = vadd.f32 %v5446, %v5452
      %v5463 = vadd.f32 %v5447, %v5453
      %v5464 = vadd.f32 %v5459, 3.0
      %v5465 = vadd.f32 %v5460, 3.0
      %v5466 = vadd.f32 %v5461, 3.0
      %v5467 = vadd.f32 %v5462, 3.0
      %v5468 = vadd.f32 %v5463, 3.0
      %v5469 = vmax.f32 %v5464, 0.0
      %v5470 = vmax.f32 %v5465, 0.0
      %v5471 = vmax.f32 %v5466, 0.0
      %v5472 = vmax.f32 %v5467, 0.0
      %v5473 = vmax.f32 %v5468, 0.0
      %v5474 = vmin.f32 %v5469, 6.0
      %v5475 = vmin.f32 %v5470, 6.0
      %v5476 = vmin.f32 %v5471, 6.0
      %v5477 = vmin.f32 %v5472, 6.0
      %v5478 = vmin.f32 %v5473, 6.0
      %v5479 = vmul.f32 %v5459, %v5474
      %v5480 = vmul.f32 %v5460, %v5475
      %v5481 = vmul.f32 %v5461, %v5476
      %v5482 = vmul.f32 %v5462, %v5477
      %v5483 = vmul.f32 %v5463, %v5478
      %v5484 = vmul.f32 %v5479, 0.16666667
      %v5485 = vmul.f32 %v5480, 0.16666667
      %v5486 = vmul.f32 %v5481, 0.16666667
      %v5487 = vmul.f32 %v5482, 0.16666667
      %v5488 = vmul.f32 %v5483, 0.16666667
      %v5489 = vld [vmem:[%s3 + $0x380] sm:$0xff]
      %v5490 = vld [vmem:[%s3 + $0x388] sm:$0xff]
      %v5491 = vld [vmem:[%s3 + $0x390] sm:$0xff]
      %v5492 = vld [vmem:[%s3 + $0x398] sm:$0xff]
      %v5493 = vld [vmem:[%s3 + $0x3a0] sm:$0xff]
      %v5494 = vld [vmem:[%s3 + $0x3a8] sm:$0xff]
      %v5495 = vld [vmem:[%s3 + $0x3b0] sm:$0xff]
      %v5496 = vld [vmem:[%s3 + $0x3b8] sm:$0xff]
      %v5497 = vld [vmem:[%s3 + $0x3c0] sm:$0xff]
      %v5498 = vld [vmem:[%s3 + $0x3c8] sm:$0xff]
      %v5499 = vld [vmem:[%s3 + $0x3d0] sm:$0xff]
      %v5500 = vld [vmem:[%s3 + $0x3d8] sm:$0xff]
      %v5501 = vld [vmem:[%s3 + $0x3e0] sm:$0xff]
      %v5502 = vld [vmem:[%s3 + $0x3e8] sm:$0xff]
      %v5503 = vld [vmem:[%s3 + $0x3f0] sm:$0xff]
      %v5504 = vld [vmem:[%s3 + $0x3f8] sm:$0xff]
      %v5505 = vld [vmem:[%s3 + $0x400] sm:$0xff]
      %v5506 = vld [vmem:[%s3 + $0x408] sm:$0xff]
      %v5507 = vld [vmem:[%s3 + $0x410] sm:$0xff]
      %v5508 = vld [vmem:[%s3 + $0x418] sm:$0xff]
      %v5509 = vld [vmem:[%s3 + $0x420] sm:$0xff]
      %v5510 = vld [vmem:[%s3 + $0x428] sm:$0xff]
      %v5511 = vld [vmem:[%s3 + $0x430] sm:$0xff]
      %v5512 = vld [vmem:[%s3 + $0x438] sm:$0xff]
      %v5513 = vld [vmem:[%s3 + $0x440] sm:$0xff]
      %v5514 = vld [vmem:[%s3 + $0x448] sm:$0xff]
      %v5515 = vld [vmem:[%s3 + $0x450] sm:$0xff]
      %v5516 = vld [vmem:[%s3 + $0x458] sm:$0xff]
      %v5517 = vld [vmem:[%s3 + $0x460] sm:$0xff]
      %v5518 = vld [vmem:[%s3 + $0x468] sm:$0xff]
      %v5519 = vld [vmem:[%s3 + $0x470] sm:$0xff]
      %v5520 = vld [vmem:[%s3 + $0x478] sm:$0xff]
      %v5521 = vld [vmem:[%s3 + $0x480] sm:$0xff]
      %v5522 = vld [vmem:[%s3 + $0x488] sm:$0xff]
      %v5523 = vld [vmem:[%s3 + $0x490] sm:$0xff]
      %v5524 = vld [vmem:[%s3 + $0x498] sm:$0xff]
      %v5525 = vld [vmem:[%s3 + $0x4a0] sm:$0xff]
      %v5526 = vld [vmem:[%s3 + $0x4a8] sm:$0xff]
      %v5527 = vld [vmem:[%s3 + $0x4b0] sm:$0xff]
      %v5528 = vld [vmem:[%s3 + $0x4b8] sm:$0xff]
      %v5529 = vld [vmem:[%s3 + $0x4c0] sm:$0xff]
      %v5530 = vld [vmem:[%s3 + $0x4c8] sm:$0xff]
      %v5531 = vld [vmem:[%s3 + $0x4d0] sm:$0xff]
      %v5532 = vld [vmem:[%s3 + $0x4d8] sm:$0xff]
      %v5533 = vld [vmem:[%s3 + $0x4e0] sm:$0xff]
      %v5534 = vld [vmem:[%s3 + $0x4e8] sm:$0xff]
      %v5535 = vld [vmem:[%s3 + $0x4f0] sm:$0xff]
      %v5536 = vld [vmem:[%s3 + $0x4f8] sm:$0xff]
      %v5537 = vld [vmem:[%s3 + $0x500] sm:$0xff]
      %v5538 = vld [vmem:[%s3 + $0x508] sm:$0xff]
      %v5539 = vld [vmem:[%s3 + $0x510] sm:$0xff]
      %v5540 = vld [vmem:[%s3 + $0x518] sm:$0xff]
      %v5541 = vld [vmem:[%s3 + $0x520] sm:$0xff]
      %v5542 = vld [vmem:[%s3 + $0x528] sm:$0xff]
      %v5543 = vld [vmem:[%s3 + $0x530] sm:$0xff]
      %v5544 = vld [vmem:[%s3 + $0x538] sm:$0xff]
      %v5545 = vld [vmem:[%s3 + $0x540] sm:$0xff]
      %v5546 = vld [vmem:[%s3 + $0x548] sm:$0xff]
      %v5547 = vld [vmem:[%s3 + $0x550] sm:$0xff]
      %v5548 = vld [vmem:[%s3 + $0x558] sm:$0xff]
      %v5549 = vld [vmem:[%s3 + $0x560] sm:$0xff]
      %v5550 = vld [vmem:[%s3 + $0x568] sm:$0xff]
      %v5551 = vld [vmem:[%s3 + $0x570] sm:$0xff]
      %v5552 = vld [vmem:[%s3 + $0x578] sm:$0xff]
      %v5553 = vld [vmem:[%s3 + $0x580] sm:$0xff]
      %v5554 = vld [vmem:[%s3 + $0x588] sm:$0xff]
      %v5555 = vld [vmem:[%s3 + $0x590] sm:$0xff]
      %v5556 = vld [vmem:[%s3 + $0x598] sm:$0xff]
      %v5557 = vld [vmem:[%s3 + $0x5a0] sm:$0xff]
      %v5558 = vld [vmem:[%s3 + $0x5a8] sm:$0xff]
      %v5559 = vld [vmem:[%s3 + $0x5b0] sm:$0xff]
      %v5560 = vld [vmem:[%s3 + $0x5b8] sm:$0xff]
      %s5561 = scalar_lea.vmem %s4, 192
      %v5562 = vld [vmem:[%s5561] ss:$8 sm:$0x3]
      %v5563 = vld [vmem:[%s5 + $0x230] sm:$0xff]
      %v5564 = vld [vmem:[%s5 + $0x238] sm:$0xff]
      %v5565 = vld [vmem:[%s5 + $0x240] sm:$0xf]
      %v5566 = vld [vmem:[%s5 + $0x244] sm:$0xff]
      %v5567 = vld [vmem:[%s5 + $0x24c] sm:$0xff]
      %v5568 = vld [vmem:[%s5 + $0x254] sm:$0xf]
      %v5569 = vld [vmem:[%s5 + $0x258] sm:$0xff]
      %v5570 = vld [vmem:[%s5 + $0x260] sm:$0xff]
      %v5571 = vld [vmem:[%s5 + $0x268] sm:$0xf]
      %v5572 = vld [vmem:[%s5 + $0x26c] sm:$0xff]
      %v5573 = vld [vmem:[%s5 + $0x274] sm:$0xff]
      %v5574 = vld [vmem:[%s5 + $0x27c] sm:$0xf]
      %v5575 = vld [vmem:[%s5 + $0x280] sm:$0xff]
      %v5576 = vld [vmem:[%s5 + $0x288] sm:$0xff]
      %v5577 = vld [vmem:[%s5 + $0x290] sm:$0xf]
      %v5578 = vld [vmem:[%s5 + $0x294] sm:$0xff]
      %v5579 = vld [vmem:[%s5 + $0x29c] sm:$0xff]
      %v5580 = vld [vmem:[%s5 + $0x2a4] sm:$0xf]
      %v5581 = vld [vmem:[%s5 + $0x2a8] sm:$0xff]
      %v5582 = vld [vmem:[%s5 + $0x2b0] sm:$0xff]
      %v5583 = vld [vmem:[%s5 + $0x2b8] sm:$0xf]
      %v5584 = vld [vmem:[%s5 + $0x2bc] sm:$0xff]
      %v5585 = vld [vmem:[%s5 + $0x2c4] sm:$0xff]
      %v5586 = vld [vmem:[%s5 + $0x2cc] sm:$0xf]
      %v5587 = vld [vmem:[%s5 + $0x2d0] sm:$0xff]
      %v5588 = vld [vmem:[%s5 + $0x2d8] sm:$0xff]
      %v5589 = vld [vmem:[%s5 + $0x2e0] sm:$0xf]
      %v5590 = vld [vmem:[%s5 + $0x2e4] sm:$0xff]
      %v5591 = vld [vmem:[%s5 + $0x2ec] sm:$0xff]
      %v5592 = vld [vmem:[%s5 + $0x2f4] sm:$0xf]
      %v5593 = vld [vmem:[%s5 + $0x2f8] sm:$0xff]
      %v5594 = vld [vmem:[%s5 + $0x300] sm:$0xff]
      %v5595 = vld [vmem:[%s5 + $0x308] sm:$0xf]
      %v5596 = vld [vmem:[%s5 + $0x30c] sm:$0xff]
      %v5597 = vld [vmem:[%s5 + $0x314] sm:$0xff]
      %v5598 = vld [vmem:[%s5 + $0x31c] sm:$0xf]
      %v5599 = vld [vmem:[%s5 + $0x320] sm:$0xff]
      %v5600 = vld [vmem:[%s5 + $0x328] sm:$0xff]
      %v5601 = vld [vmem:[%s5 + $0x330] sm:$0xf]
      %v5602 = vld [vmem:[%s5 + $0x334] sm:$0xff]
      %v5603 = vld [vmem:[%s5 + $0x33c] sm:$0xff]
      %v5604 = vld [vmem:[%s5 + $0x344] sm:$0xf]
      %v5605 = vld [vmem:[%s5 + $0x348] sm:$0xff]
      %v5606 = vld [vmem:[%s5 + $0x350] sm:$0xff]
      %v5607 = vld [vmem:[%s5 + $0x358] sm:$0xf]
      %v5608 = vld [vmem:[%s5 + $0x35c] sm:$0xff]
      %v5609 = vld [vmem:[%s5 + $0x364] sm:$0xff]
      %v5610 = vld [vmem:[%s5 + $0x36c] sm:$0xf]
      %v5611 = vld [vmem:[%s5 + $0x370] sm:$0xff]
      %v5612 = vld [vmem:[%s5 + $0x378] sm:$0xff]
      %v5613 = vld [vmem:[%s5 + $0x380] sm:$0xf]
      %v5614 = vld [vmem:[%s5 + $0x384] sm:$0xff]
      %v5615 = vld [vmem:[%s5 + $0x38c] sm:$0xff]
      %v5616 = vld [vmem:[%s5 + $0x394] sm:$0xf]
      %s5617 = scalar_lea.vmem %s6, 280
      %v5618 = vld [vmem:[%s5617] ss:$8 sm:$0xf]
      %v5619 = vld [vmem:[%s5617] ss:$8 sm:$0x10]
      %v5620 = vor.u32 %v5618, %v5619
      %v5621 = vpack.c.bf16 %v5484, %v5484
      %v5622 = vpack.c.bf16 %v5485, %v5485
      %v5623 = vpack.c.bf16 %v5486, %v5486
      %v5624 = vpack.c.bf16 %v5487, %v5487
      %v5625 = vpack.c.bf16 %v5488, %v5488
      %v5627 = vperm.slane %v5562, 0
      %v5628 = vperm.slane %v5562, 1
      %v5703 = vunpack.c.l.b16 %v5489
      %v5704 = vunpack.c.h.b16 %v5489
      %v5705 = vunpack.c.l.b16 %v5490
      %v5706 = vunpack.c.h.b16 %v5490
      %v5707 = vunpack.c.l.b16 %v5491
      %v5708 = vunpack.c.h.b16 %v5491
      %v5709 = vunpack.c.l.b16 %v5492
      %v5710 = vunpack.c.h.b16 %v5492
      %v5711 = vunpack.c.l.b16 %v5493
      %v5712 = vunpack.c.h.b16 %v5493
      %v5713 = vunpack.c.l.b16 %v5494
      %v5714 = vunpack.c.h.b16 %v5494
      %v5715 = vunpack.c.l.b16 %v5495
      %v5716 = vunpack.c.h.b16 %v5495
      %v5717 = vunpack.c.l.b16 %v5496
      %v5718 = vunpack.c.h.b16 %v5496
      %v5719 = vunpack.c.l.b16 %v5497
      %v5720 = vunpack.c.h.b16 %v5497
      %v5721 = vunpack.c.l.b16 %v5498
      %v5722 = vunpack.c.h.b16 %v5498
      %v5723 = vunpack.c.l.b16 %v5499
      %v5724 = vunpack.c.h.b16 %v5499
      %v5725 = vunpack.c.l.b16 %v5500
      %v5726 = vunpack.c.h.b16 %v5500
      %v5727 = vunpack.c.l.b16 %v5501
      %v5728 = vunpack.c.h.b16 %v5501
      %v5729 = vunpack.c.l.b16 %v5502
      %v5730 = vunpack.c.h.b16 %v5502
      %v5731 = vunpack.c.l.b16 %v5503
      %v5732 = vunpack.c.h.b16 %v5503
      %v5733 = vunpack.c.l.b16 %v5504
      %v5734 = vunpack.c.h.b16 %v5504
      %v5735 = vunpack.c.l.b16 %v5505
      %v5736 = vunpack.c.h.b16 %v5505
      %v5737 = vunpack.c.l.b16 %v5506
      %v5738 = vunpack.c.h.b16 %v5506
      %v5739 = vunpack.c.l.b16 %v5507
      %v5740 = vunpack.c.h.b16 %v5507
      %v5741 = vunpack.c.l.b16 %v5508
      %v5742 = vunpack.c.h.b16 %v5508
      %v5743 = vunpack.c.l.b16 %v5509
      %v5744 = vunpack.c.h.b16 %v5509
      %v5745 = vunpack.c.l.b16 %v5510
      %v5746 = vunpack.c.h.b16 %v5510
      %v5747 = vunpack.c.l.b16 %v5511
      %v5748 = vunpack.c.h.b16 %v5511
      %v5749 = vunpack.c.l.b16 %v5512
      %v5750 = vunpack.c.h.b16 %v5512
      %v5751 = vunpack.c.l.b16 %v5513
      %v5752 = vunpack.c.h.b16 %v5513
      %v5753 = vunpack.c.l.b16 %v5514
      %v5754 = vunpack.c.h.b16 %v5514
      %v5755 = vunpack.c.l.b16 %v5515
      %v5756 = vunpack.c.h.b16 %v5515
      %v5757 = vunpack.c.l.b16 %v5516
      %v5758 = vunpack.c.h.b16 %v5516
      %v5759 = vunpack.c.l.b16 %v5517
      %v5760 = vunpack.c.h.b16 %v5517
      %v5761 = vunpack.c.l.b16 %v5518
      %v5762 = vunpack.c.h.b16 %v5518
      %v5763 = vunpack.c.l.b16 %v5519
      %v5764 = vunpack.c.h.b16 %v5519
      %v5765 = vunpack.c.l.b16 %v5520
      %v5766 = vunpack.c.h.b16 %v5520
      %v5767 = vunpack.c.l.b16 %v5521
      %v5768 = vunpack.c.h.b16 %v5521
      %v5769 = vunpack.c.l.b16 %v5522
      %v5770 = vunpack.c.h.b16 %v5522
      %v5771 = vunpack.c.l.b16 %v5523
      %v5772 = vunpack.c.h.b16 %v5523
      %v5773 = vunpack.c.l.b16 %v5524
      %v5774 = vunpack.c.h.b16 %v5524
      %v5775 = vunpack.c.l.b16 %v5525
      %v5776 = vunpack.c.h.b16 %v5525
      %v5777 = vunpack.c.l.b16 %v5526
      %v5778 = vunpack.c.h.b16 %v5526
      %v5779 = vunpack.c.l.b16 %v5527
      %v5780 = vunpack.c.h.b16 %v5527
      %v5781 = vunpack.c.l.b16 %v5528
      %v5782 = vunpack.c.h.b16 %v5528
      %v5783 = vunpack.c.l.b16 %v5529
      %v5784 = vunpack.c.h.b16 %v5529
      %v5785 = vunpack.c.l.b16 %v5530
      %v5786 = vunpack.c.h.b16 %v5530
      %v5787 = vunpack.c.l.b16 %v5531
      %v5788 = vunpack.c.h.b16 %v5531
      %v5789 = vunpack.c.l.b16 %v5532
      %v5790 = vunpack.c.h.b16 %v5532
      %v5791 = vunpack.c.l.b16 %v5533
      %v5792 = vunpack.c.h.b16 %v5533
      %v5793 = vunpack.c.l.b16 %v5534
      %v5794 = vunpack.c.h.b16 %v5534
      %v5795 = vunpack.c.l.b16 %v5535
      %v5796 = vunpack.c.h.b16 %v5535
      %v5797 = vunpack.c.l.b16 %v5536
      %v5798 = vunpack.c.h.b16 %v5536
      %v5799 = vunpack.c.l.b16 %v5537
      %v5800 = vunpack.c.h.b16 %v5537
      %v5801 = vunpack.c.l.b16 %v5538
      %v5802 = vunpack.c.h.b16 %v5538
      %v5803 = vunpack.c.l.b16 %v5539
      %v5804 = vunpack.c.h.b16 %v5539
      %v5805 = vunpack.c.l.b16 %v5540
      %v5806 = vunpack.c.h.b16 %v5540
      %v5807 = vunpack.c.l.b16 %v5541
      %v5808 = vunpack.c.h.b16 %v5541
      %v5809 = vunpack.c.l.b16 %v5542
      %v5810 = vunpack.c.h.b16 %v5542
      %v5811 = vunpack.c.l.b16 %v5543
      %v5812 = vunpack.c.h.b16 %v5543
      %v5813 = vunpack.c.l.b16 %v5544
      %v5814 = vunpack.c.h.b16 %v5544
      %v5815 = vunpack.c.l.b16 %v5545
      %v5816 = vunpack.c.h.b16 %v5545
      %v5817 = vunpack.c.l.b16 %v5546
      %v5818 = vunpack.c.h.b16 %v5546
      %v5819 = vunpack.c.l.b16 %v5547
      %v5820 = vunpack.c.h.b16 %v5547
      %v5821 = vunpack.c.l.b16 %v5548
      %v5822 = vunpack.c.h.b16 %v5548
      %v5823 = vunpack.c.l.b16 %v5549
      %v5824 = vunpack.c.h.b16 %v5549
      %v5825 = vunpack.c.l.b16 %v5550
      %v5826 = vunpack.c.h.b16 %v5550
      %v5827 = vunpack.c.l.b16 %v5551
      %v5828 = vunpack.c.h.b16 %v5551
      %v5829 = vunpack.c.l.b16 %v5552
      %v5830 = vunpack.c.h.b16 %v5552
      %v5831 = vunpack.c.l.b16 %v5553
      %v5832 = vunpack.c.h.b16 %v5553
      %v5833 = vunpack.c.l.b16 %v5554
      %v5834 = vunpack.c.h.b16 %v5554
      %v5835 = vunpack.c.l.b16 %v5555
      %v5836 = vunpack.c.h.b16 %v5555
      %v5837 = vunpack.c.l.b16 %v5556
      %v5838 = vunpack.c.h.b16 %v5556
      %v5839 = vunpack.c.l.b16 %v5557
      %v5840 = vunpack.c.h.b16 %v5557
      %v5841 = vunpack.c.l.b16 %v5558
      %v5842 = vunpack.c.h.b16 %v5558
      %v5843 = vunpack.c.l.b16 %v5559
      %v5844 = vunpack.c.h.b16 %v5559
      %v5845 = vunpack.c.l.b16 %v5560
      %v5846 = vunpack.c.h.b16 %v5560
      %v5847 = vpack.c.b16 %v5705, %v5703
      %v5848 = vpack.c.b16 %v5706, %v5704
      %v5849 = vpack.c.b16 %v5709, %v5707
      %v5850 = vpack.c.b16 %v5710, %v5708
      %v5851 = vpack.c.b16 %v5713, %v5711
      %v5852 = vpack.c.b16 %v5714, %v5712
      %v5853 = vpack.c.b16 %v5717, %v5715
      %v5854 = vpack.c.b16 %v5718, %v5716
      %v5855 = vpack.c.b16 %v5721, %v5719
      %v5856 = vpack.c.b16 %v5722, %v5720
      %v5857 = vpack.c.b16 %v5725, %v5723
      %v5858 = vpack.c.b16 %v5726, %v5724
      %v5859 = vpack.c.b16 %v5729, %v5727
      %v5860 = vpack.c.b16 %v5730, %v5728
      %v5861 = vpack.c.b16 %v5733, %v5731
      %v5862 = vpack.c.b16 %v5734, %v5732
      %v5863 = vpack.c.b16 %v5737, %v5735
      %v5864 = vpack.c.b16 %v5738, %v5736
      %v5865 = vpack.c.b16 %v5741, %v5739
      %v5866 = vpack.c.b16 %v5742, %v5740
      %v5867 = vpack.c.b16 %v5745, %v5743
      %v5868 = vpack.c.b16 %v5746, %v5744
      %v5869 = vpack.c.b16 %v5749, %v5747
      %v5870 = vpack.c.b16 %v5750, %v5748
      %v5871 = vpack.c.b16 %v5753, %v5751
      %v5872 = vpack.c.b16 %v5754, %v5752
      %v5873 = vpack.c.b16 %v5757, %v5755
      %v5874 = vpack.c.b16 %v5758, %v5756
      %v5875 = vpack.c.b16 %v5761, %v5759
      %v5876 = vpack.c.b16 %v5762, %v5760
      %v5877 = vpack.c.b16 %v5765, %v5763
      %v5878 = vpack.c.b16 %v5766, %v5764
      %v5879 = vpack.c.b16 %v5769, %v5767
      %v5880 = vpack.c.b16 %v5770, %v5768
      %v5881 = vpack.c.b16 %v5773, %v5771
      %v5882 = vpack.c.b16 %v5774, %v5772
      %v5883 = vpack.c.b16 %v5777, %v5775
      %v5884 = vpack.c.b16 %v5778, %v5776
      %v5885 = vpack.c.b16 %v5781, %v5779
      %v5886 = vpack.c.b16 %v5782, %v5780
      %v5887 = vpack.c.b16 %v5785, %v5783
      %v5888 = vpack.c.b16 %v5786, %v5784
      %v5889 = vpack.c.b16 %v5789, %v5787
      %v5890 = vpack.c.b16 %v5790, %v5788
      %v5891 = vpack.c.b16 %v5793, %v5791
      %v5892 = vpack.c.b16 %v5794, %v5792
      %v5893 = vpack.c.b16 %v5797, %v5795
      %v5894 = vpack.c.b16 %v5798, %v5796
      %v5895 = vpack.c.b16 %v5801, %v5799
      %v5896 = vpack.c.b16 %v5802, %v5800
      %v5897 = vpack.c.b16 %v5805, %v5803
      %v5898 = vpack.c.b16 %v5806, %v5804
      %v5899 = vpack.c.b16 %v5809, %v5807
      %v5900 = vpack.c.b16 %v5810, %v5808
      %v5901 = vpack.c.b16 %v5813, %v5811
      %v5902 = vpack.c.b16 %v5814, %v5812
      %v5903 = vpack.c.b16 %v5817, %v5815
      %v5904 = vpack.c.b16 %v5818, %v5816
      %v5905 = vpack.c.b16 %v5821, %v5819
      %v5906 = vpack.c.b16 %v5822, %v5820
      %v5907 = vpack.c.b16 %v5825, %v5823
      %v5908 = vpack.c.b16 %v5826, %v5824
      %v5909 = vpack.c.b16 %v5829, %v5827
      %v5910 = vpack.c.b16 %v5830, %v5828
      %v5911 = vpack.c.b16 %v5833, %v5831
      %v5912 = vpack.c.b16 %v5834, %v5832
      %v5913 = vpack.c.b16 %v5837, %v5835
      %v5914 = vpack.c.b16 %v5838, %v5836
      %v5915 = vpack.c.b16 %v5841, %v5839
      %v5916 = vpack.c.b16 %v5842, %v5840
      %v5917 = vpack.c.b16 %v5845, %v5843
      %v5918 = vpack.c.b16 %v5846, %v5844
      %v5992 = vsel %vm1944, %v5625, 0
      %5994 = vmatpush.bf16.msra.mxu0 %v5861
      %5995 = vmatpush.bf16.msra.mxu0 %v5859
      %5996 = vmatpush.bf16.msra.mxu0 %v5857
      %5997 = vmatpush.bf16.msra.mxu0 %v5855
      %5998 = vmatpush.bf16.msra.mxu0 %v5853
      %5999 = vmatpush.bf16.msra.mxu0 %v5851
      %6000 = vmatpush.bf16.msra.mxu0 %v5849
      %6001 = vmatpush.bf16.msra.mxu0 %v5847
      %6002 = vmatmul.bf16.gmra.mxu0 %v5621
      %v6003 = vpop.f32.mrf.mxu0
      %v6004 = vadd.f32 %v5627, %v6003
      %v6005 = vpop.f32.mrf.mxu0
      %6006 = vdwg.mxu0
      %6007 = vmatpush.bf16.msra.mxu0 %v5877
      %6008 = vmatpush.bf16.msra.mxu0 %v5875
      %6009 = vmatpush.bf16.msra.mxu0 %v5873
      %6010 = vmatpush.bf16.msra.mxu0 %v5871
      %6011 = vmatpush.bf16.msra.mxu0 %v5869
      %6012 = vmatpush.bf16.msra.mxu0 %v5867
      %6013 = vmatpush.bf16.msra.mxu0 %v5865
      %6014 = vmatpush.bf16.msra.mxu0 %v5863
      %6015 = vmatmul.bf16.gmra.mxu0 %v5622
      %v6016 = vpop.f32.mrf.mxu0
      %v6017 = vadd.f32 %v6004, %v6016
      %v6018 = vpop.f32.mrf.mxu0
      %6019 = vdwg.mxu0
      %6020 = vmatpush.bf16.msra.mxu0 %v5893
      %6021 = vmatpush.bf16.msra.mxu0 %v5891
      %6022 = vmatpush.bf16.msra.mxu0 %v5889
      %6023 = vmatpush.bf16.msra.mxu0 %v5887
      %6024 = vmatpush.bf16.msra.mxu0 %v5885
      %6025 = vmatpush.bf16.msra.mxu0 %v5883
      %6026 = vmatpush.bf16.msra.mxu0 %v5881
      %6027 = vmatpush.bf16.msra.mxu0 %v5879
      %6028 = vmatmul.bf16.gmra.mxu0 %v5623
      %v6029 = vpop.f32.mrf.mxu0
      %v6030 = vadd.f32 %v6017, %v6029
      %v6031 = vpop.f32.mrf.mxu0
      %6032 = vdwg.mxu0
      %6033 = vmatpush.bf16.msra.mxu0 %v5909
      %6034 = vmatpush.bf16.msra.mxu0 %v5907
      %6035 = vmatpush.bf16.msra.mxu0 %v5905
      %6036 = vmatpush.bf16.msra.mxu0 %v5903
      %6037 = vmatpush.bf16.msra.mxu0 %v5901
      %6038 = vmatpush.bf16.msra.mxu0 %v5899
      %6039 = vmatpush.bf16.msra.mxu0 %v5897
      %6040 = vmatpush.bf16.msra.mxu0 %v5895
      %6041 = vmatmul.bf16.gmra.mxu0 %v5624
      %v6042 = vpop.f32.mrf.mxu0
      %v6043 = vadd.f32 %v6030, %v6042
      %v6044 = vpop.f32.mrf.mxu0
      %6045 = vdwg.mxu0
      %6046 = vmatpush.bf16.msra.mxu0 0
      %6047 = vmatpush.bf16.msra.mxu0 0
      %6048 = vmatpush.bf16.msra.mxu0 0
      %6049 = vmatpush.bf16.msra.mxu0 0
      %6050 = vmatpush.bf16.msra.mxu0 %v5917
      %6051 = vmatpush.bf16.msra.mxu0 %v5915
      %6052 = vmatpush.bf16.msra.mxu0 %v5913
      %6053 = vmatpush.bf16.msra.mxu0 %v5911
      %6054 = vmatmul.bf16.gmra.mxu0 %v5992
      %v6055 = vpop.f32.mrf.mxu0
      %v6056 = vadd.f32 %v6043, %v6055
      %v6057 = vpop.f32.mrf.mxu0
      %6058 = vdwg.mxu0
      %6059 = vmatpush.bf16.msra.mxu0 %v5862
      %6060 = vmatpush.bf16.msra.mxu0 %v5860
      %6061 = vmatpush.bf16.msra.mxu0 %v5858
      %6062 = vmatpush.bf16.msra.mxu0 %v5856
      %6063 = vmatpush.bf16.msra.mxu0 %v5854
      %6064 = vmatpush.bf16.msra.mxu0 %v5852
      %6065 = vmatpush.bf16.msra.mxu0 %v5850
      %6066 = vmatpush.bf16.msra.mxu0 %v5848
      %6067 = vmatmul.bf16.gmra.mxu0 %v5621
      %v6068 = vpop.f32.mrf.mxu0
      %v6069 = vadd.f32 %v5628, %v6068
      %v6070 = vpop.f32.mrf.mxu0
      %6071 = vdwg.mxu0
      %6072 = vmatpush.bf16.msra.mxu0 %v5878
      %6073 = vmatpush.bf16.msra.mxu0 %v5876
      %6074 = vmatpush.bf16.msra.mxu0 %v5874
      %6075 = vmatpush.bf16.msra.mxu0 %v5872
      %6076 = vmatpush.bf16.msra.mxu0 %v5870
      %6077 = vmatpush.bf16.msra.mxu0 %v5868
      %6078 = vmatpush.bf16.msra.mxu0 %v5866
      %6079 = vmatpush.bf16.msra.mxu0 %v5864
      %6080 = vmatmul.bf16.gmra.mxu0 %v5622
      %v6081 = vpop.f32.mrf.mxu0
      %v6082 = vadd.f32 %v6069, %v6081
      %v6083 = vpop.f32.mrf.mxu0
      %6084 = vdwg.mxu0
      %6085 = vmatpush.bf16.msra.mxu0 %v5894
      %6086 = vmatpush.bf16.msra.mxu0 %v5892
      %6087 = vmatpush.bf16.msra.mxu0 %v5890
      %6088 = vmatpush.bf16.msra.mxu0 %v5888
      %6089 = vmatpush.bf16.msra.mxu0 %v5886
      %6090 = vmatpush.bf16.msra.mxu0 %v5884
      %6091 = vmatpush.bf16.msra.mxu0 %v5882
      %6092 = vmatpush.bf16.msra.mxu0 %v5880
      %6093 = vmatmul.bf16.gmra.mxu0 %v5623
      %v6094 = vpop.f32.mrf.mxu0
      %v6095 = vadd.f32 %v6082, %v6094
      %v6096 = vpop.f32.mrf.mxu0
      %6097 = vdwg.mxu0
      %6098 = vmatpush.bf16.msra.mxu0 %v5910
      %6099 = vmatpush.bf16.msra.mxu0 %v5908
      %6100 = vmatpush.bf16.msra.mxu0 %v5906
      %6101 = vmatpush.bf16.msra.mxu0 %v5904
      %6102 = vmatpush.bf16.msra.mxu0 %v5902
      %6103 = vmatpush.bf16.msra.mxu0 %v5900
      %6104 = vmatpush.bf16.msra.mxu0 %v5898
      %6105 = vmatpush.bf16.msra.mxu0 %v5896
      %6106 = vmatmul.bf16.gmra.mxu0 %v5624
      %v6107 = vpop.f32.mrf.mxu0
      %v6108 = vadd.f32 %v6095, %v6107
      %v6109 = vpop.f32.mrf.mxu0
      %6110 = vdwg.mxu0
      %6111 = vmatpush.bf16.msra.mxu0 0
      %6112 = vmatpush.bf16.msra.mxu0 0
      %6113 = vmatpush.bf16.msra.mxu0 0
      %6114 = vmatpush.bf16.msra.mxu0 0
      %6115 = vmatpush.bf16.msra.mxu0 %v5918
      %6116 = vmatpush.bf16.msra.mxu0 %v5916
      %6117 = vmatpush.bf16.msra.mxu0 %v5914
      %6118 = vmatpush.bf16.msra.mxu0 %v5912
      %6119 = vmatmul.bf16.gmra.mxu0 %v5992
      %v6120 = vpop.f32.mrf.mxu0
      %v6121 = vadd.f32 %v6108, %v6120
      %v6122 = vpop.f32.mrf.mxu0
      %6123 = vdwg.mxu0
      %v6124 = vmax.f32 %v6056, 0.0
      %v6125 = vmax.f32 %v6121, 0.0
      %v6126 = vpack.c.bf16 %v6124, %v6124
      %v6127 = vpack.c.bf16 %v6125, %v6125
      %v6129 = vperm.slane %v5620, 0
      %v6130 = vperm.slane %v5620, 1
      %v6131 = vperm.slane %v5620, 2
      %v6132 = vperm.slane %v5620, 3
      %v6133 = vperm.slane %v5620, 4
      %v6193 = vunpack.c.l.b16 %v5563
      %v6194 = vunpack.c.h.b16 %v5563
      %v6195 = vunpack.c.l.b16 %v5564
      %v6196 = vunpack.c.h.b16 %v5564
      %v6197 = vunpack.c.l.b16 %v5565
      %v6198 = vunpack.c.l.b16 %v5566
      %v6199 = vunpack.c.h.b16 %v5566
      %v6200 = vunpack.c.l.b16 %v5567
      %v6201 = vunpack.c.h.b16 %v5567
      %v6202 = vunpack.c.l.b16 %v5568
      %v6203 = vunpack.c.l.b16 %v5569
      %v6204 = vunpack.c.h.b16 %v5569
      %v6205 = vunpack.c.l.b16 %v5570
      %v6206 = vunpack.c.h.b16 %v5570
      %v6207 = vunpack.c.l.b16 %v5571
      %v6208 = vunpack.c.l.b16 %v5572
      %v6209 = vunpack.c.h.b16 %v5572
      %v6210 = vunpack.c.l.b16 %v5573
      %v6211 = vunpack.c.h.b16 %v5573
      %v6212 = vunpack.c.l.b16 %v5574
      %v6213 = vunpack.c.l.b16 %v5575
      %v6214 = vunpack.c.h.b16 %v5575
      %v6215 = vunpack.c.l.b16 %v5576
      %v6216 = vunpack.c.h.b16 %v5576
      %v6217 = vunpack.c.l.b16 %v5577
      %v6218 = vunpack.c.l.b16 %v5578
      %v6219 = vunpack.c.h.b16 %v5578
      %v6220 = vunpack.c.l.b16 %v5579
      %v6221 = vunpack.c.h.b16 %v5579
      %v6222 = vunpack.c.l.b16 %v5580
      %v6223 = vunpack.c.l.b16 %v5581
      %v6224 = vunpack.c.h.b16 %v5581
      %v6225 = vunpack.c.l.b16 %v5582
      %v6226 = vunpack.c.h.b16 %v5582
      %v6227 = vunpack.c.l.b16 %v5583
      %v6228 = vunpack.c.l.b16 %v5584
      %v6229 = vunpack.c.h.b16 %v5584
      %v6230 = vunpack.c.l.b16 %v5585
      %v6231 = vunpack.c.h.b16 %v5585
      %v6232 = vunpack.c.l.b16 %v5586
      %v6233 = vunpack.c.l.b16 %v5587
      %v6234 = vunpack.c.h.b16 %v5587
      %v6235 = vunpack.c.l.b16 %v5588
      %v6236 = vunpack.c.h.b16 %v5588
      %v6237 = vunpack.c.l.b16 %v5589
      %v6238 = vunpack.c.l.b16 %v5590
      %v6239 = vunpack.c.h.b16 %v5590
      %v6240 = vunpack.c.l.b16 %v5591
      %v6241 = vunpack.c.h.b16 %v5591
      %v6242 = vunpack.c.l.b16 %v5592
      %v6243 = vunpack.c.l.b16 %v5593
      %v6244 = vunpack.c.h.b16 %v5593
      %v6245 = vunpack.c.l.b16 %v5594
      %v6246 = vunpack.c.h.b16 %v5594
      %v6247 = vunpack.c.l.b16 %v5595
      %v6248 = vunpack.c.l.b16 %v5596
      %v6249 = vunpack.c.h.b16 %v5596
      %v6250 = vunpack.c.l.b16 %v5597
      %v6251 = vunpack.c.h.b16 %v5597
      %v6252 = vunpack.c.l.b16 %v5598
      %v6253 = vunpack.c.l.b16 %v5599
      %v6254 = vunpack.c.h.b16 %v5599
      %v6255 = vunpack.c.l.b16 %v5600
      %v6256 = vunpack.c.h.b16 %v5600
      %v6257 = vunpack.c.l.b16 %v5601
      %v6258 = vunpack.c.l.b16 %v5602
      %v6259 = vunpack.c.h.b16 %v5602
      %v6260 = vunpack.c.l.b16 %v5603
      %v6261 = vunpack.c.h.b16 %v5603
      %v6262 = vunpack.c.l.b16 %v5604
      %v6263 = vunpack.c.l.b16 %v5605
      %v6264 = vunpack.c.h.b16 %v5605
      %v6265 = vunpack.c.l.b16 %v5606
      %v6266 = vunpack.c.h.b16 %v5606
      %v6267 = vunpack.c.l.b16 %v5607
      %v6268 = vunpack.c.l.b16 %v5608
      %v6269 = vunpack.c.h.b16 %v5608
      %v6270 = vunpack.c.l.b16 %v5609
      %v6271 = vunpack.c.h.b16 %v5609
      %v6272 = vunpack.c.l.b16 %v5610
      %v6273 = vunpack.c.l.b16 %v5611
      %v6274 = vunpack.c.h.b16 %v5611
      %v6275 = vunpack.c.l.b16 %v5612
      %v6276 = vunpack.c.h.b16 %v5612
      %v6277 = vunpack.c.l.b16 %v5613
      %v6278 = vunpack.c.l.b16 %v5614
      %v6279 = vunpack.c.h.b16 %v5614
      %v6280 = vunpack.c.l.b16 %v5615
      %v6281 = vunpack.c.h.b16 %v5615
      %v6282 = vunpack.c.l.b16 %v5616
      %v6283 = vpack.c.b16 %v6198, %v6193
      %v6284 = vpack.c.b16 %v6199, %v6194
      %v6285 = vpack.c.b16 %v6200, %v6195
      %v6286 = vpack.c.b16 %v6201, %v6196
      %v6287 = vpack.c.b16 %v6202, %v6197
      %v6288 = vpack.c.b16 %v6208, %v6203
      %v6289 = vpack.c.b16 %v6209, %v6204
      %v6290 = vpack.c.b16 %v6210, %v6205
      %v6291 = vpack.c.b16 %v6211, %v6206
      %v6292 = vpack.c.b16 %v6212, %v6207
      %v6293 = vpack.c.b16 %v6218, %v6213
      %v6294 = vpack.c.b16 %v6219, %v6214
      %v6295 = vpack.c.b16 %v6220, %v6215
      %v6296 = vpack.c.b16 %v6221, %v6216
      %v6297 = vpack.c.b16 %v6222, %v6217
      %v6298 = vpack.c.b16 %v6228, %v6223
      %v6299 = vpack.c.b16 %v6229, %v6224
      %v6300 = vpack.c.b16 %v6230, %v6225
      %v6301 = vpack.c.b16 %v6231, %v6226
      %v6302 = vpack.c.b16 %v6232, %v6227
      %v6303 = vpack.c.b16 %v6238, %v6233
      %v6304 = vpack.c.b16 %v6239, %v6234
      %v6305 = vpack.c.b16 %v6240, %v6235
      %v6306 = vpack.c.b16 %v6241, %v6236
      %v6307 = vpack.c.b16 %v6242, %v6237
      %v6308 = vpack.c.b16 %v6248, %v6243
      %v6309 = vpack.c.b16 %v6249, %v6244
      %v6310 = vpack.c.b16 %v6250, %v6245
      %v6311 = vpack.c.b16 %v6251, %v6246
      %v6312 = vpack.c.b16 %v6252, %v6247
      %v6313 = vpack.c.b16 %v6258, %v6253
      %v6314 = vpack.c.b16 %v6259, %v6254
      %v6315 = vpack.c.b16 %v6260, %v6255
      %v6316 = vpack.c.b16 %v6261, %v6256
      %v6317 = vpack.c.b16 %v6262, %v6257
      %v6318 = vpack.c.b16 %v6268, %v6263
      %v6319 = vpack.c.b16 %v6269, %v6264
      %v6320 = vpack.c.b16 %v6270, %v6265
      %v6321 = vpack.c.b16 %v6271, %v6266
      %v6322 = vpack.c.b16 %v6272, %v6267
      %v6323 = vpack.c.b16 %v6278, %v6273
      %v6324 = vpack.c.b16 %v6279, %v6274
      %v6325 = vpack.c.b16 %v6280, %v6275
      %v6326 = vpack.c.b16 %v6281, %v6276
      %v6327 = vpack.c.b16 %v6282, %v6277
      %v6374 = vsel %vm1638, %v6127, 0
      %6376 = vmatpush.bf16.msra.mxu0 %v6318
      %6377 = vmatpush.bf16.msra.mxu0 %v6313
      %6378 = vmatpush.bf16.msra.mxu0 %v6308
      %6379 = vmatpush.bf16.msra.mxu0 %v6303
      %6380 = vmatpush.bf16.msra.mxu0 %v6298
      %6381 = vmatpush.bf16.msra.mxu0 %v6293
      %6382 = vmatpush.bf16.msra.mxu0 %v6288
      %6383 = vmatpush.bf16.msra.mxu0 %v6283
      %6384 = vmatmul.bf16.gmra.mxu0 %v6126
      %v6385 = vpop.f32.mrf.mxu0
      %v6386 = vadd.f32 %v6129, %v6385
      %v6387 = vpop.f32.mrf.mxu0
      %6388 = vdwg.mxu0
      %6389 = vmatpush.bf16.msra.mxu0 0
      %6390 = vmatpush.bf16.msra.mxu0 0
      %6391 = vmatpush.bf16.msra.mxu0 0
      %6392 = vmatpush.bf16.msra.mxu0 0
      %6393 = vmatpush.bf16.msra.mxu0 0
      %6394 = vmatpush.bf16.msra.mxu0 0
      %6395 = vmatpush.bf16.msra.mxu0 0
      %6396 = vmatpush.bf16.msra.mxu0 %v6323
      %6397 = vmatmul.bf16.gmra.mxu0 %v6374
      %v6398 = vpop.f32.mrf.mxu0
      %v6399 = vadd.f32 %v6386, %v6398
      %v6400 = vpop.f32.mrf.mxu0
      %6401 = vdwg.mxu0
      %6402 = vmatpush.bf16.msra.mxu0 %v6319
      %6403 = vmatpush.bf16.msra.mxu0 %v6314
      %6404 = vmatpush.bf16.msra.mxu0 %v6309
      %6405 = vmatpush.bf16.msra.mxu0 %v6304
      %6406 = vmatpush.bf16.msra.mxu0 %v6299
      %6407 = vmatpush.bf16.msra.mxu0 %v6294
      %6408 = vmatpush.bf16.msra.mxu0 %v6289
      %6409 = vmatpush.bf16.msra.mxu0 %v6284
      %6410 = vmatmul.bf16.gmra.mxu0 %v6126
      %v6411 = vpop.f32.mrf.mxu0
      %v6412 = vadd.f32 %v6130, %v6411
      %v6413 = vpop.f32.mrf.mxu0
      %6414 = vdwg.mxu0
      %6415 = vmatpush.bf16.msra.mxu0 0
      %6416 = vmatpush.bf16.msra.mxu0 0
      %6417 = vmatpush.bf16.msra.mxu0 0
      %6418 = vmatpush.bf16.msra.mxu0 0
      %6419 = vmatpush.bf16.msra.mxu0 0
      %6420 = vmatpush.bf16.msra.mxu0 0
      %6421 = vmatpush.bf16.msra.mxu0 0
      %6422 = vmatpush.bf16.msra.mxu0 %v6324
      %6423 = vmatmul.bf16.gmra.mxu0 %v6374
      %v6424 = vpop.f32.mrf.mxu0
      %v6425 = vadd.f32 %v6412, %v6424
      %v6426 = vpop.f32.mrf.mxu0
      %6427 = vdwg.mxu0
      %6428 = vmatpush.bf16.msra.mxu0 %v6320
      %6429 = vmatpush.bf16.msra.mxu0 %v6315
      %6430 = vmatpush.bf16.msra.mxu0 %v6310
      %6431 = vmatpush.bf16.msra.mxu0 %v6305
      %6432 = vmatpush.bf16.msra.mxu0 %v6300
      %6433 = vmatpush.bf16.msra.mxu0 %v6295
      %6434 = vmatpush.bf16.msra.mxu0 %v6290
      %6435 = vmatpush.bf16.msra.mxu0 %v6285
      %6436 = vmatmul.bf16.gmra.mxu0 %v6126
      %v6437 = vpop.f32.mrf.mxu0
      %v6438 = vadd.f32 %v6131, %v6437
      %v6439 = vpop.f32.mrf.mxu0
      %6440 = vdwg.mxu0
      %6441 = vmatpush.bf16.msra.mxu0 0
      %6442 = vmatpush.bf16.msra.mxu0 0
      %6443 = vmatpush.bf16.msra.mxu0 0
      %6444 = vmatpush.bf16.msra.mxu0 0
      %6445 = vmatpush.bf16.msra.mxu0 0
      %6446 = vmatpush.bf16.msra.mxu0 0
      %6447 = vmatpush.bf16.msra.mxu0 0
      %6448 = vmatpush.bf16.msra.mxu0 %v6325
      %6449 = vmatmul.bf16.gmra.mxu0 %v6374
      %v6450 = vpop.f32.mrf.mxu0
      %v6451 = vadd.f32 %v6438, %v6450
      %v6452 = vpop.f32.mrf.mxu0
      %6453 = vdwg.mxu0
      %6454 = vmatpush.bf16.msra.mxu0 %v6321
      %6455 = vmatpush.bf16.msra.mxu0 %v6316
      %6456 = vmatpush.bf16.msra.mxu0 %v6311
      %6457 = vmatpush.bf16.msra.mxu0 %v6306
      %6458 = vmatpush.bf16.msra.mxu0 %v6301
      %6459 = vmatpush.bf16.msra.mxu0 %v6296
      %6460 = vmatpush.bf16.msra.mxu0 %v6291
      %6461 = vmatpush.bf16.msra.mxu0 %v6286
      %6462 = vmatmul.bf16.gmra.mxu0 %v6126
      %v6463 = vpop.f32.mrf.mxu0
      %v6464 = vadd.f32 %v6132, %v6463
      %v6465 = vpop.f32.mrf.mxu0
      %6466 = vdwg.mxu0
      %6467 = vmatpush.bf16.msra.mxu0 0
      %6468 = vmatpush.bf16.msra.mxu0 0
      %6469 = vmatpush.bf16.msra.mxu0 0
      %6470 = vmatpush.bf16.msra.mxu0 0
      %6471 = vmatpush.bf16.msra.mxu0 0
      %6472 = vmatpush.bf16.msra.mxu0 0
      %6473 = vmatpush.bf16.msra.mxu0 0
      %6474 = vmatpush.bf16.msra.mxu0 %v6326
      %6475 = vmatmul.bf16.gmra.mxu0 %v6374
      %v6476 = vpop.f32.mrf.mxu0
      %v6477 = vadd.f32 %v6464, %v6476
      %v6478 = vpop.f32.mrf.mxu0
      %6479 = vdwg.mxu0
      %6480 = vmatpush.bf16.msra.mxu0 %v6322
      %6481 = vmatpush.bf16.msra.mxu0 %v6317
      %6482 = vmatpush.bf16.msra.mxu0 %v6312
      %6483 = vmatpush.bf16.msra.mxu0 %v6307
      %6484 = vmatpush.bf16.msra.mxu0 %v6302
      %6485 = vmatpush.bf16.msra.mxu0 %v6297
      %6486 = vmatpush.bf16.msra.mxu0 %v6292
      %6487 = vmatpush.bf16.msra.mxu0 %v6287
      %6488 = vmatmul.bf16.gmra.mxu0 %v6126
      %v6489 = vpop.f32.mrf.mxu0
      %v6490 = vadd.f32 %v6133, %v6489
      %v6491 = vpop.f32.mrf.mxu0
      %6492 = vdwg.mxu0
      %6493 = vmatpush.bf16.msra.mxu0 0
      %6494 = vmatpush.bf16.msra.mxu0 0
      %6495 = vmatpush.bf16.msra.mxu0 0
      %6496 = vmatpush.bf16.msra.mxu0 0
      %6497 = vmatpush.bf16.msra.mxu0 0
      %6498 = vmatpush.bf16.msra.mxu0 0
      %6499 = vmatpush.bf16.msra.mxu0 0
      %6500 = vmatpush.bf16.msra.mxu0 %v6327
      %6501 = vmatmul.bf16.gmra.mxu0 %v6374
      %v6502 = vpop.f32.mrf.mxu0
      %v6503 = vadd.f32 %v6490, %v6502
      %v6504 = vpop.f32.mrf.mxu0
      %6505 = vdwg.mxu0
      %v6506 = vadd.f32 %v6399, 3.0
      %v6507 = vadd.f32 %v6425, 3.0
      %v6508 = vadd.f32 %v6451, 3.0
      %v6509 = vadd.f32 %v6477, 3.0
      %v6510 = vadd.f32 %v6503, 3.0
      %v6511 = vmax.f32 %v6506, 0.0
      %v6512 = vmax.f32 %v6507, 0.0
      %v6513 = vmax.f32 %v6508, 0.0
      %v6514 = vmax.f32 %v6509, 0.0
      %v6515 = vmax.f32 %v6510, 0.0
      %v6516 = vmin.f32 %v6511, 6.0
      %v6517 = vmin.f32 %v6512, 6.0
      %v6518 = vmin.f32 %v6513, 6.0
      %v6519 = vmin.f32 %v6514, 6.0
      %v6520 = vmin.f32 %v6515, 6.0
      %v6521 = vmul.f32 %v6516, 0.16666667
      %v6522 = vmul.f32 %v6517, 0.16666667
      %v6523 = vmul.f32 %v6518, 0.16666667
      %v6524 = vmul.f32 %v6519, 0.16666667
      %v6525 = vmul.f32 %v6520, 0.16666667
      %v6526 = vmul.f32 %v5484, %v6521
      %v6527 = vmul.f32 %v5485, %v6522
      %v6528 = vmul.f32 %v5486, %v6523
      %v6529 = vmul.f32 %v5487, %v6524
      %v6530 = vmul.f32 %v5488, %v6525
      %v6531 = vld [vmem:[%s1 + $0x5e8] sm:$0xf]
      %v6532 = vld [vmem:[%s1 + $0x5ec] sm:$0xf]
      %v6533 = vld [vmem:[%s1 + $0x5f0] sm:$0xf]
      %v6534 = vld [vmem:[%s1 + $0x5f4] sm:$0xf]
      %v6535 = vld [vmem:[%s1 + $0x5f8] sm:$0xf]
      %v6536 = vld [vmem:[%s1 + $0x5fc] sm:$0xf]
      %v6537 = vld [vmem:[%s1 + $0x600] sm:$0xf]
      %v6538 = vld [vmem:[%s1 + $0x604] sm:$0xf]
      %v6539 = vld [vmem:[%s1 + $0x608] sm:$0xf]
      %v6540 = vld [vmem:[%s1 + $0x60c] sm:$0xf]
      %v6541 = vld [vmem:[%s1 + $0x610] sm:$0xf]
      %v6542 = vld [vmem:[%s1 + $0x614] sm:$0xf]
      %v6543 = vld [vmem:[%s1 + $0x618] sm:$0xf]
      %v6544 = vld [vmem:[%s1 + $0x61c] sm:$0xf]
      %v6545 = vld [vmem:[%s1 + $0x620] sm:$0xf]
      %v6546 = vld [vmem:[%s1 + $0x624] sm:$0xf]
      %v6547 = vld [vmem:[%s1 + $0x628] sm:$0xf]
      %v6548 = vld [vmem:[%s1 + $0x62c] sm:$0xf]
      %v6549 = vld [vmem:[%s1 + $0x630] sm:$0xf]
      %v6550 = vld [vmem:[%s1 + $0x634] sm:$0xf]
      %v6551 = vld [vmem:[%s1 + $0x638] sm:$0xf]
      %v6552 = vld [vmem:[%s1 + $0x63c] sm:$0xf]
      %v6553 = vld [vmem:[%s1 + $0x640] sm:$0xf]
      %v6554 = vld [vmem:[%s1 + $0x644] sm:$0xf]
      %v6555 = vld [vmem:[%s1 + $0x648] sm:$0xf]
      %v6556 = vld [vmem:[%s1 + $0x64c] sm:$0xf]
      %v6557 = vld [vmem:[%s1 + $0x650] sm:$0xf]
      %v6558 = vld [vmem:[%s1 + $0x654] sm:$0xf]
      %v6559 = vld [vmem:[%s1 + $0x658] sm:$0xf]
      %v6560 = vld [vmem:[%s1 + $0x65c] sm:$0xf]
      %v6561 = vld [vmem:[%s1 + $0x660] sm:$0xf]
      %v6562 = vld [vmem:[%s1 + $0x664] sm:$0xf]
      %v6563 = vld [vmem:[%s1 + $0x668] sm:$0xf]
      %v6564 = vld [vmem:[%s1 + $0x66c] sm:$0xf]
      %v6565 = vld [vmem:[%s1 + $0x670] sm:$0xf]
      %v6566 = vld [vmem:[%s1 + $0x674] sm:$0xf]
      %v6567 = vld [vmem:[%s1 + $0x678] sm:$0xf]
      %v6568 = vld [vmem:[%s1 + $0x67c] sm:$0xf]
      %v6569 = vld [vmem:[%s1 + $0x680] sm:$0xf]
      %v6570 = vld [vmem:[%s1 + $0x684] sm:$0xf]
      %v6571 = vld [vmem:[%s1 + $0x688] sm:$0xf]
      %v6572 = vld [vmem:[%s1 + $0x68c] sm:$0xf]
      %v6573 = vld [vmem:[%s1 + $0x690] sm:$0xf]
      %v6574 = vld [vmem:[%s1 + $0x694] sm:$0xf]
      %v6575 = vld [vmem:[%s1 + $0x698] sm:$0xf]
      %v6576 = vld [vmem:[%s1 + $0x69c] sm:$0xf]
      %v6577 = vld [vmem:[%s1 + $0x6a0] sm:$0xf]
      %v6578 = vld [vmem:[%s1 + $0x6a4] sm:$0xf]
      %v6579 = vld [vmem:[%s1 + $0x6a8] sm:$0xf]
      %v6580 = vld [vmem:[%s1 + $0x6ac] sm:$0xf]
      %v6581 = vld [vmem:[%s1 + $0x6b0] sm:$0xf]
      %v6582 = vld [vmem:[%s1 + $0x6b4] sm:$0xf]
      %v6583 = vld [vmem:[%s1 + $0x6b8] sm:$0xf]
      %v6584 = vld [vmem:[%s1 + $0x6bc] sm:$0xf]
      %v6585 = vld [vmem:[%s1 + $0x6c0] sm:$0xf]
      %v6586 = vld [vmem:[%s1 + $0x6c4] sm:$0xf]
      %v6587 = vld [vmem:[%s1 + $0x6c8] sm:$0xf]
      %v6588 = vld [vmem:[%s1 + $0x6cc] sm:$0xf]
      %v6589 = vld [vmem:[%s1 + $0x6d0] sm:$0xf]
      %v6590 = vld [vmem:[%s1 + $0x6d4] sm:$0xf]
      %v6591 = vld [vmem:[%s1 + $0x6d8] sm:$0xf]
      %v6592 = vld [vmem:[%s1 + $0x6dc] sm:$0xf]
      %v6593 = vld [vmem:[%s1 + $0x6e0] sm:$0xf]
      %v6594 = vld [vmem:[%s1 + $0x6e4] sm:$0xf]
      %v6595 = vld [vmem:[%s1 + $0x6e8] sm:$0xf]
      %v6596 = vld [vmem:[%s1 + $0x6ec] sm:$0xf]
      %v6597 = vld [vmem:[%s1 + $0x6f0] sm:$0xf]
      %v6598 = vld [vmem:[%s1 + $0x6f4] sm:$0xf]
      %v6599 = vld [vmem:[%s1 + $0x6f8] sm:$0xf]
      %v6600 = vld [vmem:[%s1 + $0x6fc] sm:$0xf]
      %v6601 = vld [vmem:[%s1 + $0x700] sm:$0xf]
      %v6602 = vld [vmem:[%s1 + $0x704] sm:$0xf]
      %v6603 = vld [vmem:[%s2 + $0x128] sm:$0x1]
      %v6604 = vpack.c.bf16 %v6526, %v6526
      %v6605 = vpack.c.bf16 %v6527, %v6527
      %v6606 = vpack.c.bf16 %v6528, %v6528
      %v6607 = vpack.c.bf16 %v6529, %v6529
      %v6608 = vpack.c.bf16 %v6530, %v6530
      %v6609 = vperm.slane %v6603, 0
      %v6682 = vunpack.c.l.b16 %v6531
      %v6683 = vunpack.c.l.b16 %v6532
      %v6684 = vunpack.c.l.b16 %v6533
      %v6685 = vunpack.c.l.b16 %v6534
      %v6686 = vunpack.c.l.b16 %v6535
      %v6687 = vunpack.c.l.b16 %v6536
      %v6688 = vunpack.c.l.b16 %v6537
      %v6689 = vunpack.c.l.b16 %v6538
      %v6690 = vunpack.c.l.b16 %v6539
      %v6691 = vunpack.c.l.b16 %v6540
      %v6692 = vunpack.c.l.b16 %v6541
      %v6693 = vunpack.c.l.b16 %v6542
      %v6694 = vunpack.c.l.b16 %v6543
      %v6695 = vunpack.c.l.b16 %v6544
      %v6696 = vunpack.c.l.b16 %v6545
      %v6697 = vunpack.c.l.b16 %v6546
      %v6698 = vunpack.c.l.b16 %v6547
      %v6699 = vunpack.c.l.b16 %v6548
      %v6700 = vunpack.c.l.b16 %v6549
      %v6701 = vunpack.c.l.b16 %v6550
      %v6702 = vunpack.c.l.b16 %v6551
      %v6703 = vunpack.c.l.b16 %v6552
      %v6704 = vunpack.c.l.b16 %v6553
      %v6705 = vunpack.c.l.b16 %v6554
      %v6706 = vunpack.c.l.b16 %v6555
      %v6707 = vunpack.c.l.b16 %v6556
      %v6708 = vunpack.c.l.b16 %v6557
      %v6709 = vunpack.c.l.b16 %v6558
      %v6710 = vunpack.c.l.b16 %v6559
      %v6711 = vunpack.c.l.b16 %v6560
      %v6712 = vunpack.c.l.b16 %v6561
      %v6713 = vunpack.c.l.b16 %v6562
      %v6714 = vunpack.c.l.b16 %v6563
      %v6715 = vunpack.c.l.b16 %v6564
      %v6716 = vunpack.c.l.b16 %v6565
      %v6717 = vunpack.c.l.b16 %v6566
      %v6718 = vunpack.c.l.b16 %v6567
      %v6719 = vunpack.c.l.b16 %v6568
      %v6720 = vunpack.c.l.b16 %v6569
      %v6721 = vunpack.c.l.b16 %v6570
      %v6722 = vunpack.c.l.b16 %v6571
      %v6723 = vunpack.c.l.b16 %v6572
      %v6724 = vunpack.c.l.b16 %v6573
      %v6725 = vunpack.c.l.b16 %v6574
      %v6726 = vunpack.c.l.b16 %v6575
      %v6727 = vunpack.c.l.b16 %v6576
      %v6728 = vunpack.c.l.b16 %v6577
      %v6729 = vunpack.c.l.b16 %v6578
      %v6730 = vunpack.c.l.b16 %v6579
      %v6731 = vunpack.c.l.b16 %v6580
      %v6732 = vunpack.c.l.b16 %v6581
      %v6733 = vunpack.c.l.b16 %v6582
      %v6734 = vunpack.c.l.b16 %v6583
      %v6735 = vunpack.c.l.b16 %v6584
      %v6736 = vunpack.c.l.b16 %v6585
      %v6737 = vunpack.c.l.b16 %v6586
      %v6738 = vunpack.c.l.b16 %v6587
      %v6739 = vunpack.c.l.b16 %v6588
      %v6740 = vunpack.c.l.b16 %v6589
      %v6741 = vunpack.c.l.b16 %v6590
      %v6742 = vunpack.c.l.b16 %v6591
      %v6743 = vunpack.c.l.b16 %v6592
      %v6744 = vunpack.c.l.b16 %v6593
      %v6745 = vunpack.c.l.b16 %v6594
      %v6746 = vunpack.c.l.b16 %v6595
      %v6747 = vunpack.c.l.b16 %v6596
      %v6748 = vunpack.c.l.b16 %v6597
      %v6749 = vunpack.c.l.b16 %v6598
      %v6750 = vunpack.c.l.b16 %v6599
      %v6751 = vunpack.c.l.b16 %v6600
      %v6752 = vunpack.c.l.b16 %v6601
      %v6753 = vunpack.c.l.b16 %v6602
      %v6754 = vpack.c.b16 %v6683, %v6682
      %v6755 = vpack.c.b16 %v6685, %v6684
      %v6756 = vpack.c.b16 %v6687, %v6686
      %v6757 = vpack.c.b16 %v6689, %v6688
      %v6758 = vpack.c.b16 %v6691, %v6690
      %v6759 = vpack.c.b16 %v6693, %v6692
      %v6760 = vpack.c.b16 %v6695, %v6694
      %v6761 = vpack.c.b16 %v6697, %v6696
      %v6762 = vpack.c.b16 %v6699, %v6698
      %v6763 = vpack.c.b16 %v6701, %v6700
      %v6764 = vpack.c.b16 %v6703, %v6702
      %v6765 = vpack.c.b16 %v6705, %v6704
      %v6766 = vpack.c.b16 %v6707, %v6706
      %v6767 = vpack.c.b16 %v6709, %v6708
      %v6768 = vpack.c.b16 %v6711, %v6710
      %v6769 = vpack.c.b16 %v6713, %v6712
      %v6770 = vpack.c.b16 %v6715, %v6714
      %v6771 = vpack.c.b16 %v6717, %v6716
      %v6772 = vpack.c.b16 %v6719, %v6718
      %v6773 = vpack.c.b16 %v6721, %v6720
      %v6774 = vpack.c.b16 %v6723, %v6722
      %v6775 = vpack.c.b16 %v6725, %v6724
      %v6776 = vpack.c.b16 %v6727, %v6726
      %v6777 = vpack.c.b16 %v6729, %v6728
      %v6778 = vpack.c.b16 %v6731, %v6730
      %v6779 = vpack.c.b16 %v6733, %v6732
      %v6780 = vpack.c.b16 %v6735, %v6734
      %v6781 = vpack.c.b16 %v6737, %v6736
      %v6782 = vpack.c.b16 %v6739, %v6738
      %v6783 = vpack.c.b16 %v6741, %v6740
      %v6784 = vpack.c.b16 %v6743, %v6742
      %v6785 = vpack.c.b16 %v6745, %v6744
      %v6786 = vpack.c.b16 %v6747, %v6746
      %v6787 = vpack.c.b16 %v6749, %v6748
      %v6788 = vpack.c.b16 %v6751, %v6750
      %v6789 = vpack.c.b16 %v6753, %v6752
      %v6827 = vsel %vm1944, %v6608, 0
      %6829 = vmatpush.bf16.msra.mxu0 %v6761
      %6830 = vmatpush.bf16.msra.mxu0 %v6760
      %6831 = vmatpush.bf16.msra.mxu0 %v6759
      %6832 = vmatpush.bf16.msra.mxu0 %v6758
      %6833 = vmatpush.bf16.msra.mxu0 %v6757
      %6834 = vmatpush.bf16.msra.mxu0 %v6756
      %6835 = vmatpush.bf16.msra.mxu0 %v6755
      %6836 = vmatpush.bf16.msra.mxu0 %v6754
      %6837 = vmatmul.bf16.gmra.mxu0 %v6604
      %v6838 = vpop.f32.mrf.mxu0
      %v6839 = vadd.f32 %v6609, %v6838
      %v6840 = vpop.f32.mrf.mxu0
      %6841 = vdwg.mxu0
      %6842 = vmatpush.bf16.msra.mxu0 %v6769
      %6843 = vmatpush.bf16.msra.mxu0 %v6768
      %6844 = vmatpush.bf16.msra.mxu0 %v6767
      %6845 = vmatpush.bf16.msra.mxu0 %v6766
      %6846 = vmatpush.bf16.msra.mxu0 %v6765
      %6847 = vmatpush.bf16.msra.mxu0 %v6764
      %6848 = vmatpush.bf16.msra.mxu0 %v6763
      %6849 = vmatpush.bf16.msra.mxu0 %v6762
      %6850 = vmatmul.bf16.gmra.mxu0 %v6605
      %v6851 = vpop.f32.mrf.mxu0
      %v6852 = vadd.f32 %v6839, %v6851
      %v6853 = vpop.f32.mrf.mxu0
      %6854 = vdwg.mxu0
      %6855 = vmatpush.bf16.msra.mxu0 %v6777
      %6856 = vmatpush.bf16.msra.mxu0 %v6776
      %6857 = vmatpush.bf16.msra.mxu0 %v6775
      %6858 = vmatpush.bf16.msra.mxu0 %v6774
      %6859 = vmatpush.bf16.msra.mxu0 %v6773
      %6860 = vmatpush.bf16.msra.mxu0 %v6772
      %6861 = vmatpush.bf16.msra.mxu0 %v6771
      %6862 = vmatpush.bf16.msra.mxu0 %v6770
      %6863 = vmatmul.bf16.gmra.mxu0 %v6606
      %v6864 = vpop.f32.mrf.mxu0
      %v6865 = vadd.f32 %v6852, %v6864
      %v6866 = vpop.f32.mrf.mxu0
      %6867 = vdwg.mxu0
      %6868 = vmatpush.bf16.msra.mxu0 %v6785
      %6869 = vmatpush.bf16.msra.mxu0 %v6784
      %6870 = vmatpush.bf16.msra.mxu0 %v6783
      %6871 = vmatpush.bf16.msra.mxu0 %v6782
      %6872 = vmatpush.bf16.msra.mxu0 %v6781
      %6873 = vmatpush.bf16.msra.mxu0 %v6780
      %6874 = vmatpush.bf16.msra.mxu0 %v6779
      %6875 = vmatpush.bf16.msra.mxu0 %v6778
      %6876 = vmatmul.bf16.gmra.mxu0 %v6607
      %v6877 = vpop.f32.mrf.mxu0
      %v6878 = vadd.f32 %v6865, %v6877
      %v6879 = vpop.f32.mrf.mxu0
      %6880 = vdwg.mxu0
      %6881 = vmatpush.bf16.msra.mxu0 0
      %6882 = vmatpush.bf16.msra.mxu0 0
      %6883 = vmatpush.bf16.msra.mxu0 0
      %6884 = vmatpush.bf16.msra.mxu0 0
      %6885 = vmatpush.bf16.msra.mxu0 %v6789
      %6886 = vmatpush.bf16.msra.mxu0 %v6788
      %6887 = vmatpush.bf16.msra.mxu0 %v6787
      %6888 = vmatpush.bf16.msra.mxu0 %v6786
      %6889 = vmatmul.bf16.gmra.mxu0 %v6827
      %v6890 = vpop.f32.mrf.mxu0
      %v6891 = vadd.f32 %v6878, %v6890
      %v6892 = vpop.f32.mrf.mxu0
      %6893 = vdwg.mxu0
      %v6894 = vadd.f32 %v6891, %v5120
      %v6895 = vld [vmem:[%s5 + $0x398] sm:$0xff]
      %v6896 = vld [vmem:[%s5 + $0x3a0] sm:$0xff]
      %v6897 = vld [vmem:[%s5 + $0x3a8] sm:$0xf]
      %v6898 = vld [vmem:[%s5 + $0x3ac] sm:$0xff]
      %v6899 = vld [vmem:[%s5 + $0x3b4] sm:$0xff]
      %v6900 = vld [vmem:[%s5 + $0x3bc] sm:$0xf]
      %v6901 = vld [vmem:[%s5 + $0x3c0] sm:$0xff]
      %v6902 = vld [vmem:[%s5 + $0x3c8] sm:$0xff]
      %v6903 = vld [vmem:[%s5 + $0x3d0] sm:$0xf]
      %v6904 = vld [vmem:[%s5 + $0x3d4] sm:$0xff]
      %v6905 = vld [vmem:[%s5 + $0x3dc] sm:$0xff]
      %v6906 = vld [vmem:[%s5 + $0x3e4] sm:$0xf]
      %v6907 = vld [vmem:[%s5 + $0x3e8] sm:$0xff]
      %v6908 = vld [vmem:[%s5 + $0x3f0] sm:$0xff]
      %v6909 = vld [vmem:[%s5 + $0x3f8] sm:$0xf]
      %v6910 = vld [vmem:[%s5 + $0x3fc] sm:$0xff]
      %v6911 = vld [vmem:[%s5 + $0x404] sm:$0xff]
      %v6912 = vld [vmem:[%s5 + $0x40c] sm:$0xf]
      %v6913 = vld [vmem:[%s5 + $0x410] sm:$0xff]
      %v6914 = vld [vmem:[%s5 + $0x418] sm:$0xff]
      %v6915 = vld [vmem:[%s5 + $0x420] sm:$0xf]
      %v6916 = vld [vmem:[%s5 + $0x424] sm:$0xff]
      %v6917 = vld [vmem:[%s5 + $0x42c] sm:$0xff]
      %v6918 = vld [vmem:[%s5 + $0x434] sm:$0xf]
      %v6919 = vld [vmem:[%s5 + $0x438] sm:$0xff]
      %v6920 = vld [vmem:[%s5 + $0x440] sm:$0xff]
      %v6921 = vld [vmem:[%s5 + $0x448] sm:$0xf]
      %v6922 = vld [vmem:[%s5 + $0x44c] sm:$0xff]
      %v6923 = vld [vmem:[%s5 + $0x454] sm:$0xff]
      %v6924 = vld [vmem:[%s5 + $0x45c] sm:$0xf]
      %v6925 = vld [vmem:[%s5 + $0x460] sm:$0xff]
      %v6926 = vld [vmem:[%s5 + $0x468] sm:$0xff]
      %v6927 = vld [vmem:[%s5 + $0x470] sm:$0xf]
      %v6928 = vld [vmem:[%s5 + $0x474] sm:$0xff]
      %v6929 = vld [vmem:[%s5 + $0x47c] sm:$0xff]
      %v6930 = vld [vmem:[%s5 + $0x484] sm:$0xf]
      %s6931 = scalar_lea.vmem %s6, 320
      %v6932 = vld [vmem:[%s6931] ss:$8 sm:$0xf]
      %v6933 = vld [vmem:[%s6931] ss:$8 sm:$0x10]
      %v6934 = vor.u32 %v6932, %v6933
      %v6935 = vpack.c.bf16 %v6894, %v6894
      %v6937 = vperm.slane %v6934, 0
      %v6938 = vperm.slane %v6934, 1
      %v6939 = vperm.slane %v6934, 2
      %v6940 = vperm.slane %v6934, 3
      %v6941 = vperm.slane %v6934, 4
      %v6983 = vunpack.c.l.b16 %v6895
      %v6984 = vunpack.c.h.b16 %v6895
      %v6985 = vunpack.c.l.b16 %v6896
      %v6986 = vunpack.c.h.b16 %v6896
      %v6987 = vunpack.c.l.b16 %v6897
      %v6988 = vunpack.c.l.b16 %v6898
      %v6989 = vunpack.c.h.b16 %v6898
      %v6990 = vunpack.c.l.b16 %v6899
      %v6991 = vunpack.c.h.b16 %v6899
      %v6992 = vunpack.c.l.b16 %v6900
      %v6993 = vunpack.c.l.b16 %v6901
      %v6994 = vunpack.c.h.b16 %v6901
      %v6995 = vunpack.c.l.b16 %v6902
      %v6996 = vunpack.c.h.b16 %v6902
      %v6997 = vunpack.c.l.b16 %v6903
      %v6998 = vunpack.c.l.b16 %v6904
      %v6999 = vunpack.c.h.b16 %v6904
      %v7000 = vunpack.c.l.b16 %v6905
      %v7001 = vunpack.c.h.b16 %v6905
      %v7002 = vunpack.c.l.b16 %v6906
      %v7003 = vunpack.c.l.b16 %v6907
      %v7004 = vunpack.c.h.b16 %v6907
      %v7005 = vunpack.c.l.b16 %v6908
      %v7006 = vunpack.c.h.b16 %v6908
      %v7007 = vunpack.c.l.b16 %v6909
      %v7008 = vunpack.c.l.b16 %v6910
      %v7009 = vunpack.c.h.b16 %v6910
      %v7010 = vunpack.c.l.b16 %v6911
      %v7011 = vunpack.c.h.b16 %v6911
      %v7012 = vunpack.c.l.b16 %v6912
      %v7013 = vunpack.c.l.b16 %v6913
      %v7014 = vunpack.c.h.b16 %v6913
      %v7015 = vunpack.c.l.b16 %v6914
      %v7016 = vunpack.c.h.b16 %v6914
      %v7017 = vunpack.c.l.b16 %v6915
      %v7018 = vunpack.c.l.b16 %v6916
      %v7019 = vunpack.c.h.b16 %v6916
      %v7020 = vunpack.c.l.b16 %v6917
      %v7021 = vunpack.c.h.b16 %v6917
      %v7022 = vunpack.c.l.b16 %v6918
      %v7023 = vunpack.c.l.b16 %v6919
      %v7024 = vunpack.c.h.b16 %v6919
      %v7025 = vunpack.c.l.b16 %v6920
      %v7026 = vunpack.c.h.b16 %v6920
      %v7027 = vunpack.c.l.b16 %v6921
      %v7028 = vunpack.c.l.b16 %v6922
      %v7029 = vunpack.c.h.b16 %v6922
      %v7030 = vunpack.c.l.b16 %v6923
      %v7031 = vunpack.c.h.b16 %v6923
      %v7032 = vunpack.c.l.b16 %v6924
      %v7033 = vunpack.c.l.b16 %v6925
      %v7034 = vunpack.c.h.b16 %v6925
      %v7035 = vunpack.c.l.b16 %v6926
      %v7036 = vunpack.c.h.b16 %v6926
      %v7037 = vunpack.c.l.b16 %v6927
      %v7038 = vunpack.c.l.b16 %v6928
      %v7039 = vunpack.c.h.b16 %v6928
      %v7040 = vunpack.c.l.b16 %v6929
      %v7041 = vunpack.c.h.b16 %v6929
      %v7042 = vunpack.c.l.b16 %v6930
      %v7043 = vpack.c.b16 %v6988, %v6983
      %v7044 = vpack.c.b16 %v6989, %v6984
      %v7045 = vpack.c.b16 %v6990, %v6985
      %v7046 = vpack.c.b16 %v6991, %v6986
      %v7047 = vpack.c.b16 %v6992, %v6987
      %v7048 = vpack.c.b16 %v6998, %v6993
      %v7049 = vpack.c.b16 %v6999, %v6994
      %v7050 = vpack.c.b16 %v7000, %v6995
      %v7051 = vpack.c.b16 %v7001, %v6996
      %v7052 = vpack.c.b16 %v7002, %v6997
      %v7053 = vpack.c.b16 %v7008, %v7003
      %v7054 = vpack.c.b16 %v7009, %v7004
      %v7055 = vpack.c.b16 %v7010, %v7005
      %v7056 = vpack.c.b16 %v7011, %v7006
      %v7057 = vpack.c.b16 %v7012, %v7007
      %v7058 = vpack.c.b16 %v7018, %v7013
      %v7059 = vpack.c.b16 %v7019, %v7014
      %v7060 = vpack.c.b16 %v7020, %v7015
      %v7061 = vpack.c.b16 %v7021, %v7016
      %v7062 = vpack.c.b16 %v7022, %v7017
      %v7063 = vpack.c.b16 %v7028, %v7023
      %v7064 = vpack.c.b16 %v7029, %v7024
      %v7065 = vpack.c.b16 %v7030, %v7025
      %v7066 = vpack.c.b16 %v7031, %v7026
      %v7067 = vpack.c.b16 %v7032, %v7027
      %v7068 = vpack.c.b16 %v7038, %v7033
      %v7069 = vpack.c.b16 %v7039, %v7034
      %v7070 = vpack.c.b16 %v7040, %v7035
      %v7071 = vpack.c.b16 %v7041, %v7036
      %v7072 = vpack.c.b16 %v7042, %v7037
      %v7104 = vsel %vm2589, %v6935, 0
      %7106 = vmatpush.bf16.msra.mxu0 0
      %7107 = vmatpush.bf16.msra.mxu0 0
      %7108 = vmatpush.bf16.msra.mxu0 %v7068
      %7109 = vmatpush.bf16.msra.mxu0 %v7063
      %7110 = vmatpush.bf16.msra.mxu0 %v7058
      %7111 = vmatpush.bf16.msra.mxu0 %v7053
      %7112 = vmatpush.bf16.msra.mxu0 %v7048
      %7113 = vmatpush.bf16.msra.mxu0 %v7043
      %7114 = vmatmul.bf16.gmra.mxu0 %v7104
      %v7115 = vpop.f32.mrf.mxu0
      %v7116 = vadd.f32 %v6937, %v7115
      %v7117 = vpop.f32.mrf.mxu0
      %7118 = vdwg.mxu0
      %7119 = vmatpush.bf16.msra.mxu0 0
      %7120 = vmatpush.bf16.msra.mxu0 0
      %7121 = vmatpush.bf16.msra.mxu0 %v7069
      %7122 = vmatpush.bf16.msra.mxu0 %v7064
      %7123 = vmatpush.bf16.msra.mxu0 %v7059
      %7124 = vmatpush.bf16.msra.mxu0 %v7054
      %7125 = vmatpush.bf16.msra.mxu0 %v7049
      %7126 = vmatpush.bf16.msra.mxu0 %v7044
      %7127 = vmatmul.bf16.gmra.mxu0 %v7104
      %v7128 = vpop.f32.mrf.mxu0
      %v7129 = vadd.f32 %v6938, %v7128
      %v7130 = vpop.f32.mrf.mxu0
      %7131 = vdwg.mxu0
      %7132 = vmatpush.bf16.msra.mxu0 0
      %7133 = vmatpush.bf16.msra.mxu0 0
      %7134 = vmatpush.bf16.msra.mxu0 %v7070
      %7135 = vmatpush.bf16.msra.mxu0 %v7065
      %7136 = vmatpush.bf16.msra.mxu0 %v7060
      %7137 = vmatpush.bf16.msra.mxu0 %v7055
      %7138 = vmatpush.bf16.msra.mxu0 %v7050
      %7139 = vmatpush.bf16.msra.mxu0 %v7045
      %7140 = vmatmul.bf16.gmra.mxu0 %v7104
      %v7141 = vpop.f32.mrf.mxu0
      %v7142 = vadd.f32 %v6939, %v7141
      %v7143 = vpop.f32.mrf.mxu0
      %7144 = vdwg.mxu0
      %7145 = vmatpush.bf16.msra.mxu0 0
      %7146 = vmatpush.bf16.msra.mxu0 0
      %7147 = vmatpush.bf16.msra.mxu0 %v7071
      %7148 = vmatpush.bf16.msra.mxu0 %v7066
      %7149 = vmatpush.bf16.msra.mxu0 %v7061
      %7150 = vmatpush.bf16.msra.mxu0 %v7056
      %7151 = vmatpush.bf16.msra.mxu0 %v7051
      %7152 = vmatpush.bf16.msra.mxu0 %v7046
      %7153 = vmatmul.bf16.gmra.mxu0 %v7104
      %v7154 = vpop.f32.mrf.mxu0
      %v7155 = vadd.f32 %v6940, %v7154
      %v7156 = vpop.f32.mrf.mxu0
      %7157 = vdwg.mxu0
      %7158 = vmatpush.bf16.msra.mxu0 0
      %7159 = vmatpush.bf16.msra.mxu0 0
      %7160 = vmatpush.bf16.msra.mxu0 %v7072
      %7161 = vmatpush.bf16.msra.mxu0 %v7067
      %7162 = vmatpush.bf16.msra.mxu0 %v7062
      %7163 = vmatpush.bf16.msra.mxu0 %v7057
      %7164 = vmatpush.bf16.msra.mxu0 %v7052
      %7165 = vmatpush.bf16.msra.mxu0 %v7047
      %7166 = vmatmul.bf16.gmra.mxu0 %v7104
      %v7167 = vpop.f32.mrf.mxu0
      %v7168 = vadd.f32 %v6941, %v7167
      %v7169 = vpop.f32.mrf.mxu0
      %7170 = vdwg.mxu0
      %v7171 = vadd.f32 %v7116, 3.0
      %v7172 = vadd.f32 %v7129, 3.0
      %v7173 = vadd.f32 %v7142, 3.0
      %v7174 = vadd.f32 %v7155, 3.0
      %v7175 = vadd.f32 %v7168, 3.0
      %v7176 = vmax.f32 %v7171, 0.0
      %v7177 = vmax.f32 %v7172, 0.0
      %v7178 = vmax.f32 %v7173, 0.0
      %v7179 = vmax.f32 %v7174, 0.0
      %v7180 = vmax.f32 %v7175, 0.0
      %v7181 = vmin.f32 %v7176, 6.0
      %v7182 = vmin.f32 %v7177, 6.0
      %v7183 = vmin.f32 %v7178, 6.0
      %v7184 = vmin.f32 %v7179, 6.0
      %v7185 = vmin.f32 %v7180, 6.0
      %v7186 = vmul.f32 %v7116, %v7181
      %v7187 = vmul.f32 %v7129, %v7182
      %v7188 = vmul.f32 %v7142, %v7183
      %v7189 = vmul.f32 %v7155, %v7184
      %v7190 = vmul.f32 %v7168, %v7185
      %v7191 = vmul.f32 %v7186, 0.16666667
      %v7192 = vmul.f32 %v7187, 0.16666667
      %v7193 = vmul.f32 %v7188, 0.16666667
      %v7194 = vmul.f32 %v7189, 0.16666667
      %v7195 = vmul.f32 %v7190, 0.16666667
      %s7196 = scalar_lea.vmem %s6, 360
      %v7197 = vld [vmem:[%s7196] ss:$8 sm:$0xf]
      %v7198 = vld [vmem:[%s7196] ss:$8 sm:$0x10]
      %v7199 = vor.u32 %v7197, %v7198
      %s7200 = scalar_lea.vmem %s6, 400
      %v7201 = vld [vmem:[%s7200] ss:$8 sm:$0xf]
      %v7202 = vld [vmem:[%s7200] ss:$8 sm:$0x10]
      %v7203 = vor.u32 %v7201, %v7202
      %v7205 = vperm.slane %v7199, 0
      %v7206 = vperm.slane %v7199, 1
      %v7207 = vperm.slane %v7199, 2
      %v7208 = vperm.slane %v7199, 3
      %v7209 = vperm.slane %v7199, 4
      %v7215 = vmul.f32 %v7191, %v7205
      %v7216 = vmul.f32 %v7192, %v7206
      %v7217 = vmul.f32 %v7193, %v7207
      %v7218 = vmul.f32 %v7194, %v7208
      %v7219 = vmul.f32 %v7195, %v7209
      %v7221 = vperm.slane %v7203, 0
      %v7222 = vperm.slane %v7203, 1
      %v7223 = vperm.slane %v7203, 2
      %v7224 = vperm.slane %v7203, 3
      %v7225 = vperm.slane %v7203, 4
      %v7231 = vadd.f32 %v7215, %v7221
      %v7232 = vadd.f32 %v7216, %v7222
      %v7233 = vadd.f32 %v7217, %v7223
      %v7234 = vadd.f32 %v7218, %v7224
      %v7235 = vadd.f32 %v7219, %v7225
      %v7236 = vadd.f32 %v7231, 3.0
      %v7237 = vadd.f32 %v7232, 3.0
      %v7238 = vadd.f32 %v7233, 3.0
      %v7239 = vadd.f32 %v7234, 3.0
      %v7240 = vadd.f32 %v7235, 3.0
      %v7241 = vmax.f32 %v7236, 0.0
      %v7242 = vmax.f32 %v7237, 0.0
      %v7243 = vmax.f32 %v7238, 0.0
      %v7244 = vmax.f32 %v7239, 0.0
      %v7245 = vmax.f32 %v7240, 0.0
      %v7246 = vmin.f32 %v7241, 6.0
      %v7247 = vmin.f32 %v7242, 6.0
      %v7248 = vmin.f32 %v7243, 6.0
      %v7249 = vmin.f32 %v7244, 6.0
      %v7250 = vmin.f32 %v7245, 6.0
      %v7251 = vmul.f32 %v7231, %v7246
      %v7252 = vmul.f32 %v7232, %v7247
      %v7253 = vmul.f32 %v7233, %v7248
      %v7254 = vmul.f32 %v7234, %v7249
      %v7255 = vmul.f32 %v7235, %v7250
      %v7256 = vmul.f32 %v7251, 0.16666667
      %v7257 = vmul.f32 %v7252, 0.16666667
      %v7258 = vmul.f32 %v7253, 0.16666667
      %v7259 = vmul.f32 %v7254, 0.16666667
      %v7260 = vmul.f32 %v7255, 0.16666667
      %v7261 = vld [vmem:[%s3 + $0x5c0] sm:$0xff]
      %v7262 = vld [vmem:[%s3 + $0x5c8] sm:$0xff]
      %v7263 = vld [vmem:[%s3 + $0x5d0] sm:$0xff]
      %v7264 = vld [vmem:[%s3 + $0x5d8] sm:$0xff]
      %v7265 = vld [vmem:[%s3 + $0x5e0] sm:$0xff]
      %v7266 = vld [vmem:[%s3 + $0x5e8] sm:$0xff]
      %v7267 = vld [vmem:[%s3 + $0x5f0] sm:$0xff]
      %v7268 = vld [vmem:[%s3 + $0x5f8] sm:$0xff]
      %v7269 = vld [vmem:[%s3 + $0x600] sm:$0xff]
      %v7270 = vld [vmem:[%s3 + $0x608] sm:$0xff]
      %v7271 = vld [vmem:[%s3 + $0x610] sm:$0xff]
      %v7272 = vld [vmem:[%s3 + $0x618] sm:$0xff]
      %v7273 = vld [vmem:[%s3 + $0x620] sm:$0xff]
      %v7274 = vld [vmem:[%s3 + $0x628] sm:$0xff]
      %v7275 = vld [vmem:[%s3 + $0x630] sm:$0xff]
      %v7276 = vld [vmem:[%s3 + $0x638] sm:$0xff]
      %v7277 = vld [vmem:[%s3 + $0x640] sm:$0xff]
      %v7278 = vld [vmem:[%s3 + $0x648] sm:$0xff]
      %v7279 = vld [vmem:[%s3 + $0x650] sm:$0xff]
      %v7280 = vld [vmem:[%s3 + $0x658] sm:$0xff]
      %v7281 = vld [vmem:[%s3 + $0x660] sm:$0xff]
      %v7282 = vld [vmem:[%s3 + $0x668] sm:$0xff]
      %v7283 = vld [vmem:[%s3 + $0x670] sm:$0xff]
      %v7284 = vld [vmem:[%s3 + $0x678] sm:$0xff]
      %v7285 = vld [vmem:[%s3 + $0x680] sm:$0xff]
      %v7286 = vld [vmem:[%s3 + $0x688] sm:$0xff]
      %v7287 = vld [vmem:[%s3 + $0x690] sm:$0xff]
      %v7288 = vld [vmem:[%s3 + $0x698] sm:$0xff]
      %v7289 = vld [vmem:[%s3 + $0x6a0] sm:$0xff]
      %v7290 = vld [vmem:[%s3 + $0x6a8] sm:$0xff]
      %v7291 = vld [vmem:[%s3 + $0x6b0] sm:$0xff]
      %v7292 = vld [vmem:[%s3 + $0x6b8] sm:$0xff]
      %v7293 = vld [vmem:[%s3 + $0x6c0] sm:$0xff]
      %v7294 = vld [vmem:[%s3 + $0x6c8] sm:$0xff]
      %v7295 = vld [vmem:[%s3 + $0x6d0] sm:$0xff]
      %v7296 = vld [vmem:[%s3 + $0x6d8] sm:$0xff]
      %v7297 = vld [vmem:[%s3 + $0x6e0] sm:$0xff]
      %v7298 = vld [vmem:[%s3 + $0x6e8] sm:$0xff]
      %v7299 = vld [vmem:[%s3 + $0x6f0] sm:$0xff]
      %v7300 = vld [vmem:[%s3 + $0x6f8] sm:$0xff]
      %v7301 = vld [vmem:[%s3 + $0x700] sm:$0xff]
      %v7302 = vld [vmem:[%s3 + $0x708] sm:$0xff]
      %v7303 = vld [vmem:[%s3 + $0x710] sm:$0xff]
      %v7304 = vld [vmem:[%s3 + $0x718] sm:$0xff]
      %v7305 = vld [vmem:[%s3 + $0x720] sm:$0xff]
      %v7306 = vld [vmem:[%s3 + $0x728] sm:$0xff]
      %v7307 = vld [vmem:[%s3 + $0x730] sm:$0xff]
      %v7308 = vld [vmem:[%s3 + $0x738] sm:$0xff]
      %v7309 = vld [vmem:[%s3 + $0x740] sm:$0xff]
      %v7310 = vld [vmem:[%s3 + $0x748] sm:$0xff]
      %v7311 = vld [vmem:[%s3 + $0x750] sm:$0xff]
      %v7312 = vld [vmem:[%s3 + $0x758] sm:$0xff]
      %v7313 = vld [vmem:[%s3 + $0x760] sm:$0xff]
      %v7314 = vld [vmem:[%s3 + $0x768] sm:$0xff]
      %v7315 = vld [vmem:[%s3 + $0x770] sm:$0xff]
      %v7316 = vld [vmem:[%s3 + $0x778] sm:$0xff]
      %v7317 = vld [vmem:[%s3 + $0x780] sm:$0xff]
      %v7318 = vld [vmem:[%s3 + $0x788] sm:$0xff]
      %v7319 = vld [vmem:[%s3 + $0x790] sm:$0xff]
      %v7320 = vld [vmem:[%s3 + $0x798] sm:$0xff]
      %v7321 = vld [vmem:[%s3 + $0x7a0] sm:$0xff]
      %v7322 = vld [vmem:[%s3 + $0x7a8] sm:$0xff]
      %v7323 = vld [vmem:[%s3 + $0x7b0] sm:$0xff]
      %v7324 = vld [vmem:[%s3 + $0x7b8] sm:$0xff]
      %v7325 = vld [vmem:[%s3 + $0x7c0] sm:$0xff]
      %v7326 = vld [vmem:[%s3 + $0x7c8] sm:$0xff]
      %v7327 = vld [vmem:[%s3 + $0x7d0] sm:$0xff]
      %v7328 = vld [vmem:[%s3 + $0x7d8] sm:$0xff]
      %v7329 = vld [vmem:[%s3 + $0x7e0] sm:$0xff]
      %v7330 = vld [vmem:[%s3 + $0x7e8] sm:$0xff]
      %v7331 = vld [vmem:[%s3 + $0x7f0] sm:$0xff]
      %v7332 = vld [vmem:[%s3 + $0x7f8] sm:$0xff]
      %s7333 = scalar_lea.vmem %s4, 208
      %v7334 = vld [vmem:[%s7333] ss:$8 sm:$0x3]
      %v7335 = vld [vmem:[%s5 + $0x488] sm:$0xff]
      %v7336 = vld [vmem:[%s5 + $0x490] sm:$0xff]
      %v7337 = vld [vmem:[%s5 + $0x498] sm:$0xf]
      %v7338 = vld [vmem:[%s5 + $0x49c] sm:$0xff]
      %v7339 = vld [vmem:[%s5 + $0x4a4] sm:$0xff]
      %v7340 = vld [vmem:[%s5 + $0x4ac] sm:$0xf]
      %v7341 = vld [vmem:[%s5 + $0x4b0] sm:$0xff]
      %v7342 = vld [vmem:[%s5 + $0x4b8] sm:$0xff]
      %v7343 = vld [vmem:[%s5 + $0x4c0] sm:$0xf]
      %v7344 = vld [vmem:[%s5 + $0x4c4] sm:$0xff]
      %v7345 = vld [vmem:[%s5 + $0x4cc] sm:$0xff]
      %v7346 = vld [vmem:[%s5 + $0x4d4] sm:$0xf]
      %v7347 = vld [vmem:[%s5 + $0x4d8] sm:$0xff]
      %v7348 = vld [vmem:[%s5 + $0x4e0] sm:$0xff]
      %v7349 = vld [vmem:[%s5 + $0x4e8] sm:$0xf]
      %v7350 = vld [vmem:[%s5 + $0x4ec] sm:$0xff]
      %v7351 = vld [vmem:[%s5 + $0x4f4] sm:$0xff]
      %v7352 = vld [vmem:[%s5 + $0x4fc] sm:$0xf]
      %v7353 = vld [vmem:[%s5 + $0x500] sm:$0xff]
      %v7354 = vld [vmem:[%s5 + $0x508] sm:$0xff]
      %v7355 = vld [vmem:[%s5 + $0x510] sm:$0xf]
      %v7356 = vld [vmem:[%s5 + $0x514] sm:$0xff]
      %v7357 = vld [vmem:[%s5 + $0x51c] sm:$0xff]
      %v7358 = vld [vmem:[%s5 + $0x524] sm:$0xf]
      %v7359 = vld [vmem:[%s5 + $0x528] sm:$0xff]
      %v7360 = vld [vmem:[%s5 + $0x530] sm:$0xff]
      %v7361 = vld [vmem:[%s5 + $0x538] sm:$0xf]
      %v7362 = vld [vmem:[%s5 + $0x53c] sm:$0xff]
      %v7363 = vld [vmem:[%s5 + $0x544] sm:$0xff]
      %v7364 = vld [vmem:[%s5 + $0x54c] sm:$0xf]
      %v7365 = vld [vmem:[%s5 + $0x550] sm:$0xff]
      %v7366 = vld [vmem:[%s5 + $0x558] sm:$0xff]
      %v7367 = vld [vmem:[%s5 + $0x560] sm:$0xf]
      %v7368 = vld [vmem:[%s5 + $0x564] sm:$0xff]
      %v7369 = vld [vmem:[%s5 + $0x56c] sm:$0xff]
      %v7370 = vld [vmem:[%s5 + $0x574] sm:$0xf]
      %v7371 = vld [vmem:[%s5 + $0x578] sm:$0xff]
      %v7372 = vld [vmem:[%s5 + $0x580] sm:$0xff]
      %v7373 = vld [vmem:[%s5 + $0x588] sm:$0xf]
      %v7374 = vld [vmem:[%s5 + $0x58c] sm:$0xff]
      %v7375 = vld [vmem:[%s5 + $0x594] sm:$0xff]
      %v7376 = vld [vmem:[%s5 + $0x59c] sm:$0xf]
      %v7377 = vld [vmem:[%s5 + $0x5a0] sm:$0xff]
      %v7378 = vld [vmem:[%s5 + $0x5a8] sm:$0xff]
      %v7379 = vld [vmem:[%s5 + $0x5b0] sm:$0xf]
      %v7380 = vld [vmem:[%s5 + $0x5b4] sm:$0xff]
      %v7381 = vld [vmem:[%s5 + $0x5bc] sm:$0xff]
      %v7382 = vld [vmem:[%s5 + $0x5c4] sm:$0xf]
      %v7383 = vld [vmem:[%s5 + $0x5c8] sm:$0xff]
      %v7384 = vld [vmem:[%s5 + $0x5d0] sm:$0xff]
      %v7385 = vld [vmem:[%s5 + $0x5d8] sm:$0xf]
      %v7386 = vld [vmem:[%s5 + $0x5dc] sm:$0xff]
      %v7387 = vld [vmem:[%s5 + $0x5e4] sm:$0xff]
      %v7388 = vld [vmem:[%s5 + $0x5ec] sm:$0xf]
      %s7389 = scalar_lea.vmem %s6, 440
      %v7390 = vld [vmem:[%s7389] ss:$8 sm:$0xf]
      %v7391 = vld [vmem:[%s7389] ss:$8 sm:$0x10]
      %v7392 = vor.u32 %v7390, %v7391
      %v7393 = vpack.c.bf16 %v7256, %v7256
      %v7394 = vpack.c.bf16 %v7257, %v7257
      %v7395 = vpack.c.bf16 %v7258, %v7258
      %v7396 = vpack.c.bf16 %v7259, %v7259
      %v7397 = vpack.c.bf16 %v7260, %v7260
      %v7399 = vperm.slane %v7334, 0
      %v7400 = vperm.slane %v7334, 1
      %v7475 = vunpack.c.l.b16 %v7261
      %v7476 = vunpack.c.h.b16 %v7261
      %v7477 = vunpack.c.l.b16 %v7262
      %v7478 = vunpack.c.h.b16 %v7262
      %v7479 = vunpack.c.l.b16 %v7263
      %v7480 = vunpack.c.h.b16 %v7263
      %v7481 = vunpack.c.l.b16 %v7264
      %v7482 = vunpack.c.h.b16 %v7264
      %v7483 = vunpack.c.l.b16 %v7265
      %v7484 = vunpack.c.h.b16 %v7265
      %v7485 = vunpack.c.l.b16 %v7266
      %v7486 = vunpack.c.h.b16 %v7266
      %v7487 = vunpack.c.l.b16 %v7267
      %v7488 = vunpack.c.h.b16 %v7267
      %v7489 = vunpack.c.l.b16 %v7268
      %v7490 = vunpack.c.h.b16 %v7268
      %v7491 = vunpack.c.l.b16 %v7269
      %v7492 = vunpack.c.h.b16 %v7269
      %v7493 = vunpack.c.l.b16 %v7270
      %v7494 = vunpack.c.h.b16 %v7270
      %v7495 = vunpack.c.l.b16 %v7271
      %v7496 = vunpack.c.h.b16 %v7271
      %v7497 = vunpack.c.l.b16 %v7272
      %v7498 = vunpack.c.h.b16 %v7272
      %v7499 = vunpack.c.l.b16 %v7273
      %v7500 = vunpack.c.h.b16 %v7273
      %v7501 = vunpack.c.l.b16 %v7274
      %v7502 = vunpack.c.h.b16 %v7274
      %v7503 = vunpack.c.l.b16 %v7275
      %v7504 = vunpack.c.h.b16 %v7275
      %v7505 = vunpack.c.l.b16 %v7276
      %v7506 = vunpack.c.h.b16 %v7276
      %v7507 = vunpack.c.l.b16 %v7277
      %v7508 = vunpack.c.h.b16 %v7277
      %v7509 = vunpack.c.l.b16 %v7278
      %v7510 = vunpack.c.h.b16 %v7278
      %v7511 = vunpack.c.l.b16 %v7279
      %v7512 = vunpack.c.h.b16 %v7279
      %v7513 = vunpack.c.l.b16 %v7280
      %v7514 = vunpack.c.h.b16 %v7280
      %v7515 = vunpack.c.l.b16 %v7281
      %v7516 = vunpack.c.h.b16 %v7281
      %v7517 = vunpack.c.l.b16 %v7282
      %v7518 = vunpack.c.h.b16 %v7282
      %v7519 = vunpack.c.l.b16 %v7283
      %v7520 = vunpack.c.h.b16 %v7283
      %v7521 = vunpack.c.l.b16 %v7284
      %v7522 = vunpack.c.h.b16 %v7284
      %v7523 = vunpack.c.l.b16 %v7285
      %v7524 = vunpack.c.h.b16 %v7285
      %v7525 = vunpack.c.l.b16 %v7286
      %v7526 = vunpack.c.h.b16 %v7286
      %v7527 = vunpack.c.l.b16 %v7287
      %v7528 = vunpack.c.h.b16 %v7287
      %v7529 = vunpack.c.l.b16 %v7288
      %v7530 = vunpack.c.h.b16 %v7288
      %v7531 = vunpack.c.l.b16 %v7289
      %v7532 = vunpack.c.h.b16 %v7289
      %v7533 = vunpack.c.l.b16 %v7290
      %v7534 = vunpack.c.h.b16 %v7290
      %v7535 = vunpack.c.l.b16 %v7291
      %v7536 = vunpack.c.h.b16 %v7291
      %v7537 = vunpack.c.l.b16 %v7292
      %v7538 = vunpack.c.h.b16 %v7292
      %v7539 = vunpack.c.l.b16 %v7293
      %v7540 = vunpack.c.h.b16 %v7293
      %v7541 = vunpack.c.l.b16 %v7294
      %v7542 = vunpack.c.h.b16 %v7294
      %v7543 = vunpack.c.l.b16 %v7295
      %v7544 = vunpack.c.h.b16 %v7295
      %v7545 = vunpack.c.l.b16 %v7296
      %v7546 = vunpack.c.h.b16 %v7296
      %v7547 = vunpack.c.l.b16 %v7297
      %v7548 = vunpack.c.h.b16 %v7297
      %v7549 = vunpack.c.l.b16 %v7298
      %v7550 = vunpack.c.h.b16 %v7298
      %v7551 = vunpack.c.l.b16 %v7299
      %v7552 = vunpack.c.h.b16 %v7299
      %v7553 = vunpack.c.l.b16 %v7300
      %v7554 = vunpack.c.h.b16 %v7300
      %v7555 = vunpack.c.l.b16 %v7301
      %v7556 = vunpack.c.h.b16 %v7301
      %v7557 = vunpack.c.l.b16 %v7302
      %v7558 = vunpack.c.h.b16 %v7302
      %v7559 = vunpack.c.l.b16 %v7303
      %v7560 = vunpack.c.h.b16 %v7303
      %v7561 = vunpack.c.l.b16 %v7304
      %v7562 = vunpack.c.h.b16 %v7304
      %v7563 = vunpack.c.l.b16 %v7305
      %v7564 = vunpack.c.h.b16 %v7305
      %v7565 = vunpack.c.l.b16 %v7306
      %v7566 = vunpack.c.h.b16 %v7306
      %v7567 = vunpack.c.l.b16 %v7307
      %v7568 = vunpack.c.h.b16 %v7307
      %v7569 = vunpack.c.l.b16 %v7308
      %v7570 = vunpack.c.h.b16 %v7308
      %v7571 = vunpack.c.l.b16 %v7309
      %v7572 = vunpack.c.h.b16 %v7309
      %v7573 = vunpack.c.l.b16 %v7310
      %v7574 = vunpack.c.h.b16 %v7310
      %v7575 = vunpack.c.l.b16 %v7311
      %v7576 = vunpack.c.h.b16 %v7311
      %v7577 = vunpack.c.l.b16 %v7312
      %v7578 = vunpack.c.h.b16 %v7312
      %v7579 = vunpack.c.l.b16 %v7313
      %v7580 = vunpack.c.h.b16 %v7313
      %v7581 = vunpack.c.l.b16 %v7314
      %v7582 = vunpack.c.h.b16 %v7314
      %v7583 = vunpack.c.l.b16 %v7315
      %v7584 = vunpack.c.h.b16 %v7315
      %v7585 = vunpack.c.l.b16 %v7316
      %v7586 = vunpack.c.h.b16 %v7316
      %v7587 = vunpack.c.l.b16 %v7317
      %v7588 = vunpack.c.h.b16 %v7317
      %v7589 = vunpack.c.l.b16 %v7318
      %v7590 = vunpack.c.h.b16 %v7318
      %v7591 = vunpack.c.l.b16 %v7319
      %v7592 = vunpack.c.h.b16 %v7319
      %v7593 = vunpack.c.l.b16 %v7320
      %v7594 = vunpack.c.h.b16 %v7320
      %v7595 = vunpack.c.l.b16 %v7321
      %v7596 = vunpack.c.h.b16 %v7321
      %v7597 = vunpack.c.l.b16 %v7322
      %v7598 = vunpack.c.h.b16 %v7322
      %v7599 = vunpack.c.l.b16 %v7323
      %v7600 = vunpack.c.h.b16 %v7323
      %v7601 = vunpack.c.l.b16 %v7324
      %v7602 = vunpack.c.h.b16 %v7324
      %v7603 = vunpack.c.l.b16 %v7325
      %v7604 = vunpack.c.h.b16 %v7325
      %v7605 = vunpack.c.l.b16 %v7326
      %v7606 = vunpack.c.h.b16 %v7326
      %v7607 = vunpack.c.l.b16 %v7327
      %v7608 = vunpack.c.h.b16 %v7327
      %v7609 = vunpack.c.l.b16 %v7328
      %v7610 = vunpack.c.h.b16 %v7328
      %v7611 = vunpack.c.l.b16 %v7329
      %v7612 = vunpack.c.h.b16 %v7329
      %v7613 = vunpack.c.l.b16 %v7330
      %v7614 = vunpack.c.h.b16 %v7330
      %v7615 = vunpack.c.l.b16 %v7331
      %v7616 = vunpack.c.h.b16 %v7331
      %v7617 = vunpack.c.l.b16 %v7332
      %v7618 = vunpack.c.h.b16 %v7332
      %v7619 = vpack.c.b16 %v7477, %v7475
      %v7620 = vpack.c.b16 %v7478, %v7476
      %v7621 = vpack.c.b16 %v7481, %v7479
      %v7622 = vpack.c.b16 %v7482, %v7480
      %v7623 = vpack.c.b16 %v7485, %v7483
      %v7624 = vpack.c.b16 %v7486, %v7484
      %v7625 = vpack.c.b16 %v7489, %v7487
      %v7626 = vpack.c.b16 %v7490, %v7488
      %v7627 = vpack.c.b16 %v7493, %v7491
      %v7628 = vpack.c.b16 %v7494, %v7492
      %v7629 = vpack.c.b16 %v7497, %v7495
      %v7630 = vpack.c.b16 %v7498, %v7496
      %v7631 = vpack.c.b16 %v7501, %v7499
      %v7632 = vpack.c.b16 %v7502, %v7500
      %v7633 = vpack.c.b16 %v7505, %v7503
      %v7634 = vpack.c.b16 %v7506, %v7504
      %v7635 = vpack.c.b16 %v7509, %v7507
      %v7636 = vpack.c.b16 %v7510, %v7508
      %v7637 = vpack.c.b16 %v7513, %v7511
      %v7638 = vpack.c.b16 %v7514, %v7512
      %v7639 = vpack.c.b16 %v7517, %v7515
      %v7640 = vpack.c.b16 %v7518, %v7516
      %v7641 = vpack.c.b16 %v7521, %v7519
      %v7642 = vpack.c.b16 %v7522, %v7520
      %v7643 = vpack.c.b16 %v7525, %v7523
      %v7644 = vpack.c.b16 %v7526, %v7524
      %v7645 = vpack.c.b16 %v7529, %v7527
      %v7646 = vpack.c.b16 %v7530, %v7528
      %v7647 = vpack.c.b16 %v7533, %v7531
      %v7648 = vpack.c.b16 %v7534, %v7532
      %v7649 = vpack.c.b16 %v7537, %v7535
      %v7650 = vpack.c.b16 %v7538, %v7536
      %v7651 = vpack.c.b16 %v7541, %v7539
      %v7652 = vpack.c.b16 %v7542, %v7540
      %v7653 = vpack.c.b16 %v7545, %v7543
      %v7654 = vpack.c.b16 %v7546, %v7544
      %v7655 = vpack.c.b16 %v7549, %v7547
      %v7656 = vpack.c.b16 %v7550, %v7548
      %v7657 = vpack.c.b16 %v7553, %v7551
      %v7658 = vpack.c.b16 %v7554, %v7552
      %v7659 = vpack.c.b16 %v7557, %v7555
      %v7660 = vpack.c.b16 %v7558, %v7556
      %v7661 = vpack.c.b16 %v7561, %v7559
      %v7662 = vpack.c.b16 %v7562, %v7560
      %v7663 = vpack.c.b16 %v7565, %v7563
      %v7664 = vpack.c.b16 %v7566, %v7564
      %v7665 = vpack.c.b16 %v7569, %v7567
      %v7666 = vpack.c.b16 %v7570, %v7568
      %v7667 = vpack.c.b16 %v7573, %v7571
      %v7668 = vpack.c.b16 %v7574, %v7572
      %v7669 = vpack.c.b16 %v7577, %v7575
      %v7670 = vpack.c.b16 %v7578, %v7576
      %v7671 = vpack.c.b16 %v7581, %v7579
      %v7672 = vpack.c.b16 %v7582, %v7580
      %v7673 = vpack.c.b16 %v7585, %v7583
      %v7674 = vpack.c.b16 %v7586, %v7584
      %v7675 = vpack.c.b16 %v7589, %v7587
      %v7676 = vpack.c.b16 %v7590, %v7588
      %v7677 = vpack.c.b16 %v7593, %v7591
      %v7678 = vpack.c.b16 %v7594, %v7592
      %v7679 = vpack.c.b16 %v7597, %v7595
      %v7680 = vpack.c.b16 %v7598, %v7596
      %v7681 = vpack.c.b16 %v7601, %v7599
      %v7682 = vpack.c.b16 %v7602, %v7600
      %v7683 = vpack.c.b16 %v7605, %v7603
      %v7684 = vpack.c.b16 %v7606, %v7604
      %v7685 = vpack.c.b16 %v7609, %v7607
      %v7686 = vpack.c.b16 %v7610, %v7608
      %v7687 = vpack.c.b16 %v7613, %v7611
      %v7688 = vpack.c.b16 %v7614, %v7612
      %v7689 = vpack.c.b16 %v7617, %v7615
      %v7690 = vpack.c.b16 %v7618, %v7616
      %v7764 = vsel %vm1944, %v7397, 0
      %7766 = vmatpush.bf16.msra.mxu0 %v7633
      %7767 = vmatpush.bf16.msra.mxu0 %v7631
      %7768 = vmatpush.bf16.msra.mxu0 %v7629
      %7769 = vmatpush.bf16.msra.mxu0 %v7627
      %7770 = vmatpush.bf16.msra.mxu0 %v7625
      %7771 = vmatpush.bf16.msra.mxu0 %v7623
      %7772 = vmatpush.bf16.msra.mxu0 %v7621
      %7773 = vmatpush.bf16.msra.mxu0 %v7619
      %7774 = vmatmul.bf16.gmra.mxu0 %v7393
      %v7775 = vpop.f32.mrf.mxu0
      %v7776 = vadd.f32 %v7399, %v7775
      %v7777 = vpop.f32.mrf.mxu0
      %7778 = vdwg.mxu0
      %7779 = vmatpush.bf16.msra.mxu0 %v7649
      %7780 = vmatpush.bf16.msra.mxu0 %v7647
      %7781 = vmatpush.bf16.msra.mxu0 %v7645
      %7782 = vmatpush.bf16.msra.mxu0 %v7643
      %7783 = vmatpush.bf16.msra.mxu0 %v7641
      %7784 = vmatpush.bf16.msra.mxu0 %v7639
      %7785 = vmatpush.bf16.msra.mxu0 %v7637
      %7786 = vmatpush.bf16.msra.mxu0 %v7635
      %7787 = vmatmul.bf16.gmra.mxu0 %v7394
      %v7788 = vpop.f32.mrf.mxu0
      %v7789 = vadd.f32 %v7776, %v7788
      %v7790 = vpop.f32.mrf.mxu0
      %7791 = vdwg.mxu0
      %7792 = vmatpush.bf16.msra.mxu0 %v7665
      %7793 = vmatpush.bf16.msra.mxu0 %v7663
      %7794 = vmatpush.bf16.msra.mxu0 %v7661
      %7795 = vmatpush.bf16.msra.mxu0 %v7659
      %7796 = vmatpush.bf16.msra.mxu0 %v7657
      %7797 = vmatpush.bf16.msra.mxu0 %v7655
      %7798 = vmatpush.bf16.msra.mxu0 %v7653
      %7799 = vmatpush.bf16.msra.mxu0 %v7651
      %7800 = vmatmul.bf16.gmra.mxu0 %v7395
      %v7801 = vpop.f32.mrf.mxu0
      %v7802 = vadd.f32 %v7789, %v7801
      %v7803 = vpop.f32.mrf.mxu0
      %7804 = vdwg.mxu0
      %7805 = vmatpush.bf16.msra.mxu0 %v7681
      %7806 = vmatpush.bf16.msra.mxu0 %v7679
      %7807 = vmatpush.bf16.msra.mxu0 %v7677
      %7808 = vmatpush.bf16.msra.mxu0 %v7675
      %7809 = vmatpush.bf16.msra.mxu0 %v7673
      %7810 = vmatpush.bf16.msra.mxu0 %v7671
      %7811 = vmatpush.bf16.msra.mxu0 %v7669
      %7812 = vmatpush.bf16.msra.mxu0 %v7667
      %7813 = vmatmul.bf16.gmra.mxu0 %v7396
      %v7814 = vpop.f32.mrf.mxu0
      %v7815 = vadd.f32 %v7802, %v7814
      %v7816 = vpop.f32.mrf.mxu0
      %7817 = vdwg.mxu0
      %7818 = vmatpush.bf16.msra.mxu0 0
      %7819 = vmatpush.bf16.msra.mxu0 0
      %7820 = vmatpush.bf16.msra.mxu0 0
      %7821 = vmatpush.bf16.msra.mxu0 0
      %7822 = vmatpush.bf16.msra.mxu0 %v7689
      %7823 = vmatpush.bf16.msra.mxu0 %v7687
      %7824 = vmatpush.bf16.msra.mxu0 %v7685
      %7825 = vmatpush.bf16.msra.mxu0 %v7683
      %7826 = vmatmul.bf16.gmra.mxu0 %v7764
      %v7827 = vpop.f32.mrf.mxu0
      %v7828 = vadd.f32 %v7815, %v7827
      %v7829 = vpop.f32.mrf.mxu0
      %7830 = vdwg.mxu0
      %7831 = vmatpush.bf16.msra.mxu0 %v7634
      %7832 = vmatpush.bf16.msra.mxu0 %v7632
      %7833 = vmatpush.bf16.msra.mxu0 %v7630
      %7834 = vmatpush.bf16.msra.mxu0 %v7628
      %7835 = vmatpush.bf16.msra.mxu0 %v7626
      %7836 = vmatpush.bf16.msra.mxu0 %v7624
      %7837 = vmatpush.bf16.msra.mxu0 %v7622
      %7838 = vmatpush.bf16.msra.mxu0 %v7620
      %7839 = vmatmul.bf16.gmra.mxu0 %v7393
      %v7840 = vpop.f32.mrf.mxu0
      %v7841 = vadd.f32 %v7400, %v7840
      %v7842 = vpop.f32.mrf.mxu0
      %7843 = vdwg.mxu0
      %7844 = vmatpush.bf16.msra.mxu0 %v7650
      %7845 = vmatpush.bf16.msra.mxu0 %v7648
      %7846 = vmatpush.bf16.msra.mxu0 %v7646
      %7847 = vmatpush.bf16.msra.mxu0 %v7644
      %7848 = vmatpush.bf16.msra.mxu0 %v7642
      %7849 = vmatpush.bf16.msra.mxu0 %v7640
      %7850 = vmatpush.bf16.msra.mxu0 %v7638
      %7851 = vmatpush.bf16.msra.mxu0 %v7636
      %7852 = vmatmul.bf16.gmra.mxu0 %v7394
      %v7853 = vpop.f32.mrf.mxu0
      %v7854 = vadd.f32 %v7841, %v7853
      %v7855 = vpop.f32.mrf.mxu0
      %7856 = vdwg.mxu0
      %7857 = vmatpush.bf16.msra.mxu0 %v7666
      %7858 = vmatpush.bf16.msra.mxu0 %v7664
      %7859 = vmatpush.bf16.msra.mxu0 %v7662
      %7860 = vmatpush.bf16.msra.mxu0 %v7660
      %7861 = vmatpush.bf16.msra.mxu0 %v7658
      %7862 = vmatpush.bf16.msra.mxu0 %v7656
      %7863 = vmatpush.bf16.msra.mxu0 %v7654
      %7864 = vmatpush.bf16.msra.mxu0 %v7652
      %7865 = vmatmul.bf16.gmra.mxu0 %v7395
      %v7866 = vpop.f32.mrf.mxu0
      %v7867 = vadd.f32 %v7854, %v7866
      %v7868 = vpop.f32.mrf.mxu0
      %7869 = vdwg.mxu0
      %7870 = vmatpush.bf16.msra.mxu0 %v7682
      %7871 = vmatpush.bf16.msra.mxu0 %v7680
      %7872 = vmatpush.bf16.msra.mxu0 %v7678
      %7873 = vmatpush.bf16.msra.mxu0 %v7676
      %7874 = vmatpush.bf16.msra.mxu0 %v7674
      %7875 = vmatpush.bf16.msra.mxu0 %v7672
      %7876 = vmatpush.bf16.msra.mxu0 %v7670
      %7877 = vmatpush.bf16.msra.mxu0 %v7668
      %7878 = vmatmul.bf16.gmra.mxu0 %v7396
      %v7879 = vpop.f32.mrf.mxu0
      %v7880 = vadd.f32 %v7867, %v7879
      %v7881 = vpop.f32.mrf.mxu0
      %7882 = vdwg.mxu0
      %7883 = vmatpush.bf16.msra.mxu0 0
      %7884 = vmatpush.bf16.msra.mxu0 0
      %7885 = vmatpush.bf16.msra.mxu0 0
      %7886 = vmatpush.bf16.msra.mxu0 0
      %7887 = vmatpush.bf16.msra.mxu0 %v7690
      %7888 = vmatpush.bf16.msra.mxu0 %v7688
      %7889 = vmatpush.bf16.msra.mxu0 %v7686
      %7890 = vmatpush.bf16.msra.mxu0 %v7684
      %7891 = vmatmul.bf16.gmra.mxu0 %v7764
      %v7892 = vpop.f32.mrf.mxu0
      %v7893 = vadd.f32 %v7880, %v7892
      %v7894 = vpop.f32.mrf.mxu0
      %7895 = vdwg.mxu0
      %v7896 = vmax.f32 %v7828, 0.0
      %v7897 = vmax.f32 %v7893, 0.0
      %v7898 = vpack.c.bf16 %v7896, %v7896
      %v7899 = vpack.c.bf16 %v7897, %v7897
      %v7901 = vperm.slane %v7392, 0
      %v7902 = vperm.slane %v7392, 1
      %v7903 = vperm.slane %v7392, 2
      %v7904 = vperm.slane %v7392, 3
      %v7905 = vperm.slane %v7392, 4
      %v7965 = vunpack.c.l.b16 %v7335
      %v7966 = vunpack.c.h.b16 %v7335
      %v7967 = vunpack.c.l.b16 %v7336
      %v7968 = vunpack.c.h.b16 %v7336
      %v7969 = vunpack.c.l.b16 %v7337
      %v7970 = vunpack.c.l.b16 %v7338
      %v7971 = vunpack.c.h.b16 %v7338
      %v7972 = vunpack.c.l.b16 %v7339
      %v7973 = vunpack.c.h.b16 %v7339
      %v7974 = vunpack.c.l.b16 %v7340
      %v7975 = vunpack.c.l.b16 %v7341
      %v7976 = vunpack.c.h.b16 %v7341
      %v7977 = vunpack.c.l.b16 %v7342
      %v7978 = vunpack.c.h.b16 %v7342
      %v7979 = vunpack.c.l.b16 %v7343
      %v7980 = vunpack.c.l.b16 %v7344
      %v7981 = vunpack.c.h.b16 %v7344
      %v7982 = vunpack.c.l.b16 %v7345
      %v7983 = vunpack.c.h.b16 %v7345
      %v7984 = vunpack.c.l.b16 %v7346
      %v7985 = vunpack.c.l.b16 %v7347
      %v7986 = vunpack.c.h.b16 %v7347
      %v7987 = vunpack.c.l.b16 %v7348
      %v7988 = vunpack.c.h.b16 %v7348
      %v7989 = vunpack.c.l.b16 %v7349
      %v7990 = vunpack.c.l.b16 %v7350
      %v7991 = vunpack.c.h.b16 %v7350
      %v7992 = vunpack.c.l.b16 %v7351
      %v7993 = vunpack.c.h.b16 %v7351
      %v7994 = vunpack.c.l.b16 %v7352
      %v7995 = vunpack.c.l.b16 %v7353
      %v7996 = vunpack.c.h.b16 %v7353
      %v7997 = vunpack.c.l.b16 %v7354
      %v7998 = vunpack.c.h.b16 %v7354
      %v7999 = vunpack.c.l.b16 %v7355
      %v8000 = vunpack.c.l.b16 %v7356
      %v8001 = vunpack.c.h.b16 %v7356
      %v8002 = vunpack.c.l.b16 %v7357
      %v8003 = vunpack.c.h.b16 %v7357
      %v8004 = vunpack.c.l.b16 %v7358
      %v8005 = vunpack.c.l.b16 %v7359
      %v8006 = vunpack.c.h.b16 %v7359
      %v8007 = vunpack.c.l.b16 %v7360
      %v8008 = vunpack.c.h.b16 %v7360
      %v8009 = vunpack.c.l.b16 %v7361
      %v8010 = vunpack.c.l.b16 %v7362
      %v8011 = vunpack.c.h.b16 %v7362
      %v8012 = vunpack.c.l.b16 %v7363
      %v8013 = vunpack.c.h.b16 %v7363
      %v8014 = vunpack.c.l.b16 %v7364
      %v8015 = vunpack.c.l.b16 %v7365
      %v8016 = vunpack.c.h.b16 %v7365
      %v8017 = vunpack.c.l.b16 %v7366
      %v8018 = vunpack.c.h.b16 %v7366
      %v8019 = vunpack.c.l.b16 %v7367
      %v8020 = vunpack.c.l.b16 %v7368
      %v8021 = vunpack.c.h.b16 %v7368
      %v8022 = vunpack.c.l.b16 %v7369
      %v8023 = vunpack.c.h.b16 %v7369
      %v8024 = vunpack.c.l.b16 %v7370
      %v8025 = vunpack.c.l.b16 %v7371
      %v8026 = vunpack.c.h.b16 %v7371
      %v8027 = vunpack.c.l.b16 %v7372
      %v8028 = vunpack.c.h.b16 %v7372
      %v8029 = vunpack.c.l.b16 %v7373
      %v8030 = vunpack.c.l.b16 %v7374
      %v8031 = vunpack.c.h.b16 %v7374
      %v8032 = vunpack.c.l.b16 %v7375
      %v8033 = vunpack.c.h.b16 %v7375
      %v8034 = vunpack.c.l.b16 %v7376
      %v8035 = vunpack.c.l.b16 %v7377
      %v8036 = vunpack.c.h.b16 %v7377
      %v8037 = vunpack.c.l.b16 %v7378
      %v8038 = vunpack.c.h.b16 %v7378
      %v8039 = vunpack.c.l.b16 %v7379
      %v8040 = vunpack.c.l.b16 %v7380
      %v8041 = vunpack.c.h.b16 %v7380
      %v8042 = vunpack.c.l.b16 %v7381
      %v8043 = vunpack.c.h.b16 %v7381
      %v8044 = vunpack.c.l.b16 %v7382
      %v8045 = vunpack.c.l.b16 %v7383
      %v8046 = vunpack.c.h.b16 %v7383
      %v8047 = vunpack.c.l.b16 %v7384
      %v8048 = vunpack.c.h.b16 %v7384
      %v8049 = vunpack.c.l.b16 %v7385
      %v8050 = vunpack.c.l.b16 %v7386
      %v8051 = vunpack.c.h.b16 %v7386
      %v8052 = vunpack.c.l.b16 %v7387
      %v8053 = vunpack.c.h.b16 %v7387
      %v8054 = vunpack.c.l.b16 %v7388
      %v8055 = vpack.c.b16 %v7970, %v7965
      %v8056 = vpack.c.b16 %v7971, %v7966
      %v8057 = vpack.c.b16 %v7972, %v7967
      %v8058 = vpack.c.b16 %v7973, %v7968
      %v8059 = vpack.c.b16 %v7974, %v7969
      %v8060 = vpack.c.b16 %v7980, %v7975
      %v8061 = vpack.c.b16 %v7981, %v7976
      %v8062 = vpack.c.b16 %v7982, %v7977
      %v8063 = vpack.c.b16 %v7983, %v7978
      %v8064 = vpack.c.b16 %v7984, %v7979
      %v8065 = vpack.c.b16 %v7990, %v7985
      %v8066 = vpack.c.b16 %v7991, %v7986
      %v8067 = vpack.c.b16 %v7992, %v7987
      %v8068 = vpack.c.b16 %v7993, %v7988
      %v8069 = vpack.c.b16 %v7994, %v7989
      %v8070 = vpack.c.b16 %v8000, %v7995
      %v8071 = vpack.c.b16 %v8001, %v7996
      %v8072 = vpack.c.b16 %v8002, %v7997
      %v8073 = vpack.c.b16 %v8003, %v7998
      %v8074 = vpack.c.b16 %v8004, %v7999
      %v8075 = vpack.c.b16 %v8010, %v8005
      %v8076 = vpack.c.b16 %v8011, %v8006
      %v8077 = vpack.c.b16 %v8012, %v8007
      %v8078 = vpack.c.b16 %v8013, %v8008
      %v8079 = vpack.c.b16 %v8014, %v8009
      %v8080 = vpack.c.b16 %v8020, %v8015
      %v8081 = vpack.c.b16 %v8021, %v8016
      %v8082 = vpack.c.b16 %v8022, %v8017
      %v8083 = vpack.c.b16 %v8023, %v8018
      %v8084 = vpack.c.b16 %v8024, %v8019
      %v8085 = vpack.c.b16 %v8030, %v8025
      %v8086 = vpack.c.b16 %v8031, %v8026
      %v8087 = vpack.c.b16 %v8032, %v8027
      %v8088 = vpack.c.b16 %v8033, %v8028
      %v8089 = vpack.c.b16 %v8034, %v8029
      %v8090 = vpack.c.b16 %v8040, %v8035
      %v8091 = vpack.c.b16 %v8041, %v8036
      %v8092 = vpack.c.b16 %v8042, %v8037
      %v8093 = vpack.c.b16 %v8043, %v8038
      %v8094 = vpack.c.b16 %v8044, %v8039
      %v8095 = vpack.c.b16 %v8050, %v8045
      %v8096 = vpack.c.b16 %v8051, %v8046
      %v8097 = vpack.c.b16 %v8052, %v8047
      %v8098 = vpack.c.b16 %v8053, %v8048
      %v8099 = vpack.c.b16 %v8054, %v8049
      %v8146 = vsel %vm1638, %v7899, 0
      %8148 = vmatpush.bf16.msra.mxu0 %v8090
      %8149 = vmatpush.bf16.msra.mxu0 %v8085
      %8150 = vmatpush.bf16.msra.mxu0 %v8080
      %8151 = vmatpush.bf16.msra.mxu0 %v8075
      %8152 = vmatpush.bf16.msra.mxu0 %v8070
      %8153 = vmatpush.bf16.msra.mxu0 %v8065
      %8154 = vmatpush.bf16.msra.mxu0 %v8060
      %8155 = vmatpush.bf16.msra.mxu0 %v8055
      %8156 = vmatmul.bf16.gmra.mxu0 %v7898
      %v8157 = vpop.f32.mrf.mxu0
      %v8158 = vadd.f32 %v7901, %v8157
      %v8159 = vpop.f32.mrf.mxu0
      %8160 = vdwg.mxu0
      %8161 = vmatpush.bf16.msra.mxu0 0
      %8162 = vmatpush.bf16.msra.mxu0 0
      %8163 = vmatpush.bf16.msra.mxu0 0
      %8164 = vmatpush.bf16.msra.mxu0 0
      %8165 = vmatpush.bf16.msra.mxu0 0
      %8166 = vmatpush.bf16.msra.mxu0 0
      %8167 = vmatpush.bf16.msra.mxu0 0
      %8168 = vmatpush.bf16.msra.mxu0 %v8095
      %8169 = vmatmul.bf16.gmra.mxu0 %v8146
      %v8170 = vpop.f32.mrf.mxu0
      %v8171 = vadd.f32 %v8158, %v8170
      %v8172 = vpop.f32.mrf.mxu0
      %8173 = vdwg.mxu0
      %8174 = vmatpush.bf16.msra.mxu0 %v8091
      %8175 = vmatpush.bf16.msra.mxu0 %v8086
      %8176 = vmatpush.bf16.msra.mxu0 %v8081
      %8177 = vmatpush.bf16.msra.mxu0 %v8076
      %8178 = vmatpush.bf16.msra.mxu0 %v8071
      %8179 = vmatpush.bf16.msra.mxu0 %v8066
      %8180 = vmatpush.bf16.msra.mxu0 %v8061
      %8181 = vmatpush.bf16.msra.mxu0 %v8056
      %8182 = vmatmul.bf16.gmra.mxu0 %v7898
      %v8183 = vpop.f32.mrf.mxu0
      %v8184 = vadd.f32 %v7902, %v8183
      %v8185 = vpop.f32.mrf.mxu0
      %8186 = vdwg.mxu0
      %8187 = vmatpush.bf16.msra.mxu0 0
      %8188 = vmatpush.bf16.msra.mxu0 0
      %8189 = vmatpush.bf16.msra.mxu0 0
      %8190 = vmatpush.bf16.msra.mxu0 0
      %8191 = vmatpush.bf16.msra.mxu0 0
      %8192 = vmatpush.bf16.msra.mxu0 0
      %8193 = vmatpush.bf16.msra.mxu0 0
      %8194 = vmatpush.bf16.msra.mxu0 %v8096
      %8195 = vmatmul.bf16.gmra.mxu0 %v8146
      %v8196 = vpop.f32.mrf.mxu0
      %v8197 = vadd.f32 %v8184, %v8196
      %v8198 = vpop.f32.mrf.mxu0
      %8199 = vdwg.mxu0
      %8200 = vmatpush.bf16.msra.mxu0 %v8092
      %8201 = vmatpush.bf16.msra.mxu0 %v8087
      %8202 = vmatpush.bf16.msra.mxu0 %v8082
      %8203 = vmatpush.bf16.msra.mxu0 %v8077
      %8204 = vmatpush.bf16.msra.mxu0 %v8072
      %8205 = vmatpush.bf16.msra.mxu0 %v8067
      %8206 = vmatpush.bf16.msra.mxu0 %v8062
      %8207 = vmatpush.bf16.msra.mxu0 %v8057
      %8208 = vmatmul.bf16.gmra.mxu0 %v7898
      %v8209 = vpop.f32.mrf.mxu0
      %v8210 = vadd.f32 %v7903, %v8209
      %v8211 = vpop.f32.mrf.mxu0
      %8212 = vdwg.mxu0
      %8213 = vmatpush.bf16.msra.mxu0 0
      %8214 = vmatpush.bf16.msra.mxu0 0
      %8215 = vmatpush.bf16.msra.mxu0 0
      %8216 = vmatpush.bf16.msra.mxu0 0
      %8217 = vmatpush.bf16.msra.mxu0 0
      %8218 = vmatpush.bf16.msra.mxu0 0
      %8219 = vmatpush.bf16.msra.mxu0 0
      %8220 = vmatpush.bf16.msra.mxu0 %v8097
      %8221 = vmatmul.bf16.gmra.mxu0 %v8146
      %v8222 = vpop.f32.mrf.mxu0
      %v8223 = vadd.f32 %v8210, %v8222
      %v8224 = vpop.f32.mrf.mxu0
      %8225 = vdwg.mxu0
      %8226 = vmatpush.bf16.msra.mxu0 %v8093
      %8227 = vmatpush.bf16.msra.mxu0 %v8088
      %8228 = vmatpush.bf16.msra.mxu0 %v8083
      %8229 = vmatpush.bf16.msra.mxu0 %v8078
      %8230 = vmatpush.bf16.msra.mxu0 %v8073
      %8231 = vmatpush.bf16.msra.mxu0 %v8068
      %8232 = vmatpush.bf16.msra.mxu0 %v8063
      %8233 = vmatpush.bf16.msra.mxu0 %v8058
      %8234 = vmatmul.bf16.gmra.mxu0 %v7898
      %v8235 = vpop.f32.mrf.mxu0
      %v8236 = vadd.f32 %v7904, %v8235
      %v8237 = vpop.f32.mrf.mxu0
      %8238 = vdwg.mxu0
      %8239 = vmatpush.bf16.msra.mxu0 0
      %8240 = vmatpush.bf16.msra.mxu0 0
      %8241 = vmatpush.bf16.msra.mxu0 0
      %8242 = vmatpush.bf16.msra.mxu0 0
      %8243 = vmatpush.bf16.msra.mxu0 0
      %8244 = vmatpush.bf16.msra.mxu0 0
      %8245 = vmatpush.bf16.msra.mxu0 0
      %8246 = vmatpush.bf16.msra.mxu0 %v8098
      %8247 = vmatmul.bf16.gmra.mxu0 %v8146
      %v8248 = vpop.f32.mrf.mxu0
      %v8249 = vadd.f32 %v8236, %v8248
      %v8250 = vpop.f32.mrf.mxu0
      %8251 = vdwg.mxu0
      %8252 = vmatpush.bf16.msra.mxu0 %v8094
      %8253 = vmatpush.bf16.msra.mxu0 %v8089
      %8254 = vmatpush.bf16.msra.mxu0 %v8084
      %8255 = vmatpush.bf16.msra.mxu0 %v8079
      %8256 = vmatpush.bf16.msra.mxu0 %v8074
      %8257 = vmatpush.bf16.msra.mxu0 %v8069
      %8258 = vmatpush.bf16.msra.mxu0 %v8064
      %8259 = vmatpush.bf16.msra.mxu0 %v8059
      %8260 = vmatmul.bf16.gmra.mxu0 %v7898
      %v8261 = vpop.f32.mrf.mxu0
      %v8262 = vadd.f32 %v7905, %v8261
      %v8263 = vpop.f32.mrf.mxu0
      %8264 = vdwg.mxu0
      %8265 = vmatpush.bf16.msra.mxu0 0
      %8266 = vmatpush.bf16.msra.mxu0 0
      %8267 = vmatpush.bf16.msra.mxu0 0
      %8268 = vmatpush.bf16.msra.mxu0 0
      %8269 = vmatpush.bf16.msra.mxu0 0
      %8270 = vmatpush.bf16.msra.mxu0 0
      %8271 = vmatpush.bf16.msra.mxu0 0
      %8272 = vmatpush.bf16.msra.mxu0 %v8099
      %8273 = vmatmul.bf16.gmra.mxu0 %v8146
      %v8274 = vpop.f32.mrf.mxu0
      %v8275 = vadd.f32 %v8262, %v8274
      %v8276 = vpop.f32.mrf.mxu0
      %8277 = vdwg.mxu0
      %v8278 = vadd.f32 %v8171, 3.0
      %v8279 = vadd.f32 %v8197, 3.0
      %v8280 = vadd.f32 %v8223, 3.0
      %v8281 = vadd.f32 %v8249, 3.0
      %v8282 = vadd.f32 %v8275, 3.0
      %v8283 = vmax.f32 %v8278, 0.0
      %v8284 = vmax.f32 %v8279, 0.0
      %v8285 = vmax.f32 %v8280, 0.0
      %v8286 = vmax.f32 %v8281, 0.0
      %v8287 = vmax.f32 %v8282, 0.0
      %v8288 = vmin.f32 %v8283, 6.0
      %v8289 = vmin.f32 %v8284, 6.0
      %v8290 = vmin.f32 %v8285, 6.0
      %v8291 = vmin.f32 %v8286, 6.0
      %v8292 = vmin.f32 %v8287, 6.0
      %v8293 = vmul.f32 %v8288, 0.16666667
      %v8294 = vmul.f32 %v8289, 0.16666667
      %v8295 = vmul.f32 %v8290, 0.16666667
      %v8296 = vmul.f32 %v8291, 0.16666667
      %v8297 = vmul.f32 %v8292, 0.16666667
      %v8298 = vmul.f32 %v7256, %v8293
      %v8299 = vmul.f32 %v7257, %v8294
      %v8300 = vmul.f32 %v7258, %v8295
      %v8301 = vmul.f32 %v7259, %v8296
      %v8302 = vmul.f32 %v7260, %v8297
      %v8303 = vld [vmem:[%s1 + $0x708] sm:$0xf]
      %v8304 = vld [vmem:[%s1 + $0x70c] sm:$0xf]
      %v8305 = vld [vmem:[%s1 + $0x710] sm:$0xf]
      %v8306 = vld [vmem:[%s1 + $0x714] sm:$0xf]
      %v8307 = vld [vmem:[%s1 + $0x718] sm:$0xf]
      %v8308 = vld [vmem:[%s1 + $0x71c] sm:$0xf]
      %v8309 = vld [vmem:[%s1 + $0x720] sm:$0xf]
      %v8310 = vld [vmem:[%s1 + $0x724] sm:$0xf]
      %v8311 = vld [vmem:[%s1 + $0x728] sm:$0xf]
      %v8312 = vld [vmem:[%s1 + $0x72c] sm:$0xf]
      %v8313 = vld [vmem:[%s1 + $0x730] sm:$0xf]
      %v8314 = vld [vmem:[%s1 + $0x734] sm:$0xf]
      %v8315 = vld [vmem:[%s1 + $0x738] sm:$0xf]
      %v8316 = vld [vmem:[%s1 + $0x73c] sm:$0xf]
      %v8317 = vld [vmem:[%s1 + $0x740] sm:$0xf]
      %v8318 = vld [vmem:[%s1 + $0x744] sm:$0xf]
      %v8319 = vld [vmem:[%s1 + $0x748] sm:$0xf]
      %v8320 = vld [vmem:[%s1 + $0x74c] sm:$0xf]
      %v8321 = vld [vmem:[%s1 + $0x750] sm:$0xf]
      %v8322 = vld [vmem:[%s1 + $0x754] sm:$0xf]
      %v8323 = vld [vmem:[%s1 + $0x758] sm:$0xf]
      %v8324 = vld [vmem:[%s1 + $0x75c] sm:$0xf]
      %v8325 = vld [vmem:[%s1 + $0x760] sm:$0xf]
      %v8326 = vld [vmem:[%s1 + $0x764] sm:$0xf]
      %v8327 = vld [vmem:[%s1 + $0x768] sm:$0xf]
      %v8328 = vld [vmem:[%s1 + $0x76c] sm:$0xf]
      %v8329 = vld [vmem:[%s1 + $0x770] sm:$0xf]
      %v8330 = vld [vmem:[%s1 + $0x774] sm:$0xf]
      %v8331 = vld [vmem:[%s1 + $0x778] sm:$0xf]
      %v8332 = vld [vmem:[%s1 + $0x77c] sm:$0xf]
      %v8333 = vld [vmem:[%s1 + $0x780] sm:$0xf]
      %v8334 = vld [vmem:[%s1 + $0x784] sm:$0xf]
      %v8335 = vld [vmem:[%s1 + $0x788] sm:$0xf]
      %v8336 = vld [vmem:[%s1 + $0x78c] sm:$0xf]
      %v8337 = vld [vmem:[%s1 + $0x790] sm:$0xf]
      %v8338 = vld [vmem:[%s1 + $0x794] sm:$0xf]
      %v8339 = vld [vmem:[%s1 + $0x798] sm:$0xf]
      %v8340 = vld [vmem:[%s1 + $0x79c] sm:$0xf]
      %v8341 = vld [vmem:[%s1 + $0x7a0] sm:$0xf]
      %v8342 = vld [vmem:[%s1 + $0x7a4] sm:$0xf]
      %v8343 = vld [vmem:[%s1 + $0x7a8] sm:$0xf]
      %v8344 = vld [vmem:[%s1 + $0x7ac] sm:$0xf]
      %v8345 = vld [vmem:[%s1 + $0x7b0] sm:$0xf]
      %v8346 = vld [vmem:[%s1 + $0x7b4] sm:$0xf]
      %v8347 = vld [vmem:[%s1 + $0x7b8] sm:$0xf]
      %v8348 = vld [vmem:[%s1 + $0x7bc] sm:$0xf]
      %v8349 = vld [vmem:[%s1 + $0x7c0] sm:$0xf]
      %v8350 = vld [vmem:[%s1 + $0x7c4] sm:$0xf]
      %v8351 = vld [vmem:[%s1 + $0x7c8] sm:$0xf]
      %v8352 = vld [vmem:[%s1 + $0x7cc] sm:$0xf]
      %v8353 = vld [vmem:[%s1 + $0x7d0] sm:$0xf]
      %v8354 = vld [vmem:[%s1 + $0x7d4] sm:$0xf]
      %v8355 = vld [vmem:[%s1 + $0x7d8] sm:$0xf]
      %v8356 = vld [vmem:[%s1 + $0x7dc] sm:$0xf]
      %v8357 = vld [vmem:[%s1 + $0x7e0] sm:$0xf]
      %v8358 = vld [vmem:[%s1 + $0x7e4] sm:$0xf]
      %v8359 = vld [vmem:[%s1 + $0x7e8] sm:$0xf]
      %v8360 = vld [vmem:[%s1 + $0x7ec] sm:$0xf]
      %v8361 = vld [vmem:[%s1 + $0x7f0] sm:$0xf]
      %v8362 = vld [vmem:[%s1 + $0x7f4] sm:$0xf]
      %v8363 = vld [vmem:[%s1 + $0x7f8] sm:$0xf]
      %v8364 = vld [vmem:[%s1 + $0x7fc] sm:$0xf]
      %v8365 = vld [vmem:[%s1 + $0x800] sm:$0xf]
      %v8366 = vld [vmem:[%s1 + $0x804] sm:$0xf]
      %v8367 = vld [vmem:[%s1 + $0x808] sm:$0xf]
      %v8368 = vld [vmem:[%s1 + $0x80c] sm:$0xf]
      %v8369 = vld [vmem:[%s1 + $0x810] sm:$0xf]
      %v8370 = vld [vmem:[%s1 + $0x814] sm:$0xf]
      %v8371 = vld [vmem:[%s1 + $0x818] sm:$0xf]
      %v8372 = vld [vmem:[%s1 + $0x81c] sm:$0xf]
      %v8373 = vld [vmem:[%s1 + $0x820] sm:$0xf]
      %v8374 = vld [vmem:[%s1 + $0x824] sm:$0xf]
      %v8375 = vld [vmem:[%s2 + $0x130] sm:$0x1]
      %v8376 = vpack.c.bf16 %v8298, %v8298
      %v8377 = vpack.c.bf16 %v8299, %v8299
      %v8378 = vpack.c.bf16 %v8300, %v8300
      %v8379 = vpack.c.bf16 %v8301, %v8301
      %v8380 = vpack.c.bf16 %v8302, %v8302
      %v8381 = vperm.slane %v8375, 0
      %v8454 = vunpack.c.l.b16 %v8303
      %v8455 = vunpack.c.l.b16 %v8304
      %v8456 = vunpack.c.l.b16 %v8305
      %v8457 = vunpack.c.l.b16 %v8306
      %v8458 = vunpack.c.l.b16 %v8307
      %v8459 = vunpack.c.l.b16 %v8308
      %v8460 = vunpack.c.l.b16 %v8309
      %v8461 = vunpack.c.l.b16 %v8310
      %v8462 = vunpack.c.l.b16 %v8311
      %v8463 = vunpack.c.l.b16 %v8312
      %v8464 = vunpack.c.l.b16 %v8313
      %v8465 = vunpack.c.l.b16 %v8314
      %v8466 = vunpack.c.l.b16 %v8315
      %v8467 = vunpack.c.l.b16 %v8316
      %v8468 = vunpack.c.l.b16 %v8317
      %v8469 = vunpack.c.l.b16 %v8318
      %v8470 = vunpack.c.l.b16 %v8319
      %v8471 = vunpack.c.l.b16 %v8320
      %v8472 = vunpack.c.l.b16 %v8321
      %v8473 = vunpack.c.l.b16 %v8322
      %v8474 = vunpack.c.l.b16 %v8323
      %v8475 = vunpack.c.l.b16 %v8324
      %v8476 = vunpack.c.l.b16 %v8325
      %v8477 = vunpack.c.l.b16 %v8326
      %v8478 = vunpack.c.l.b16 %v8327
      %v8479 = vunpack.c.l.b16 %v8328
      %v8480 = vunpack.c.l.b16 %v8329
      %v8481 = vunpack.c.l.b16 %v8330
      %v8482 = vunpack.c.l.b16 %v8331
      %v8483 = vunpack.c.l.b16 %v8332
      %v8484 = vunpack.c.l.b16 %v8333
      %v8485 = vunpack.c.l.b16 %v8334
      %v8486 = vunpack.c.l.b16 %v8335
      %v8487 = vunpack.c.l.b16 %v8336
      %v8488 = vunpack.c.l.b16 %v8337
      %v8489 = vunpack.c.l.b16 %v8338
      %v8490 = vunpack.c.l.b16 %v8339
      %v8491 = vunpack.c.l.b16 %v8340
      %v8492 = vunpack.c.l.b16 %v8341
      %v8493 = vunpack.c.l.b16 %v8342
      %v8494 = vunpack.c.l.b16 %v8343
      %v8495 = vunpack.c.l.b16 %v8344
      %v8496 = vunpack.c.l.b16 %v8345
      %v8497 = vunpack.c.l.b16 %v8346
      %v8498 = vunpack.c.l.b16 %v8347
      %v8499 = vunpack.c.l.b16 %v8348
      %v8500 = vunpack.c.l.b16 %v8349
      %v8501 = vunpack.c.l.b16 %v8350
      %v8502 = vunpack.c.l.b16 %v8351
      %v8503 = vunpack.c.l.b16 %v8352
      %v8504 = vunpack.c.l.b16 %v8353
      %v8505 = vunpack.c.l.b16 %v8354
      %v8506 = vunpack.c.l.b16 %v8355
      %v8507 = vunpack.c.l.b16 %v8356
      %v8508 = vunpack.c.l.b16 %v8357
      %v8509 = vunpack.c.l.b16 %v8358
      %v8510 = vunpack.c.l.b16 %v8359
      %v8511 = vunpack.c.l.b16 %v8360
      %v8512 = vunpack.c.l.b16 %v8361
      %v8513 = vunpack.c.l.b16 %v8362
      %v8514 = vunpack.c.l.b16 %v8363
      %v8515 = vunpack.c.l.b16 %v8364
      %v8516 = vunpack.c.l.b16 %v8365
      %v8517 = vunpack.c.l.b16 %v8366
      %v8518 = vunpack.c.l.b16 %v8367
      %v8519 = vunpack.c.l.b16 %v8368
      %v8520 = vunpack.c.l.b16 %v8369
      %v8521 = vunpack.c.l.b16 %v8370
      %v8522 = vunpack.c.l.b16 %v8371
      %v8523 = vunpack.c.l.b16 %v8372
      %v8524 = vunpack.c.l.b16 %v8373
      %v8525 = vunpack.c.l.b16 %v8374
      %v8526 = vpack.c.b16 %v8455, %v8454
      %v8527 = vpack.c.b16 %v8457, %v8456
      %v8528 = vpack.c.b16 %v8459, %v8458
      %v8529 = vpack.c.b16 %v8461, %v8460
      %v8530 = vpack.c.b16 %v8463, %v8462
      %v8531 = vpack.c.b16 %v8465, %v8464
      %v8532 = vpack.c.b16 %v8467, %v8466
      %v8533 = vpack.c.b16 %v8469, %v8468
      %v8534 = vpack.c.b16 %v8471, %v8470
      %v8535 = vpack.c.b16 %v8473, %v8472
      %v8536 = vpack.c.b16 %v8475, %v8474
      %v8537 = vpack.c.b16 %v8477, %v8476
      %v8538 = vpack.c.b16 %v8479, %v8478
      %v8539 = vpack.c.b16 %v8481, %v8480
      %v8540 = vpack.c.b16 %v8483, %v8482
      %v8541 = vpack.c.b16 %v8485, %v8484
      %v8542 = vpack.c.b16 %v8487, %v8486
      %v8543 = vpack.c.b16 %v8489, %v8488
      %v8544 = vpack.c.b16 %v8491, %v8490
      %v8545 = vpack.c.b16 %v8493, %v8492
      %v8546 = vpack.c.b16 %v8495, %v8494
      %v8547 = vpack.c.b16 %v8497, %v8496
      %v8548 = vpack.c.b16 %v8499, %v8498
      %v8549 = vpack.c.b16 %v8501, %v8500
      %v8550 = vpack.c.b16 %v8503, %v8502
      %v8551 = vpack.c.b16 %v8505, %v8504
      %v8552 = vpack.c.b16 %v8507, %v8506
      %v8553 = vpack.c.b16 %v8509, %v8508
      %v8554 = vpack.c.b16 %v8511, %v8510
      %v8555 = vpack.c.b16 %v8513, %v8512
      %v8556 = vpack.c.b16 %v8515, %v8514
      %v8557 = vpack.c.b16 %v8517, %v8516
      %v8558 = vpack.c.b16 %v8519, %v8518
      %v8559 = vpack.c.b16 %v8521, %v8520
      %v8560 = vpack.c.b16 %v8523, %v8522
      %v8561 = vpack.c.b16 %v8525, %v8524
      %v8599 = vsel %vm1944, %v8380, 0
      %8601 = vmatpush.bf16.msra.mxu0 %v8533
      %8602 = vmatpush.bf16.msra.mxu0 %v8532
      %8603 = vmatpush.bf16.msra.mxu0 %v8531
      %8604 = vmatpush.bf16.msra.mxu0 %v8530
      %8605 = vmatpush.bf16.msra.mxu0 %v8529
      %8606 = vmatpush.bf16.msra.mxu0 %v8528
      %8607 = vmatpush.bf16.msra.mxu0 %v8527
      %8608 = vmatpush.bf16.msra.mxu0 %v8526
      %8609 = vmatmul.bf16.gmra.mxu0 %v8376
      %v8610 = vpop.f32.mrf.mxu0
      %v8611 = vadd.f32 %v8381, %v8610
      %v8612 = vpop.f32.mrf.mxu0
      %8613 = vdwg.mxu0
      %8614 = vmatpush.bf16.msra.mxu0 %v8541
      %8615 = vmatpush.bf16.msra.mxu0 %v8540
      %8616 = vmatpush.bf16.msra.mxu0 %v8539
      %8617 = vmatpush.bf16.msra.mxu0 %v8538
      %8618 = vmatpush.bf16.msra.mxu0 %v8537
      %8619 = vmatpush.bf16.msra.mxu0 %v8536
      %8620 = vmatpush.bf16.msra.mxu0 %v8535
      %8621 = vmatpush.bf16.msra.mxu0 %v8534
      %8622 = vmatmul.bf16.gmra.mxu0 %v8377
      %v8623 = vpop.f32.mrf.mxu0
      %v8624 = vadd.f32 %v8611, %v8623
      %v8625 = vpop.f32.mrf.mxu0
      %8626 = vdwg.mxu0
      %8627 = vmatpush.bf16.msra.mxu0 %v8549
      %8628 = vmatpush.bf16.msra.mxu0 %v8548
      %8629 = vmatpush.bf16.msra.mxu0 %v8547
      %8630 = vmatpush.bf16.msra.mxu0 %v8546
      %8631 = vmatpush.bf16.msra.mxu0 %v8545
      %8632 = vmatpush.bf16.msra.mxu0 %v8544
      %8633 = vmatpush.bf16.msra.mxu0 %v8543
      %8634 = vmatpush.bf16.msra.mxu0 %v8542
      %8635 = vmatmul.bf16.gmra.mxu0 %v8378
      %v8636 = vpop.f32.mrf.mxu0
      %v8637 = vadd.f32 %v8624, %v8636
      %v8638 = vpop.f32.mrf.mxu0
      %8639 = vdwg.mxu0
      %8640 = vmatpush.bf16.msra.mxu0 %v8557
      %8641 = vmatpush.bf16.msra.mxu0 %v8556
      %8642 = vmatpush.bf16.msra.mxu0 %v8555
      %8643 = vmatpush.bf16.msra.mxu0 %v8554
      %8644 = vmatpush.bf16.msra.mxu0 %v8553
      %8645 = vmatpush.bf16.msra.mxu0 %v8552
      %8646 = vmatpush.bf16.msra.mxu0 %v8551
      %8647 = vmatpush.bf16.msra.mxu0 %v8550
      %8648 = vmatmul.bf16.gmra.mxu0 %v8379
      %v8649 = vpop.f32.mrf.mxu0
      %v8650 = vadd.f32 %v8637, %v8649
      %v8651 = vpop.f32.mrf.mxu0
      %8652 = vdwg.mxu0
      %8653 = vmatpush.bf16.msra.mxu0 0
      %8654 = vmatpush.bf16.msra.mxu0 0
      %8655 = vmatpush.bf16.msra.mxu0 0
      %8656 = vmatpush.bf16.msra.mxu0 0
      %8657 = vmatpush.bf16.msra.mxu0 %v8561
      %8658 = vmatpush.bf16.msra.mxu0 %v8560
      %8659 = vmatpush.bf16.msra.mxu0 %v8559
      %8660 = vmatpush.bf16.msra.mxu0 %v8558
      %8661 = vmatmul.bf16.gmra.mxu0 %v8599
      %v8662 = vpop.f32.mrf.mxu0
      %v8663 = vadd.f32 %v8650, %v8662
      %v8664 = vpop.f32.mrf.mxu0
      %8665 = vdwg.mxu0
      %v8666 = vadd.f32 %v8663, %v6894
      %v8667 = vld [vmem:[%s5 + $0x5f0] sm:$0xff]
      %v8668 = vld [vmem:[%s5 + $0x5f8] sm:$0xff]
      %v8669 = vld [vmem:[%s5 + $0x600] sm:$0xf]
      %v8670 = vld [vmem:[%s5 + $0x604] sm:$0xff]
      %v8671 = vld [vmem:[%s5 + $0x60c] sm:$0xff]
      %v8672 = vld [vmem:[%s5 + $0x614] sm:$0xf]
      %v8673 = vld [vmem:[%s5 + $0x618] sm:$0xff]
      %v8674 = vld [vmem:[%s5 + $0x620] sm:$0xff]
      %v8675 = vld [vmem:[%s5 + $0x628] sm:$0xf]
      %v8676 = vld [vmem:[%s5 + $0x62c] sm:$0xff]
      %v8677 = vld [vmem:[%s5 + $0x634] sm:$0xff]
      %v8678 = vld [vmem:[%s5 + $0x63c] sm:$0xf]
      %v8679 = vld [vmem:[%s5 + $0x640] sm:$0xff]
      %v8680 = vld [vmem:[%s5 + $0x648] sm:$0xff]
      %v8681 = vld [vmem:[%s5 + $0x650] sm:$0xf]
      %v8682 = vld [vmem:[%s5 + $0x654] sm:$0xff]
      %v8683 = vld [vmem:[%s5 + $0x65c] sm:$0xff]
      %v8684 = vld [vmem:[%s5 + $0x664] sm:$0xf]
      %v8685 = vld [vmem:[%s5 + $0x668] sm:$0xff]
      %v8686 = vld [vmem:[%s5 + $0x670] sm:$0xff]
      %v8687 = vld [vmem:[%s5 + $0x678] sm:$0xf]
      %v8688 = vld [vmem:[%s5 + $0x67c] sm:$0xff]
      %v8689 = vld [vmem:[%s5 + $0x684] sm:$0xff]
      %v8690 = vld [vmem:[%s5 + $0x68c] sm:$0xf]
      %v8691 = vld [vmem:[%s5 + $0x690] sm:$0xff]
      %v8692 = vld [vmem:[%s5 + $0x698] sm:$0xff]
      %v8693 = vld [vmem:[%s5 + $0x6a0] sm:$0xf]
      %v8694 = vld [vmem:[%s5 + $0x6a4] sm:$0xff]
      %v8695 = vld [vmem:[%s5 + $0x6ac] sm:$0xff]
      %v8696 = vld [vmem:[%s5 + $0x6b4] sm:$0xf]
      %v8697 = vld [vmem:[%s5 + $0x6b8] sm:$0xff]
      %v8698 = vld [vmem:[%s5 + $0x6c0] sm:$0xff]
      %v8699 = vld [vmem:[%s5 + $0x6c8] sm:$0xf]
      %v8700 = vld [vmem:[%s5 + $0x6cc] sm:$0xff]
      %v8701 = vld [vmem:[%s5 + $0x6d4] sm:$0xff]
      %v8702 = vld [vmem:[%s5 + $0x6dc] sm:$0xf]
      %s8703 = scalar_lea.vmem %s6, 480
      %v8704 = vld [vmem:[%s8703] ss:$8 sm:$0xf]
      %v8705 = vld [vmem:[%s8703] ss:$8 sm:$0x10]
      %v8706 = vor.u32 %v8704, %v8705
      %v8707 = vpack.c.bf16 %v8666, %v8666
      %v8709 = vperm.slane %v8706, 0
      %v8710 = vperm.slane %v8706, 1
      %v8711 = vperm.slane %v8706, 2
      %v8712 = vperm.slane %v8706, 3
      %v8713 = vperm.slane %v8706, 4
      %v8755 = vunpack.c.l.b16 %v8667
      %v8756 = vunpack.c.h.b16 %v8667
      %v8757 = vunpack.c.l.b16 %v8668
      %v8758 = vunpack.c.h.b16 %v8668
      %v8759 = vunpack.c.l.b16 %v8669
      %v8760 = vunpack.c.l.b16 %v8670
      %v8761 = vunpack.c.h.b16 %v8670
      %v8762 = vunpack.c.l.b16 %v8671
      %v8763 = vunpack.c.h.b16 %v8671
      %v8764 = vunpack.c.l.b16 %v8672
      %v8765 = vunpack.c.l.b16 %v8673
      %v8766 = vunpack.c.h.b16 %v8673
      %v8767 = vunpack.c.l.b16 %v8674
      %v8768 = vunpack.c.h.b16 %v8674
      %v8769 = vunpack.c.l.b16 %v8675
      %v8770 = vunpack.c.l.b16 %v8676
      %v8771 = vunpack.c.h.b16 %v8676
      %v8772 = vunpack.c.l.b16 %v8677
      %v8773 = vunpack.c.h.b16 %v8677
      %v8774 = vunpack.c.l.b16 %v8678
      %v8775 = vunpack.c.l.b16 %v8679
      %v8776 = vunpack.c.h.b16 %v8679
      %v8777 = vunpack.c.l.b16 %v8680
      %v8778 = vunpack.c.h.b16 %v8680
      %v8779 = vunpack.c.l.b16 %v8681
      %v8780 = vunpack.c.l.b16 %v8682
      %v8781 = vunpack.c.h.b16 %v8682
      %v8782 = vunpack.c.l.b16 %v8683
      %v8783 = vunpack.c.h.b16 %v8683
      %v8784 = vunpack.c.l.b16 %v8684
      %v8785 = vunpack.c.l.b16 %v8685
      %v8786 = vunpack.c.h.b16 %v8685
      %v8787 = vunpack.c.l.b16 %v8686
      %v8788 = vunpack.c.h.b16 %v8686
      %v8789 = vunpack.c.l.b16 %v8687
      %v8790 = vunpack.c.l.b16 %v8688
      %v8791 = vunpack.c.h.b16 %v8688
      %v8792 = vunpack.c.l.b16 %v8689
      %v8793 = vunpack.c.h.b16 %v8689
      %v8794 = vunpack.c.l.b16 %v8690
      %v8795 = vunpack.c.l.b16 %v8691
      %v8796 = vunpack.c.h.b16 %v8691
      %v8797 = vunpack.c.l.b16 %v8692
      %v8798 = vunpack.c.h.b16 %v8692
      %v8799 = vunpack.c.l.b16 %v8693
      %v8800 = vunpack.c.l.b16 %v8694
      %v8801 = vunpack.c.h.b16 %v8694
      %v8802 = vunpack.c.l.b16 %v8695
      %v8803 = vunpack.c.h.b16 %v8695
      %v8804 = vunpack.c.l.b16 %v8696
      %v8805 = vunpack.c.l.b16 %v8697
      %v8806 = vunpack.c.h.b16 %v8697
      %v8807 = vunpack.c.l.b16 %v8698
      %v8808 = vunpack.c.h.b16 %v8698
      %v8809 = vunpack.c.l.b16 %v8699
      %v8810 = vunpack.c.l.b16 %v8700
      %v8811 = vunpack.c.h.b16 %v8700
      %v8812 = vunpack.c.l.b16 %v8701
      %v8813 = vunpack.c.h.b16 %v8701
      %v8814 = vunpack.c.l.b16 %v8702
      %v8815 = vpack.c.b16 %v8760, %v8755
      %v8816 = vpack.c.b16 %v8761, %v8756
      %v8817 = vpack.c.b16 %v8762, %v8757
      %v8818 = vpack.c.b16 %v8763, %v8758
      %v8819 = vpack.c.b16 %v8764, %v8759
      %v8820 = vpack.c.b16 %v8770, %v8765
      %v8821 = vpack.c.b16 %v8771, %v8766
      %v8822 = vpack.c.b16 %v8772, %v8767
      %v8823 = vpack.c.b16 %v8773, %v8768
      %v8824 = vpack.c.b16 %v8774, %v8769
      %v8825 = vpack.c.b16 %v8780, %v8775
      %v8826 = vpack.c.b16 %v8781, %v8776
      %v8827 = vpack.c.b16 %v8782, %v8777
      %v8828 = vpack.c.b16 %v8783, %v8778
      %v8829 = vpack.c.b16 %v8784, %v8779
      %v8830 = vpack.c.b16 %v8790, %v8785
      %v8831 = vpack.c.b16 %v8791, %v8786
      %v8832 = vpack.c.b16 %v8792, %v8787
      %v8833 = vpack.c.b16 %v8793, %v8788
      %v8834 = vpack.c.b16 %v8794, %v8789
      %v8835 = vpack.c.b16 %v8800, %v8795
      %v8836 = vpack.c.b16 %v8801, %v8796
      %v8837 = vpack.c.b16 %v8802, %v8797
      %v8838 = vpack.c.b16 %v8803, %v8798
      %v8839 = vpack.c.b16 %v8804, %v8799
      %v8840 = vpack.c.b16 %v8810, %v8805
      %v8841 = vpack.c.b16 %v8811, %v8806
      %v8842 = vpack.c.b16 %v8812, %v8807
      %v8843 = vpack.c.b16 %v8813, %v8808
      %v8844 = vpack.c.b16 %v8814, %v8809
      %v8876 = vsel %vm2589, %v8707, 0
      %8878 = vmatpush.bf16.msra.mxu0 0
      %8879 = vmatpush.bf16.msra.mxu0 0
      %8880 = vmatpush.bf16.msra.mxu0 %v8840
      %8881 = vmatpush.bf16.msra.mxu0 %v8835
      %8882 = vmatpush.bf16.msra.mxu0 %v8830
      %8883 = vmatpush.bf16.msra.mxu0 %v8825
      %8884 = vmatpush.bf16.msra.mxu0 %v8820
      %8885 = vmatpush.bf16.msra.mxu0 %v8815
      %8886 = vmatmul.bf16.gmra.mxu0 %v8876
      %v8887 = vpop.f32.mrf.mxu0
      %v8888 = vadd.f32 %v8709, %v8887
      %v8889 = vpop.f32.mrf.mxu0
      %8890 = vdwg.mxu0
      %8891 = vmatpush.bf16.msra.mxu0 0
      %8892 = vmatpush.bf16.msra.mxu0 0
      %8893 = vmatpush.bf16.msra.mxu0 %v8841
      %8894 = vmatpush.bf16.msra.mxu0 %v8836
      %8895 = vmatpush.bf16.msra.mxu0 %v8831
      %8896 = vmatpush.bf16.msra.mxu0 %v8826
      %8897 = vmatpush.bf16.msra.mxu0 %v8821
      %8898 = vmatpush.bf16.msra.mxu0 %v8816
      %8899 = vmatmul.bf16.gmra.mxu0 %v8876
      %v8900 = vpop.f32.mrf.mxu0
      %v8901 = vadd.f32 %v8710, %v8900
      %v8902 = vpop.f32.mrf.mxu0
      %8903 = vdwg.mxu0
      %8904 = vmatpush.bf16.msra.mxu0 0
      %8905 = vmatpush.bf16.msra.mxu0 0
      %8906 = vmatpush.bf16.msra.mxu0 %v8842
      %8907 = vmatpush.bf16.msra.mxu0 %v8837
      %8908 = vmatpush.bf16.msra.mxu0 %v8832
      %8909 = vmatpush.bf16.msra.mxu0 %v8827
      %8910 = vmatpush.bf16.msra.mxu0 %v8822
      %8911 = vmatpush.bf16.msra.mxu0 %v8817
      %8912 = vmatmul.bf16.gmra.mxu0 %v8876
      %v8913 = vpop.f32.mrf.mxu0
      %v8914 = vadd.f32 %v8711, %v8913
      %v8915 = vpop.f32.mrf.mxu0
      %8916 = vdwg.mxu0
      %8917 = vmatpush.bf16.msra.mxu0 0
      %8918 = vmatpush.bf16.msra.mxu0 0
      %8919 = vmatpush.bf16.msra.mxu0 %v8843
      %8920 = vmatpush.bf16.msra.mxu0 %v8838
      %8921 = vmatpush.bf16.msra.mxu0 %v8833
      %8922 = vmatpush.bf16.msra.mxu0 %v8828
      %8923 = vmatpush.bf16.msra.mxu0 %v8823
      %8924 = vmatpush.bf16.msra.mxu0 %v8818
      %8925 = vmatmul.bf16.gmra.mxu0 %v8876
      %v8926 = vpop.f32.mrf.mxu0
      %v8927 = vadd.f32 %v8712, %v8926
      %v8928 = vpop.f32.mrf.mxu0
      %8929 = vdwg.mxu0
      %8930 = vmatpush.bf16.msra.mxu0 0
      %8931 = vmatpush.bf16.msra.mxu0 0
      %8932 = vmatpush.bf16.msra.mxu0 %v8844
      %8933 = vmatpush.bf16.msra.mxu0 %v8839
      %8934 = vmatpush.bf16.msra.mxu0 %v8834
      %8935 = vmatpush.bf16.msra.mxu0 %v8829
      %8936 = vmatpush.bf16.msra.mxu0 %v8824
      %8937 = vmatpush.bf16.msra.mxu0 %v8819
      %8938 = vmatmul.bf16.gmra.mxu0 %v8876
      %v8939 = vpop.f32.mrf.mxu0
      %v8940 = vadd.f32 %v8713, %v8939
      %v8941 = vpop.f32.mrf.mxu0
      %8942 = vdwg.mxu0
      %v8943 = vadd.f32 %v8888, 3.0
      %v8944 = vadd.f32 %v8901, 3.0
      %v8945 = vadd.f32 %v8914, 3.0
      %v8946 = vadd.f32 %v8927, 3.0
      %v8947 = vadd.f32 %v8940, 3.0
      %v8948 = vmax.f32 %v8943, 0.0
      %v8949 = vmax.f32 %v8944, 0.0
      %v8950 = vmax.f32 %v8945, 0.0
      %v8951 = vmax.f32 %v8946, 0.0
      %v8952 = vmax.f32 %v8947, 0.0
      %v8953 = vmin.f32 %v8948, 6.0
      %v8954 = vmin.f32 %v8949, 6.0
      %v8955 = vmin.f32 %v8950, 6.0
      %v8956 = vmin.f32 %v8951, 6.0
      %v8957 = vmin.f32 %v8952, 6.0
      %v8958 = vmul.f32 %v8888, %v8953
      %v8959 = vmul.f32 %v8901, %v8954
      %v8960 = vmul.f32 %v8914, %v8955
      %v8961 = vmul.f32 %v8927, %v8956
      %v8962 = vmul.f32 %v8940, %v8957
      %v8963 = vmul.f32 %v8958, 0.16666667
      %v8964 = vmul.f32 %v8959, 0.16666667
      %v8965 = vmul.f32 %v8960, 0.16666667
      %v8966 = vmul.f32 %v8961, 0.16666667
      %v8967 = vmul.f32 %v8962, 0.16666667
      %v8968 = vld [vmem:[%s1 + $0x828] sm:$0xf]
      %v8969 = vld [vmem:[%s1 + $0x82c] sm:$0xf]
      %v8970 = vld [vmem:[%s1 + $0x830] sm:$0xf]
      %v8971 = vld [vmem:[%s1 + $0x834] sm:$0xf]
      %v8972 = vld [vmem:[%s1 + $0x838] sm:$0xf]
      %v8973 = vld [vmem:[%s1 + $0x83c] sm:$0xf]
      %v8974 = vld [vmem:[%s1 + $0x840] sm:$0xf]
      %v8975 = vld [vmem:[%s1 + $0x844] sm:$0xf]
      %v8976 = vld [vmem:[%s1 + $0x848] sm:$0xf]
      %v8977 = vld [vmem:[%s1 + $0x84c] sm:$0xf]
      %v8978 = vld [vmem:[%s1 + $0x850] sm:$0xf]
      %v8979 = vld [vmem:[%s1 + $0x854] sm:$0xf]
      %v8980 = vld [vmem:[%s1 + $0x858] sm:$0xf]
      %v8981 = vld [vmem:[%s1 + $0x85c] sm:$0xf]
      %v8982 = vld [vmem:[%s1 + $0x860] sm:$0xf]
      %v8983 = vld [vmem:[%s1 + $0x864] sm:$0xf]
      %v8984 = vld [vmem:[%s1 + $0x868] sm:$0xf]
      %v8985 = vld [vmem:[%s1 + $0x86c] sm:$0xf]
      %v8986 = vld [vmem:[%s1 + $0x870] sm:$0xf]
      %v8987 = vld [vmem:[%s1 + $0x874] sm:$0xf]
      %v8988 = vld [vmem:[%s1 + $0x878] sm:$0xf]
      %v8989 = vld [vmem:[%s1 + $0x87c] sm:$0xf]
      %v8990 = vld [vmem:[%s1 + $0x880] sm:$0xf]
      %v8991 = vld [vmem:[%s1 + $0x884] sm:$0xf]
      %v8992 = vld [vmem:[%s1 + $0x888] sm:$0xf]
      %v8993 = vld [vmem:[%s1 + $0x88c] sm:$0xf]
      %v8994 = vld [vmem:[%s1 + $0x890] sm:$0xf]
      %v8995 = vld [vmem:[%s1 + $0x894] sm:$0xf]
      %v8996 = vld [vmem:[%s1 + $0x898] sm:$0xf]
      %v8997 = vld [vmem:[%s1 + $0x89c] sm:$0xf]
      %v8998 = vld [vmem:[%s1 + $0x8a0] sm:$0xf]
      %v8999 = vld [vmem:[%s1 + $0x8a4] sm:$0xf]
      %v9000 = vld [vmem:[%s1 + $0x8a8] sm:$0xf]
      %v9001 = vld [vmem:[%s1 + $0x8ac] sm:$0xf]
      %v9002 = vld [vmem:[%s1 + $0x8b0] sm:$0xf]
      %v9003 = vld [vmem:[%s1 + $0x8b4] sm:$0xf]
      %v9004 = vld [vmem:[%s1 + $0x8b8] sm:$0xf]
      %v9005 = vld [vmem:[%s1 + $0x8bc] sm:$0xf]
      %v9006 = vld [vmem:[%s1 + $0x8c0] sm:$0xf]
      %v9007 = vld [vmem:[%s1 + $0x8c4] sm:$0xf]
      %v9008 = vld [vmem:[%s1 + $0x8c8] sm:$0xf]
      %v9009 = vld [vmem:[%s1 + $0x8cc] sm:$0xf]
      %v9010 = vld [vmem:[%s1 + $0x8d0] sm:$0xf]
      %v9011 = vld [vmem:[%s1 + $0x8d4] sm:$0xf]
      %v9012 = vld [vmem:[%s1 + $0x8d8] sm:$0xf]
      %v9013 = vld [vmem:[%s1 + $0x8dc] sm:$0xf]
      %v9014 = vld [vmem:[%s1 + $0x8e0] sm:$0xf]
      %v9015 = vld [vmem:[%s1 + $0x8e4] sm:$0xf]
      %v9016 = vld [vmem:[%s1 + $0x8e8] sm:$0xf]
      %v9017 = vld [vmem:[%s1 + $0x8ec] sm:$0xf]
      %v9018 = vld [vmem:[%s1 + $0x8f0] sm:$0xf]
      %v9019 = vld [vmem:[%s1 + $0x8f4] sm:$0xf]
      %v9020 = vld [vmem:[%s1 + $0x8f8] sm:$0xf]
      %v9021 = vld [vmem:[%s1 + $0x8fc] sm:$0xf]
      %v9022 = vld [vmem:[%s1 + $0x900] sm:$0xf]
      %v9023 = vld [vmem:[%s1 + $0x904] sm:$0xf]
      %v9024 = vld [vmem:[%s1 + $0x908] sm:$0xf]
      %v9025 = vld [vmem:[%s1 + $0x90c] sm:$0xf]
      %v9026 = vld [vmem:[%s1 + $0x910] sm:$0xf]
      %v9027 = vld [vmem:[%s1 + $0x914] sm:$0xf]
      %v9028 = vld [vmem:[%s1 + $0x918] sm:$0xf]
      %v9029 = vld [vmem:[%s1 + $0x91c] sm:$0xf]
      %v9030 = vld [vmem:[%s1 + $0x920] sm:$0xf]
      %v9031 = vld [vmem:[%s1 + $0x924] sm:$0xf]
      %v9032 = vld [vmem:[%s1 + $0x928] sm:$0xf]
      %v9033 = vld [vmem:[%s1 + $0x92c] sm:$0xf]
      %v9034 = vld [vmem:[%s1 + $0x930] sm:$0xf]
      %v9035 = vld [vmem:[%s1 + $0x934] sm:$0xf]
      %v9036 = vld [vmem:[%s1 + $0x938] sm:$0xf]
      %v9037 = vld [vmem:[%s1 + $0x93c] sm:$0xf]
      %v9038 = vld [vmem:[%s1 + $0x940] sm:$0xf]
      %v9039 = vld [vmem:[%s1 + $0x944] sm:$0xf]
      %v9040 = vld [vmem:[%s2 + $0x138] sm:$0x1]
      %v9041 = vpack.c.bf16 %v8963, %v8963
      %v9042 = vpack.c.bf16 %v8964, %v8964
      %v9043 = vpack.c.bf16 %v8965, %v8965
      %v9044 = vpack.c.bf16 %v8966, %v8966
      %v9045 = vpack.c.bf16 %v8967, %v8967
      %v9046 = vperm.slane %v9040, 0
      %v9119 = vunpack.c.l.b16 %v8968
      %v9120 = vunpack.c.l.b16 %v8969
      %v9121 = vunpack.c.l.b16 %v8970
      %v9122 = vunpack.c.l.b16 %v8971
      %v9123 = vunpack.c.l.b16 %v8972
      %v9124 = vunpack.c.l.b16 %v8973
      %v9125 = vunpack.c.l.b16 %v8974
      %v9126 = vunpack.c.l.b16 %v8975
      %v9127 = vunpack.c.l.b16 %v8976
      %v9128 = vunpack.c.l.b16 %v8977
      %v9129 = vunpack.c.l.b16 %v8978
      %v9130 = vunpack.c.l.b16 %v8979
      %v9131 = vunpack.c.l.b16 %v8980
      %v9132 = vunpack.c.l.b16 %v8981
      %v9133 = vunpack.c.l.b16 %v8982
      %v9134 = vunpack.c.l.b16 %v8983
      %v9135 = vunpack.c.l.b16 %v8984
      %v9136 = vunpack.c.l.b16 %v8985
      %v9137 = vunpack.c.l.b16 %v8986
      %v9138 = vunpack.c.l.b16 %v8987
      %v9139 = vunpack.c.l.b16 %v8988
      %v9140 = vunpack.c.l.b16 %v8989
      %v9141 = vunpack.c.l.b16 %v8990
      %v9142 = vunpack.c.l.b16 %v8991
      %v9143 = vunpack.c.l.b16 %v8992
      %v9144 = vunpack.c.l.b16 %v8993
      %v9145 = vunpack.c.l.b16 %v8994
      %v9146 = vunpack.c.l.b16 %v8995
      %v9147 = vunpack.c.l.b16 %v8996
      %v9148 = vunpack.c.l.b16 %v8997
      %v9149 = vunpack.c.l.b16 %v8998
      %v9150 = vunpack.c.l.b16 %v8999
      %v9151 = vunpack.c.l.b16 %v9000
      %v9152 = vunpack.c.l.b16 %v9001
      %v9153 = vunpack.c.l.b16 %v9002
      %v9154 = vunpack.c.l.b16 %v9003
      %v9155 = vunpack.c.l.b16 %v9004
      %v9156 = vunpack.c.l.b16 %v9005
      %v9157 = vunpack.c.l.b16 %v9006
      %v9158 = vunpack.c.l.b16 %v9007
      %v9159 = vunpack.c.l.b16 %v9008
      %v9160 = vunpack.c.l.b16 %v9009
      %v9161 = vunpack.c.l.b16 %v9010
      %v9162 = vunpack.c.l.b16 %v9011
      %v9163 = vunpack.c.l.b16 %v9012
      %v9164 = vunpack.c.l.b16 %v9013
      %v9165 = vunpack.c.l.b16 %v9014
      %v9166 = vunpack.c.l.b16 %v9015
      %v9167 = vunpack.c.l.b16 %v9016
      %v9168 = vunpack.c.l.b16 %v9017
      %v9169 = vunpack.c.l.b16 %v9018
      %v9170 = vunpack.c.l.b16 %v9019
      %v9171 = vunpack.c.l.b16 %v9020
      %v9172 = vunpack.c.l.b16 %v9021
      %v9173 = vunpack.c.l.b16 %v9022
      %v9174 = vunpack.c.l.b16 %v9023
      %v9175 = vunpack.c.l.b16 %v9024
      %v9176 = vunpack.c.l.b16 %v9025
      %v9177 = vunpack.c.l.b16 %v9026
      %v9178 = vunpack.c.l.b16 %v9027
      %v9179 = vunpack.c.l.b16 %v9028
      %v9180 = vunpack.c.l.b16 %v9029
      %v9181 = vunpack.c.l.b16 %v9030
      %v9182 = vunpack.c.l.b16 %v9031
      %v9183 = vunpack.c.l.b16 %v9032
      %v9184 = vunpack.c.l.b16 %v9033
      %v9185 = vunpack.c.l.b16 %v9034
      %v9186 = vunpack.c.l.b16 %v9035
      %v9187 = vunpack.c.l.b16 %v9036
      %v9188 = vunpack.c.l.b16 %v9037
      %v9189 = vunpack.c.l.b16 %v9038
      %v9190 = vunpack.c.l.b16 %v9039
      %v9191 = vpack.c.b16 %v9120, %v9119
      %v9192 = vpack.c.b16 %v9122, %v9121
      %v9193 = vpack.c.b16 %v9124, %v9123
      %v9194 = vpack.c.b16 %v9126, %v9125
      %v9195 = vpack.c.b16 %v9128, %v9127
      %v9196 = vpack.c.b16 %v9130, %v9129
      %v9197 = vpack.c.b16 %v9132, %v9131
      %v9198 = vpack.c.b16 %v9134, %v9133
      %v9199 = vpack.c.b16 %v9136, %v9135
      %v9200 = vpack.c.b16 %v9138, %v9137
      %v9201 = vpack.c.b16 %v9140, %v9139
      %v9202 = vpack.c.b16 %v9142, %v9141
      %v9203 = vpack.c.b16 %v9144, %v9143
      %v9204 = vpack.c.b16 %v9146, %v9145
      %v9205 = vpack.c.b16 %v9148, %v9147
      %v9206 = vpack.c.b16 %v9150, %v9149
      %v9207 = vpack.c.b16 %v9152, %v9151
      %v9208 = vpack.c.b16 %v9154, %v9153
      %v9209 = vpack.c.b16 %v9156, %v9155
      %v9210 = vpack.c.b16 %v9158, %v9157
      %v9211 = vpack.c.b16 %v9160, %v9159
      %v9212 = vpack.c.b16 %v9162, %v9161
      %v9213 = vpack.c.b16 %v9164, %v9163
      %v9214 = vpack.c.b16 %v9166, %v9165
      %v9215 = vpack.c.b16 %v9168, %v9167
      %v9216 = vpack.c.b16 %v9170, %v9169
      %v9217 = vpack.c.b16 %v9172, %v9171
      %v9218 = vpack.c.b16 %v9174, %v9173
      %v9219 = vpack.c.b16 %v9176, %v9175
      %v9220 = vpack.c.b16 %v9178, %v9177
      %v9221 = vpack.c.b16 %v9180, %v9179
      %v9222 = vpack.c.b16 %v9182, %v9181
      %v9223 = vpack.c.b16 %v9184, %v9183
      %v9224 = vpack.c.b16 %v9186, %v9185
      %v9225 = vpack.c.b16 %v9188, %v9187
      %v9226 = vpack.c.b16 %v9190, %v9189
      %v9264 = vsel %vm1944, %v9045, 0
      %9266 = vmatpush.bf16.msra.mxu0 %v9198
      %9267 = vmatpush.bf16.msra.mxu0 %v9197
      %9268 = vmatpush.bf16.msra.mxu0 %v9196
      %9269 = vmatpush.bf16.msra.mxu0 %v9195
      %9270 = vmatpush.bf16.msra.mxu0 %v9194
      %9271 = vmatpush.bf16.msra.mxu0 %v9193
      %9272 = vmatpush.bf16.msra.mxu0 %v9192
      %9273 = vmatpush.bf16.msra.mxu0 %v9191
      %9274 = vmatmul.bf16.gmra.mxu0 %v9041
      %v9275 = vpop.f32.mrf.mxu0
      %v9276 = vadd.f32 %v9046, %v9275
      %v9277 = vpop.f32.mrf.mxu0
      %9278 = vdwg.mxu0
      %9279 = vmatpush.bf16.msra.mxu0 %v9206
      %9280 = vmatpush.bf16.msra.mxu0 %v9205
      %9281 = vmatpush.bf16.msra.mxu0 %v9204
      %9282 = vmatpush.bf16.msra.mxu0 %v9203
      %9283 = vmatpush.bf16.msra.mxu0 %v9202
      %9284 = vmatpush.bf16.msra.mxu0 %v9201
      %9285 = vmatpush.bf16.msra.mxu0 %v9200
      %9286 = vmatpush.bf16.msra.mxu0 %v9199
      %9287 = vmatmul.bf16.gmra.mxu0 %v9042
      %v9288 = vpop.f32.mrf.mxu0
      %v9289 = vadd.f32 %v9276, %v9288
      %v9290 = vpop.f32.mrf.mxu0
      %9291 = vdwg.mxu0
      %9292 = vmatpush.bf16.msra.mxu0 %v9214
      %9293 = vmatpush.bf16.msra.mxu0 %v9213
      %9294 = vmatpush.bf16.msra.mxu0 %v9212
      %9295 = vmatpush.bf16.msra.mxu0 %v9211
      %9296 = vmatpush.bf16.msra.mxu0 %v9210
      %9297 = vmatpush.bf16.msra.mxu0 %v9209
      %9298 = vmatpush.bf16.msra.mxu0 %v9208
      %9299 = vmatpush.bf16.msra.mxu0 %v9207
      %9300 = vmatmul.bf16.gmra.mxu0 %v9043
      %v9301 = vpop.f32.mrf.mxu0
      %v9302 = vadd.f32 %v9289, %v9301
      %v9303 = vpop.f32.mrf.mxu0
      %9304 = vdwg.mxu0
      %9305 = vmatpush.bf16.msra.mxu0 %v9222
      %9306 = vmatpush.bf16.msra.mxu0 %v9221
      %9307 = vmatpush.bf16.msra.mxu0 %v9220
      %9308 = vmatpush.bf16.msra.mxu0 %v9219
      %9309 = vmatpush.bf16.msra.mxu0 %v9218
      %9310 = vmatpush.bf16.msra.mxu0 %v9217
      %9311 = vmatpush.bf16.msra.mxu0 %v9216
      %9312 = vmatpush.bf16.msra.mxu0 %v9215
      %9313 = vmatmul.bf16.gmra.mxu0 %v9044
      %v9314 = vpop.f32.mrf.mxu0
      %v9315 = vadd.f32 %v9302, %v9314
      %v9316 = vpop.f32.mrf.mxu0
      %9317 = vdwg.mxu0
      %9318 = vmatpush.bf16.msra.mxu0 0
      %9319 = vmatpush.bf16.msra.mxu0 0
      %9320 = vmatpush.bf16.msra.mxu0 0
      %9321 = vmatpush.bf16.msra.mxu0 0
      %9322 = vmatpush.bf16.msra.mxu0 %v9226
      %9323 = vmatpush.bf16.msra.mxu0 %v9225
      %9324 = vmatpush.bf16.msra.mxu0 %v9224
      %9325 = vmatpush.bf16.msra.mxu0 %v9223
      %9326 = vmatmul.bf16.gmra.mxu0 %v9264
      %v9327 = vpop.f32.mrf.mxu0
      %v9328 = vadd.f32 %v9315, %v9327
      %v9329 = vpop.f32.mrf.mxu0
      %9330 = vdwg.mxu0
      %v9331 = vxor.u32 %v9328, 2147483648
      %v9332 = vmul.f32 %v9331, 1.442695
      %v9333 = vpow.pop %v9332
      %v9334 = vadd.f32 %v9333, 1.0
      %v9335 = vrcp.pop %v9334
      %v9336 = vmul.f32 %v9334, %v9335
      %v9337 = vsub.f32 1.0, %v9336
      %v9338 = vmul.f32 %v9335, %v9337
      %v9339 = vadd.f32 %v9335, %v9338
      %vm9340 = vweird.f32 %v9334
      %vm9341 = vweird.f32 %v9335
      %vm9342 = vmor %vm9340, %vm9341
      %v9343 = vsel %vm9342, %v9335, %v9339
      %v9344 = vand.u32 2147483647, %v9334
      %vm9345 = vcmp.eq.f32.partialorder %v9344, 8.507059e+37
      %v9346 = vand.u32 %v9334, 2147483648
      %v9347 = vor.u32 1.1754944e-38, %v9346
      %v9348 = vsel %vm9345, %v9347, %v9343
      %v9349 = vmul.f32 1.0, %v9348
      %9351 = vset.pattern.permute.xlu0 0
      %9352 = vperm.xlu0 %9351, %v9349
      %v9353 = vpop.permute.xlu0 %9352
      %v9355 = vsel %vm1723, %v9353, 0.0
      %9356 = vst [vmem:[%s276] sm:$0xff] %v9355
      %p9357 = scmp.lt.s32.totalorder %s18, 1
      %s9358 = scalar_select %p9357, %s18, 1
      %s9359 = smul.addr %s9358, 8
      %s9360 = scalar_lea.vmem %s7, %s9359
      // Predicated region
      $region49: #{discriminator_forward.1} parent=47 // pred_check
        %p9361 = pneg %p188
      $region50: #{discriminator_forward.1} parent=47 // pred_check_branch
        %9363 = sbr.rel (%p9361) target = $region52
      $region51: #{discriminator_forward.1} parent=47 // pred_region
        _
      $region52: #{discriminator_forward.1} parent=47 // pred_fallthru
        _
    $region48: #{discriminator_forward.1} parent=5 // pred_fallthru
      _
    %p9364 = scmp.le.s32.totalorder 2, %s13
    // Predicated region
    $region53: #{discriminator_forward.1} parent=5 // pred_check
      %p9365 = pneg %p9364
    $region54: #{discriminator_forward.1} parent=5 // pred_check_branch
      %9367 = sbr.rel (%p9365) target = $region56
    $region55: #{discriminator_forward.1} parent=5 // pred_region
      %s9368 = ssub.s32 %s13, 2
      // Predicated region
      $region57: #{discriminator_forward.1} parent=55 // pred_check
        %p9369 = pneg %p194
      $region58: #{discriminator_forward.1} parent=55 // pred_check_branch
        %9371 = sbr.rel (%p9369) target = $region60
      $region59: #{discriminator_forward.1} parent=55 // pred_region
        %p9372 = scmp.lt.s32.totalorder %s19, 1
        %s9373 = scalar_select %p9372, %s19, 1
        %s9374 = smul.addr %s9373, 8
        %s9375 = scalar_lea.vmem %s7, %s9374
      $region60: #{discriminator_forward.1} parent=55 // pred_fallthru
        _
    $region56: #{discriminator_forward.1} parent=5 // pred_fallthru
      _
  $region6: #{discriminator_forward.1} parent=0 // loop_footer
    %s17 = sadd.s32 1, %s13
  $region7: #{discriminator_forward.1} parent=0 // loop_footer_branch
    %12 = sbr.rel target = $region3
  $region8: #{discriminator_forward.1} parent=0 // loop_exit
    _

</llo_original>
